<compile_context>
chip_gen: v7x
topology: tpu7x:2x2x1
jax: 0.10.0
libtpu: 0.0.40
codegen_flags: <defaults>
</compile_context>

<pallas_src>
import functools

import jax
import jax.numpy as jnp
from jax import lax
from jax.experimental import pallas as pl
from jax.experimental.pallas import tpu as pltpu


def _residual_conv_block_kernel(n_stages, D, H, P, WC, *refs):
    """refs = (x_ref, T0, b0, ..., T_{n-1}, b_{n-1}, o_ref, pad_ref).

    Layouts (lane dim = W*C everywhere):
      x_ref  : (1, R, WC) bf16, R = (D+2)*P + 2, "flat padded" rows dd*P + hh of
               the zero-D/H-padded input (plus 2 zero spill rows at the end).
      o_ref  : (1, D*P, WC) f32; row d*P + h holds out[d, h] for h < H (the two
               rows per plane with h >= H are junk and stripped by the wrapper).
      pad_ref: (R, WC) bf16 scratch holding the previous stage's padded
               activation in the same flat layout.
    """
    x_ref = refs[0]
    t_refs = [refs[1 + 2 * s] for s in range(n_stages)]   # (9, WC, WC) bf16
    b_refs = [refs[2 + 2 * s] for s in range(n_stages)]   # (1, WC) f32
    o_ref = refs[1 + 2 * n_stages]
    pad_ref = refs[2 + 2 * n_stages]

    DP = D * P
    R = (D + 2) * P + 2

    if n_stages > 1:
        # Halo-only zeroing (every grid step; never program_id-gated): the
        # interior rows [P+1, P+1+DP) are fully rewritten by each stage's
        # store, so only the outer halo needs zeros.
        pad_ref[0:P + 1, :] = jnp.zeros((P + 1, WC), pad_ref.dtype)
        pad_ref[P + 1 + DP:R, :] = jnp.zeros((R - (P + 1 + DP), WC), pad_ref.dtype)

        # Rows r with (r % P) < H are real output rows; the other 2 rows per
        # plane are the H-halo rows of the next stage's padded activation and
        # must be written back as zeros.
        row = lax.broadcasted_iota(jnp.int32, (DP, 1), 0)
        interior = (row % P) < H                           # (DP, 1) bool

    for stage in range(n_stages):
        # f32 register accumulator initialised with the lane-tiled bias;
        # no VMEM accumulator, no read-modify-write.
        acc = jnp.broadcast_to(b_refs[stage][...], (DP, WC))

        for kd in range(3):
            for kh in range(3):
                off = kd * P + kh                          # static sublane offset
                if stage == 0:
                    lhs = x_ref[0, off:off + DP, :]        # contiguous ref slice
                else:
                    lhs = pad_ref[off:off + DP, :]
                # bf16 x bf16 -> f32 MXU matmul, M=DP, K=N=WC
                acc = acc + lax.dot_general(
                    lhs, t_refs[stage][kd * 3 + kh],
                    dimension_numbers=(((1,), (0,)), ((), ())),
                    preferred_element_type=jnp.float32)

        if stage != n_stages - 1:
            out = jnp.maximum(acc, 0.0)                    # inter-stage ReLU
            out = jnp.where(interior, out, 0.0)            # keep H-halo rows zero
            pad_ref[P + 1:P + 1 + DP, :] = out.astype(pad_ref.dtype)
        else:
            # residual add in f32 + final ReLU, single lane-dense store
            x_res = x_ref[0, P + 1:P + 1 + DP, :].astype(jnp.float32)
            o_ref[0] = jnp.maximum(acc + x_res, 0.0).astype(o_ref.dtype)


def _build_w_toeplitz(w_oidhw, W):
    """PyTorch (Cout, Cin, 3, 3, 3) conv weight -> (9, W*Cin, W*Cout) block-
    Toeplitz over the W axis (zero padding along W baked in as zero blocks).
    First index is kd*3 + kh."""
    Cout, Cin, KD, KH, KW = w_oidhw.shape
    wt = jnp.transpose(w_oidhw, (2, 3, 4, 1, 0))           # (kd, kh, kw, Cin, Cout)
    T = jnp.zeros((KD, KH, W * Cin, W * Cout), w_oidhw.dtype)
    for w_out in range(W):
        for kw in range(KW):
            w_in = w_out + kw - 1                          # padding = 1
            if 0 <= w_in < W:
                T = T.at[:, :, w_in * Cin:(w_in + 1) * Cin,
                               w_out * Cout:(w_out + 1) * Cout].set(wt[:, :, kw])
    return T.reshape(KD * KH, W * Cin, W * Cout)


def residual_conv_block_ncdhw(x_ncdhw, weights_oidhw, biases):
    """ResidualConvBlock forward (normalization='none'), PyTorch NCDHW layout.
    Activations travel as bf16 (deliberate perf choice); weights are bf16 on
    the MXU with f32 accumulation; the residual add and output are f32."""
    N, C, D, H, W = x_ncdhw.shape
    n_stages = len(weights_oidhw)
    for w in weights_oidhw:
        assert w.shape[0] == C and w.shape[1] == C, "residual block needs Cin == Cout"

    WC = W * C
    P = H + 2
    DP = D * P
    R = (D + 2) * P + 2

    # channels-last with (W, C) fused into the lane dim -> lane-dense, bf16
    x_lane = jnp.transpose(x_ncdhw, (0, 2, 3, 4, 1)).reshape(N, D, H, WC)
    x_lane = x_lane.astype(jnp.bfloat16)
    # Bake the D/H zero halo (+2 spill rows) into the HBM layout so stage 0
    # reads taps straight from the input block (no in-kernel copy).
    x_pad = jnp.pad(x_lane, ((0, 0), (1, 1), (1, 1), (0, 0)))
    x_flat = jnp.pad(x_pad.reshape(N, (D + 2) * P, WC), ((0, 0), (0, 2), (0, 0)))

    # Toeplitz weights (bf16 for the MXU) and lane-tiled biases (f32), built once.
    t_ws = [_build_w_toeplitz(w, W).astype(jnp.bfloat16) for w in weights_oidhw]
    b_ts = [jnp.tile(b.astype(jnp.float32), W).reshape(1, WC) for b in biases]

    kernel = functools.partial(_residual_conv_block_kernel, n_stages, D, H, P, WC)
    args = [x_flat] + [a for s in range(n_stages) for a in (t_ws[s], b_ts[s])]

    def build(single_buffer_weights):
        wkw = dict(pipeline_mode=pl.Buffered(1)) if single_buffer_weights else {}
        in_specs = [pl.BlockSpec((1, R, WC), lambda n: (n, 0, 0))]
        for _ in range(n_stages):
            # Grid-invariant, whole-array resident weight / bias blocks.
            in_specs.append(pl.BlockSpec((9, WC, WC), lambda n: (0, 0, 0), **wkw))
            in_specs.append(pl.BlockSpec((1, WC), lambda n: (0, 0), **wkw))
        out_spec = pl.BlockSpec((1, DP, WC), lambda n: (n, 0, 0))
        return pl.pallas_call(
            kernel,
            out_shape=jax.ShapeDtypeStruct((N, DP, WC), jnp.float32),
            grid_spec=pltpu.PrefetchScalarGridSpec(
                num_scalar_prefetch=0,
                grid=(N,),
                in_specs=in_specs,
                out_specs=out_spec,
                scratch_shapes=[pltpu.VMEM((R, WC), jnp.bfloat16)],
            ),
            compiler_params=pltpu.CompilerParams(
                dimension_semantics=("parallel",)),
        )

    try:
        y_flat = jax.block_until_ready(build(True)(*args))
    except Exception:
        # Fallback if single-buffered pipeline_mode is unsupported in this jax.
        y_flat = build(False)(*args)

    # strip the junk (H-halo) rows and go back to PyTorch NCDHW
    y = y_flat.reshape(N, D, P, WC)[:, :, :H, :].reshape(N, D, H, W, C)
    return jnp.transpose(y, (0, 4, 1, 2, 3))


def _reference_ncdhw(x, weights_oidhw, biases, n_stages):
    """Pure-JAX f32 reference using lax.conv_general_dilated (NCDHW)."""
    act = x
    for s in range(n_stages):
        y = lax.conv_general_dilated(
            act, weights_oidhw[s],
            window_strides=(1, 1, 1), padding=((1, 1), (1, 1), (1, 1)),
            dimension_numbers=("NCDHW", "OIDHW", "NCDHW"),
            precision=lax.Precision.HIGHEST)
        y = y + biases[s][None, :, None, None, None]
        if s != n_stages - 1:
            y = jnp.maximum(y, 0.0)
        act = y
    return jnp.maximum(act + x, 0.0)


if __name__ == "__main__":
    # Small, module-consistent shapes: residual block needs Cin == Cout;
    # C=16 (VNet base width) with W=8 makes the lane dim W*C = 128.
    N, C, D, H, W = 2, 16, 8, 8, 8
    n_stages = 2

    key = jax.random.PRNGKey(0)
    kx, *kws = jax.random.split(key, 1 + 2 * n_stages)

    x = jax.random.normal(kx, (N, C, D, H, W), dtype=jnp.float32)

    weights, biases = [], []     # PyTorch layout (Cout, Cin, 3, 3, 3)
    for s in range(n_stages):
        fan_in = C * 3 * 3 * 3
        w = jax.random.normal(kws[2 * s], (C, C, 3, 3, 3), jnp.float32) / jnp.sqrt(fan_in)
        b = 0.01 * jax.random.normal(kws[2 * s + 1], (C,), jnp.float32)
        weights.append(w)
        biases.append(b)

    out = residual_conv_block_ncdhw(x, weights, biases)
    out = jax.block_until_ready(out)

    # The wrapper deliberately quantizes the activation stream to bf16, so the
    # reference consumes the same bf16-rounded input; the remaining tolerance
    # covers bf16 weights / intermediates on the MXU (f32 accumulation).
    x_q = x.astype(jnp.bfloat16).astype(jnp.float32)
    ref = _reference_ncdhw(x_q, weights, biases, n_stages)

    assert out.shape == (N, C, D, H, W)
    max_err = float(jnp.max(jnp.abs(out - ref)))
    assert jnp.allclose(out, ref, atol=5e-2, rtol=5e-2), (
        "mismatch vs reference (max abs err %g)" % max_err)

    print("KERNEL_OK")
</pallas_src>

<mosaic_0001>
module attributes {stable_mosaic.version = 11 : i64} {
  func.func @_residual_conv_block_kernel(%arg0: i32, %arg1: memref<1x102x128xbf16, #tpu.memory_space<vmem>>, %arg2: memref<9x128x128xbf16, #tpu.memory_space<vmem>>, %arg3: memref<1x128xf32, #tpu.memory_space<vmem>>, %arg4: memref<9x128x128xbf16, #tpu.memory_space<vmem>>, %arg5: memref<1x128xf32, #tpu.memory_space<vmem>>, %arg6: memref<1x80x128xf32, #tpu.memory_space<vmem>>, %arg7: memref<102x128xbf16, #tpu.memory_space<vmem>>) attributes {dimension_semantics = [#tpu.dimension_semantics<parallel>], iteration_bounds = array<i64: 2>, scalar_prefetch = 0 : i64, scratch_operands = 1 : i64, tpu.core_type = #tpu.core_type<tc>, window_params = [{transform_indices = @transform_0, window_bounds = array<i64: 1, 102, 128>}, {pipeline_mode = #tpu.pipeline_mode<synchronous>, transform_indices = @transform_1, window_bounds = array<i64: 9, 128, 128>}, {pipeline_mode = #tpu.pipeline_mode<synchronous>, transform_indices = @transform_2, window_bounds = array<i64: 1, 128>}, {pipeline_mode = #tpu.pipeline_mode<synchronous>, transform_indices = @transform_3, window_bounds = array<i64: 9, 128, 128>}, {pipeline_mode = #tpu.pipeline_mode<synchronous>, transform_indices = @transform_4, window_bounds = array<i64: 1, 128>}, {transform_indices = @transform_5, window_bounds = array<i64: 1, 80, 128>}]} {
    %cst = arith.constant 0.000000e+00 : bf16
    %0 = vector.broadcast %cst : bf16 to vector<11x128xbf16>
    %c0 = arith.constant 0 : index
    %c0_0 = arith.constant 0 : index
    %1 = vector.load %arg7[%c0, %c0_0] : memref<102x128xbf16, #tpu.memory_space<vmem>>, vector<11x128xbf16>
    tpu.vector_store %arg7[%c0, %c0_0], %0 {strides = array<i32>} : memref<102x128xbf16, #tpu.memory_space<vmem>>, vector<11x128xbf16>,
    %cst_1 = arith.constant 0.000000e+00 : bf16
    %2 = vector.broadcast %cst_1 : bf16 to vector<11x128xbf16>
    %c91 = arith.constant 91 : index
    %c0_2 = arith.constant 0 : index
    %3 = vector.load %arg7[%c91, %c0_2] : memref<102x128xbf16, #tpu.memory_space<vmem>>, vector<11x128xbf16>
    tpu.vector_store %arg7[%c91, %c0_2], %2 {strides = array<i32>} : memref<102x128xbf16, #tpu.memory_space<vmem>>, vector<11x128xbf16>,
    %4 = tpu.iota {dimensions = array<i32: 0>} : vector<80x1xi32>
    %c10_i32 = arith.constant 10 : i32
    %c0_i32 = arith.constant 0 : i32
    %5 = arith.cmpi eq, %c10_i32, %c0_i32 : i32
    %c1_i32 = arith.constant 1 : i32
    %6 = arith.select %5, %c1_i32, %c10_i32 : i32
    %7 = vector.broadcast %6 : i32 to vector<80x1xi32>
    %8 = arith.remsi %4, %7 : vector<80x1xi32>
    %c0_i32_3 = arith.constant 0 : i32
    %9 = vector.broadcast %c0_i32_3 : i32 to vector<80x1xi32>
    %10 = arith.cmpi ne, %8, %9 : vector<80x1xi32>
    %c0_i32_4 = arith.constant 0 : i32
    %11 = vector.broadcast %c0_i32_4 : i32 to vector<80x1xi32>
    %12 = arith.cmpi slt, %8, %11 : vector<80x1xi32>
    %c0_i32_5 = arith.constant 0 : i32
    %13 = arith.cmpi slt, %6, %c0_i32_5 : i32
    %14 = vector.broadcast %13 : i1 to vector<80x1xi1>
    %15 = vector.broadcast %14 : vector<80x1xi1> to vector<80x1xi1>
    %16 = arith.xori %12, %15 : vector<80x1xi1>
    %17 = arith.andi %16, %10 : vector<80x1xi1>
    %18 = vector.broadcast %6 : i32 to vector<80x1xi32>
    %19 = arith.addi %8, %18 : vector<80x1xi32>
    %20 = arith.select %17, %19, %8 : vector<80x1xi1>, vector<80x1xi32>
    %c8_i32 = arith.constant 8 : i32
    %21 = vector.broadcast %c8_i32 : i32 to vector<80x1xi32>
    %22 = arith.cmpi slt, %20, %21 : vector<80x1xi32>
    %c0_6 = arith.constant 0 : index
    %c0_7 = arith.constant 0 : index
    %23 = vector.load %arg3[%c0_6, %c0_7] : memref<1x128xf32, #tpu.memory_space<vmem>>, vector<1x128xf32>
    %24 = vector.shape_cast %23 : vector<1x128xf32> to vector<1x128xf32>
    %25 = vector.broadcast %24 : vector<1x128xf32> to vector<80x128xf32>
    %c0_8 = arith.constant 0 : index
    %c0_9 = arith.constant 0 : index
    %c0_10 = arith.constant 0 : index
    %26 = vector.load %arg1[%c0_8, %c0_9, %c0_10] : memref<1x102x128xbf16, #tpu.memory_space<vmem>>, vector<1x80x128xbf16>
    %27 = vector.shape_cast %26 : vector<1x80x128xbf16> to vector<80x128xbf16>
    %c0_11 = arith.constant 0 : index
    %c0_12 = arith.constant 0 : index
    %c0_13 = arith.constant 0 : index
    %28 = vector.load %arg2[%c0_11, %c0_12, %c0_13] : memref<9x128x128xbf16, #tpu.memory_space<vmem>>, vector<1x128x128xbf16>
    %29 = vector.shape_cast %28 : vector<1x128x128xbf16> to vector<128x128xbf16>
    %cst_14 = arith.constant dense<0.000000e+00> : vector<80x128xf32>
    %30 = tpu.matmul %27, %29, %cst_14 {dimension_numbers = #tpu.dot_dimension_numbers<[1], [0], [0], [1], [0, 0, 1, 1], [], []>} : vector<80x128xbf16>, vector<128x128xbf16>, vector<80x128xf32> -> vector<80x128xf32>
    %31 = arith.addf %25, %30 : vector<80x128xf32>
    %c0_15 = arith.constant 0 : index
    %c1 = arith.constant 1 : index
    %c0_16 = arith.constant 0 : index
    %32 = vector.load %arg1[%c0_15, %c1, %c0_16] : memref<1x102x128xbf16, #tpu.memory_space<vmem>>, vector<1x80x128xbf16>
    %33 = vector.shape_cast %32 : vector<1x80x128xbf16> to vector<80x128xbf16>
    %c1_17 = arith.constant 1 : index
    %c0_18 = arith.constant 0 : index
    %c0_19 = arith.constant 0 : index
    %34 = vector.load %arg2[%c1_17, %c0_18, %c0_19] : memref<9x128x128xbf16, #tpu.memory_space<vmem>>, vector<1x128x128xbf16>
    %35 = vector.shape_cast %34 : vector<1x128x128xbf16> to vector<128x128xbf16>
    %cst_20 = arith.constant dense<0.000000e+00> : vector<80x128xf32>
    %36 = tpu.matmul %33, %35, %cst_20 {dimension_numbers = #tpu.dot_dimension_numbers<[1], [0], [0], [1], [0, 0, 1, 1], [], []>} : vector<80x128xbf16>, vector<128x128xbf16>, vector<80x128xf32> -> vector<80x128xf32>
    %37 = arith.addf %31, %36 : vector<80x128xf32>
    %c0_21 = arith.constant 0 : index
    %c2 = arith.constant 2 : index
    %c0_22 = arith.constant 0 : index
    %38 = vector.load %arg1[%c0_21, %c2, %c0_22] : memref<1x102x128xbf16, #tpu.memory_space<vmem>>, vector<1x80x128xbf16>
    %39 = vector.shape_cast %38 : vector<1x80x128xbf16> to vector<80x128xbf16>
    %c2_23 = arith.constant 2 : index
    %c0_24 = arith.constant 0 : index
    %c0_25 = arith.constant 0 : index
    %40 = vector.load %arg2[%c2_23, %c0_24, %c0_25] : memref<9x128x128xbf16, #tpu.memory_space<vmem>>, vector<1x128x128xbf16>
    %41 = vector.shape_cast %40 : vector<1x128x128xbf16> to vector<128x128xbf16>
    %cst_26 = arith.constant dense<0.000000e+00> : vector<80x128xf32>
    %42 = tpu.matmul %39, %41, %cst_26 {dimension_numbers = #tpu.dot_dimension_numbers<[1], [0], [0], [1], [0, 0, 1, 1], [], []>} : vector<80x128xbf16>, vector<128x128xbf16>, vector<80x128xf32> -> vector<80x128xf32>
    %43 = arith.addf %37, %42 : vector<80x128xf32>
    %c0_27 = arith.constant 0 : index
    %c10 = arith.constant 10 : index
    %c0_28 = arith.constant 0 : index
    %44 = vector.load %arg1[%c0_27, %c10, %c0_28] : memref<1x102x128xbf16, #tpu.memory_space<vmem>>, vector<1x80x128xbf16>
    %45 = vector.shape_cast %44 : vector<1x80x128xbf16> to vector<80x128xbf16>
    %c3 = arith.constant 3 : index
    %c0_29 = arith.constant 0 : index
    %c0_30 = arith.constant 0 : index
    %46 = vector.load %arg2[%c3, %c0_29, %c0_30] : memref<9x128x128xbf16, #tpu.memory_space<vmem>>, vector<1x128x128xbf16>
    %47 = vector.shape_cast %46 : vector<1x128x128xbf16> to vector<128x128xbf16>
    %cst_31 = arith.constant dense<0.000000e+00> : vector<80x128xf32>
    %48 = tpu.matmul %45, %47, %cst_31 {dimension_numbers = #tpu.dot_dimension_numbers<[1], [0], [0], [1], [0, 0, 1, 1], [], []>} : vector<80x128xbf16>, vector<128x128xbf16>, vector<80x128xf32> -> vector<80x128xf32>
    %49 = arith.addf %43, %48 : vector<80x128xf32>
    %c0_32 = arith.constant 0 : index
    %c11 = arith.constant 11 : index
    %c0_33 = arith.constant 0 : index
    %50 = vector.load %arg1[%c0_32, %c11, %c0_33] : memref<1x102x128xbf16, #tpu.memory_space<vmem>>, vector<1x80x128xbf16>
    %51 = vector.shape_cast %50 : vector<1x80x128xbf16> to vector<80x128xbf16>
    %c4 = arith.constant 4 : index
    %c0_34 = arith.constant 0 : index
    %c0_35 = arith.constant 0 : index
    %52 = vector.load %arg2[%c4, %c0_34, %c0_35] : memref<9x128x128xbf16, #tpu.memory_space<vmem>>, vector<1x128x128xbf16>
    %53 = vector.shape_cast %52 : vector<1x128x128xbf16> to vector<128x128xbf16>
    %cst_36 = arith.constant dense<0.000000e+00> : vector<80x128xf32>
    %54 = tpu.matmul %51, %53, %cst_36 {dimension_numbers = #tpu.dot_dimension_numbers<[1], [0], [0], [1], [0, 0, 1, 1], [], []>} : vector<80x128xbf16>, vector<128x128xbf16>, vector<80x128xf32> -> vector<80x128xf32>
    %55 = arith.addf %49, %54 : vector<80x128xf32>
    %c0_37 = arith.constant 0 : index
    %c12 = arith.constant 12 : index
    %c0_38 = arith.constant 0 : index
    %56 = vector.load %arg1[%c0_37, %c12, %c0_38] : memref<1x102x128xbf16, #tpu.memory_space<vmem>>, vector<1x80x128xbf16>
    %57 = vector.shape_cast %56 : vector<1x80x128xbf16> to vector<80x128xbf16>
    %c5 = arith.constant 5 : index
    %c0_39 = arith.constant 0 : index
    %c0_40 = arith.constant 0 : index
    %58 = vector.load %arg2[%c5, %c0_39, %c0_40] : memref<9x128x128xbf16, #tpu.memory_space<vmem>>, vector<1x128x128xbf16>
    %59 = vector.shape_cast %58 : vector<1x128x128xbf16> to vector<128x128xbf16>
    %cst_41 = arith.constant dense<0.000000e+00> : vector<80x128xf32>
    %60 = tpu.matmul %57, %59, %cst_41 {dimension_numbers = #tpu.dot_dimension_numbers<[1], [0], [0], [1], [0, 0, 1, 1], [], []>} : vector<80x128xbf16>, vector<128x128xbf16>, vector<80x128xf32> -> vector<80x128xf32>
    %61 = arith.addf %55, %60 : vector<80x128xf32>
    %c0_42 = arith.constant 0 : index
    %c20 = arith.constant 20 : index
    %c0_43 = arith.constant 0 : index
    %62 = vector.load %arg1[%c0_42, %c20, %c0_43] : memref<1x102x128xbf16, #tpu.memory_space<vmem>>, vector<1x80x128xbf16>
    %63 = vector.shape_cast %62 : vector<1x80x128xbf16> to vector<80x128xbf16>
    %c6 = arith.constant 6 : index
    %c0_44 = arith.constant 0 : index
    %c0_45 = arith.constant 0 : index
    %64 = vector.load %arg2[%c6, %c0_44, %c0_45] : memref<9x128x128xbf16, #tpu.memory_space<vmem>>, vector<1x128x128xbf16>
    %65 = vector.shape_cast %64 : vector<1x128x128xbf16> to vector<128x128xbf16>
    %cst_46 = arith.constant dense<0.000000e+00> : vector<80x128xf32>
    %66 = tpu.matmul %63, %65, %cst_46 {dimension_numbers = #tpu.dot_dimension_numbers<[1], [0], [0], [1], [0, 0, 1, 1], [], []>} : vector<80x128xbf16>, vector<128x128xbf16>, vector<80x128xf32> -> vector<80x128xf32>
    %67 = arith.addf %61, %66 : vector<80x128xf32>
    %c0_47 = arith.constant 0 : index
    %c21 = arith.constant 21 : index
    %c0_48 = arith.constant 0 : index
    %68 = vector.load %arg1[%c0_47, %c21, %c0_48] : memref<1x102x128xbf16, #tpu.memory_space<vmem>>, vector<1x80x128xbf16>
    %69 = vector.shape_cast %68 : vector<1x80x128xbf16> to vector<80x128xbf16>
    %c7 = arith.constant 7 : index
    %c0_49 = arith.constant 0 : index
    %c0_50 = arith.constant 0 : index
    %70 = vector.load %arg2[%c7, %c0_49, %c0_50] : memref<9x128x128xbf16, #tpu.memory_space<vmem>>, vector<1x128x128xbf16>
    %71 = vector.shape_cast %70 : vector<1x128x128xbf16> to vector<128x128xbf16>
    %cst_51 = arith.constant dense<0.000000e+00> : vector<80x128xf32>
    %72 = tpu.matmul %69, %71, %cst_51 {dimension_numbers = #tpu.dot_dimension_numbers<[1], [0], [0], [1], [0, 0, 1, 1], [], []>} : vector<80x128xbf16>, vector<128x128xbf16>, vector<80x128xf32> -> vector<80x128xf32>
    %73 = arith.addf %67, %72 : vector<80x128xf32>
    %c0_52 = arith.constant 0 : index
    %c22 = arith.constant 22 : index
    %c0_53 = arith.constant 0 : index
    %74 = vector.load %arg1[%c0_52, %c22, %c0_53] : memref<1x102x128xbf16, #tpu.memory_space<vmem>>, vector<1x80x128xbf16>
    %75 = vector.shape_cast %74 : vector<1x80x128xbf16> to vector<80x128xbf16>
    %c8 = arith.constant 8 : index
    %c0_54 = arith.constant 0 : index
    %c0_55 = arith.constant 0 : index
    %76 = vector.load %arg2[%c8, %c0_54, %c0_55] : memref<9x128x128xbf16, #tpu.memory_space<vmem>>, vector<1x128x128xbf16>
    %77 = vector.shape_cast %76 : vector<1x128x128xbf16> to vector<128x128xbf16>
    %cst_56 = arith.constant dense<0.000000e+00> : vector<80x128xf32>
    %78 = tpu.matmul %75, %77, %cst_56 {dimension_numbers = #tpu.dot_dimension_numbers<[1], [0], [0], [1], [0, 0, 1, 1], [], []>} : vector<80x128xbf16>, vector<128x128xbf16>, vector<80x128xf32> -> vector<80x128xf32>
    %79 = arith.addf %73, %78 : vector<80x128xf32>
    %cst_57 = arith.constant 0.000000e+00 : f32
    %80 = vector.broadcast %cst_57 : f32 to vector<80x128xf32>
    %81 = arith.maximumf %79, %80 : vector<80x128xf32>
    %cst_58 = arith.constant 0.000000e+00 : f32
    %82 = vector.shape_cast %22 : vector<80x1xi1> to vector<80x1xi1>
    %83 = vector.broadcast %82 : vector<80x1xi1> to vector<80x128xi1>
    %84 = vector.broadcast %cst_58 : f32 to vector<80x128xf32>
    %85 = arith.select %83, %81, %84 : vector<80x128xi1>, vector<80x128xf32>
    %86 = arith.truncf %85 : vector<80x128xf32> to vector<80x128xbf16>
    %c11_59 = arith.constant 11 : index
    %c0_60 = arith.constant 0 : index
    %87 = vector.load %arg7[%c11_59, %c0_60] : memref<102x128xbf16, #tpu.memory_space<vmem>>, vector<80x128xbf16>
    tpu.vector_store %arg7[%c11_59, %c0_60], %86 {strides = array<i32>} : memref<102x128xbf16, #tpu.memory_space<vmem>>, vector<80x128xbf16>,
    %c0_61 = arith.constant 0 : index
    %c0_62 = arith.constant 0 : index
    %88 = vector.load %arg5[%c0_61, %c0_62] : memref<1x128xf32, #tpu.memory_space<vmem>>, vector<1x128xf32>
    %89 = vector.shape_cast %88 : vector<1x128xf32> to vector<1x128xf32>
    %90 = vector.broadcast %89 : vector<1x128xf32> to vector<80x128xf32>
    %c0_63 = arith.constant 0 : index
    %c0_64 = arith.constant 0 : index
    %91 = vector.load %arg7[%c0_63, %c0_64] : memref<102x128xbf16, #tpu.memory_space<vmem>>, vector<80x128xbf16>
    %c0_65 = arith.constant 0 : index
    %c0_66 = arith.constant 0 : index
    %c0_67 = arith.constant 0 : index
    %92 = vector.load %arg4[%c0_65, %c0_66, %c0_67] : memref<9x128x128xbf16, #tpu.memory_space<vmem>>, vector<1x128x128xbf16>
    %93 = vector.shape_cast %92 : vector<1x128x128xbf16> to vector<128x128xbf16>
    %cst_68 = arith.constant dense<0.000000e+00> : vector<80x128xf32>
    %94 = tpu.matmul %91, %93, %cst_68 {dimension_numbers = #tpu.dot_dimension_numbers<[1], [0], [0], [1], [0, 0, 1, 1], [], []>} : vector<80x128xbf16>, vector<128x128xbf16>, vector<80x128xf32> -> vector<80x128xf32>
    %95 = arith.addf %90, %94 : vector<80x128xf32>
    %c1_69 = arith.constant 1 : index
    %c0_70 = arith.constant 0 : index
    %96 = vector.load %arg7[%c1_69, %c0_70] : memref<102x128xbf16, #tpu.memory_space<vmem>>, vector<80x128xbf16>
    %c1_71 = arith.constant 1 : index
    %c0_72 = arith.constant 0 : index
    %c0_73 = arith.constant 0 : index
    %97 = vector.load %arg4[%c1_71, %c0_72, %c0_73] : memref<9x128x128xbf16, #tpu.memory_space<vmem>>, vector<1x128x128xbf16>
    %98 = vector.shape_cast %97 : vector<1x128x128xbf16> to vector<128x128xbf16>
    %cst_74 = arith.constant dense<0.000000e+00> : vector<80x128xf32>
    %99 = tpu.matmul %96, %98, %cst_74 {dimension_numbers = #tpu.dot_dimension_numbers<[1], [0], [0], [1], [0, 0, 1, 1], [], []>} : vector<80x128xbf16>, vector<128x128xbf16>, vector<80x128xf32> -> vector<80x128xf32>
    %100 = arith.addf %95, %99 : vector<80x128xf32>
    %c2_75 = arith.constant 2 : index
    %c0_76 = arith.constant 0 : index
    %101 = vector.load %arg7[%c2_75, %c0_76] : memref<102x128xbf16, #tpu.memory_space<vmem>>, vector<80x128xbf16>
    %c2_77 = arith.constant 2 : index
    %c0_78 = arith.constant 0 : index
    %c0_79 = arith.constant 0 : index
    %102 = vector.load %arg4[%c2_77, %c0_78, %c0_79] : memref<9x128x128xbf16, #tpu.memory_space<vmem>>, vector<1x128x128xbf16>
    %103 = vector.shape_cast %102 : vector<1x128x128xbf16> to vector<128x128xbf16>
    %cst_80 = arith.constant dense<0.000000e+00> : vector<80x128xf32>
    %104 = tpu.matmul %101, %103, %cst_80 {dimension_numbers = #tpu.dot_dimension_numbers<[1], [0], [0], [1], [0, 0, 1, 1], [], []>} : vector<80x128xbf16>, vector<128x128xbf16>, vector<80x128xf32> -> vector<80x128xf32>
    %105 = arith.addf %100, %104 : vector<80x128xf32>
    %c10_81 = arith.constant 10 : index
    %c0_82 = arith.constant 0 : index
    %106 = vector.load %arg7[%c10_81, %c0_82] : memref<102x128xbf16, #tpu.memory_space<vmem>>, vector<80x128xbf16>
    %c3_83 = arith.constant 3 : index
    %c0_84 = arith.constant 0 : index
    %c0_85 = arith.constant 0 : index
    %107 = vector.load %arg4[%c3_83, %c0_84, %c0_85] : memref<9x128x128xbf16, #tpu.memory_space<vmem>>, vector<1x128x128xbf16>
    %108 = vector.shape_cast %107 : vector<1x128x128xbf16> to vector<128x128xbf16>
    %cst_86 = arith.constant dense<0.000000e+00> : vector<80x128xf32>
    %109 = tpu.matmul %106, %108, %cst_86 {dimension_numbers = #tpu.dot_dimension_numbers<[1], [0], [0], [1], [0, 0, 1, 1], [], []>} : vector<80x128xbf16>, vector<128x128xbf16>, vector<80x128xf32> -> vector<80x128xf32>
    %110 = arith.addf %105, %109 : vector<80x128xf32>
    %c11_87 = arith.constant 11 : index
    %c0_88 = arith.constant 0 : index
    %111 = vector.load %arg7[%c11_87, %c0_88] : memref<102x128xbf16, #tpu.memory_space<vmem>>, vector<80x128xbf16>
    %c4_89 = arith.constant 4 : index
    %c0_90 = arith.constant 0 : index
    %c0_91 = arith.constant 0 : index
    %112 = vector.load %arg4[%c4_89, %c0_90, %c0_91] : memref<9x128x128xbf16, #tpu.memory_space<vmem>>, vector<1x128x128xbf16>
    %113 = vector.shape_cast %112 : vector<1x128x128xbf16> to vector<128x128xbf16>
    %cst_92 = arith.constant dense<0.000000e+00> : vector<80x128xf32>
    %114 = tpu.matmul %111, %113, %cst_92 {dimension_numbers = #tpu.dot_dimension_numbers<[1], [0], [0], [1], [0, 0, 1, 1], [], []>} : vector<80x128xbf16>, vector<128x128xbf16>, vector<80x128xf32> -> vector<80x128xf32>
    %115 = arith.addf %110, %114 : vector<80x128xf32>
    %c12_93 = arith.constant 12 : index
    %c0_94 = arith.constant 0 : index
    %116 = vector.load %arg7[%c12_93, %c0_94] : memref<102x128xbf16, #tpu.memory_space<vmem>>, vector<80x128xbf16>
    %c5_95 = arith.constant 5 : index
    %c0_96 = arith.constant 0 : index
    %c0_97 = arith.constant 0 : index
    %117 = vector.load %arg4[%c5_95, %c0_96, %c0_97] : memref<9x128x128xbf16, #tpu.memory_space<vmem>>, vector<1x128x128xbf16>
    %118 = vector.shape_cast %117 : vector<1x128x128xbf16> to vector<128x128xbf16>
    %cst_98 = arith.constant dense<0.000000e+00> : vector<80x128xf32>
    %119 = tpu.matmul %116, %118, %cst_98 {dimension_numbers = #tpu.dot_dimension_numbers<[1], [0], [0], [1], [0, 0, 1, 1], [], []>} : vector<80x128xbf16>, vector<128x128xbf16>, vector<80x128xf32> -> vector<80x128xf32>
    %120 = arith.addf %115, %119 : vector<80x128xf32>
    %c20_99 = arith.constant 20 : index
    %c0_100 = arith.constant 0 : index
    %121 = vector.load %arg7[%c20_99, %c0_100] : memref<102x128xbf16, #tpu.memory_space<vmem>>, vector<80x128xbf16>
    %c6_101 = arith.constant 6 : index
    %c0_102 = arith.constant 0 : index
    %c0_103 = arith.constant 0 : index
    %122 = vector.load %arg4[%c6_101, %c0_102, %c0_103] : memref<9x128x128xbf16, #tpu.memory_space<vmem>>, vector<1x128x128xbf16>
    %123 = vector.shape_cast %122 : vector<1x128x128xbf16> to vector<128x128xbf16>
    %cst_104 = arith.constant dense<0.000000e+00> : vector<80x128xf32>
    %124 = tpu.matmul %121, %123, %cst_104 {dimension_numbers = #tpu.dot_dimension_numbers<[1], [0], [0], [1], [0, 0, 1, 1], [], []>} : vector<80x128xbf16>, vector<128x128xbf16>, vector<80x128xf32> -> vector<80x128xf32>
    %125 = arith.addf %120, %124 : vector<80x128xf32>
    %c21_105 = arith.constant 21 : index
    %c0_106 = arith.constant 0 : index
    %126 = vector.load %arg7[%c21_105, %c0_106] : memref<102x128xbf16, #tpu.memory_space<vmem>>, vector<80x128xbf16>
    %c7_107 = arith.constant 7 : index
    %c0_108 = arith.constant 0 : index
    %c0_109 = arith.constant 0 : index
    %127 = vector.load %arg4[%c7_107, %c0_108, %c0_109] : memref<9x128x128xbf16, #tpu.memory_space<vmem>>, vector<1x128x128xbf16>
    %128 = vector.shape_cast %127 : vector<1x128x128xbf16> to vector<128x128xbf16>
    %cst_110 = arith.constant dense<0.000000e+00> : vector<80x128xf32>
    %129 = tpu.matmul %126, %128, %cst_110 {dimension_numbers = #tpu.dot_dimension_numbers<[1], [0], [0], [1], [0, 0, 1, 1], [], []>} : vector<80x128xbf16>, vector<128x128xbf16>, vector<80x128xf32> -> vector<80x128xf32>
    %130 = arith.addf %125, %129 : vector<80x128xf32>
    %c22_111 = arith.constant 22 : index
    %c0_112 = arith.constant 0 : index
    %131 = vector.load %arg7[%c22_111, %c0_112] : memref<102x128xbf16, #tpu.memory_space<vmem>>, vector<80x128xbf16>
    %c8_113 = arith.constant 8 : index
    %c0_114 = arith.constant 0 : index
    %c0_115 = arith.constant 0 : index
    %132 = vector.load %arg4[%c8_113, %c0_114, %c0_115] : memref<9x128x128xbf16, #tpu.memory_space<vmem>>, vector<1x128x128xbf16>
    %133 = vector.shape_cast %132 : vector<1x128x128xbf16> to vector<128x128xbf16>
    %cst_116 = arith.constant dense<0.000000e+00> : vector<80x128xf32>
    %134 = tpu.matmul %131, %133, %cst_116 {dimension_numbers = #tpu.dot_dimension_numbers<[1], [0], [0], [1], [0, 0, 1, 1], [], []>} : vector<80x128xbf16>, vector<128x128xbf16>, vector<80x128xf32> -> vector<80x128xf32>
    %135 = arith.addf %130, %134 : vector<80x128xf32>
    %c0_117 = arith.constant 0 : index
    %c11_118 = arith.constant 11 : index
    %c0_119 = arith.constant 0 : index
    %136 = vector.load %arg1[%c0_117, %c11_118, %c0_119] : memref<1x102x128xbf16, #tpu.memory_space<vmem>>, vector<1x80x128xbf16>
    %137 = vector.shape_cast %136 : vector<1x80x128xbf16> to vector<80x128xbf16>
    %138 = arith.extf %137 : vector<80x128xbf16> to vector<80x128xf32>
    %139 = arith.addf %135, %138 : vector<80x128xf32>
    %cst_120 = arith.constant 0.000000e+00 : f32
    %140 = vector.broadcast %cst_120 : f32 to vector<80x128xf32>
    %141 = arith.maximumf %139, %140 : vector<80x128xf32>
    %c0_121 = arith.constant 0 : index
    %c0_122 = arith.constant 0 : index
    %c0_123 = arith.constant 0 : index
    %142 = vector.load %arg6[%c0_121, %c0_122, %c0_123] : memref<1x80x128xf32, #tpu.memory_space<vmem>>, vector<1x80x128xf32>
    %143 = vector.shape_cast %142 : vector<1x80x128xf32> to vector<80x128xf32>
    %144 = vector.shape_cast %141 : vector<80x128xf32> to vector<1x80x128xf32>
    tpu.vector_store %arg6[%c0_121, %c0_122, %c0_123], %144 {strides = array<i32>} : memref<1x80x128xf32, #tpu.memory_space<vmem>>, vector<1x80x128xf32>,
    return
  }
  func.func @transform_0(%arg0: i32) -> (i32, i32, i32) {
    %c0_i32 = arith.constant 0 : i32
    %c0_i32_0 = arith.constant 0 : i32
    %c0_i32_1 = arith.constant 0 : i32
    return %arg0, %c0_i32, %c0_i32_0 : i32, i32, i32
  }
  func.func @transform_1(%arg0: i32) -> (i32, i32, i32) {
    %c0_i32 = arith.constant 0 : i32
    %c0_i32_0 = arith.constant 0 : i32
    %c0_i32_1 = arith.constant 0 : i32
    %c0_i32_2 = arith.constant 0 : i32
    return %c0_i32, %c0_i32_0, %c0_i32_1 : i32, i32, i32
  }
  func.func @transform_2(%arg0: i32) -> (i32, i32) {
    %c0_i32 = arith.constant 0 : i32
    %c0_i32_0 = arith.constant 0 : i32
    %c0_i32_1 = arith.constant 0 : i32
    return %c0_i32, %c0_i32_0 : i32, i32
  }
  func.func @transform_3(%arg0: i32) -> (i32, i32, i32) {
    %c0_i32 = arith.constant 0 : i32
    %c0_i32_0 = arith.constant 0 : i32
    %c0_i32_1 = arith.constant 0 : i32
    %c0_i32_2 = arith.constant 0 : i32
    return %c0_i32, %c0_i32_0, %c0_i32_1 : i32, i32, i32
  }
  func.func @transform_4(%arg0: i32) -> (i32, i32) {
    %c0_i32 = arith.constant 0 : i32
    %c0_i32_0 = arith.constant 0 : i32
    %c0_i32_1 = arith.constant 0 : i32
    return %c0_i32, %c0_i32_0 : i32, i32
  }
  func.func @transform_5(%arg0: i32) -> (i32, i32, i32) {
    %c0_i32 = arith.constant 0 : i32
    %c0_i32_0 = arith.constant 0 : i32
    %c0_i32_1 = arith.constant 0 : i32
    return %arg0, %c0_i32, %c0_i32_0 : i32, i32, i32
  }
}

module attributes {stable_mosaic.version = 11 : i64} {
  func.func @_residual_conv_block_kernel(%arg0: i32, %arg1: memref<1x102x128xbf16, #tpu.memory_space<vmem>>, %arg2: memref<9x128x128xbf16, #tpu.memory_space<vmem>>, %arg3: memref<1x128xf32, #tpu.memory_space<vmem>>, %arg4: memref<9x128x128xbf16, #tpu.memory_space<vmem>>, %arg5: memref<1x128xf32, #tpu.memory_space<vmem>>, %arg6: memref<1x80x128xf32, #tpu.memory_space<vmem>>, %arg7: memref<102x128xbf16, #tpu.memory_space<vmem>>) attributes {dimension_semantics = [#tpu.dimension_semantics<parallel>], iteration_bounds = array<i64: 2>, scalar_prefetch = 0 : i64, scratch_operands = 1 : i64, tpu.core_type = #tpu.core_type<tc>, window_params = [{transform_indices = @transform_0, window_bounds = array<i64: 1, 102, 128>}, {pipeline_mode = #tpu.pipeline_mode<synchronous>, transform_indices = @transform_1, window_bounds = array<i64: 9, 128, 128>}, {pipeline_mode = #tpu.pipeline_mode<synchronous>, transform_indices = @transform_2, window_bounds = array<i64: 1, 128>}, {pipeline_mode = #tpu.pipeline_mode<synchronous>, transform_indices = @transform_3, window_bounds = array<i64: 9, 128, 128>}, {pipeline_mode = #tpu.pipeline_mode<synchronous>, transform_indices = @transform_4, window_bounds = array<i64: 1, 128>}, {transform_indices = @transform_5, window_bounds = array<i64: 1, 80, 128>}]} {
    %cst = arith.constant 0.000000e+00 : bf16
    %0 = vector.broadcast %cst : bf16 to vector<11x128xbf16>
    %c0 = arith.constant 0 : index
    %c0_0 = arith.constant 0 : index
    %1 = vector.load %arg7[%c0, %c0_0] : memref<102x128xbf16, #tpu.memory_space<vmem>>, vector<11x128xbf16>
    tpu.vector_store %arg7[%c0, %c0_0], %0 {strides = array<i32>} : memref<102x128xbf16, #tpu.memory_space<vmem>>, vector<11x128xbf16>,
    %cst_1 = arith.constant 0.000000e+00 : bf16
    %2 = vector.broadcast %cst_1 : bf16 to vector<11x128xbf16>
    %c91 = arith.constant 91 : index
    %c0_2 = arith.constant 0 : index
    %3 = vector.load %arg7[%c91, %c0_2] : memref<102x128xbf16, #tpu.memory_space<vmem>>, vector<11x128xbf16>
    tpu.vector_store %arg7[%c91, %c0_2], %2 {strides = array<i32>} : memref<102x128xbf16, #tpu.memory_space<vmem>>, vector<11x128xbf16>,
    %4 = tpu.iota {dimensions = array<i32: 0>} : vector<80x1xi32>
    %c10_i32 = arith.constant 10 : i32
    %c0_i32 = arith.constant 0 : i32
    %5 = arith.cmpi eq, %c10_i32, %c0_i32 : i32
    %c1_i32 = arith.constant 1 : i32
    %6 = arith.select %5, %c1_i32, %c10_i32 : i32
    %7 = vector.broadcast %6 : i32 to vector<80x1xi32>
    %8 = arith.remsi %4, %7 : vector<80x1xi32>
    %c0_i32_3 = arith.constant 0 : i32
    %9 = vector.broadcast %c0_i32_3 : i32 to vector<80x1xi32>
    %10 = arith.cmpi ne, %8, %9 : vector<80x1xi32>
    %c0_i32_4 = arith.constant 0 : i32
    %11 = vector.broadcast %c0_i32_4 : i32 to vector<80x1xi32>
    %12 = arith.cmpi slt, %8, %11 : vector<80x1xi32>
    %c0_i32_5 = arith.constant 0 : i32
    %13 = arith.cmpi slt, %6, %c0_i32_5 : i32
    %14 = vector.broadcast %13 : i1 to vector<80x1xi1>
    %15 = vector.broadcast %14 : vector<80x1xi1> to vector<80x1xi1>
    %16 = arith.xori %12, %15 : vector<80x1xi1>
    %17 = arith.andi %16, %10 : vector<80x1xi1>
    %18 = vector.broadcast %6 : i32 to vector<80x1xi32>
    %19 = arith.addi %8, %18 : vector<80x1xi32>
    %20 = arith.select %17, %19, %8 : vector<80x1xi1>, vector<80x1xi32>
    %c8_i32 = arith.constant 8 : i32
    %21 = vector.broadcast %c8_i32 : i32 to vector<80x1xi32>
    %22 = arith.cmpi slt, %20, %21 : vector<80x1xi32>
    %c0_6 = arith.constant 0 : index
    %c0_7 = arith.constant 0 : index
    %23 = vector.load %arg3[%c0_6, %c0_7] : memref<1x128xf32, #tpu.memory_space<vmem>>, vector<1x128xf32>
    %24 = vector.shape_cast %23 : vector<1x128xf32> to vector<1x128xf32>
    %25 = vector.broadcast %24 : vector<1x128xf32> to vector<80x128xf32>
    %c0_8 = arith.constant 0 : index
    %c0_9 = arith.constant 0 : index
    %c0_10 = arith.constant 0 : index
    %26 = vector.load %arg1[%c0_8, %c0_9, %c0_10] : memref<1x102x128xbf16, #tpu.memory_space<vmem>>, vector<1x80x128xbf16>
    %27 = vector.shape_cast %26 : vector<1x80x128xbf16> to vector<80x128xbf16>
    %c0_11 = arith.constant 0 : index
    %c0_12 = arith.constant 0 : index
    %c0_13 = arith.constant 0 : index
    %28 = vector.load %arg2[%c0_11, %c0_12, %c0_13] : memref<9x128x128xbf16, #tpu.memory_space<vmem>>, vector<1x128x128xbf16>
    %29 = vector.shape_cast %28 : vector<1x128x128xbf16> to vector<128x128xbf16>
    %cst_14 = arith.constant dense<0.000000e+00> : vector<80x128xf32>
    %30 = tpu.matmul %27, %29, %cst_14 {dimension_numbers = #tpu.dot_dimension_numbers<[1], [0], [0], [1], [0, 0, 1, 1], [], []>} : vector<80x128xbf16>, vector<128x128xbf16>, vector<80x128xf32> -> vector<80x128xf32>
    %31 = arith.addf %25, %30 : vector<80x128xf32>
    %c0_15 = arith.constant 0 : index
    %c1 = arith.constant 1 : index
    %c0_16 = arith.constant 0 : index
    %32 = vector.load %arg1[%c0_15, %c1, %c0_16] : memref<1x102x128xbf16, #tpu.memory_space<vmem>>, vector<1x80x128xbf16>
    %33 = vector.shape_cast %32 : vector<1x80x128xbf16> to vector<80x128xbf16>
    %c1_17 = arith.constant 1 : index
    %c0_18 = arith.constant 0 : index
    %c0_19 = arith.constant 0 : index
    %34 = vector.load %arg2[%c1_17, %c0_18, %c0_19] : memref<9x128x128xbf16, #tpu.memory_space<vmem>>, vector<1x128x128xbf16>
    %35 = vector.shape_cast %34 : vector<1x128x128xbf16> to vector<128x128xbf16>
    %cst_20 = arith.constant dense<0.000000e+00> : vector<80x128xf32>
    %36 = tpu.matmul %33, %35, %cst_20 {dimension_numbers = #tpu.dot_dimension_numbers<[1], [0], [0], [1], [0, 0, 1, 1], [], []>} : vector<80x128xbf16>, vector<128x128xbf16>, vector<80x128xf32> -> vector<80x128xf32>
    %37 = arith.addf %31, %36 : vector<80x128xf32>
    %c0_21 = arith.constant 0 : index
    %c2 = arith.constant 2 : index
    %c0_22 = arith.constant 0 : index
    %38 = vector.load %arg1[%c0_21, %c2, %c0_22] : memref<1x102x128xbf16, #tpu.memory_space<vmem>>, vector<1x80x128xbf16>
    %39 = vector.shape_cast %38 : vector<1x80x128xbf16> to vector<80x128xbf16>
    %c2_23 = arith.constant 2 : index
    %c0_24 = arith.constant 0 : index
    %c0_25 = arith.constant 0 : index
    %40 = vector.load %arg2[%c2_23, %c0_24, %c0_25] : memref<9x128x128xbf16, #tpu.memory_space<vmem>>, vector<1x128x128xbf16>
    %41 = vector.shape_cast %40 : vector<1x128x128xbf16> to vector<128x128xbf16>
    %cst_26 = arith.constant dense<0.000000e+00> : vector<80x128xf32>
    %42 = tpu.matmul %39, %41, %cst_26 {dimension_numbers = #tpu.dot_dimension_numbers<[1], [0], [0], [1], [0, 0, 1, 1], [], []>} : vector<80x128xbf16>, vector<128x128xbf16>, vector<80x128xf32> -> vector<80x128xf32>
    %43 = arith.addf %37, %42 : vector<80x128xf32>
    %c0_27 = arith.constant 0 : index
    %c10 = arith.constant 10 : index
    %c0_28 = arith.constant 0 : index
    %44 = vector.load %arg1[%c0_27, %c10, %c0_28] : memref<1x102x128xbf16, #tpu.memory_space<vmem>>, vector<1x80x128xbf16>
    %45 = vector.shape_cast %44 : vector<1x80x128xbf16> to vector<80x128xbf16>
    %c3 = arith.constant 3 : index
    %c0_29 = arith.constant 0 : index
    %c0_30 = arith.constant 0 : index
    %46 = vector.load %arg2[%c3, %c0_29, %c0_30] : memref<9x128x128xbf16, #tpu.memory_space<vmem>>, vector<1x128x128xbf16>
    %47 = vector.shape_cast %46 : vector<1x128x128xbf16> to vector<128x128xbf16>
    %cst_31 = arith.constant dense<0.000000e+00> : vector<80x128xf32>
    %48 = tpu.matmul %45, %47, %cst_31 {dimension_numbers = #tpu.dot_dimension_numbers<[1], [0], [0], [1], [0, 0, 1, 1], [], []>} : vector<80x128xbf16>, vector<128x128xbf16>, vector<80x128xf32> -> vector<80x128xf32>
    %49 = arith.addf %43, %48 : vector<80x128xf32>
    %c0_32 = arith.constant 0 : index
    %c11 = arith.constant 11 : index
    %c0_33 = arith.constant 0 : index
    %50 = vector.load %arg1[%c0_32, %c11, %c0_33] : memref<1x102x128xbf16, #tpu.memory_space<vmem>>, vector<1x80x128xbf16>
    %51 = vector.shape_cast %50 : vector<1x80x128xbf16> to vector<80x128xbf16>
    %c4 = arith.constant 4 : index
    %c0_34 = arith.constant 0 : index
    %c0_35 = arith.constant 0 : index
    %52 = vector.load %arg2[%c4, %c0_34, %c0_35] : memref<9x128x128xbf16, #tpu.memory_space<vmem>>, vector<1x128x128xbf16>
    %53 = vector.shape_cast %52 : vector<1x128x128xbf16> to vector<128x128xbf16>
    %cst_36 = arith.constant dense<0.000000e+00> : vector<80x128xf32>
    %54 = tpu.matmul %51, %53, %cst_36 {dimension_numbers = #tpu.dot_dimension_numbers<[1], [0], [0], [1], [0, 0, 1, 1], [], []>} : vector<80x128xbf16>, vector<128x128xbf16>, vector<80x128xf32> -> vector<80x128xf32>
    %55 = arith.addf %49, %54 : vector<80x128xf32>
    %c0_37 = arith.constant 0 : index
    %c12 = arith.constant 12 : index
    %c0_38 = arith.constant 0 : index
    %56 = vector.load %arg1[%c0_37, %c12, %c0_38] : memref<1x102x128xbf16, #tpu.memory_space<vmem>>, vector<1x80x128xbf16>
    %57 = vector.shape_cast %56 : vector<1x80x128xbf16> to vector<80x128xbf16>
    %c5 = arith.constant 5 : index
    %c0_39 = arith.constant 0 : index
    %c0_40 = arith.constant 0 : index
    %58 = vector.load %arg2[%c5, %c0_39, %c0_40] : memref<9x128x128xbf16, #tpu.memory_space<vmem>>, vector<1x128x128xbf16>
    %59 = vector.shape_cast %58 : vector<1x128x128xbf16> to vector<128x128xbf16>
    %cst_41 = arith.constant dense<0.000000e+00> : vector<80x128xf32>
    %60 = tpu.matmul %57, %59, %cst_41 {dimension_numbers = #tpu.dot_dimension_numbers<[1], [0], [0], [1], [0, 0, 1, 1], [], []>} : vector<80x128xbf16>, vector<128x128xbf16>, vector<80x128xf32> -> vector<80x128xf32>
    %61 = arith.addf %55, %60 : vector<80x128xf32>
    %c0_42 = arith.constant 0 : index
    %c20 = arith.constant 20 : index
    %c0_43 = arith.constant 0 : index
    %62 = vector.load %arg1[%c0_42, %c20, %c0_43] : memref<1x102x128xbf16, #tpu.memory_space<vmem>>, vector<1x80x128xbf16>
    %63 = vector.shape_cast %62 : vector<1x80x128xbf16> to vector<80x128xbf16>
    %c6 = arith.constant 6 : index
    %c0_44 = arith.constant 0 : index
    %c0_45 = arith.constant 0 : index
    %64 = vector.load %arg2[%c6, %c0_44, %c0_45] : memref<9x128x128xbf16, #tpu.memory_space<vmem>>, vector<1x128x128xbf16>
    %65 = vector.shape_cast %64 : vector<1x128x128xbf16> to vector<128x128xbf16>
    %cst_46 = arith.constant dense<0.000000e+00> : vector<80x128xf32>
    %66 = tpu.matmul %63, %65, %cst_46 {dimension_numbers = #tpu.dot_dimension_numbers<[1], [0], [0], [1], [0, 0, 1, 1], [], []>} : vector<80x128xbf16>, vector<128x128xbf16>, vector<80x128xf32> -> vector<80x128xf32>
    %67 = arith.addf %61, %66 : vector<80x128xf32>
    %c0_47 = arith.constant 0 : index
    %c21 = arith.constant 21 : index
    %c0_48 = arith.constant 0 : index
    %68 = vector.load %arg1[%c0_47, %c21, %c0_48] : memref<1x102x128xbf16, #tpu.memory_space<vmem>>, vector<1x80x128xbf16>
    %69 = vector.shape_cast %68 : vector<1x80x128xbf16> to vector<80x128xbf16>
    %c7 = arith.constant 7 : index
    %c0_49 = arith.constant 0 : index
    %c0_50 = arith.constant 0 : index
    %70 = vector.load %arg2[%c7, %c0_49, %c0_50] : memref<9x128x128xbf16, #tpu.memory_space<vmem>>, vector<1x128x128xbf16>
    %71 = vector.shape_cast %70 : vector<1x128x128xbf16> to vector<128x128xbf16>
    %cst_51 = arith.constant dense<0.000000e+00> : vector<80x128xf32>
    %72 = tpu.matmul %69, %71, %cst_51 {dimension_numbers = #tpu.dot_dimension_numbers<[1], [0], [0], [1], [0, 0, 1, 1], [], []>} : vector<80x128xbf16>, vector<128x128xbf16>, vector<80x128xf32> -> vector<80x128xf32>
    %73 = arith.addf %67, %72 : vector<80x128xf32>
    %c0_52 = arith.constant 0 : index
    %c22 = arith.constant 22 : index
    %c0_53 = arith.constant 0 : index
    %74 = vector.load %arg1[%c0_52, %c22, %c0_53] : memref<1x102x128xbf16, #tpu.memory_space<vmem>>, vector<1x80x128xbf16>
    %75 = vector.shape_cast %74 : vector<1x80x128xbf16> to vector<80x128xbf16>
    %c8 = arith.constant 8 : index
    %c0_54 = arith.constant 0 : index
    %c0_55 = arith.constant 0 : index
    %76 = vector.load %arg2[%c8, %c0_54, %c0_55] : memref<9x128x128xbf16, #tpu.memory_space<vmem>>, vector<1x128x128xbf16>
    %77 = vector.shape_cast %76 : vector<1x128x128xbf16> to vector<128x128xbf16>
    %cst_56 = arith.constant dense<0.000000e+00> : vector<80x128xf32>
    %78 = tpu.matmul %75, %77, %cst_56 {dimension_numbers = #tpu.dot_dimension_numbers<[1], [0], [0], [1], [0, 0, 1, 1], [], []>} : vector<80x128xbf16>, vector<128x128xbf16>, vector<80x128xf32> -> vector<80x128xf32>
    %79 = arith.addf %73, %78 : vector<80x128xf32>
    %cst_57 = arith.constant 0.000000e+00 : f32
    %80 = vector.broadcast %cst_57 : f32 to vector<80x128xf32>
    %81 = arith.maximumf %79, %80 : vector<80x128xf32>
    %cst_58 = arith.constant 0.000000e+00 : f32
    %82 = vector.shape_cast %22 : vector<80x1xi1> to vector<80x1xi1>
    %83 = vector.broadcast %82 : vector<80x1xi1> to vector<80x128xi1>
    %84 = vector.broadcast %cst_58 : f32 to vector<80x128xf32>
    %85 = arith.select %83, %81, %84 : vector<80x128xi1>, vector<80x128xf32>
    %86 = arith.truncf %85 : vector<80x128xf32> to vector<80x128xbf16>
    %c11_59 = arith.constant 11 : index
    %c0_60 = arith.constant 0 : index
    %87 = vector.load %arg7[%c11_59, %c0_60] : memref<102x128xbf16, #tpu.memory_space<vmem>>, vector<80x128xbf16>
    tpu.vector_store %arg7[%c11_59, %c0_60], %86 {strides = array<i32>} : memref<102x128xbf16, #tpu.memory_space<vmem>>, vector<80x128xbf16>,
    %c0_61 = arith.constant 0 : index
    %c0_62 = arith.constant 0 : index
    %88 = vector.load %arg5[%c0_61, %c0_62] : memref<1x128xf32, #tpu.memory_space<vmem>>, vector<1x128xf32>
    %89 = vector.shape_cast %88 : vector<1x128xf32> to vector<1x128xf32>
    %90 = vector.broadcast %89 : vector<1x128xf32> to vector<80x128xf32>
    %c0_63 = arith.constant 0 : index
    %c0_64 = arith.constant 0 : index
    %91 = vector.load %arg7[%c0_63, %c0_64] : memref<102x128xbf16, #tpu.memory_space<vmem>>, vector<80x128xbf16>
    %c0_65 = arith.constant 0 : index
    %c0_66 = arith.constant 0 : index
    %c0_67 = arith.constant 0 : index
    %92 = vector.load %arg4[%c0_65, %c0_66, %c0_67] : memref<9x128x128xbf16, #tpu.memory_space<vmem>>, vector<1x128x128xbf16>
    %93 = vector.shape_cast %92 : vector<1x128x128xbf16> to vector<128x128xbf16>
    %cst_68 = arith.constant dense<0.000000e+00> : vector<80x128xf32>
    %94 = tpu.matmul %91, %93, %cst_68 {dimension_numbers = #tpu.dot_dimension_numbers<[1], [0], [0], [1], [0, 0, 1, 1], [], []>} : vector<80x128xbf16>, vector<128x128xbf16>, vector<80x128xf32> -> vector<80x128xf32>
    %95 = arith.addf %90, %94 : vector<80x128xf32>
    %c1_69 = arith.constant 1 : index
    %c0_70 = arith.constant 0 : index
    %96 = vector.load %arg7[%c1_69, %c0_70] : memref<102x128xbf16, #tpu.memory_space<vmem>>, vector<80x128xbf16>
    %c1_71 = arith.constant 1 : index
    %c0_72 = arith.constant 0 : index
    %c0_73 = arith.constant 0 : index
    %97 = vector.load %arg4[%c1_71, %c0_72, %c0_73] : memref<9x128x128xbf16, #tpu.memory_space<vmem>>, vector<1x128x128xbf16>
    %98 = vector.shape_cast %97 : vector<1x128x128xbf16> to vector<128x128xbf16>
    %cst_74 = arith.constant dense<0.000000e+00> : vector<80x128xf32>
    %99 = tpu.matmul %96, %98, %cst_74 {dimension_numbers = #tpu.dot_dimension_numbers<[1], [0], [0], [1], [0, 0, 1, 1], [], []>} : vector<80x128xbf16>, vector<128x128xbf16>, vector<80x128xf32> -> vector<80x128xf32>
    %100 = arith.addf %95, %99 : vector<80x128xf32>
    %c2_75 = arith.constant 2 : index
    %c0_76 = arith.constant 0 : index
    %101 = vector.load %arg7[%c2_75, %c0_76] : memref<102x128xbf16, #tpu.memory_space<vmem>>, vector<80x128xbf16>
    %c2_77 = arith.constant 2 : index
    %c0_78 = arith.constant 0 : index
    %c0_79 = arith.constant 0 : index
    %102 = vector.load %arg4[%c2_77, %c0_78, %c0_79] : memref<9x128x128xbf16, #tpu.memory_space<vmem>>, vector<1x128x128xbf16>
    %103 = vector.shape_cast %102 : vector<1x128x128xbf16> to vector<128x128xbf16>
    %cst_80 = arith.constant dense<0.000000e+00> : vector<80x128xf32>
    %104 = tpu.matmul %101, %103, %cst_80 {dimension_numbers = #tpu.dot_dimension_numbers<[1], [0], [0], [1], [0, 0, 1, 1], [], []>} : vector<80x128xbf16>, vector<128x128xbf16>, vector<80x128xf32> -> vector<80x128xf32>
    %105 = arith.addf %100, %104 : vector<80x128xf32>
    %c10_81 = arith.constant 10 : index
    %c0_82 = arith.constant 0 : index
    %106 = vector.load %arg7[%c10_81, %c0_82] : memref<102x128xbf16, #tpu.memory_space<vmem>>, vector<80x128xbf16>
    %c3_83 = arith.constant 3 : index
    %c0_84 = arith.constant 0 : index
    %c0_85 = arith.constant 0 : index
    %107 = vector.load %arg4[%c3_83, %c0_84, %c0_85] : memref<9x128x128xbf16, #tpu.memory_space<vmem>>, vector<1x128x128xbf16>
    %108 = vector.shape_cast %107 : vector<1x128x128xbf16> to vector<128x128xbf16>
    %cst_86 = arith.constant dense<0.000000e+00> : vector<80x128xf32>
    %109 = tpu.matmul %106, %108, %cst_86 {dimension_numbers = #tpu.dot_dimension_numbers<[1], [0], [0], [1], [0, 0, 1, 1], [], []>} : vector<80x128xbf16>, vector<128x128xbf16>, vector<80x128xf32> -> vector<80x128xf32>
    %110 = arith.addf %105, %109 : vector<80x128xf32>
    %c11_87 = arith.constant 11 : index
    %c0_88 = arith.constant 0 : index
    %111 = vector.load %arg7[%c11_87, %c0_88] : memref<102x128xbf16, #tpu.memory_space<vmem>>, vector<80x128xbf16>
    %c4_89 = arith.constant 4 : index
    %c0_90 = arith.constant 0 : index
    %c0_91 = arith.constant 0 : index
    %112 = vector.load %arg4[%c4_89, %c0_90, %c0_91] : memref<9x128x128xbf16, #tpu.memory_space<vmem>>, vector<1x128x128xbf16>
    %113 = vector.shape_cast %112 : vector<1x128x128xbf16> to vector<128x128xbf16>
    %cst_92 = arith.constant dense<0.000000e+00> : vector<80x128xf32>
    %114 = tpu.matmul %111, %113, %cst_92 {dimension_numbers = #tpu.dot_dimension_numbers<[1], [0], [0], [1], [0, 0, 1, 1], [], []>} : vector<80x128xbf16>, vector<128x128xbf16>, vector<80x128xf32> -> vector<80x128xf32>
    %115 = arith.addf %110, %114 : vector<80x128xf32>
    %c12_93 = arith.constant 12 : index
    %c0_94 = arith.constant 0 : index
    %116 = vector.load %arg7[%c12_93, %c0_94] : memref<102x128xbf16, #tpu.memory_space<vmem>>, vector<80x128xbf16>
    %c5_95 = arith.constant 5 : index
    %c0_96 = arith.constant 0 : index
    %c0_97 = arith.constant 0 : index
    %117 = vector.load %arg4[%c5_95, %c0_96, %c0_97] : memref<9x128x128xbf16, #tpu.memory_space<vmem>>, vector<1x128x128xbf16>
    %118 = vector.shape_cast %117 : vector<1x128x128xbf16> to vector<128x128xbf16>
    %cst_98 = arith.constant dense<0.000000e+00> : vector<80x128xf32>
    %119 = tpu.matmul %116, %118, %cst_98 {dimension_numbers = #tpu.dot_dimension_numbers<[1], [0], [0], [1], [0, 0, 1, 1], [], []>} : vector<80x128xbf16>, vector<128x128xbf16>, vector<80x128xf32> -> vector<80x128xf32>
    %120 = arith.addf %115, %119 : vector<80x128xf32>
    %c20_99 = arith.constant 20 : index
    %c0_100 = arith.constant 0 : index
    %121 = vector.load %arg7[%c20_99, %c0_100] : memref<102x128xbf16, #tpu.memory_space<vmem>>, vector<80x128xbf16>
    %c6_101 = arith.constant 6 : index
    %c0_102 = arith.constant 0 : index
    %c0_103 = arith.constant 0 : index
    %122 = vector.load %arg4[%c6_101, %c0_102, %c0_103] : memref<9x128x128xbf16, #tpu.memory_space<vmem>>, vector<1x128x128xbf16>
    %123 = vector.shape_cast %122 : vector<1x128x128xbf16> to vector<128x128xbf16>
    %cst_104 = arith.constant dense<0.000000e+00> : vector<80x128xf32>
    %124 = tpu.matmul %121, %123, %cst_104 {dimension_numbers = #tpu.dot_dimension_numbers<[1], [0], [0], [1], [0, 0, 1, 1], [], []>} : vector<80x128xbf16>, vector<128x128xbf16>, vector<80x128xf32> -> vector<80x128xf32>
    %125 = arith.addf %120, %124 : vector<80x128xf32>
    %c21_105 = arith.constant 21 : index
    %c0_106 = arith.constant 0 : index
    %126 = vector.load %arg7[%c21_105, %c0_106] : memref<102x128xbf16, #tpu.memory_space<vmem>>, vector<80x128xbf16>
    %c7_107 = arith.constant 7 : index
    %c0_108 = arith.constant 0 : index
    %c0_109 = arith.constant 0 : index
    %127 = vector.load %arg4[%c7_107, %c0_108, %c0_109] : memref<9x128x128xbf16, #tpu.memory_space<vmem>>, vector<1x128x128xbf16>
    %128 = vector.shape_cast %127 : vector<1x128x128xbf16> to vector<128x128xbf16>
    %cst_110 = arith.constant dense<0.000000e+00> : vector<80x128xf32>
    %129 = tpu.matmul %126, %128, %cst_110 {dimension_numbers = #tpu.dot_dimension_numbers<[1], [0], [0], [1], [0, 0, 1, 1], [], []>} : vector<80x128xbf16>, vector<128x128xbf16>, vector<80x128xf32> -> vector<80x128xf32>
    %130 = arith.addf %125, %129 : vector<80x128xf32>
    %c22_111 = arith.constant 22 : index
    %c0_112 = arith.constant 0 : index
    %131 = vector.load %arg7[%c22_111, %c0_112] : memref<102x128xbf16, #tpu.memory_space<vmem>>, vector<80x128xbf16>
    %c8_113 = arith.constant 8 : index
    %c0_114 = arith.constant 0 : index
    %c0_115 = arith.constant 0 : index
    %132 = vector.load %arg4[%c8_113, %c0_114, %c0_115] : memref<9x128x128xbf16, #tpu.memory_space<vmem>>, vector<1x128x128xbf16>
    %133 = vector.shape_cast %132 : vector<1x128x128xbf16> to vector<128x128xbf16>
    %cst_116 = arith.constant dense<0.000000e+00> : vector<80x128xf32>
    %134 = tpu.matmul %131, %133, %cst_116 {dimension_numbers = #tpu.dot_dimension_numbers<[1], [0], [0], [1], [0, 0, 1, 1], [], []>} : vector<80x128xbf16>, vector<128x128xbf16>, vector<80x128xf32> -> vector<80x128xf32>
    %135 = arith.addf %130, %134 : vector<80x128xf32>
    %c0_117 = arith.constant 0 : index
    %c11_118 = arith.constant 11 : index
    %c0_119 = arith.constant 0 : index
    %136 = vector.load %arg1[%c0_117, %c11_118, %c0_119] : memref<1x102x128xbf16, #tpu.memory_space<vmem>>, vector<1x80x128xbf16>
    %137 = vector.shape_cast %136 : vector<1x80x128xbf16> to vector<80x128xbf16>
    %138 = arith.extf %137 : vector<80x128xbf16> to vector<80x128xf32>
    %139 = arith.addf %135, %138 : vector<80x128xf32>
    %cst_120 = arith.constant 0.000000e+00 : f32
    %140 = vector.broadcast %cst_120 : f32 to vector<80x128xf32>
    %141 = arith.maximumf %139, %140 : vector<80x128xf32>
    %c0_121 = arith.constant 0 : index
    %c0_122 = arith.constant 0 : index
    %c0_123 = arith.constant 0 : index
    %142 = vector.load %arg6[%c0_121, %c0_122, %c0_123] : memref<1x80x128xf32, #tpu.memory_space<vmem>>, vector<1x80x128xf32>
    %143 = vector.shape_cast %142 : vector<1x80x128xf32> to vector<80x128xf32>
    %144 = vector.shape_cast %141 : vector<80x128xf32> to vector<1x80x128xf32>
    tpu.vector_store %arg6[%c0_121, %c0_122, %c0_123], %144 {strides = array<i32>} : memref<1x80x128xf32, #tpu.memory_space<vmem>>, vector<1x80x128xf32>,
    return
  }
  func.func @transform_0(%arg0: i32) -> (i32, i32, i32) {
    %c0_i32 = arith.constant 0 : i32
    %c0_i32_0 = arith.constant 0 : i32
    %c0_i32_1 = arith.constant 0 : i32
    return %arg0, %c0_i32, %c0_i32_0 : i32, i32, i32
  }
  func.func @transform_1(%arg0: i32) -> (i32, i32, i32) {
    %c0_i32 = arith.constant 0 : i32
    %c0_i32_0 = arith.constant 0 : i32
    %c0_i32_1 = arith.constant 0 : i32
    %c0_i32_2 = arith.constant 0 : i32
    return %c0_i32, %c0_i32_0, %c0_i32_1 : i32, i32, i32
  }
  func.func @transform_2(%arg0: i32) -> (i32, i32) {
    %c0_i32 = arith.constant 0 : i32
    %c0_i32_0 = arith.constant 0 : i32
    %c0_i32_1 = arith.constant 0 : i32
    return %c0_i32, %c0_i32_0 : i32, i32
  }
  func.func @transform_3(%arg0: i32) -> (i32, i32, i32) {
    %c0_i32 = arith.constant 0 : i32
    %c0_i32_0 = arith.constant 0 : i32
    %c0_i32_1 = arith.constant 0 : i32
    %c0_i32_2 = arith.constant 0 : i32
    return %c0_i32, %c0_i32_0, %c0_i32_1 : i32, i32, i32
  }
  func.func @transform_4(%arg0: i32) -> (i32, i32) {
    %c0_i32 = arith.constant 0 : i32
    %c0_i32_0 = arith.constant 0 : i32
    %c0_i32_1 = arith.constant 0 : i32
    return %c0_i32, %c0_i32_0 : i32, i32
  }
  func.func @transform_5(%arg0: i32) -> (i32, i32, i32) {
    %c0_i32 = arith.constant 0 : i32
    %c0_i32_0 = arith.constant 0 : i32
    %c0_i32_1 = arith.constant 0 : i32
    return %arg0, %c0_i32, %c0_i32_0 : i32, i32, i32
  }
}

</mosaic_0001>

<llo_original>
// kernel: tpu_custom_call.1
$region0: #{tpu_custom_call.1}
  #allocation0 [shape = 'u32[]', space=smem, size = 0x4, offset = 0x4, fixed_abs, tag = 'smem constant byte address 0x4 - core index']
  #allocation1 [shape = 'u32[144,128]{1,0:T(1,128)}', space=vmem, size = 0x12000, scoped, tag = 'internal scratch']
  #allocation2 [shape = 'bf16[102,128]{1,0:T(8,128)(2,1)}', space=vmem, size = 0x6800, scoped, tag = 'scratch operand']
  %s0 = inlined_call_operand.vmem [shape: bf16[2,102,128], index: 0, kind: input, shape index: {}]
  %s1 = inlined_call_operand.hbm [shape: bf16[9,128,128], index: 1, kind: input, shape index: {}]
  %s2 = inlined_call_operand.vmem [shape: f32[1,128], index: 2, kind: input, shape index: {}]
  %s3 = inlined_call_operand.hbm [shape: bf16[9,128,128], index: 3, kind: input, shape index: {}]
  %s4 = inlined_call_operand.vmem [shape: f32[1,128], index: 4, kind: input, shape index: {}]
  %s5 = inlined_call_operand.hbm [shape: f32[2,80,128], index: 5, kind: output, shape index: {}]
  %s6 = sld [smem:[#allocation0]]
  $region61: #{tpu_custom_call.1} parent=0
    _
  %s8 = ssub.s32 1, %s6
  %s9 = scalar_select 0, %s8, %s6
  $region1: #{tpu_custom_call.1} parent=0
    #allocation3 [shape = 'u8[294912]{0}', space=vmem, size = 0x48000, scoped, tag = 'input window, operand 1, single buffered']
    #allocation4 [shape = 's32[2]{0}', space=sflag, size = 0x8, scoped, tag = 'scoped memory for tpu_custom_call.1']
    #allocation5 [shape = 's32[2]{0}', space=sflag, size = 0x8, scoped, tag = 'scoped memory for tpu_custom_call.1']
    #allocation6 [shape = 'u8[294912]{0}', space=vmem, size = 0x48000, scoped, tag = 'input window, operand 3, single buffered']
    #allocation7 [shape = 's32[1]{0}', space=sflag, size = 0x4, scoped, tag = 'scoped memory for tpu_custom_call.1']
    #allocation8 [shape = 'u8[81920]{0}', space=vmem, size = 0x14000, scoped, tag = 'output window, operand 0']
    %10 = vsyncpa [#allocation4], 0
    %11 = vsyncpa [#allocation7], 0
    %12 = vsyncpa [#allocation5], 0
    %s13 = scalar_lea.sflag [#allocation5], 1
    %14 = vsyncpa %s13, 0
    loop: start=0, step=1, limit=4
    $region2: #{tpu_custom_call.1} parent=1 // loop_pre_header
      _
    $region3: #{tpu_custom_call.1} parent=1 // loop_header
      %s16 = sphi 0, %s20
      %p17 = scmp.ge.s32.totalorder %s16, 4
      %s26 = sphi 0, %s28
      %s29 = sphi 0, %s26
      %s30 = sphi 0, %s29
      %s46 = sphi 0, %s30
      %s50 = sphi 0, %s50
      %s52 = sphi 0, %s50
      %s53 = sphi 0, %s52
      %s67 = sphi 0, %s53
      %s71 = sphi 0, %s71
      %s73 = sphi 0, %s71
      %s74 = sphi 0, %s73
      %s88 = sphi 0, %s74
      %s92 = sphi 0, %s92
      %s94 = sphi 0, %s92
      %s95 = sphi 0, %s94
      %s109 = sphi 0, %s95
      %s113 = sphi 0, %s113
      %s115 = sphi 0, %s113
      %s116 = sphi 0, %s115
      %s130 = sphi 0, %s116
      %s136 = sphi 0, %s138
      %s139 = sphi 0, %s136
      %s140 = sphi 0, %s139
      %s156 = sphi 0, %s140
    $region4: #{tpu_custom_call.1} parent=1 // loop_header_branch
      %19 = sbr.rel (%p17) target = $region8
    $region5: #{tpu_custom_call.1} parent=1 // loop_body
      %s21 = ssub.s32 %s16, 1
      %s22 = ssub.s32 %s16, 2
      %s23 = sadd.s32 %s16, 1
      %s24 = ssub.s32 %s16, %s23
      %p25 = scmp.eq.s32.totalorder %s24, 0
      %s27 = sadd.s32 %s26, 1
      %s28 = scalar_select %p25, %s26, %s27
      %p31 = pneg %p25
      %p32 = scmp.eq.s32.totalorder %s16, 1
      %p33 = por %p31, %p32
      %p34 = scmp.ne.s32.totalorder %s26, %s29
      %p35 = scmp.eq.s32.totalorder %s16, 0
      %p36 = por %p34, %p35
      %p37 = scmp.ne.s32.totalorder %s26, %s29
      %p38 = scmp.eq.s32.totalorder %s21, 1
      %p39 = por %p37, %p38
      %p40 = scmp.ne.s32.totalorder %s29, %s30
      %p41 = scmp.eq.s32.totalorder %s21, 0
      %p42 = por %p40, %p41
      %p43 = scmp.ne.s32.totalorder %s29, %s30
      %p44 = scmp.eq.s32.totalorder %s22, 1
      %p45 = por %p43, %p44
      %p47 = scmp.ne.s32.totalorder %s30, %s46
      %p48 = scmp.eq.s32.totalorder %s22, 0
      %p49 = por %p47, %p48
      %s51 = sadd.s32 %s50, 1
      %p54 = scmp.eq.s32.totalorder %s16, 1
      %p55 = scmp.ne.s32.totalorder %s50, %s52
      %p56 = scmp.eq.s32.totalorder %s16, 0
      %p57 = por %p55, %p56
      %p58 = scmp.ne.s32.totalorder %s50, %s52
      %p59 = scmp.eq.s32.totalorder %s21, 1
      %p60 = por %p58, %p59
      %p61 = scmp.ne.s32.totalorder %s52, %s53
      %p62 = scmp.eq.s32.totalorder %s21, 0
      %p63 = por %p61, %p62
      %p64 = scmp.ne.s32.totalorder %s52, %s53
      %p65 = scmp.eq.s32.totalorder %s22, 1
      %p66 = por %p64, %p65
      %p68 = scmp.ne.s32.totalorder %s53, %s67
      %p69 = scmp.eq.s32.totalorder %s22, 0
      %p70 = por %p68, %p69
      %s72 = sadd.s32 %s71, 1
      %p75 = scmp.eq.s32.totalorder %s16, 1
      %p76 = scmp.ne.s32.totalorder %s71, %s73
      %p77 = scmp.eq.s32.totalorder %s16, 0
      %p78 = por %p76, %p77
      %p79 = scmp.ne.s32.totalorder %s71, %s73
      %p80 = scmp.eq.s32.totalorder %s21, 1
      %p81 = por %p79, %p80
      %p82 = scmp.ne.s32.totalorder %s73, %s74
      %p83 = scmp.eq.s32.totalorder %s21, 0
      %p84 = por %p82, %p83
      %p85 = scmp.ne.s32.totalorder %s73, %s74
      %p86 = scmp.eq.s32.totalorder %s22, 1
      %p87 = por %p85, %p86
      %p89 = scmp.ne.s32.totalorder %s74, %s88
      %p90 = scmp.eq.s32.totalorder %s22, 0
      %p91 = por %p89, %p90
      %s93 = sadd.s32 %s92, 1
      %p96 = scmp.eq.s32.totalorder %s16, 1
      %p97 = scmp.ne.s32.totalorder %s92, %s94
      %p98 = scmp.eq.s32.totalorder %s16, 0
      %p99 = por %p97, %p98
      %p100 = scmp.ne.s32.totalorder %s92, %s94
      %p101 = scmp.eq.s32.totalorder %s21, 1
      %p102 = por %p100, %p101
      %p103 = scmp.ne.s32.totalorder %s94, %s95
      %p104 = scmp.eq.s32.totalorder %s21, 0
      %p105 = por %p103, %p104
      %p106 = scmp.ne.s32.totalorder %s94, %s95
      %p107 = scmp.eq.s32.totalorder %s22, 1
      %p108 = por %p106, %p107
      %p110 = scmp.ne.s32.totalorder %s95, %s109
      %p111 = scmp.eq.s32.totalorder %s22, 0
      %p112 = por %p110, %p111
      %s114 = sadd.s32 %s113, 1
      %p117 = scmp.eq.s32.totalorder %s16, 1
      %p118 = scmp.ne.s32.totalorder %s113, %s115
      %p119 = scmp.eq.s32.totalorder %s16, 0
      %p120 = por %p118, %p119
      %p121 = scmp.ne.s32.totalorder %s113, %s115
      %p122 = scmp.eq.s32.totalorder %s21, 1
      %p123 = por %p121, %p122
      %p124 = scmp.ne.s32.totalorder %s115, %s116
      %p125 = scmp.eq.s32.totalorder %s21, 0
      %p126 = por %p124, %p125
      %p127 = scmp.ne.s32.totalorder %s115, %s116
      %p128 = scmp.eq.s32.totalorder %s22, 1
      %p129 = por %p127, %p128
      %p131 = scmp.ne.s32.totalorder %s116, %s130
      %p132 = scmp.eq.s32.totalorder %s22, 0
      %p133 = por %p131, %p132
      %s134 = ssub.s32 %s16, %s23
      %p135 = scmp.eq.s32.totalorder %s134, 0
      %s137 = sadd.s32 %s136, 1
      %s138 = scalar_select %p135, %s136, %s137
      %p141 = pneg %p135
      %p142 = scmp.eq.s32.totalorder %s16, 1
      %p143 = por %p141, %p142
      %p144 = scmp.ne.s32.totalorder %s136, %s139
      %p145 = scmp.eq.s32.totalorder %s16, 0
      %p146 = por %p144, %p145
      %p147 = scmp.ne.s32.totalorder %s136, %s139
      %p148 = scmp.eq.s32.totalorder %s21, 1
      %p149 = por %p147, %p148
      %p150 = scmp.ne.s32.totalorder %s139, %s140
      %p151 = scmp.eq.s32.totalorder %s21, 0
      %p152 = por %p150, %p151
      %p153 = scmp.ne.s32.totalorder %s139, %s140
      %p154 = scmp.eq.s32.totalorder %s22, 1
      %p155 = por %p153, %p154
      %p157 = scmp.ne.s32.totalorder %s140, %s156
      %p158 = scmp.eq.s32.totalorder %s22, 0
      %p159 = por %p157, %p158
      %p160 = scmp.le.s32.totalorder 1, %s16
      %p161 = scmp.lt.s32.totalorder %s16, 3
      %p162 = pnand %p160, %p161
      %p163 = pneg %p162
      // Predicated region
      $region9: #{tpu_custom_call.1} parent=5 // pred_check
        _
      $region10: #{tpu_custom_call.1} parent=5 // pred_check_branch
        %165 = sbr.rel (%p162) target = $region12
      $region11: #{tpu_custom_call.1} parent=5 // pred_region
        %s166 = ssub.s32 %s16, 1
        // Predicated region
        $region13: #{tpu_custom_call.1} parent=11 // pred_check
          %p167 = pneg %p63
        $region14: #{tpu_custom_call.1} parent=11 // pred_check_branch
          %169 = sbr.rel (%p167) target = $region16
        $region15: #{tpu_custom_call.1} parent=11 // pred_region
          %s171 = ssub.s32 9216, 9216
          %172 = vsyncadd [#allocation4], %s171
          %s173 = sshll.u32 [#allocation3], 4
          %s174 = int_to_ptr.vmem [resolvable:$true] %s173
          %179 = dma.hbm_to_vmem [thread:$0]  %s1, 9216, %s174, [#allocation4], 64, 64, 4
        $region16: #{tpu_custom_call.1} parent=11 // pred_fallthru
          _
        // Predicated region
        $region17: #{tpu_custom_call.1} parent=11 // pred_check
          %p180 = pneg %p84
        $region18: #{tpu_custom_call.1} parent=11 // pred_check_branch
          %182 = sbr.rel (%p180) target = $region20
        $region19: #{tpu_custom_call.1} parent=11 // pred_region
          _
        $region20: #{tpu_custom_call.1} parent=11 // pred_fallthru
          _
        // Predicated region
        $region21: #{tpu_custom_call.1} parent=11 // pred_check
          %p183 = pneg %p105
        $region22: #{tpu_custom_call.1} parent=11 // pred_check_branch
          %185 = sbr.rel (%p183) target = $region24
        $region23: #{tpu_custom_call.1} parent=11 // pred_region
          %s187 = ssub.s32 9216, 9216
          %188 = vsyncadd [#allocation7], %s187
          %s189 = sshll.u32 [#allocation6], 4
          %s190 = int_to_ptr.vmem [resolvable:$true] %s189
          %195 = dma.hbm_to_vmem [thread:$0]  %s3, 9216, %s190, [#allocation7], 64, 64, 4
        $region24: #{tpu_custom_call.1} parent=11 // pred_fallthru
          _
        // Predicated region
        $region25: #{tpu_custom_call.1} parent=11 // pred_check
          %p196 = pneg %p126
        $region26: #{tpu_custom_call.1} parent=11 // pred_check_branch
          %198 = sbr.rel (%p196) target = $region28
        $region27: #{tpu_custom_call.1} parent=11 // pred_region
          _
        $region28: #{tpu_custom_call.1} parent=11 // pred_fallthru
          _
      $region12: #{tpu_custom_call.1} parent=5 // pred_fallthru
        _
      %p199 = scmp.lt.s32.totalorder %s16, 2
      // Predicated region
      $region29: #{tpu_custom_call.1} parent=5 // pred_check
        %p200 = pneg %p199
      $region30: #{tpu_custom_call.1} parent=5 // pred_check_branch
        %202 = sbr.rel (%p200) target = $region32
      $region31: #{tpu_custom_call.1} parent=5 // pred_region
        // Predicated region
        $region33: #{tpu_custom_call.1} parent=31 // pred_check
          %p203 = pneg %p36
        $region34: #{tpu_custom_call.1} parent=31 // pred_check_branch
          %205 = sbr.rel (%p203) target = $region36
        $region35: #{tpu_custom_call.1} parent=31 // pred_region
          %p206 = scmp.lt.s32.totalorder %s16, 1
          %s207 = scalar_select %p206, %s16, 1
          %s208 = smul.addr %s207, 13
          %s209 = smul.addr %s208, 4
          %s210 = scalar_lea.vmem %s0, %s209
        $region36: #{tpu_custom_call.1} parent=31 // pred_fallthru
          _
      $region32: #{tpu_custom_call.1} parent=5 // pred_fallthru
        _
      %p211 = scmp.le.s32.totalorder 1, %s16
      %p212 = scmp.lt.s32.totalorder %s16, 3
      %p213 = pnand %p211, %p212
      %p214 = pneg %p213
      // Predicated region
      $region37: #{tpu_custom_call.1} parent=5 // pred_check
        _
      $region38: #{tpu_custom_call.1} parent=5 // pred_check_branch
        %216 = sbr.rel (%p213) target = $region40
      $region39: #{tpu_custom_call.1} parent=5 // pred_region
        %s217 = ssub.s32 %s16, 1
        // Predicated region
        $region41: #{tpu_custom_call.1} parent=39 // pred_check
          %p218 = pneg %p63
        $region42: #{tpu_custom_call.1} parent=39 // pred_check_branch
          %220 = sbr.rel (%p218) target = $region44
        $region43: #{tpu_custom_call.1} parent=39 // pred_region
          %221 = dma.done [#allocation4], 9216
        $region44: #{tpu_custom_call.1} parent=39 // pred_fallthru
          _
        // Predicated region
        $region45: #{tpu_custom_call.1} parent=39 // pred_check
          %p222 = pneg %p105
        $region46: #{tpu_custom_call.1} parent=39 // pred_check_branch
          %224 = sbr.rel (%p222) target = $region48
        $region47: #{tpu_custom_call.1} parent=39 // pred_region
          %225 = dma.done [#allocation7], 9216
        $region48: #{tpu_custom_call.1} parent=39 // pred_fallthru
          _
        %p226 = scmp.lt.s32.totalorder %s21, 1
        %s227 = scalar_select %p226, %s21, 1
        %s228 = smul.addr %s227, 13
        %s229 = smul.addr %s228, 4
        %s230 = scalar_lea.vmem %s0, %s229
        %p231 = pneg %p42
        %p232 = pneg %p39
        %p233 = pneg %p63
        %p234 = pneg %p60
        %p235 = pneg %p84
        %p236 = pneg %p81
        %p237 = pneg %p105
        %p238 = pneg %p102
        %p239 = pneg %p126
        %p240 = pneg %p123
        %p241 = pneg %p152
        %p242 = pneg %p149
        %s243 = sand.u32 %s139, 1
        %s244 = scalar_lea.sflag [#allocation5], %s243
        %s245 = sand.u32 %s139, 1
        %s246 = smul.addr %s245, 80
        %s247 = scalar_lea.vmem [#allocation8], %s246
        %p248 = scmp.lt.s32.totalorder %s21, 1
        %s249 = scalar_select %p248, %s21, 1
        %s250 = smul.addr %s249, 13
        %s251 = smul.addr %s250, 4
        %s252 = scalar_lea.vmem %s0, %s251
        %254 = vst [vmem:[#allocation2] sm:$0xf] 0
        %vm255 = vcmask 1041408
        %vm256 = vsmask.f32 1280
        %vm257 = vmand %vm255, %vm256
        %v258 = vld [vmem:[#allocation2 + $0x4] sm:$0x3]
        %v259 = vsel %vm257, 0, %v258
        %260 = vst [vmem:[#allocation2 + $0x4] sm:$0x3] %v259
        %vm261 = vcmask 1043457
        %vm262 = vsmask.f32 7942
        %vm263 = vmand %vm261, %vm262
        %v264 = vld [vmem:[#allocation2 + $0x2c] sm:$0xe]
        %v265 = vsel %vm263, 0, %v264
        %266 = vst [vmem:[#allocation2 + $0x2c] sm:$0xe] %v265
        %267 = vst [vmem:[#allocation2 + $0x30] sm:$0x7] 0
        %v268 = vlaneseq
        %v269 = vshrl.u32 %v268, 7
        %v270 = vadd.s32 %v269, 8
        %v271 = vadd.s32 %v269, 16
        %v272 = vadd.s32 %v269, 24
        %v273 = vadd.s32 %v269, 32
        %v274 = vadd.s32 %v269, 40
        %v275 = vadd.s32 %v269, 48
        %v276 = vadd.s32 %v269, 56
        %v277 = vadd.s32 %v269, 64
        %v278 = vadd.s32 %v269, 72
        %vm279 = vcmp.lt.s32.totalorder %v269, 0
        %v280 = vsub.s32 0, %v269
        %v281 = vsel %vm279, %v280, %v269
        %v282 = vmul.u32.u64.compose %v281, 3435973837
        %v283 = vextract.low.u32 %v282
        %v284 = vextract.high.u32 %v282
        %v285 = vshrl.u32 %v284, 3
        %v286 = vmul.u32 %v285, 10
        %v287 = vsub.s32 %v281, %v286
        %v288 = vsub.s32 0, %v287
        %v289 = vsel %vm279, %v288, %v287
        %vm290 = vcmp.lt.s32.totalorder %v270, 0
        %v291 = vsub.s32 0, %v270
        %v292 = vsel %vm290, %v291, %v270
        %v293 = vmul.u32.u64.compose %v292, 3435973837
        %v294 = vextract.low.u32 %v293
        %v295 = vextract.high.u32 %v293
        %v296 = vshrl.u32 %v295, 3
        %v297 = vmul.u32 %v296, 10
        %v298 = vsub.s32 %v292, %v297
        %v299 = vsub.s32 0, %v298
        %v300 = vsel %vm290, %v299, %v298
        %vm301 = vcmp.lt.s32.totalorder %v271, 0
        %v302 = vsub.s32 0, %v271
        %v303 = vsel %vm301, %v302, %v271
        %v304 = vmul.u32.u64.compose %v303, 3435973837
        %v305 = vextract.low.u32 %v304
        %v306 = vextract.high.u32 %v304
        %v307 = vshrl.u32 %v306, 3
        %v308 = vmul.u32 %v307, 10
        %v309 = vsub.s32 %v303, %v308
        %v310 = vsub.s32 0, %v309
        %v311 = vsel %vm301, %v310, %v309
        %vm312 = vcmp.lt.s32.totalorder %v272, 0
        %v313 = vsub.s32 0, %v272
        %v314 = vsel %vm312, %v313, %v272
        %v315 = vmul.u32.u64.compose %v314, 3435973837
        %v316 = vextract.low.u32 %v315
        %v317 = vextract.high.u32 %v315
        %v318 = vshrl.u32 %v317, 3
        %v319 = vmul.u32 %v318, 10
        %v320 = vsub.s32 %v314, %v319
        %v321 = vsub.s32 0, %v320
        %v322 = vsel %vm312, %v321, %v320
        %vm323 = vcmp.lt.s32.totalorder %v273, 0
        %v324 = vsub.s32 0, %v273
        %v325 = vsel %vm323, %v324, %v273
        %v326 = vmul.u32.u64.compose %v325, 3435973837
        %v327 = vextract.low.u32 %v326
        %v328 = vextract.high.u32 %v326
        %v329 = vshrl.u32 %v328, 3
        %v330 = vmul.u32 %v329, 10
        %v331 = vsub.s32 %v325, %v330
        %v332 = vsub.s32 0, %v331
        %v333 = vsel %vm323, %v332, %v331
        %vm334 = vcmp.lt.s32.totalorder %v274, 0
        %v335 = vsub.s32 0, %v274
        %v336 = vsel %vm334, %v335, %v274
        %v337 = vmul.u32.u64.compose %v336, 3435973837
        %v338 = vextract.low.u32 %v337
        %v339 = vextract.high.u32 %v337
        %v340 = vshrl.u32 %v339, 3
        %v341 = vmul.u32 %v340, 10
        %v342 = vsub.s32 %v336, %v341
        %v343 = vsub.s32 0, %v342
        %v344 = vsel %vm334, %v343, %v342
        %vm345 = vcmp.lt.s32.totalorder %v275, 0
        %v346 = vsub.s32 0, %v275
        %v347 = vsel %vm345, %v346, %v275
        %v348 = vmul.u32.u64.compose %v347, 3435973837
        %v349 = vextract.low.u32 %v348
        %v350 = vextract.high.u32 %v348
        %v351 = vshrl.u32 %v350, 3
        %v352 = vmul.u32 %v351, 10
        %v353 = vsub.s32 %v347, %v352
        %v354 = vsub.s32 0, %v353
        %v355 = vsel %vm345, %v354, %v353
        %vm356 = vcmp.lt.s32.totalorder %v276, 0
        %v357 = vsub.s32 0, %v276
        %v358 = vsel %vm356, %v357, %v276
        %v359 = vmul.u32.u64.compose %v358, 3435973837
        %v360 = vextract.low.u32 %v359
        %v361 = vextract.high.u32 %v359
        %v362 = vshrl.u32 %v361, 3
        %v363 = vmul.u32 %v362, 10
        %v364 = vsub.s32 %v358, %v363
        %v365 = vsub.s32 0, %v364
        %v366 = vsel %vm356, %v365, %v364
        %vm367 = vcmp.lt.s32.totalorder %v277, 0
        %v368 = vsub.s32 0, %v277
        %v369 = vsel %vm367, %v368, %v277
        %v370 = vmul.u32.u64.compose %v369, 3435973837
        %v371 = vextract.low.u32 %v370
        %v372 = vextract.high.u32 %v370
        %v373 = vshrl.u32 %v372, 3
        %v374 = vmul.u32 %v373, 10
        %v375 = vsub.s32 %v369, %v374
        %v376 = vsub.s32 0, %v375
        %v377 = vsel %vm367, %v376, %v375
        %vm378 = vcmp.lt.s32.totalorder %v278, 0
        %v379 = vsub.s32 0, %v278
        %v380 = vsel %vm378, %v379, %v278
        %v381 = vmul.u32.u64.compose %v380, 3435973837
        %v382 = vextract.low.u32 %v381
        %v383 = vextract.high.u32 %v381
        %v384 = vshrl.u32 %v383, 3
        %v385 = vmul.u32 %v384, 10
        %v386 = vsub.s32 %v380, %v385
        %v387 = vsub.s32 0, %v386
        %v388 = vsel %vm378, %v387, %v386
        %vm389 = vcmp.ne.s32.totalorder %v289, 0
        %vm390 = vcmp.ne.s32.totalorder %v300, 0
        %vm391 = vcmp.ne.s32.totalorder %v311, 0
        %vm392 = vcmp.ne.s32.totalorder %v322, 0
        %vm393 = vcmp.ne.s32.totalorder %v333, 0
        %vm394 = vcmp.ne.s32.totalorder %v344, 0
        %vm395 = vcmp.ne.s32.totalorder %v355, 0
        %vm396 = vcmp.ne.s32.totalorder %v366, 0
        %vm397 = vcmp.ne.s32.totalorder %v377, 0
        %vm398 = vcmp.ne.s32.totalorder %v388, 0
        %vm399 = vcmp.lt.s32.totalorder %v289, 0
        %vm400 = vcmp.lt.s32.totalorder %v300, 0
        %vm401 = vcmp.lt.s32.totalorder %v311, 0
        %vm402 = vcmp.lt.s32.totalorder %v322, 0
        %vm403 = vcmp.lt.s32.totalorder %v333, 0
        %vm404 = vcmp.lt.s32.totalorder %v344, 0
        %vm405 = vcmp.lt.s32.totalorder %v355, 0
        %vm406 = vcmp.lt.s32.totalorder %v366, 0
        %vm407 = vcmp.lt.s32.totalorder %v377, 0
        %vm408 = vcmp.lt.s32.totalorder %v388, 0
        %vm409 = vmand %vm399, %vm389
        %vm410 = vmand %vm400, %vm390
        %vm411 = vmand %vm401, %vm391
        %vm412 = vmand %vm402, %vm392
        %vm413 = vmand %vm403, %vm393
        %vm414 = vmand %vm404, %vm394
        %vm415 = vmand %vm405, %vm395
        %vm416 = vmand %vm406, %vm396
        %vm417 = vmand %vm407, %vm397
        %vm418 = vmand %vm408, %vm398
        %v419 = vadd.s32 %v289, 10
        %v420 = vadd.s32 %v300, 10
        %v421 = vadd.s32 %v311, 10
        %v422 = vadd.s32 %v322, 10
        %v423 = vadd.s32 %v333, 10
        %v424 = vadd.s32 %v344, 10
        %v425 = vadd.s32 %v355, 10
        %v426 = vadd.s32 %v366, 10
        %v427 = vadd.s32 %v377, 10
        %v428 = vadd.s32 %v388, 10
        %v429 = vsel %vm409, %v419, %v289
        %v430 = vsel %vm410, %v420, %v300
        %v431 = vsel %vm411, %v421, %v311
        %v432 = vsel %vm412, %v422, %v322
        %v433 = vsel %vm413, %v423, %v333
        %v434 = vsel %vm414, %v424, %v344
        %v435 = vsel %vm415, %v425, %v355
        %v436 = vsel %vm416, %v426, %v366
        %v437 = vsel %vm417, %v427, %v377
        %v438 = vsel %vm418, %v428, %v388
        %vm439 = vcmp.lt.s32.totalorder %v429, 8
        %vm440 = vcmp.lt.s32.totalorder %v430, 8
        %vm441 = vcmp.lt.s32.totalorder %v431, 8
        %vm442 = vcmp.lt.s32.totalorder %v432, 8
        %vm443 = vcmp.lt.s32.totalorder %v433, 8
        %vm444 = vcmp.lt.s32.totalorder %v434, 8
        %vm445 = vcmp.lt.s32.totalorder %v435, 8
        %vm446 = vcmp.lt.s32.totalorder %v436, 8
        %vm447 = vcmp.lt.s32.totalorder %v437, 8
        %vm448 = vcmp.lt.s32.totalorder %v438, 8
        %v449 = vld [vmem:[%s2] sm:$0x1]
        %v451 = vlaneseq
        %v452 = vshrl.u32 %v451, 7
        %v453 = vsub.s32 0, %v452
        %v454 = vrot.slane %v449, %v453
        %v456 = vld [vmem:[%s252] sm:$0xf]
        %v457 = vld [vmem:[%s252 + $0x4] sm:$0xf]
        %v458 = vld [vmem:[%s252 + $0x8] sm:$0xf]
        %v459 = vld [vmem:[%s252 + $0xc] sm:$0xf]
        %v460 = vld [vmem:[%s252 + $0x10] sm:$0xf]
        %v461 = vld [vmem:[%s252 + $0x14] sm:$0xf]
        %v462 = vld [vmem:[%s252 + $0x18] sm:$0xf]
        %v463 = vld [vmem:[%s252 + $0x1c] sm:$0xf]
        %v464 = vld [vmem:[%s252 + $0x20] sm:$0xf]
        %v465 = vld [vmem:[%s252 + $0x24] sm:$0xf]
        %v466 = vld [vmem:[#allocation3] sm:$0xf]
        %v467 = vld [vmem:[#allocation3 + $0x4] sm:$0xf]
        %v468 = vld [vmem:[#allocation3 + $0x8] sm:$0xf]
        %v469 = vld [vmem:[#allocation3 + $0xc] sm:$0xf]
        %v470 = vld [vmem:[#allocation3 + $0x10] sm:$0xf]
        %v471 = vld [vmem:[#allocation3 + $0x14] sm:$0xf]
        %v472 = vld [vmem:[#allocation3 + $0x18] sm:$0xf]
        %v473 = vld [vmem:[#allocation3 + $0x1c] sm:$0xf]
        %v474 = vld [vmem:[#allocation3 + $0x20] sm:$0xf]
        %v475 = vld [vmem:[#allocation3 + $0x24] sm:$0xf]
        %v476 = vld [vmem:[#allocation3 + $0x28] sm:$0xf]
        %v477 = vld [vmem:[#allocation3 + $0x2c] sm:$0xf]
        %v478 = vld [vmem:[#allocation3 + $0x30] sm:$0xf]
        %v479 = vld [vmem:[#allocation3 + $0x34] sm:$0xf]
        %v480 = vld [vmem:[#allocation3 + $0x38] sm:$0xf]
        %v481 = vld [vmem:[#allocation3 + $0x3c] sm:$0xf]
        %v492 = vunpack.c.l.b16 %v456
        %v493 = vunpack.c.l.b16 %v457
        %v494 = vunpack.c.l.b16 %v458
        %v495 = vunpack.c.l.b16 %v459
        %v496 = vunpack.c.l.b16 %v460
        %v497 = vunpack.c.l.b16 %v461
        %v498 = vunpack.c.l.b16 %v462
        %v499 = vunpack.c.l.b16 %v463
        %v500 = vunpack.c.l.b16 %v464
        %v501 = vunpack.c.l.b16 %v465
        %v502 = vpack.c.b16 %v493, %v492
        %v503 = vpack.c.b16 %v495, %v494
        %v504 = vpack.c.b16 %v497, %v496
        %v505 = vpack.c.b16 %v499, %v498
        %v506 = vpack.c.b16 %v501, %v500
        %v528 = vunpack.c.l.b16 %v466
        %v529 = vunpack.c.l.b16 %v467
        %v530 = vunpack.c.l.b16 %v468
        %v531 = vunpack.c.l.b16 %v469
        %v532 = vunpack.c.l.b16 %v470
        %v533 = vunpack.c.l.b16 %v471
        %v534 = vunpack.c.l.b16 %v472
        %v535 = vunpack.c.l.b16 %v473
        %v536 = vunpack.c.l.b16 %v474
        %v537 = vunpack.c.l.b16 %v475
        %v538 = vunpack.c.l.b16 %v476
        %v539 = vunpack.c.l.b16 %v477
        %v540 = vunpack.c.l.b16 %v478
        %v541 = vunpack.c.l.b16 %v479
        %v542 = vunpack.c.l.b16 %v480
        %v543 = vunpack.c.l.b16 %v481
        %v544 = vpack.c.b16 %v529, %v528
        %v545 = vpack.c.b16 %v531, %v530
        %v546 = vpack.c.b16 %v533, %v532
        %v547 = vpack.c.b16 %v535, %v534
        %v548 = vpack.c.b16 %v537, %v536
        %v549 = vpack.c.b16 %v539, %v538
        %v550 = vpack.c.b16 %v541, %v540
        %v551 = vpack.c.b16 %v543, %v542
        %560 = vmatprep.subr.bf16.mxu0 0
        %561 = vmatpush1.bf16.msra.mxu0 %v544
        %562 = vmatprep.subr.bf16.mxu0 0
        %563 = vmatpush1.bf16.msra.mxu0 %v545
        %564 = vmatprep.subr.bf16.mxu0 0
        %565 = vmatpush1.bf16.msra.mxu0 %v546
        %566 = vmatprep.subr.bf16.mxu0 0
        %567 = vmatpush1.bf16.msra.mxu0 %v547
        %568 = vmatprep.subr.bf16.mxu0 0
        %569 = vmatpush1.bf16.msra.mxu0 %v548
        %570 = vmatprep.subr.bf16.mxu0 0
        %571 = vmatpush1.bf16.msra.mxu0 %v549
        %572 = vmatprep.subr.bf16.mxu0 0
        %573 = vmatpush1.bf16.msra.mxu0 %v550
        %574 = vmatprep.subr.bf16.mxu0 0
        %575 = vmatpush1.bf16.msra.mxu0 %v551
        %576 = vmatprep.subr.bf16.mxu0 0
        %577 = vmatpush1.bf16.msra.mxu0 0
        %578 = vmatprep.subr.bf16.mxu0 0
        %579 = vmatpush1.bf16.msra.mxu0 0
        %580 = vmatprep.subr.bf16.mxu0 0
        %581 = vmatpush1.bf16.msra.mxu0 0
        %582 = vmatprep.subr.bf16.mxu0 0
        %583 = vmatpush1.bf16.msra.mxu0 0
        %584 = vmatprep.subr.bf16.mxu0 0
        %585 = vmatpush1.bf16.msra.mxu0 0
        %586 = vmatprep.subr.bf16.mxu0 0
        %587 = vmatpush1.bf16.msra.mxu0 0
        %588 = vmatprep.subr.bf16.mxu0 0
        %589 = vmatpush1.bf16.msra.mxu0 0
        %590 = vmatprep.subr.bf16.mxu0 0
        %591 = vmatpush1.bf16.msra.mxu0 0
        %592 = vmatprep.mubr.bf16.mxu0 0
        %593 = vmatmul.mubr.bf16.gmra.mrb[0].mxu0 %v502
        %v594 = vpop.f32.mrb[0].mxu0
        %v595 = vadd.f32 0.0, %v594
        %v596 = vpop.f32.mrb[0].mxu0
        %v597 = vpop.f32.mrb[0].mxu0
        %v598 = vadd.f32 0.0, %v597
        %v599 = vpop.f32.mrb[0].mxu0
        %600 = vmatprep.mubr.bf16.mxu0 0
        %601 = vmatmul.mubr.bf16.gmra.mrb[0].mxu0 %v503
        %v602 = vpop.f32.mrb[0].mxu0
        %v603 = vadd.f32 0.0, %v602
        %v604 = vpop.f32.mrb[0].mxu0
        %v605 = vpop.f32.mrb[0].mxu0
        %v606 = vadd.f32 0.0, %v605
        %v607 = vpop.f32.mrb[0].mxu0
        %608 = vmatprep.mubr.bf16.mxu0 0
        %609 = vmatmul.mubr.bf16.gmra.mrb[0].mxu0 %v504
        %v610 = vpop.f32.mrb[0].mxu0
        %v611 = vadd.f32 0.0, %v610
        %v612 = vpop.f32.mrb[0].mxu0
        %v613 = vpop.f32.mrb[0].mxu0
        %v614 = vadd.f32 0.0, %v613
        %v615 = vpop.f32.mrb[0].mxu0
        %616 = vmatprep.mubr.bf16.mxu0 0
        %617 = vmatmul.mubr.bf16.gmra.mrb[0].mxu0 %v505
        %v618 = vpop.f32.mrb[0].mxu0
        %v619 = vadd.f32 0.0, %v618
        %v620 = vpop.f32.mrb[0].mxu0
        %v621 = vpop.f32.mrb[0].mxu0
        %v622 = vadd.f32 0.0, %v621
        %v623 = vpop.f32.mrb[0].mxu0
        %624 = vmatprep.mubr.bf16.mxu0 0
        %625 = vmatmul.mubr.bf16.gmra.mrb[0].mxu0 %v506
        %v626 = vpop.f32.mrb[0].mxu0
        %v627 = vadd.f32 0.0, %v626
        %v628 = vpop.f32.mrb[0].mxu0
        %v629 = vpop.f32.mrb[0].mxu0
        %v630 = vadd.f32 0.0, %v629
        %v631 = vpop.f32.mrb[0].mxu0
        %632 = vdwg.mxu0
        %v633 = vadd.f32 %v454, %v595
        %v634 = vadd.f32 %v454, %v598
        %v635 = vadd.f32 %v454, %v603
        %v636 = vadd.f32 %v454, %v606
        %v637 = vadd.f32 %v454, %v611
        %v638 = vadd.f32 %v454, %v614
        %v639 = vadd.f32 %v454, %v619
        %v640 = vadd.f32 %v454, %v622
        %v641 = vadd.f32 %v454, %v627
        %v642 = vadd.f32 %v454, %v630
        %v643 = vld [vmem:[%s252] sm:$0xf]
        %v644 = vld [vmem:[%s252 + $0x4] sm:$0xf]
        %v645 = vld [vmem:[%s252 + $0x8] sm:$0xf]
        %v646 = vld [vmem:[%s252 + $0xc] sm:$0xf]
        %v647 = vld [vmem:[%s252 + $0x10] sm:$0xf]
        %v648 = vld [vmem:[%s252 + $0x14] sm:$0xf]
        %v649 = vld [vmem:[%s252 + $0x18] sm:$0xf]
        %v650 = vld [vmem:[%s252 + $0x1c] sm:$0xf]
        %v651 = vld [vmem:[%s252 + $0x20] sm:$0xf]
        %v652 = vld [vmem:[%s252 + $0x24] sm:$0xf]
        %v653 = vld [vmem:[%s252 + $0x28] sm:$0x1]
        %s654 = scalar_lea.vmem [#allocation3], 64
        %v655 = vld [vmem:[%s654] sm:$0xf]
        %v656 = vld [vmem:[%s654 + $0x4] sm:$0xf]
        %v657 = vld [vmem:[%s654 + $0x8] sm:$0xf]
        %v658 = vld [vmem:[%s654 + $0xc] sm:$0xf]
        %v659 = vld [vmem:[%s654 + $0x10] sm:$0xf]
        %v660 = vld [vmem:[%s654 + $0x14] sm:$0xf]
        %v661 = vld [vmem:[%s654 + $0x18] sm:$0xf]
        %v662 = vld [vmem:[%s654 + $0x1c] sm:$0xf]
        %v663 = vld [vmem:[%s654 + $0x20] sm:$0xf]
        %v664 = vld [vmem:[%s654 + $0x24] sm:$0xf]
        %v665 = vld [vmem:[%s654 + $0x28] sm:$0xf]
        %v666 = vld [vmem:[%s654 + $0x2c] sm:$0xf]
        %v667 = vld [vmem:[%s654 + $0x30] sm:$0xf]
        %v668 = vld [vmem:[%s654 + $0x34] sm:$0xf]
        %v669 = vld [vmem:[%s654 + $0x38] sm:$0xf]
        %v670 = vld [vmem:[%s654 + $0x3c] sm:$0xf]
        %v682 = vunpack.c.l.b16 %v643
        %v683 = vunpack.c.l.b16 %v644
        %v684 = vunpack.c.l.b16 %v645
        %v685 = vunpack.c.l.b16 %v646
        %v686 = vunpack.c.l.b16 %v647
        %v687 = vunpack.c.l.b16 %v648
        %v688 = vunpack.c.l.b16 %v649
        %v689 = vunpack.c.l.b16 %v650
        %v690 = vunpack.c.l.b16 %v651
        %v691 = vunpack.c.l.b16 %v652
        %v692 = vunpack.c.l.b16 %v653
        %v693 = vpack.c.b16 %v683, %v682
        %v694 = vpack.c.b16 %v685, %v684
        %v695 = vpack.c.b16 %v687, %v686
        %v696 = vpack.c.b16 %v689, %v688
        %v697 = vpack.c.b16 %v691, %v690
        %v698 = vpack.c.b16 %v692, %v692
        %vm699 = vsmask.f32 7424
        %v701 = vshrl.u32 %v693, 16
        %v703 = vshll.u32 %v693, 16
        %v705 = vrot.slane %v703, 1
        %v706 = vor.u32 %v701, %v705
        %v708 = vshll.u32 %v694, 16
        %v710 = vrot.slane %v708, 1
        %v711 = vsel %vm699, %v706, %v710
        %v712 = vshrl.u32 %v694, 16
        %v714 = vor.u32 %v712, %v710
        %v716 = vshll.u32 %v695, 16
        %v718 = vrot.slane %v716, 1
        %v719 = vsel %vm699, %v714, %v718
        %v720 = vshrl.u32 %v695, 16
        %v722 = vor.u32 %v720, %v718
        %v724 = vshll.u32 %v696, 16
        %v726 = vrot.slane %v724, 1
        %v727 = vsel %vm699, %v722, %v726
        %v728 = vshrl.u32 %v696, 16
        %v730 = vor.u32 %v728, %v726
        %v732 = vshll.u32 %v697, 16
        %v734 = vrot.slane %v732, 1
        %v735 = vsel %vm699, %v730, %v734
        %v736 = vshrl.u32 %v697, 16
        %v738 = vor.u32 %v736, %v734
        %v740 = vshll.u32 %v698, 16
        %v742 = vrot.slane %v740, 1
        %v743 = vsel %vm699, %v738, %v742
        %v765 = vunpack.c.l.b16 %v655
        %v766 = vunpack.c.l.b16 %v656
        %v767 = vunpack.c.l.b16 %v657
        %v768 = vunpack.c.l.b16 %v658
        %v769 = vunpack.c.l.b16 %v659
        %v770 = vunpack.c.l.b16 %v660
        %v771 = vunpack.c.l.b16 %v661
        %v772 = vunpack.c.l.b16 %v662
        %v773 = vunpack.c.l.b16 %v663
        %v774 = vunpack.c.l.b16 %v664
        %v775 = vunpack.c.l.b16 %v665
        %v776 = vunpack.c.l.b16 %v666
        %v777 = vunpack.c.l.b16 %v667
        %v778 = vunpack.c.l.b16 %v668
        %v779 = vunpack.c.l.b16 %v669
        %v780 = vunpack.c.l.b16 %v670
        %v781 = vpack.c.b16 %v766, %v765
        %v782 = vpack.c.b16 %v768, %v767
        %v783 = vpack.c.b16 %v770, %v769
        %v784 = vpack.c.b16 %v772, %v771
        %v785 = vpack.c.b16 %v774, %v773
        %v786 = vpack.c.b16 %v776, %v775
        %v787 = vpack.c.b16 %v778, %v777
        %v788 = vpack.c.b16 %v780, %v779
        %797 = vmatprep.subr.bf16.mxu0 0
        %798 = vmatpush1.bf16.msra.mxu0 %v781
        %799 = vmatprep.subr.bf16.mxu0 0
        %800 = vmatpush1.bf16.msra.mxu0 %v782
        %801 = vmatprep.subr.bf16.mxu0 0
        %802 = vmatpush1.bf16.msra.mxu0 %v783
        %803 = vmatprep.subr.bf16.mxu0 0
        %804 = vmatpush1.bf16.msra.mxu0 %v784
        %805 = vmatprep.subr.bf16.mxu0 0
        %806 = vmatpush1.bf16.msra.mxu0 %v785
        %807 = vmatprep.subr.bf16.mxu0 0
        %808 = vmatpush1.bf16.msra.mxu0 %v786
        %809 = vmatprep.subr.bf16.mxu0 0
        %810 = vmatpush1.bf16.msra.mxu0 %v787
        %811 = vmatprep.subr.bf16.mxu0 0
        %812 = vmatpush1.bf16.msra.mxu0 %v788
        %813 = vmatprep.subr.bf16.mxu0 0
        %814 = vmatpush1.bf16.msra.mxu0 0
        %815 = vmatprep.subr.bf16.mxu0 0
        %816 = vmatpush1.bf16.msra.mxu0 0
        %817 = vmatprep.subr.bf16.mxu0 0
        %818 = vmatpush1.bf16.msra.mxu0 0
        %819 = vmatprep.subr.bf16.mxu0 0
        %820 = vmatpush1.bf16.msra.mxu0 0
        %821 = vmatprep.subr.bf16.mxu0 0
        %822 = vmatpush1.bf16.msra.mxu0 0
        %823 = vmatprep.subr.bf16.mxu0 0
        %824 = vmatpush1.bf16.msra.mxu0 0
        %825 = vmatprep.subr.bf16.mxu0 0
        %826 = vmatpush1.bf16.msra.mxu0 0
        %827 = vmatprep.subr.bf16.mxu0 0
        %828 = vmatpush1.bf16.msra.mxu0 0
        %829 = vmatprep.mubr.bf16.mxu0 0
        %830 = vmatmul.mubr.bf16.gmra.mrb[0].mxu0 %v711
        %v831 = vpop.f32.mrb[0].mxu0
        %v832 = vadd.f32 0.0, %v831
        %v833 = vpop.f32.mrb[0].mxu0
        %v834 = vpop.f32.mrb[0].mxu0
        %v835 = vadd.f32 0.0, %v834
        %v836 = vpop.f32.mrb[0].mxu0
        %837 = vmatprep.mubr.bf16.mxu0 0
        %838 = vmatmul.mubr.bf16.gmra.mrb[0].mxu0 %v719
        %v839 = vpop.f32.mrb[0].mxu0
        %v840 = vadd.f32 0.0, %v839
        %v841 = vpop.f32.mrb[0].mxu0
        %v842 = vpop.f32.mrb[0].mxu0
        %v843 = vadd.f32 0.0, %v842
        %v844 = vpop.f32.mrb[0].mxu0
        %845 = vmatprep.mubr.bf16.mxu0 0
        %846 = vmatmul.mubr.bf16.gmra.mrb[0].mxu0 %v727
        %v847 = vpop.f32.mrb[0].mxu0
        %v848 = vadd.f32 0.0, %v847
        %v849 = vpop.f32.mrb[0].mxu0
        %v850 = vpop.f32.mrb[0].mxu0
        %v851 = vadd.f32 0.0, %v850
        %v852 = vpop.f32.mrb[0].mxu0
        %853 = vmatprep.mubr.bf16.mxu0 0
        %854 = vmatmul.mubr.bf16.gmra.mrb[0].mxu0 %v735
        %v855 = vpop.f32.mrb[0].mxu0
        %v856 = vadd.f32 0.0, %v855
        %v857 = vpop.f32.mrb[0].mxu0
        %v858 = vpop.f32.mrb[0].mxu0
        %v859 = vadd.f32 0.0, %v858
        %v860 = vpop.f32.mrb[0].mxu0
        %861 = vmatprep.mubr.bf16.mxu0 0
        %862 = vmatmul.mubr.bf16.gmra.mrb[0].mxu0 %v743
        %v863 = vpop.f32.mrb[0].mxu0
        %v864 = vadd.f32 0.0, %v863
        %v865 = vpop.f32.mrb[0].mxu0
        %v866 = vpop.f32.mrb[0].mxu0
        %v867 = vadd.f32 0.0, %v866
        %v868 = vpop.f32.mrb[0].mxu0
        %869 = vdwg.mxu0
        %v870 = vadd.f32 %v633, %v832
        %v871 = vadd.f32 %v634, %v835
        %v872 = vadd.f32 %v635, %v840
        %v873 = vadd.f32 %v636, %v843
        %v874 = vadd.f32 %v637, %v848
        %v875 = vadd.f32 %v638, %v851
        %v876 = vadd.f32 %v639, %v856
        %v877 = vadd.f32 %v640, %v859
        %v878 = vadd.f32 %v641, %v864
        %v879 = vadd.f32 %v642, %v867
        %v880 = vld [vmem:[%s252] sm:$0xe]
        %s881 = scalar_lea.vmem [#allocation3], 128
        %v882 = vld [vmem:[%s881] sm:$0xf]
        %v883 = vld [vmem:[%s881 + $0x4] sm:$0xf]
        %v884 = vld [vmem:[%s881 + $0x8] sm:$0xf]
        %v885 = vld [vmem:[%s881 + $0xc] sm:$0xf]
        %v886 = vld [vmem:[%s881 + $0x10] sm:$0xf]
        %v887 = vld [vmem:[%s881 + $0x14] sm:$0xf]
        %v888 = vld [vmem:[%s881 + $0x18] sm:$0xf]
        %v889 = vld [vmem:[%s881 + $0x1c] sm:$0xf]
        %v890 = vld [vmem:[%s881 + $0x20] sm:$0xf]
        %v891 = vld [vmem:[%s881 + $0x24] sm:$0xf]
        %v892 = vld [vmem:[%s881 + $0x28] sm:$0xf]
        %v893 = vld [vmem:[%s881 + $0x2c] sm:$0xf]
        %v894 = vld [vmem:[%s881 + $0x30] sm:$0xf]
        %v895 = vld [vmem:[%s881 + $0x34] sm:$0xf]
        %v896 = vld [vmem:[%s881 + $0x38] sm:$0xf]
        %v897 = vld [vmem:[%s881 + $0x3c] sm:$0xf]
        %v899 = vunpack.c.l.b16 %v880
        %v900 = vpack.c.b16 %v683, %v899
        %vm901 = vcmask 1046528
        %v902 = vrot.slane %v900, 1
        %v903 = vrot.slane %v694, 1
        %v904 = vsel %vm901, %v902, %v903
        %v905 = vrot.slane %v695, 1
        %v906 = vsel %vm901, %v903, %v905
        %v907 = vrot.slane %v696, 1
        %v908 = vsel %vm901, %v905, %v907
        %v909 = vrot.slane %v697, 1
        %v910 = vsel %vm901, %v907, %v909
        %v911 = vrot.slane %v698, 1
        %v912 = vsel %vm901, %v909, %v911
        %v934 = vunpack.c.l.b16 %v882
        %v935 = vunpack.c.l.b16 %v883
        %v936 = vunpack.c.l.b16 %v884
        %v937 = vunpack.c.l.b16 %v885
        %v938 = vunpack.c.l.b16 %v886
        %v939 = vunpack.c.l.b16 %v887
        %v940 = vunpack.c.l.b16 %v888
        %v941 = vunpack.c.l.b16 %v889
        %v942 = vunpack.c.l.b16 %v890
        %v943 = vunpack.c.l.b16 %v891
        %v944 = vunpack.c.l.b16 %v892
        %v945 = vunpack.c.l.b16 %v893
        %v946 = vunpack.c.l.b16 %v894
        %v947 = vunpack.c.l.b16 %v895
        %v948 = vunpack.c.l.b16 %v896
        %v949 = vunpack.c.l.b16 %v897
        %v950 = vpack.c.b16 %v935, %v934
        %v951 = vpack.c.b16 %v937, %v936
        %v952 = vpack.c.b16 %v939, %v938
        %v953 = vpack.c.b16 %v941, %v940
        %v954 = vpack.c.b16 %v943, %v942
        %v955 = vpack.c.b16 %v945, %v944
        %v956 = vpack.c.b16 %v947, %v946
        %v957 = vpack.c.b16 %v949, %v948
        %966 = vmatprep.subr.bf16.mxu0 0
        %967 = vmatpush1.bf16.msra.mxu0 %v950
        %968 = vmatprep.subr.bf16.mxu0 0
        %969 = vmatpush1.bf16.msra.mxu0 %v951
        %970 = vmatprep.subr.bf16.mxu0 0
        %971 = vmatpush1.bf16.msra.mxu0 %v952
        %972 = vmatprep.subr.bf16.mxu0 0
        %973 = vmatpush1.bf16.msra.mxu0 %v953
        %974 = vmatprep.subr.bf16.mxu0 0
        %975 = vmatpush1.bf16.msra.mxu0 %v954
        %976 = vmatprep.subr.bf16.mxu0 0
        %977 = vmatpush1.bf16.msra.mxu0 %v955
        %978 = vmatprep.subr.bf16.mxu0 0
        %979 = vmatpush1.bf16.msra.mxu0 %v956
        %980 = vmatprep.subr.bf16.mxu0 0
        %981 = vmatpush1.bf16.msra.mxu0 %v957
        %982 = vmatprep.subr.bf16.mxu0 0
        %983 = vmatpush1.bf16.msra.mxu0 0
        %984 = vmatprep.subr.bf16.mxu0 0
        %985 = vmatpush1.bf16.msra.mxu0 0
        %986 = vmatprep.subr.bf16.mxu0 0
        %987 = vmatpush1.bf16.msra.mxu0 0
        %988 = vmatprep.subr.bf16.mxu0 0
        %989 = vmatpush1.bf16.msra.mxu0 0
        %990 = vmatprep.subr.bf16.mxu0 0
        %991 = vmatpush1.bf16.msra.mxu0 0
        %992 = vmatprep.subr.bf16.mxu0 0
        %993 = vmatpush1.bf16.msra.mxu0 0
        %994 = vmatprep.subr.bf16.mxu0 0
        %995 = vmatpush1.bf16.msra.mxu0 0
        %996 = vmatprep.subr.bf16.mxu0 0
        %997 = vmatpush1.bf16.msra.mxu0 0
        %998 = vmatprep.mubr.bf16.mxu0 0
        %999 = vmatmul.mubr.bf16.gmra.mrb[0].mxu0 %v904
        %v1000 = vpop.f32.mrb[0].mxu0
        %v1001 = vadd.f32 0.0, %v1000
        %v1002 = vpop.f32.mrb[0].mxu0
        %v1003 = vpop.f32.mrb[0].mxu0
        %v1004 = vadd.f32 0.0, %v1003
        %v1005 = vpop.f32.mrb[0].mxu0
        %1006 = vmatprep.mubr.bf16.mxu0 0
        %1007 = vmatmul.mubr.bf16.gmra.mrb[0].mxu0 %v906
        %v1008 = vpop.f32.mrb[0].mxu0
        %v1009 = vadd.f32 0.0, %v1008
        %v1010 = vpop.f32.mrb[0].mxu0
        %v1011 = vpop.f32.mrb[0].mxu0
        %v1012 = vadd.f32 0.0, %v1011
        %v1013 = vpop.f32.mrb[0].mxu0
        %1014 = vmatprep.mubr.bf16.mxu0 0
        %1015 = vmatmul.mubr.bf16.gmra.mrb[0].mxu0 %v908
        %v1016 = vpop.f32.mrb[0].mxu0
        %v1017 = vadd.f32 0.0, %v1016
        %v1018 = vpop.f32.mrb[0].mxu0
        %v1019 = vpop.f32.mrb[0].mxu0
        %v1020 = vadd.f32 0.0, %v1019
        %v1021 = vpop.f32.mrb[0].mxu0
        %1022 = vmatprep.mubr.bf16.mxu0 0
        %1023 = vmatmul.mubr.bf16.gmra.mrb[0].mxu0 %v910
        %v1024 = vpop.f32.mrb[0].mxu0
        %v1025 = vadd.f32 0.0, %v1024
        %v1026 = vpop.f32.mrb[0].mxu0
        %v1027 = vpop.f32.mrb[0].mxu0
        %v1028 = vadd.f32 0.0, %v1027
        %v1029 = vpop.f32.mrb[0].mxu0
        %1030 = vmatprep.mubr.bf16.mxu0 0
        %1031 = vmatmul.mubr.bf16.gmra.mrb[0].mxu0 %v912
        %v1032 = vpop.f32.mrb[0].mxu0
        %v1033 = vadd.f32 0.0, %v1032
        %v1034 = vpop.f32.mrb[0].mxu0
        %v1035 = vpop.f32.mrb[0].mxu0
        %v1036 = vadd.f32 0.0, %v1035
        %v1037 = vpop.f32.mrb[0].mxu0
        %1038 = vdwg.mxu0
        %v1039 = vadd.f32 %v870, %v1001
        %v1040 = vadd.f32 %v871, %v1004
        %v1041 = vadd.f32 %v872, %v1009
        %v1042 = vadd.f32 %v873, %v1012
        %v1043 = vadd.f32 %v874, %v1017
        %v1044 = vadd.f32 %v875, %v1020
        %v1045 = vadd.f32 %v876, %v1025
        %v1046 = vadd.f32 %v877, %v1028
        %v1047 = vadd.f32 %v878, %v1033
        %v1048 = vadd.f32 %v879, %v1036
        %v1049 = vld [vmem:[%s252 + $0x4] sm:$0xe]
        %v1050 = vld [vmem:[%s252 + $0x8] sm:$0xf]
        %v1051 = vld [vmem:[%s252 + $0xc] sm:$0xf]
        %v1052 = vld [vmem:[%s252 + $0x10] sm:$0xf]
        %v1053 = vld [vmem:[%s252 + $0x14] sm:$0xf]
        %v1054 = vld [vmem:[%s252 + $0x18] sm:$0xf]
        %v1055 = vld [vmem:[%s252 + $0x1c] sm:$0xf]
        %v1056 = vld [vmem:[%s252 + $0x20] sm:$0xf]
        %v1057 = vld [vmem:[%s252 + $0x24] sm:$0xf]
        %v1058 = vld [vmem:[%s252 + $0x28] sm:$0xf]
        %v1059 = vld [vmem:[%s252 + $0x2c] sm:$0x1]
        %s1060 = scalar_lea.vmem [#allocation3], 192
        %v1061 = vld [vmem:[%s1060] sm:$0xf]
        %v1062 = vld [vmem:[%s1060 + $0x4] sm:$0xf]
        %v1063 = vld [vmem:[%s1060 + $0x8] sm:$0xf]
        %v1064 = vld [vmem:[%s1060 + $0xc] sm:$0xf]
        %v1065 = vld [vmem:[%s1060 + $0x10] sm:$0xf]
        %v1066 = vld [vmem:[%s1060 + $0x14] sm:$0xf]
        %v1067 = vld [vmem:[%s1060 + $0x18] sm:$0xf]
        %v1068 = vld [vmem:[%s1060 + $0x1c] sm:$0xf]
        %v1069 = vld [vmem:[%s1060 + $0x20] sm:$0xf]
        %v1070 = vld [vmem:[%s1060 + $0x24] sm:$0xf]
        %v1071 = vld [vmem:[%s1060 + $0x28] sm:$0xf]
        %v1072 = vld [vmem:[%s1060 + $0x2c] sm:$0xf]
        %v1073 = vld [vmem:[%s1060 + $0x30] sm:$0xf]
        %v1074 = vld [vmem:[%s1060 + $0x34] sm:$0xf]
        %v1075 = vld [vmem:[%s1060 + $0x38] sm:$0xf]
        %v1076 = vld [vmem:[%s1060 + $0x3c] sm:$0xf]
        %v1088 = vunpack.c.l.b16 %v1049
        %v1089 = vunpack.c.l.b16 %v1050
        %v1090 = vunpack.c.l.b16 %v1051
        %v1091 = vunpack.c.l.b16 %v1052
        %v1092 = vunpack.c.l.b16 %v1053
        %v1093 = vunpack.c.l.b16 %v1054
        %v1094 = vunpack.c.l.b16 %v1055
        %v1095 = vunpack.c.l.b16 %v1056
        %v1096 = vunpack.c.l.b16 %v1057
        %v1097 = vunpack.c.l.b16 %v1058
        %v1098 = vunpack.c.l.b16 %v1059
        %v1099 = vpack.c.b16 %v1089, %v1088
        %v1100 = vpack.c.b16 %v1091, %v1090
        %v1101 = vpack.c.b16 %v1093, %v1092
        %v1102 = vpack.c.b16 %v1095, %v1094
        %v1103 = vpack.c.b16 %v1097, %v1096
        %v1104 = vpack.c.b16 %v1098, %v1098
        %v1105 = vrot.slane %v1099, 1
        %v1106 = vrot.slane %v1100, 1
        %v1107 = vsel %vm901, %v1105, %v1106
        %v1108 = vrot.slane %v1101, 1
        %v1109 = vsel %vm901, %v1106, %v1108
        %v1110 = vrot.slane %v1102, 1
        %v1111 = vsel %vm901, %v1108, %v1110
        %v1112 = vrot.slane %v1103, 1
        %v1113 = vsel %vm901, %v1110, %v1112
        %v1114 = vrot.slane %v1104, 1
        %v1115 = vsel %vm901, %v1112, %v1114
        %v1137 = vunpack.c.l.b16 %v1061
        %v1138 = vunpack.c.l.b16 %v1062
        %v1139 = vunpack.c.l.b16 %v1063
        %v1140 = vunpack.c.l.b16 %v1064
        %v1141 = vunpack.c.l.b16 %v1065
        %v1142 = vunpack.c.l.b16 %v1066
        %v1143 = vunpack.c.l.b16 %v1067
        %v1144 = vunpack.c.l.b16 %v1068
        %v1145 = vunpack.c.l.b16 %v1069
        %v1146 = vunpack.c.l.b16 %v1070
        %v1147 = vunpack.c.l.b16 %v1071
        %v1148 = vunpack.c.l.b16 %v1072
        %v1149 = vunpack.c.l.b16 %v1073
        %v1150 = vunpack.c.l.b16 %v1074
        %v1151 = vunpack.c.l.b16 %v1075
        %v1152 = vunpack.c.l.b16 %v1076
        %v1153 = vpack.c.b16 %v1138, %v1137
        %v1154 = vpack.c.b16 %v1140, %v1139
        %v1155 = vpack.c.b16 %v1142, %v1141
        %v1156 = vpack.c.b16 %v1144, %v1143
        %v1157 = vpack.c.b16 %v1146, %v1145
        %v1158 = vpack.c.b16 %v1148, %v1147
        %v1159 = vpack.c.b16 %v1150, %v1149
        %v1160 = vpack.c.b16 %v1152, %v1151
        %1169 = vmatprep.subr.bf16.mxu0 0
        %1170 = vmatpush1.bf16.msra.mxu0 %v1153
        %1171 = vmatprep.subr.bf16.mxu0 0
        %1172 = vmatpush1.bf16.msra.mxu0 %v1154
        %1173 = vmatprep.subr.bf16.mxu0 0
        %1174 = vmatpush1.bf16.msra.mxu0 %v1155
        %1175 = vmatprep.subr.bf16.mxu0 0
        %1176 = vmatpush1.bf16.msra.mxu0 %v1156
        %1177 = vmatprep.subr.bf16.mxu0 0
        %1178 = vmatpush1.bf16.msra.mxu0 %v1157
        %1179 = vmatprep.subr.bf16.mxu0 0
        %1180 = vmatpush1.bf16.msra.mxu0 %v1158
        %1181 = vmatprep.subr.bf16.mxu0 0
        %1182 = vmatpush1.bf16.msra.mxu0 %v1159
        %1183 = vmatprep.subr.bf16.mxu0 0
        %1184 = vmatpush1.bf16.msra.mxu0 %v1160
        %1185 = vmatprep.subr.bf16.mxu0 0
        %1186 = vmatpush1.bf16.msra.mxu0 0
        %1187 = vmatprep.subr.bf16.mxu0 0
        %1188 = vmatpush1.bf16.msra.mxu0 0
        %1189 = vmatprep.subr.bf16.mxu0 0
        %1190 = vmatpush1.bf16.msra.mxu0 0
        %1191 = vmatprep.subr.bf16.mxu0 0
        %1192 = vmatpush1.bf16.msra.mxu0 0
        %1193 = vmatprep.subr.bf16.mxu0 0
        %1194 = vmatpush1.bf16.msra.mxu0 0
        %1195 = vmatprep.subr.bf16.mxu0 0
        %1196 = vmatpush1.bf16.msra.mxu0 0
        %1197 = vmatprep.subr.bf16.mxu0 0
        %1198 = vmatpush1.bf16.msra.mxu0 0
        %1199 = vmatprep.subr.bf16.mxu0 0
        %1200 = vmatpush1.bf16.msra.mxu0 0
        %1201 = vmatprep.mubr.bf16.mxu0 0
        %1202 = vmatmul.mubr.bf16.gmra.mrb[0].mxu0 %v1107
        %v1203 = vpop.f32.mrb[0].mxu0
        %v1204 = vadd.f32 0.0, %v1203
        %v1205 = vpop.f32.mrb[0].mxu0
        %v1206 = vpop.f32.mrb[0].mxu0
        %v1207 = vadd.f32 0.0, %v1206
        %v1208 = vpop.f32.mrb[0].mxu0
        %1209 = vmatprep.mubr.bf16.mxu0 0
        %1210 = vmatmul.mubr.bf16.gmra.mrb[0].mxu0 %v1109
        %v1211 = vpop.f32.mrb[0].mxu0
        %v1212 = vadd.f32 0.0, %v1211
        %v1213 = vpop.f32.mrb[0].mxu0
        %v1214 = vpop.f32.mrb[0].mxu0
        %v1215 = vadd.f32 0.0, %v1214
        %v1216 = vpop.f32.mrb[0].mxu0
        %1217 = vmatprep.mubr.bf16.mxu0 0
        %1218 = vmatmul.mubr.bf16.gmra.mrb[0].mxu0 %v1111
        %v1219 = vpop.f32.mrb[0].mxu0
        %v1220 = vadd.f32 0.0, %v1219
        %v1221 = vpop.f32.mrb[0].mxu0
        %v1222 = vpop.f32.mrb[0].mxu0
        %v1223 = vadd.f32 0.0, %v1222
        %v1224 = vpop.f32.mrb[0].mxu0
        %1225 = vmatprep.mubr.bf16.mxu0 0
        %1226 = vmatmul.mubr.bf16.gmra.mrb[0].mxu0 %v1113
        %v1227 = vpop.f32.mrb[0].mxu0
        %v1228 = vadd.f32 0.0, %v1227
        %v1229 = vpop.f32.mrb[0].mxu0
        %v1230 = vpop.f32.mrb[0].mxu0
        %v1231 = vadd.f32 0.0, %v1230
        %v1232 = vpop.f32.mrb[0].mxu0
        %1233 = vmatprep.mubr.bf16.mxu0 0
        %1234 = vmatmul.mubr.bf16.gmra.mrb[0].mxu0 %v1115
        %v1235 = vpop.f32.mrb[0].mxu0
        %v1236 = vadd.f32 0.0, %v1235
        %v1237 = vpop.f32.mrb[0].mxu0
        %v1238 = vpop.f32.mrb[0].mxu0
        %v1239 = vadd.f32 0.0, %v1238
        %v1240 = vpop.f32.mrb[0].mxu0
        %1241 = vdwg.mxu0
        %v1242 = vadd.f32 %v1039, %v1204
        %v1243 = vadd.f32 %v1040, %v1207
        %v1244 = vadd.f32 %v1041, %v1212
        %v1245 = vadd.f32 %v1042, %v1215
        %v1246 = vadd.f32 %v1043, %v1220
        %v1247 = vadd.f32 %v1044, %v1223
        %v1248 = vadd.f32 %v1045, %v1228
        %v1249 = vadd.f32 %v1046, %v1231
        %v1250 = vadd.f32 %v1047, %v1236
        %v1251 = vadd.f32 %v1048, %v1239
        %v1252 = vld [vmem:[%s252 + $0x2c] sm:$0x3]
        %s1253 = scalar_lea.vmem [#allocation3], 256
        %v1254 = vld [vmem:[%s1253] sm:$0xf]
        %v1255 = vld [vmem:[%s1253 + $0x4] sm:$0xf]
        %v1256 = vld [vmem:[%s1253 + $0x8] sm:$0xf]
        %v1257 = vld [vmem:[%s1253 + $0xc] sm:$0xf]
        %v1258 = vld [vmem:[%s1253 + $0x10] sm:$0xf]
        %v1259 = vld [vmem:[%s1253 + $0x14] sm:$0xf]
        %v1260 = vld [vmem:[%s1253 + $0x18] sm:$0xf]
        %v1261 = vld [vmem:[%s1253 + $0x1c] sm:$0xf]
        %v1262 = vld [vmem:[%s1253 + $0x20] sm:$0xf]
        %v1263 = vld [vmem:[%s1253 + $0x24] sm:$0xf]
        %v1264 = vld [vmem:[%s1253 + $0x28] sm:$0xf]
        %v1265 = vld [vmem:[%s1253 + $0x2c] sm:$0xf]
        %v1266 = vld [vmem:[%s1253 + $0x30] sm:$0xf]
        %v1267 = vld [vmem:[%s1253 + $0x34] sm:$0xf]
        %v1268 = vld [vmem:[%s1253 + $0x38] sm:$0xf]
        %v1269 = vld [vmem:[%s1253 + $0x3c] sm:$0xf]
        %v1271 = vunpack.c.l.b16 %v1252
        %v1272 = vpack.c.b16 %v1271, %v1271
        %vm1273 = vsmask.f32 6400
        %v1275 = vshrl.u32 %v1099, 16
        %v1277 = vrot.slane %v1275, 1
        %v1278 = vshll.u32 %v1099, 16
        %v1280 = vrot.slane %v1278, 2
        %v1281 = vor.u32 %v1277, %v1280
        %v1283 = vshrl.u32 %v1100, 16
        %v1285 = vrot.slane %v1283, 1
        %v1286 = vshll.u32 %v1100, 16
        %v1288 = vrot.slane %v1286, 2
        %v1289 = vor.u32 %v1285, %v1288
        %v1290 = vsel %vm1273, %v1281, %v1289
        %v1292 = vshrl.u32 %v1101, 16
        %v1294 = vrot.slane %v1292, 1
        %v1295 = vshll.u32 %v1101, 16
        %v1297 = vrot.slane %v1295, 2
        %v1298 = vor.u32 %v1294, %v1297
        %v1299 = vsel %vm1273, %v1289, %v1298
        %v1301 = vshrl.u32 %v1102, 16
        %v1303 = vrot.slane %v1301, 1
        %v1304 = vshll.u32 %v1102, 16
        %v1306 = vrot.slane %v1304, 2
        %v1307 = vor.u32 %v1303, %v1306
        %v1308 = vsel %vm1273, %v1298, %v1307
        %v1310 = vshrl.u32 %v1103, 16
        %v1312 = vrot.slane %v1310, 1
        %v1313 = vshll.u32 %v1103, 16
        %v1315 = vrot.slane %v1313, 2
        %v1316 = vor.u32 %v1312, %v1315
        %v1317 = vsel %vm1273, %v1307, %v1316
        %v1319 = vshrl.u32 %v1272, 16
        %v1321 = vrot.slane %v1319, 1
        %v1322 = vshll.u32 %v1272, 16
        %v1324 = vrot.slane %v1322, 2
        %v1325 = vor.u32 %v1321, %v1324
        %v1326 = vsel %vm1273, %v1316, %v1325
        %v1348 = vunpack.c.l.b16 %v1254
        %v1349 = vunpack.c.l.b16 %v1255
        %v1350 = vunpack.c.l.b16 %v1256
        %v1351 = vunpack.c.l.b16 %v1257
        %v1352 = vunpack.c.l.b16 %v1258
        %v1353 = vunpack.c.l.b16 %v1259
        %v1354 = vunpack.c.l.b16 %v1260
        %v1355 = vunpack.c.l.b16 %v1261
        %v1356 = vunpack.c.l.b16 %v1262
        %v1357 = vunpack.c.l.b16 %v1263
        %v1358 = vunpack.c.l.b16 %v1264
        %v1359 = vunpack.c.l.b16 %v1265
        %v1360 = vunpack.c.l.b16 %v1266
        %v1361 = vunpack.c.l.b16 %v1267
        %v1362 = vunpack.c.l.b16 %v1268
        %v1363 = vunpack.c.l.b16 %v1269
        %v1364 = vpack.c.b16 %v1349, %v1348
        %v1365 = vpack.c.b16 %v1351, %v1350
        %v1366 = vpack.c.b16 %v1353, %v1352
        %v1367 = vpack.c.b16 %v1355, %v1354
        %v1368 = vpack.c.b16 %v1357, %v1356
        %v1369 = vpack.c.b16 %v1359, %v1358
        %v1370 = vpack.c.b16 %v1361, %v1360
        %v1371 = vpack.c.b16 %v1363, %v1362
        %1380 = vmatprep.subr.bf16.mxu0 0
        %1381 = vmatpush1.bf16.msra.mxu0 %v1364
        %1382 = vmatprep.subr.bf16.mxu0 0
        %1383 = vmatpush1.bf16.msra.mxu0 %v1365
        %1384 = vmatprep.subr.bf16.mxu0 0
        %1385 = vmatpush1.bf16.msra.mxu0 %v1366
        %1386 = vmatprep.subr.bf16.mxu0 0
        %1387 = vmatpush1.bf16.msra.mxu0 %v1367
        %1388 = vmatprep.subr.bf16.mxu0 0
        %1389 = vmatpush1.bf16.msra.mxu0 %v1368
        %1390 = vmatprep.subr.bf16.mxu0 0
        %1391 = vmatpush1.bf16.msra.mxu0 %v1369
        %1392 = vmatprep.subr.bf16.mxu0 0
        %1393 = vmatpush1.bf16.msra.mxu0 %v1370
        %1394 = vmatprep.subr.bf16.mxu0 0
        %1395 = vmatpush1.bf16.msra.mxu0 %v1371
        %1396 = vmatprep.subr.bf16.mxu0 0
        %1397 = vmatpush1.bf16.msra.mxu0 0
        %1398 = vmatprep.subr.bf16.mxu0 0
        %1399 = vmatpush1.bf16.msra.mxu0 0
        %1400 = vmatprep.subr.bf16.mxu0 0
        %1401 = vmatpush1.bf16.msra.mxu0 0
        %1402 = vmatprep.subr.bf16.mxu0 0
        %1403 = vmatpush1.bf16.msra.mxu0 0
        %1404 = vmatprep.subr.bf16.mxu0 0
        %1405 = vmatpush1.bf16.msra.mxu0 0
        %1406 = vmatprep.subr.bf16.mxu0 0
        %1407 = vmatpush1.bf16.msra.mxu0 0
        %1408 = vmatprep.subr.bf16.mxu0 0
        %1409 = vmatpush1.bf16.msra.mxu0 0
        %1410 = vmatprep.subr.bf16.mxu0 0
        %1411 = vmatpush1.bf16.msra.mxu0 0
        %1412 = vmatprep.mubr.bf16.mxu0 0
        %1413 = vmatmul.mubr.bf16.gmra.mrb[0].mxu0 %v1290
        %v1414 = vpop.f32.mrb[0].mxu0
        %v1415 = vadd.f32 0.0, %v1414
        %v1416 = vpop.f32.mrb[0].mxu0
        %v1417 = vpop.f32.mrb[0].mxu0
        %v1418 = vadd.f32 0.0, %v1417
        %v1419 = vpop.f32.mrb[0].mxu0
        %1420 = vmatprep.mubr.bf16.mxu0 0
        %1421 = vmatmul.mubr.bf16.gmra.mrb[0].mxu0 %v1299
        %v1422 = vpop.f32.mrb[0].mxu0
        %v1423 = vadd.f32 0.0, %v1422
        %v1424 = vpop.f32.mrb[0].mxu0
        %v1425 = vpop.f32.mrb[0].mxu0
        %v1426 = vadd.f32 0.0, %v1425
        %v1427 = vpop.f32.mrb[0].mxu0
        %1428 = vmatprep.mubr.bf16.mxu0 0
        %1429 = vmatmul.mubr.bf16.gmra.mrb[0].mxu0 %v1308
        %v1430 = vpop.f32.mrb[0].mxu0
        %v1431 = vadd.f32 0.0, %v1430
        %v1432 = vpop.f32.mrb[0].mxu0
        %v1433 = vpop.f32.mrb[0].mxu0
        %v1434 = vadd.f32 0.0, %v1433
        %v1435 = vpop.f32.mrb[0].mxu0
        %1436 = vmatprep.mubr.bf16.mxu0 0
        %1437 = vmatmul.mubr.bf16.gmra.mrb[0].mxu0 %v1317
        %v1438 = vpop.f32.mrb[0].mxu0
        %v1439 = vadd.f32 0.0, %v1438
        %v1440 = vpop.f32.mrb[0].mxu0
        %v1441 = vpop.f32.mrb[0].mxu0
        %v1442 = vadd.f32 0.0, %v1441
        %v1443 = vpop.f32.mrb[0].mxu0
        %1444 = vmatprep.mubr.bf16.mxu0 0
        %1445 = vmatmul.mubr.bf16.gmra.mrb[0].mxu0 %v1326
        %v1446 = vpop.f32.mrb[0].mxu0
        %v1447 = vadd.f32 0.0, %v1446
        %v1448 = vpop.f32.mrb[0].mxu0
        %v1449 = vpop.f32.mrb[0].mxu0
        %v1450 = vadd.f32 0.0, %v1449
        %v1451 = vpop.f32.mrb[0].mxu0
        %1452 = vdwg.mxu0
        %v1453 = vadd.f32 %v1242, %v1415
        %v1454 = vadd.f32 %v1243, %v1418
        %v1455 = vadd.f32 %v1244, %v1423
        %v1456 = vadd.f32 %v1245, %v1426
        %v1457 = vadd.f32 %v1246, %v1431
        %v1458 = vadd.f32 %v1247, %v1434
        %v1459 = vadd.f32 %v1248, %v1439
        %v1460 = vadd.f32 %v1249, %v1442
        %v1461 = vadd.f32 %v1250, %v1447
        %v1462 = vadd.f32 %v1251, %v1450
        %v1463 = vld [vmem:[%s252 + $0x4] sm:$0xc]
        %s1464 = scalar_lea.vmem [#allocation3], 320
        %v1465 = vld [vmem:[%s1464] sm:$0xf]
        %v1466 = vld [vmem:[%s1464 + $0x4] sm:$0xf]
        %v1467 = vld [vmem:[%s1464 + $0x8] sm:$0xf]
        %v1468 = vld [vmem:[%s1464 + $0xc] sm:$0xf]
        %v1469 = vld [vmem:[%s1464 + $0x10] sm:$0xf]
        %v1470 = vld [vmem:[%s1464 + $0x14] sm:$0xf]
        %v1471 = vld [vmem:[%s1464 + $0x18] sm:$0xf]
        %v1472 = vld [vmem:[%s1464 + $0x1c] sm:$0xf]
        %v1473 = vld [vmem:[%s1464 + $0x20] sm:$0xf]
        %v1474 = vld [vmem:[%s1464 + $0x24] sm:$0xf]
        %v1475 = vld [vmem:[%s1464 + $0x28] sm:$0xf]
        %v1476 = vld [vmem:[%s1464 + $0x2c] sm:$0xf]
        %v1477 = vld [vmem:[%s1464 + $0x30] sm:$0xf]
        %v1478 = vld [vmem:[%s1464 + $0x34] sm:$0xf]
        %v1479 = vld [vmem:[%s1464 + $0x38] sm:$0xf]
        %v1480 = vld [vmem:[%s1464 + $0x3c] sm:$0xf]
        %v1482 = vunpack.c.l.b16 %v1463
        %v1483 = vpack.c.b16 %v1089, %v1482
        %vm1484 = vcmask 1045504
        %v1485 = vrot.slane %v1483, 2
        %v1486 = vrot.slane %v1100, 2
        %v1487 = vsel %vm1484, %v1485, %v1486
        %v1488 = vrot.slane %v1101, 2
        %v1489 = vsel %vm1484, %v1486, %v1488
        %v1490 = vrot.slane %v1102, 2
        %v1491 = vsel %vm1484, %v1488, %v1490
        %v1492 = vrot.slane %v1103, 2
        %v1493 = vsel %vm1484, %v1490, %v1492
        %v1494 = vrot.slane %v1272, 2
        %v1495 = vsel %vm1484, %v1492, %v1494
        %v1517 = vunpack.c.l.b16 %v1465
        %v1518 = vunpack.c.l.b16 %v1466
        %v1519 = vunpack.c.l.b16 %v1467
        %v1520 = vunpack.c.l.b16 %v1468
        %v1521 = vunpack.c.l.b16 %v1469
        %v1522 = vunpack.c.l.b16 %v1470
        %v1523 = vunpack.c.l.b16 %v1471
        %v1524 = vunpack.c.l.b16 %v1472
        %v1525 = vunpack.c.l.b16 %v1473
        %v1526 = vunpack.c.l.b16 %v1474
        %v1527 = vunpack.c.l.b16 %v1475
        %v1528 = vunpack.c.l.b16 %v1476
        %v1529 = vunpack.c.l.b16 %v1477
        %v1530 = vunpack.c.l.b16 %v1478
        %v1531 = vunpack.c.l.b16 %v1479
        %v1532 = vunpack.c.l.b16 %v1480
        %v1533 = vpack.c.b16 %v1518, %v1517
        %v1534 = vpack.c.b16 %v1520, %v1519
        %v1535 = vpack.c.b16 %v1522, %v1521
        %v1536 = vpack.c.b16 %v1524, %v1523
        %v1537 = vpack.c.b16 %v1526, %v1525
        %v1538 = vpack.c.b16 %v1528, %v1527
        %v1539 = vpack.c.b16 %v1530, %v1529
        %v1540 = vpack.c.b16 %v1532, %v1531
        %1549 = vmatprep.subr.bf16.mxu0 0
        %1550 = vmatpush1.bf16.msra.mxu0 %v1533
        %1551 = vmatprep.subr.bf16.mxu0 0
        %1552 = vmatpush1.bf16.msra.mxu0 %v1534
        %1553 = vmatprep.subr.bf16.mxu0 0
        %1554 = vmatpush1.bf16.msra.mxu0 %v1535
        %1555 = vmatprep.subr.bf16.mxu0 0
        %1556 = vmatpush1.bf16.msra.mxu0 %v1536
        %1557 = vmatprep.subr.bf16.mxu0 0
        %1558 = vmatpush1.bf16.msra.mxu0 %v1537
        %1559 = vmatprep.subr.bf16.mxu0 0
        %1560 = vmatpush1.bf16.msra.mxu0 %v1538
        %1561 = vmatprep.subr.bf16.mxu0 0
        %1562 = vmatpush1.bf16.msra.mxu0 %v1539
        %1563 = vmatprep.subr.bf16.mxu0 0
        %1564 = vmatpush1.bf16.msra.mxu0 %v1540
        %1565 = vmatprep.subr.bf16.mxu0 0
        %1566 = vmatpush1.bf16.msra.mxu0 0
        %1567 = vmatprep.subr.bf16.mxu0 0
        %1568 = vmatpush1.bf16.msra.mxu0 0
        %1569 = vmatprep.subr.bf16.mxu0 0
        %1570 = vmatpush1.bf16.msra.mxu0 0
        %1571 = vmatprep.subr.bf16.mxu0 0
        %1572 = vmatpush1.bf16.msra.mxu0 0
        %1573 = vmatprep.subr.bf16.mxu0 0
        %1574 = vmatpush1.bf16.msra.mxu0 0
        %1575 = vmatprep.subr.bf16.mxu0 0
        %1576 = vmatpush1.bf16.msra.mxu0 0
        %1577 = vmatprep.subr.bf16.mxu0 0
        %1578 = vmatpush1.bf16.msra.mxu0 0
        %1579 = vmatprep.subr.bf16.mxu0 0
        %1580 = vmatpush1.bf16.msra.mxu0 0
        %1581 = vmatprep.mubr.bf16.mxu0 0
        %1582 = vmatmul.mubr.bf16.gmra.mrb[0].mxu0 %v1487
        %v1583 = vpop.f32.mrb[0].mxu0
        %v1584 = vadd.f32 0.0, %v1583
        %v1585 = vpop.f32.mrb[0].mxu0
        %v1586 = vpop.f32.mrb[0].mxu0
        %v1587 = vadd.f32 0.0, %v1586
        %v1588 = vpop.f32.mrb[0].mxu0
        %1589 = vmatprep.mubr.bf16.mxu0 0
        %1590 = vmatmul.mubr.bf16.gmra.mrb[0].mxu0 %v1489
        %v1591 = vpop.f32.mrb[0].mxu0
        %v1592 = vadd.f32 0.0, %v1591
        %v1593 = vpop.f32.mrb[0].mxu0
        %v1594 = vpop.f32.mrb[0].mxu0
        %v1595 = vadd.f32 0.0, %v1594
        %v1596 = vpop.f32.mrb[0].mxu0
        %1597 = vmatprep.mubr.bf16.mxu0 0
        %1598 = vmatmul.mubr.bf16.gmra.mrb[0].mxu0 %v1491
        %v1599 = vpop.f32.mrb[0].mxu0
        %v1600 = vadd.f32 0.0, %v1599
        %v1601 = vpop.f32.mrb[0].mxu0
        %v1602 = vpop.f32.mrb[0].mxu0
        %v1603 = vadd.f32 0.0, %v1602
        %v1604 = vpop.f32.mrb[0].mxu0
        %1605 = vmatprep.mubr.bf16.mxu0 0
        %1606 = vmatmul.mubr.bf16.gmra.mrb[0].mxu0 %v1493
        %v1607 = vpop.f32.mrb[0].mxu0
        %v1608 = vadd.f32 0.0, %v1607
        %v1609 = vpop.f32.mrb[0].mxu0
        %v1610 = vpop.f32.mrb[0].mxu0
        %v1611 = vadd.f32 0.0, %v1610
        %v1612 = vpop.f32.mrb[0].mxu0
        %1613 = vmatprep.mubr.bf16.mxu0 0
        %1614 = vmatmul.mubr.bf16.gmra.mrb[0].mxu0 %v1495
        %v1615 = vpop.f32.mrb[0].mxu0
        %v1616 = vadd.f32 0.0, %v1615
        %v1617 = vpop.f32.mrb[0].mxu0
        %v1618 = vpop.f32.mrb[0].mxu0
        %v1619 = vadd.f32 0.0, %v1618
        %v1620 = vpop.f32.mrb[0].mxu0
        %1621 = vdwg.mxu0
        %v1622 = vadd.f32 %v1453, %v1584
        %v1623 = vadd.f32 %v1454, %v1587
        %v1624 = vadd.f32 %v1455, %v1592
        %v1625 = vadd.f32 %v1456, %v1595
        %v1626 = vadd.f32 %v1457, %v1600
        %v1627 = vadd.f32 %v1458, %v1603
        %v1628 = vadd.f32 %v1459, %v1608
        %v1629 = vadd.f32 %v1460, %v1611
        %v1630 = vadd.f32 %v1461, %v1616
        %v1631 = vadd.f32 %v1462, %v1619
        %v1632 = vld [vmem:[%s252 + $0x8] sm:$0xc]
        %v1633 = vld [vmem:[%s252 + $0xc] sm:$0xf]
        %v1634 = vld [vmem:[%s252 + $0x10] sm:$0xf]
        %v1635 = vld [vmem:[%s252 + $0x14] sm:$0xf]
        %v1636 = vld [vmem:[%s252 + $0x18] sm:$0xf]
        %v1637 = vld [vmem:[%s252 + $0x1c] sm:$0xf]
        %v1638 = vld [vmem:[%s252 + $0x20] sm:$0xf]
        %v1639 = vld [vmem:[%s252 + $0x24] sm:$0xf]
        %v1640 = vld [vmem:[%s252 + $0x28] sm:$0xf]
        %v1641 = vld [vmem:[%s252 + $0x2c] sm:$0xf]
        %v1642 = vld [vmem:[%s252 + $0x30] sm:$0x3]
        %s1643 = scalar_lea.vmem [#allocation3], 384
        %v1644 = vld [vmem:[%s1643] sm:$0xf]
        %v1645 = vld [vmem:[%s1643 + $0x4] sm:$0xf]
        %v1646 = vld [vmem:[%s1643 + $0x8] sm:$0xf]
        %v1647 = vld [vmem:[%s1643 + $0xc] sm:$0xf]
        %v1648 = vld [vmem:[%s1643 + $0x10] sm:$0xf]
        %v1649 = vld [vmem:[%s1643 + $0x14] sm:$0xf]
        %v1650 = vld [vmem:[%s1643 + $0x18] sm:$0xf]
        %v1651 = vld [vmem:[%s1643 + $0x1c] sm:$0xf]
        %v1652 = vld [vmem:[%s1643 + $0x20] sm:$0xf]
        %v1653 = vld [vmem:[%s1643 + $0x24] sm:$0xf]
        %v1654 = vld [vmem:[%s1643 + $0x28] sm:$0xf]
        %v1655 = vld [vmem:[%s1643 + $0x2c] sm:$0xf]
        %v1656 = vld [vmem:[%s1643 + $0x30] sm:$0xf]
        %v1657 = vld [vmem:[%s1643 + $0x34] sm:$0xf]
        %v1658 = vld [vmem:[%s1643 + $0x38] sm:$0xf]
        %v1659 = vld [vmem:[%s1643 + $0x3c] sm:$0xf]
        %v1671 = vunpack.c.l.b16 %v1632
        %v1672 = vunpack.c.l.b16 %v1633
        %v1673 = vunpack.c.l.b16 %v1634
        %v1674 = vunpack.c.l.b16 %v1635
        %v1675 = vunpack.c.l.b16 %v1636
        %v1676 = vunpack.c.l.b16 %v1637
        %v1677 = vunpack.c.l.b16 %v1638
        %v1678 = vunpack.c.l.b16 %v1639
        %v1679 = vunpack.c.l.b16 %v1640
        %v1680 = vunpack.c.l.b16 %v1641
        %v1681 = vunpack.c.l.b16 %v1642
        %v1682 = vpack.c.b16 %v1672, %v1671
        %v1683 = vpack.c.b16 %v1674, %v1673
        %v1684 = vpack.c.b16 %v1676, %v1675
        %v1685 = vpack.c.b16 %v1678, %v1677
        %v1686 = vpack.c.b16 %v1680, %v1679
        %v1687 = vpack.c.b16 %v1681, %v1681
        %v1688 = vrot.slane %v1682, 2
        %v1689 = vrot.slane %v1683, 2
        %v1690 = vsel %vm1484, %v1688, %v1689
        %v1691 = vrot.slane %v1684, 2
        %v1692 = vsel %vm1484, %v1689, %v1691
        %v1693 = vrot.slane %v1685, 2
        %v1694 = vsel %vm1484, %v1691, %v1693
        %v1695 = vrot.slane %v1686, 2
        %v1696 = vsel %vm1484, %v1693, %v1695
        %v1697 = vrot.slane %v1687, 2
        %v1698 = vsel %vm1484, %v1695, %v1697
        %v1720 = vunpack.c.l.b16 %v1644
        %v1721 = vunpack.c.l.b16 %v1645
        %v1722 = vunpack.c.l.b16 %v1646
        %v1723 = vunpack.c.l.b16 %v1647
        %v1724 = vunpack.c.l.b16 %v1648
        %v1725 = vunpack.c.l.b16 %v1649
        %v1726 = vunpack.c.l.b16 %v1650
        %v1727 = vunpack.c.l.b16 %v1651
        %v1728 = vunpack.c.l.b16 %v1652
        %v1729 = vunpack.c.l.b16 %v1653
        %v1730 = vunpack.c.l.b16 %v1654
        %v1731 = vunpack.c.l.b16 %v1655
        %v1732 = vunpack.c.l.b16 %v1656
        %v1733 = vunpack.c.l.b16 %v1657
        %v1734 = vunpack.c.l.b16 %v1658
        %v1735 = vunpack.c.l.b16 %v1659
        %v1736 = vpack.c.b16 %v1721, %v1720
        %v1737 = vpack.c.b16 %v1723, %v1722
        %v1738 = vpack.c.b16 %v1725, %v1724
        %v1739 = vpack.c.b16 %v1727, %v1726
        %v1740 = vpack.c.b16 %v1729, %v1728
        %v1741 = vpack.c.b16 %v1731, %v1730
        %v1742 = vpack.c.b16 %v1733, %v1732
        %v1743 = vpack.c.b16 %v1735, %v1734
        %1752 = vmatprep.subr.bf16.mxu0 0
        %1753 = vmatpush1.bf16.msra.mxu0 %v1736
        %1754 = vmatprep.subr.bf16.mxu0 0
        %1755 = vmatpush1.bf16.msra.mxu0 %v1737
        %1756 = vmatprep.subr.bf16.mxu0 0
        %1757 = vmatpush1.bf16.msra.mxu0 %v1738
        %1758 = vmatprep.subr.bf16.mxu0 0
        %1759 = vmatpush1.bf16.msra.mxu0 %v1739
        %1760 = vmatprep.subr.bf16.mxu0 0
        %1761 = vmatpush1.bf16.msra.mxu0 %v1740
        %1762 = vmatprep.subr.bf16.mxu0 0
        %1763 = vmatpush1.bf16.msra.mxu0 %v1741
        %1764 = vmatprep.subr.bf16.mxu0 0
        %1765 = vmatpush1.bf16.msra.mxu0 %v1742
        %1766 = vmatprep.subr.bf16.mxu0 0
        %1767 = vmatpush1.bf16.msra.mxu0 %v1743
        %1768 = vmatprep.subr.bf16.mxu0 0
        %1769 = vmatpush1.bf16.msra.mxu0 0
        %1770 = vmatprep.subr.bf16.mxu0 0
        %1771 = vmatpush1.bf16.msra.mxu0 0
        %1772 = vmatprep.subr.bf16.mxu0 0
        %1773 = vmatpush1.bf16.msra.mxu0 0
        %1774 = vmatprep.subr.bf16.mxu0 0
        %1775 = vmatpush1.bf16.msra.mxu0 0
        %1776 = vmatprep.subr.bf16.mxu0 0
        %1777 = vmatpush1.bf16.msra.mxu0 0
        %1778 = vmatprep.subr.bf16.mxu0 0
        %1779 = vmatpush1.bf16.msra.mxu0 0
        %1780 = vmatprep.subr.bf16.mxu0 0
        %1781 = vmatpush1.bf16.msra.mxu0 0
        %1782 = vmatprep.subr.bf16.mxu0 0
        %1783 = vmatpush1.bf16.msra.mxu0 0
        %1784 = vmatprep.mubr.bf16.mxu0 0
        %1785 = vmatmul.mubr.bf16.gmra.mrb[0].mxu0 %v1690
        %v1786 = vpop.f32.mrb[0].mxu0
        %v1787 = vadd.f32 0.0, %v1786
        %v1788 = vpop.f32.mrb[0].mxu0
        %v1789 = vpop.f32.mrb[0].mxu0
        %v1790 = vadd.f32 0.0, %v1789
        %v1791 = vpop.f32.mrb[0].mxu0
        %1792 = vmatprep.mubr.bf16.mxu0 0
        %1793 = vmatmul.mubr.bf16.gmra.mrb[0].mxu0 %v1692
        %v1794 = vpop.f32.mrb[0].mxu0
        %v1795 = vadd.f32 0.0, %v1794
        %v1796 = vpop.f32.mrb[0].mxu0
        %v1797 = vpop.f32.mrb[0].mxu0
        %v1798 = vadd.f32 0.0, %v1797
        %v1799 = vpop.f32.mrb[0].mxu0
        %1800 = vmatprep.mubr.bf16.mxu0 0
        %1801 = vmatmul.mubr.bf16.gmra.mrb[0].mxu0 %v1694
        %v1802 = vpop.f32.mrb[0].mxu0
        %v1803 = vadd.f32 0.0, %v1802
        %v1804 = vpop.f32.mrb[0].mxu0
        %v1805 = vpop.f32.mrb[0].mxu0
        %v1806 = vadd.f32 0.0, %v1805
        %v1807 = vpop.f32.mrb[0].mxu0
        %1808 = vmatprep.mubr.bf16.mxu0 0
        %1809 = vmatmul.mubr.bf16.gmra.mrb[0].mxu0 %v1696
        %v1810 = vpop.f32.mrb[0].mxu0
        %v1811 = vadd.f32 0.0, %v1810
        %v1812 = vpop.f32.mrb[0].mxu0
        %v1813 = vpop.f32.mrb[0].mxu0
        %v1814 = vadd.f32 0.0, %v1813
        %v1815 = vpop.f32.mrb[0].mxu0
        %1816 = vmatprep.mubr.bf16.mxu0 0
        %1817 = vmatmul.mubr.bf16.gmra.mrb[0].mxu0 %v1698
        %v1818 = vpop.f32.mrb[0].mxu0
        %v1819 = vadd.f32 0.0, %v1818
        %v1820 = vpop.f32.mrb[0].mxu0
        %v1821 = vpop.f32.mrb[0].mxu0
        %v1822 = vadd.f32 0.0, %v1821
        %v1823 = vpop.f32.mrb[0].mxu0
        %1824 = vdwg.mxu0
        %v1825 = vadd.f32 %v1622, %v1787
        %v1826 = vadd.f32 %v1623, %v1790
        %v1827 = vadd.f32 %v1624, %v1795
        %v1828 = vadd.f32 %v1625, %v1798
        %v1829 = vadd.f32 %v1626, %v1803
        %v1830 = vadd.f32 %v1627, %v1806
        %v1831 = vadd.f32 %v1628, %v1811
        %v1832 = vadd.f32 %v1629, %v1814
        %v1833 = vadd.f32 %v1630, %v1819
        %v1834 = vadd.f32 %v1631, %v1822
        %v1835 = vld [vmem:[%s252 + $0x30] sm:$0x7]
        %s1836 = scalar_lea.vmem [#allocation3], 448
        %v1837 = vld [vmem:[%s1836] sm:$0xf]
        %v1838 = vld [vmem:[%s1836 + $0x4] sm:$0xf]
        %v1839 = vld [vmem:[%s1836 + $0x8] sm:$0xf]
        %v1840 = vld [vmem:[%s1836 + $0xc] sm:$0xf]
        %v1841 = vld [vmem:[%s1836 + $0x10] sm:$0xf]
        %v1842 = vld [vmem:[%s1836 + $0x14] sm:$0xf]
        %v1843 = vld [vmem:[%s1836 + $0x18] sm:$0xf]
        %v1844 = vld [vmem:[%s1836 + $0x1c] sm:$0xf]
        %v1845 = vld [vmem:[%s1836 + $0x20] sm:$0xf]
        %v1846 = vld [vmem:[%s1836 + $0x24] sm:$0xf]
        %v1847 = vld [vmem:[%s1836 + $0x28] sm:$0xf]
        %v1848 = vld [vmem:[%s1836 + $0x2c] sm:$0xf]
        %v1849 = vld [vmem:[%s1836 + $0x30] sm:$0xf]
        %v1850 = vld [vmem:[%s1836 + $0x34] sm:$0xf]
        %v1851 = vld [vmem:[%s1836 + $0x38] sm:$0xf]
        %v1852 = vld [vmem:[%s1836 + $0x3c] sm:$0xf]
        %v1854 = vunpack.c.l.b16 %v1835
        %v1855 = vpack.c.b16 %v1854, %v1854
        %vm1856 = vsmask.f32 5376
        %v1858 = vshrl.u32 %v1682, 16
        %v1860 = vrot.slane %v1858, 2
        %v1861 = vshll.u32 %v1682, 16
        %v1863 = vrot.slane %v1861, 3
        %v1864 = vor.u32 %v1860, %v1863
        %v1866 = vshrl.u32 %v1683, 16
        %v1868 = vrot.slane %v1866, 2
        %v1869 = vshll.u32 %v1683, 16
        %v1871 = vrot.slane %v1869, 3
        %v1872 = vor.u32 %v1868, %v1871
        %v1873 = vsel %vm1856, %v1864, %v1872
        %v1875 = vshrl.u32 %v1684, 16
        %v1877 = vrot.slane %v1875, 2
        %v1878 = vshll.u32 %v1684, 16
        %v1880 = vrot.slane %v1878, 3
        %v1881 = vor.u32 %v1877, %v1880
        %v1882 = vsel %vm1856, %v1872, %v1881
        %v1884 = vshrl.u32 %v1685, 16
        %v1886 = vrot.slane %v1884, 2
        %v1887 = vshll.u32 %v1685, 16
        %v1889 = vrot.slane %v1887, 3
        %v1890 = vor.u32 %v1886, %v1889
        %v1891 = vsel %vm1856, %v1881, %v1890
        %v1893 = vshrl.u32 %v1686, 16
        %v1895 = vrot.slane %v1893, 2
        %v1896 = vshll.u32 %v1686, 16
        %v1898 = vrot.slane %v1896, 3
        %v1899 = vor.u32 %v1895, %v1898
        %v1900 = vsel %vm1856, %v1890, %v1899
        %v1902 = vshrl.u32 %v1855, 16
        %v1904 = vrot.slane %v1902, 2
        %v1905 = vshll.u32 %v1855, 16
        %v1907 = vrot.slane %v1905, 3
        %v1908 = vor.u32 %v1904, %v1907
        %v1909 = vsel %vm1856, %v1899, %v1908
        %v1931 = vunpack.c.l.b16 %v1837
        %v1932 = vunpack.c.l.b16 %v1838
        %v1933 = vunpack.c.l.b16 %v1839
        %v1934 = vunpack.c.l.b16 %v1840
        %v1935 = vunpack.c.l.b16 %v1841
        %v1936 = vunpack.c.l.b16 %v1842
        %v1937 = vunpack.c.l.b16 %v1843
        %v1938 = vunpack.c.l.b16 %v1844
        %v1939 = vunpack.c.l.b16 %v1845
        %v1940 = vunpack.c.l.b16 %v1846
        %v1941 = vunpack.c.l.b16 %v1847
        %v1942 = vunpack.c.l.b16 %v1848
        %v1943 = vunpack.c.l.b16 %v1849
        %v1944 = vunpack.c.l.b16 %v1850
        %v1945 = vunpack.c.l.b16 %v1851
        %v1946 = vunpack.c.l.b16 %v1852
        %v1947 = vpack.c.b16 %v1932, %v1931
        %v1948 = vpack.c.b16 %v1934, %v1933
        %v1949 = vpack.c.b16 %v1936, %v1935
        %v1950 = vpack.c.b16 %v1938, %v1937
        %v1951 = vpack.c.b16 %v1940, %v1939
        %v1952 = vpack.c.b16 %v1942, %v1941
        %v1953 = vpack.c.b16 %v1944, %v1943
        %v1954 = vpack.c.b16 %v1946, %v1945
        %1963 = vmatprep.subr.bf16.mxu0 0
        %1964 = vmatpush1.bf16.msra.mxu0 %v1947
        %1965 = vmatprep.subr.bf16.mxu0 0
        %1966 = vmatpush1.bf16.msra.mxu0 %v1948
        %1967 = vmatprep.subr.bf16.mxu0 0
        %1968 = vmatpush1.bf16.msra.mxu0 %v1949
        %1969 = vmatprep.subr.bf16.mxu0 0
        %1970 = vmatpush1.bf16.msra.mxu0 %v1950
        %1971 = vmatprep.subr.bf16.mxu0 0
        %1972 = vmatpush1.bf16.msra.mxu0 %v1951
        %1973 = vmatprep.subr.bf16.mxu0 0
        %1974 = vmatpush1.bf16.msra.mxu0 %v1952
        %1975 = vmatprep.subr.bf16.mxu0 0
        %1976 = vmatpush1.bf16.msra.mxu0 %v1953
        %1977 = vmatprep.subr.bf16.mxu0 0
        %1978 = vmatpush1.bf16.msra.mxu0 %v1954
        %1979 = vmatprep.subr.bf16.mxu0 0
        %1980 = vmatpush1.bf16.msra.mxu0 0
        %1981 = vmatprep.subr.bf16.mxu0 0
        %1982 = vmatpush1.bf16.msra.mxu0 0
        %1983 = vmatprep.subr.bf16.mxu0 0
        %1984 = vmatpush1.bf16.msra.mxu0 0
        %1985 = vmatprep.subr.bf16.mxu0 0
        %1986 = vmatpush1.bf16.msra.mxu0 0
        %1987 = vmatprep.subr.bf16.mxu0 0
        %1988 = vmatpush1.bf16.msra.mxu0 0
        %1989 = vmatprep.subr.bf16.mxu0 0
        %1990 = vmatpush1.bf16.msra.mxu0 0
        %1991 = vmatprep.subr.bf16.mxu0 0
        %1992 = vmatpush1.bf16.msra.mxu0 0
        %1993 = vmatprep.subr.bf16.mxu0 0
        %1994 = vmatpush1.bf16.msra.mxu0 0
        %1995 = vmatprep.mubr.bf16.mxu0 0
        %1996 = vmatmul.mubr.bf16.gmra.mrb[0].mxu0 %v1873
        %v1997 = vpop.f32.mrb[0].mxu0
        %v1998 = vadd.f32 0.0, %v1997
        %v1999 = vpop.f32.mrb[0].mxu0
        %v2000 = vpop.f32.mrb[0].mxu0
        %v2001 = vadd.f32 0.0, %v2000
        %v2002 = vpop.f32.mrb[0].mxu0
        %2003 = vmatprep.mubr.bf16.mxu0 0
        %2004 = vmatmul.mubr.bf16.gmra.mrb[0].mxu0 %v1882
        %v2005 = vpop.f32.mrb[0].mxu0
        %v2006 = vadd.f32 0.0, %v2005
        %v2007 = vpop.f32.mrb[0].mxu0
        %v2008 = vpop.f32.mrb[0].mxu0
        %v2009 = vadd.f32 0.0, %v2008
        %v2010 = vpop.f32.mrb[0].mxu0
        %2011 = vmatprep.mubr.bf16.mxu0 0
        %2012 = vmatmul.mubr.bf16.gmra.mrb[0].mxu0 %v1891
        %v2013 = vpop.f32.mrb[0].mxu0
        %v2014 = vadd.f32 0.0, %v2013
        %v2015 = vpop.f32.mrb[0].mxu0
        %v2016 = vpop.f32.mrb[0].mxu0
        %v2017 = vadd.f32 0.0, %v2016
        %v2018 = vpop.f32.mrb[0].mxu0
        %2019 = vmatprep.mubr.bf16.mxu0 0
        %2020 = vmatmul.mubr.bf16.gmra.mrb[0].mxu0 %v1900
        %v2021 = vpop.f32.mrb[0].mxu0
        %v2022 = vadd.f32 0.0, %v2021
        %v2023 = vpop.f32.mrb[0].mxu0
        %v2024 = vpop.f32.mrb[0].mxu0
        %v2025 = vadd.f32 0.0, %v2024
        %v2026 = vpop.f32.mrb[0].mxu0
        %2027 = vmatprep.mubr.bf16.mxu0 0
        %2028 = vmatmul.mubr.bf16.gmra.mrb[0].mxu0 %v1909
        %v2029 = vpop.f32.mrb[0].mxu0
        %v2030 = vadd.f32 0.0, %v2029
        %v2031 = vpop.f32.mrb[0].mxu0
        %v2032 = vpop.f32.mrb[0].mxu0
        %v2033 = vadd.f32 0.0, %v2032
        %v2034 = vpop.f32.mrb[0].mxu0
        %2035 = vdwg.mxu0
        %v2036 = vadd.f32 %v1825, %v1998
        %v2037 = vadd.f32 %v1826, %v2001
        %v2038 = vadd.f32 %v1827, %v2006
        %v2039 = vadd.f32 %v1828, %v2009
        %v2040 = vadd.f32 %v1829, %v2014
        %v2041 = vadd.f32 %v1830, %v2017
        %v2042 = vadd.f32 %v1831, %v2022
        %v2043 = vadd.f32 %v1832, %v2025
        %v2044 = vadd.f32 %v1833, %v2030
        %v2045 = vadd.f32 %v1834, %v2033
        %v2046 = vld [vmem:[%s252 + $0x8] sm:$0x8]
        %s2047 = scalar_lea.vmem [#allocation3], 512
        %v2048 = vld [vmem:[%s2047] sm:$0xf]
        %v2049 = vld [vmem:[%s2047 + $0x4] sm:$0xf]
        %v2050 = vld [vmem:[%s2047 + $0x8] sm:$0xf]
        %v2051 = vld [vmem:[%s2047 + $0xc] sm:$0xf]
        %v2052 = vld [vmem:[%s2047 + $0x10] sm:$0xf]
        %v2053 = vld [vmem:[%s2047 + $0x14] sm:$0xf]
        %v2054 = vld [vmem:[%s2047 + $0x18] sm:$0xf]
        %v2055 = vld [vmem:[%s2047 + $0x1c] sm:$0xf]
        %v2056 = vld [vmem:[%s2047 + $0x20] sm:$0xf]
        %v2057 = vld [vmem:[%s2047 + $0x24] sm:$0xf]
        %v2058 = vld [vmem:[%s2047 + $0x28] sm:$0xf]
        %v2059 = vld [vmem:[%s2047 + $0x2c] sm:$0xf]
        %v2060 = vld [vmem:[%s2047 + $0x30] sm:$0xf]
        %v2061 = vld [vmem:[%s2047 + $0x34] sm:$0xf]
        %v2062 = vld [vmem:[%s2047 + $0x38] sm:$0xf]
        %v2063 = vld [vmem:[%s2047 + $0x3c] sm:$0xf]
        %v2065 = vunpack.c.l.b16 %v2046
        %v2066 = vpack.c.b16 %v1672, %v2065
        %vm2067 = vcmask 1044480
        %v2068 = vrot.slane %v2066, 3
        %v2069 = vrot.slane %v1683, 3
        %v2070 = vsel %vm2067, %v2068, %v2069
        %v2071 = vrot.slane %v1684, 3
        %v2072 = vsel %vm2067, %v2069, %v2071
        %v2073 = vrot.slane %v1685, 3
        %v2074 = vsel %vm2067, %v2071, %v2073
        %v2075 = vrot.slane %v1686, 3
        %v2076 = vsel %vm2067, %v2073, %v2075
        %v2077 = vrot.slane %v1855, 3
        %v2078 = vsel %vm2067, %v2075, %v2077
        %v2100 = vunpack.c.l.b16 %v2048
        %v2101 = vunpack.c.l.b16 %v2049
        %v2102 = vunpack.c.l.b16 %v2050
        %v2103 = vunpack.c.l.b16 %v2051
        %v2104 = vunpack.c.l.b16 %v2052
        %v2105 = vunpack.c.l.b16 %v2053
        %v2106 = vunpack.c.l.b16 %v2054
        %v2107 = vunpack.c.l.b16 %v2055
        %v2108 = vunpack.c.l.b16 %v2056
        %v2109 = vunpack.c.l.b16 %v2057
        %v2110 = vunpack.c.l.b16 %v2058
        %v2111 = vunpack.c.l.b16 %v2059
        %v2112 = vunpack.c.l.b16 %v2060
        %v2113 = vunpack.c.l.b16 %v2061
        %v2114 = vunpack.c.l.b16 %v2062
        %v2115 = vunpack.c.l.b16 %v2063
        %v2116 = vpack.c.b16 %v2101, %v2100
        %v2117 = vpack.c.b16 %v2103, %v2102
        %v2118 = vpack.c.b16 %v2105, %v2104
        %v2119 = vpack.c.b16 %v2107, %v2106
        %v2120 = vpack.c.b16 %v2109, %v2108
        %v2121 = vpack.c.b16 %v2111, %v2110
        %v2122 = vpack.c.b16 %v2113, %v2112
        %v2123 = vpack.c.b16 %v2115, %v2114
        %2132 = vmatprep.subr.bf16.mxu0 0
        %2133 = vmatpush1.bf16.msra.mxu0 %v2116
        %2134 = vmatprep.subr.bf16.mxu0 0
        %2135 = vmatpush1.bf16.msra.mxu0 %v2117
        %2136 = vmatprep.subr.bf16.mxu0 0
        %2137 = vmatpush1.bf16.msra.mxu0 %v2118
        %2138 = vmatprep.subr.bf16.mxu0 0
        %2139 = vmatpush1.bf16.msra.mxu0 %v2119
        %2140 = vmatprep.subr.bf16.mxu0 0
        %2141 = vmatpush1.bf16.msra.mxu0 %v2120
        %2142 = vmatprep.subr.bf16.mxu0 0
        %2143 = vmatpush1.bf16.msra.mxu0 %v2121
        %2144 = vmatprep.subr.bf16.mxu0 0
        %2145 = vmatpush1.bf16.msra.mxu0 %v2122
        %2146 = vmatprep.subr.bf16.mxu0 0
        %2147 = vmatpush1.bf16.msra.mxu0 %v2123
        %2148 = vmatprep.subr.bf16.mxu0 0
        %2149 = vmatpush1.bf16.msra.mxu0 0
        %2150 = vmatprep.subr.bf16.mxu0 0
        %2151 = vmatpush1.bf16.msra.mxu0 0
        %2152 = vmatprep.subr.bf16.mxu0 0
        %2153 = vmatpush1.bf16.msra.mxu0 0
        %2154 = vmatprep.subr.bf16.mxu0 0
        %2155 = vmatpush1.bf16.msra.mxu0 0
        %2156 = vmatprep.subr.bf16.mxu0 0
        %2157 = vmatpush1.bf16.msra.mxu0 0
        %2158 = vmatprep.subr.bf16.mxu0 0
        %2159 = vmatpush1.bf16.msra.mxu0 0
        %2160 = vmatprep.subr.bf16.mxu0 0
        %2161 = vmatpush1.bf16.msra.mxu0 0
        %2162 = vmatprep.subr.bf16.mxu0 0
        %2163 = vmatpush1.bf16.msra.mxu0 0
        %2164 = vmatprep.mubr.bf16.mxu0 0
        %2165 = vmatmul.mubr.bf16.gmra.mrb[0].mxu0 %v2070
        %v2166 = vpop.f32.mrb[0].mxu0
        %v2167 = vadd.f32 0.0, %v2166
        %v2168 = vpop.f32.mrb[0].mxu0
        %v2169 = vpop.f32.mrb[0].mxu0
        %v2170 = vadd.f32 0.0, %v2169
        %v2171 = vpop.f32.mrb[0].mxu0
        %2172 = vmatprep.mubr.bf16.mxu0 0
        %2173 = vmatmul.mubr.bf16.gmra.mrb[0].mxu0 %v2072
        %v2174 = vpop.f32.mrb[0].mxu0
        %v2175 = vadd.f32 0.0, %v2174
        %v2176 = vpop.f32.mrb[0].mxu0
        %v2177 = vpop.f32.mrb[0].mxu0
        %v2178 = vadd.f32 0.0, %v2177
        %v2179 = vpop.f32.mrb[0].mxu0
        %2180 = vmatprep.mubr.bf16.mxu0 0
        %2181 = vmatmul.mubr.bf16.gmra.mrb[0].mxu0 %v2074
        %v2182 = vpop.f32.mrb[0].mxu0
        %v2183 = vadd.f32 0.0, %v2182
        %v2184 = vpop.f32.mrb[0].mxu0
        %v2185 = vpop.f32.mrb[0].mxu0
        %v2186 = vadd.f32 0.0, %v2185
        %v2187 = vpop.f32.mrb[0].mxu0
        %2188 = vmatprep.mubr.bf16.mxu0 0
        %2189 = vmatmul.mubr.bf16.gmra.mrb[0].mxu0 %v2076
        %v2190 = vpop.f32.mrb[0].mxu0
        %v2191 = vadd.f32 0.0, %v2190
        %v2192 = vpop.f32.mrb[0].mxu0
        %v2193 = vpop.f32.mrb[0].mxu0
        %v2194 = vadd.f32 0.0, %v2193
        %v2195 = vpop.f32.mrb[0].mxu0
        %2196 = vmatprep.mubr.bf16.mxu0 0
        %2197 = vmatmul.mubr.bf16.gmra.mrb[0].mxu0 %v2078
        %v2198 = vpop.f32.mrb[0].mxu0
        %v2199 = vadd.f32 0.0, %v2198
        %v2200 = vpop.f32.mrb[0].mxu0
        %v2201 = vpop.f32.mrb[0].mxu0
        %v2202 = vadd.f32 0.0, %v2201
        %v2203 = vpop.f32.mrb[0].mxu0
        %2204 = vdwg.mxu0
        %v2205 = vadd.f32 %v2036, %v2167
        %v2206 = vadd.f32 %v2037, %v2170
        %v2207 = vadd.f32 %v2038, %v2175
        %v2208 = vadd.f32 %v2039, %v2178
        %v2209 = vadd.f32 %v2040, %v2183
        %v2210 = vadd.f32 %v2041, %v2186
        %v2211 = vadd.f32 %v2042, %v2191
        %v2212 = vadd.f32 %v2043, %v2194
        %v2213 = vadd.f32 %v2044, %v2199
        %v2214 = vadd.f32 %v2045, %v2202
        %v2215 = vmax.f32 %v2205, 0.0
        %v2216 = vmax.f32 %v2206, 0.0
        %v2217 = vmax.f32 %v2207, 0.0
        %v2218 = vmax.f32 %v2208, 0.0
        %v2219 = vmax.f32 %v2209, 0.0
        %v2220 = vmax.f32 %v2210, 0.0
        %v2221 = vmax.f32 %v2211, 0.0
        %v2222 = vmax.f32 %v2212, 0.0
        %v2223 = vmax.f32 %v2213, 0.0
        %v2224 = vmax.f32 %v2214, 0.0
        %v2225 = vsel %vm439, 1, 0
        %v2226 = vsel %vm440, 1, 0
        %v2227 = vsel %vm441, 1, 0
        %v2228 = vsel %vm442, 1, 0
        %v2229 = vsel %vm443, 1, 0
        %v2230 = vsel %vm444, 1, 0
        %v2231 = vsel %vm445, 1, 0
        %v2232 = vsel %vm446, 1, 0
        %v2233 = vsel %vm447, 1, 0
        %v2234 = vsel %vm448, 1, 0
        %vm2235 = vcmp.eq.s32.totalorder %v2225, 1
        %vm2236 = vcmp.eq.s32.totalorder %v2226, 1
        %vm2237 = vcmp.eq.s32.totalorder %v2227, 1
        %vm2238 = vcmp.eq.s32.totalorder %v2228, 1
        %vm2239 = vcmp.eq.s32.totalorder %v2229, 1
        %vm2240 = vcmp.eq.s32.totalorder %v2230, 1
        %vm2241 = vcmp.eq.s32.totalorder %v2231, 1
        %vm2242 = vcmp.eq.s32.totalorder %v2232, 1
        %vm2243 = vcmp.eq.s32.totalorder %v2233, 1
        %vm2244 = vcmp.eq.s32.totalorder %v2234, 1
        %v2245 = vsel %vm2235, %v2215, 0.0
        %v2246 = vsel %vm2236, %v2216, 0.0
        %v2247 = vsel %vm2237, %v2217, 0.0
        %v2248 = vsel %vm2238, %v2218, 0.0
        %v2249 = vsel %vm2239, %v2219, 0.0
        %v2250 = vsel %vm2240, %v2220, 0.0
        %v2251 = vsel %vm2241, %v2221, 0.0
        %v2252 = vsel %vm2242, %v2222, 0.0
        %v2253 = vsel %vm2243, %v2223, 0.0
        %v2254 = vsel %vm2244, %v2224, 0.0
        %v2255 = vpack.c.bf16 %v2246, %v2245
        %v2256 = vpack.c.bf16 %v2248, %v2247
        %v2257 = vpack.c.bf16 %v2250, %v2249
        %v2258 = vpack.c.bf16 %v2252, %v2251
        %v2259 = vpack.c.bf16 %v2254, %v2253
        %v2265 = vunpack.c.l.b16 %v2255
        %v2266 = vunpack.c.h.b16 %v2255
        %v2267 = vunpack.c.l.b16 %v2256
        %v2268 = vunpack.c.h.b16 %v2256
        %v2269 = vunpack.c.l.b16 %v2257
        %v2270 = vunpack.c.h.b16 %v2257
        %v2271 = vunpack.c.l.b16 %v2258
        %v2272 = vunpack.c.h.b16 %v2258
        %v2273 = vunpack.c.l.b16 %v2259
        %v2274 = vunpack.c.h.b16 %v2259
        %v2275 = vpack.c.b16 %v2265, %v2265
        %v2276 = vpack.c.b16 %v2266, %v2266
        %v2277 = vpack.c.b16 %v2267, %v2267
        %v2278 = vpack.c.b16 %v2268, %v2268
        %v2279 = vpack.c.b16 %v2269, %v2269
        %v2280 = vpack.c.b16 %v2270, %v2270
        %v2281 = vpack.c.b16 %v2271, %v2271
        %v2282 = vpack.c.b16 %v2272, %v2272
        %v2283 = vpack.c.b16 %v2273, %v2273
        %v2284 = vpack.c.b16 %v2274, %v2274
        %vm2285 = vsmask.f32 5392
        %vm2286 = vmor %vm256, %vm2285
        %v2288 = vshrl.u32 %v2275, 16
        %v2290 = vrot.slane %v2288, 6
        %v2291 = vshll.u32 %v2275, 16
        %v2293 = vrot.slane %v2291, 7
        %v2294 = vor.u32 %v2290, %v2293
        %v2295 = vrot.slane %v2294, 4
        %v2297 = vshrl.u32 %v2276, 16
        %v2299 = vrot.slane %v2297, 6
        %v2300 = vshll.u32 %v2276, 16
        %v2302 = vrot.slane %v2300, 7
        %v2303 = vor.u32 %v2299, %v2302
        %v2304 = vsel %vm2286, %v2295, %v2303
        %v2305 = vrot.slane %v2303, 4
        %v2307 = vshrl.u32 %v2277, 16
        %v2309 = vrot.slane %v2307, 6
        %v2310 = vshll.u32 %v2277, 16
        %v2312 = vrot.slane %v2310, 7
        %v2313 = vor.u32 %v2309, %v2312
        %v2314 = vsel %vm2286, %v2305, %v2313
        %v2315 = vrot.slane %v2313, 4
        %v2317 = vshrl.u32 %v2278, 16
        %v2319 = vrot.slane %v2317, 6
        %v2320 = vshll.u32 %v2278, 16
        %v2322 = vrot.slane %v2320, 7
        %v2323 = vor.u32 %v2319, %v2322
        %v2324 = vsel %vm2286, %v2315, %v2323
        %v2325 = vrot.slane %v2323, 4
        %v2327 = vshrl.u32 %v2279, 16
        %v2329 = vrot.slane %v2327, 6
        %v2330 = vshll.u32 %v2279, 16
        %v2332 = vrot.slane %v2330, 7
        %v2333 = vor.u32 %v2329, %v2332
        %v2334 = vsel %vm2286, %v2325, %v2333
        %v2335 = vrot.slane %v2333, 4
        %v2337 = vshrl.u32 %v2280, 16
        %v2339 = vrot.slane %v2337, 6
        %v2340 = vshll.u32 %v2280, 16
        %v2342 = vrot.slane %v2340, 7
        %v2343 = vor.u32 %v2339, %v2342
        %v2344 = vsel %vm2286, %v2335, %v2343
        %v2345 = vrot.slane %v2343, 4
        %v2347 = vshrl.u32 %v2281, 16
        %v2349 = vrot.slane %v2347, 6
        %v2350 = vshll.u32 %v2281, 16
        %v2352 = vrot.slane %v2350, 7
        %v2353 = vor.u32 %v2349, %v2352
        %v2354 = vsel %vm2286, %v2345, %v2353
        %v2355 = vrot.slane %v2353, 4
        %v2357 = vshrl.u32 %v2282, 16
        %v2359 = vrot.slane %v2357, 6
        %v2360 = vshll.u32 %v2282, 16
        %v2362 = vrot.slane %v2360, 7
        %v2363 = vor.u32 %v2359, %v2362
        %v2364 = vsel %vm2286, %v2355, %v2363
        %v2365 = vrot.slane %v2363, 4
        %v2367 = vshrl.u32 %v2283, 16
        %v2369 = vrot.slane %v2367, 6
        %v2370 = vshll.u32 %v2283, 16
        %v2372 = vrot.slane %v2370, 7
        %v2373 = vor.u32 %v2369, %v2372
        %v2374 = vsel %vm2286, %v2365, %v2373
        %v2375 = vrot.slane %v2373, 4
        %v2377 = vshrl.u32 %v2284, 16
        %v2379 = vrot.slane %v2377, 6
        %v2380 = vshll.u32 %v2284, 16
        %v2382 = vrot.slane %v2380, 7
        %v2383 = vor.u32 %v2379, %v2382
        %v2384 = vsel %vm2286, %v2375, %v2383
        %v2385 = vrot.slane %v2383, 4
        %v2397 = vld [vmem:[#allocation2 + $0x4] sm:$0xe]
        %v2398 = vsel %vm263, %v2294, %v2397
        %2399 = vst [vmem:[#allocation2 + $0x4] sm:$0xe] %v2398
        %2400 = vst [vmem:[#allocation2 + $0x8] sm:$0xf] %v2304
        %2401 = vst [vmem:[#allocation2 + $0xc] sm:$0xf] %v2314
        %2402 = vst [vmem:[#allocation2 + $0x10] sm:$0xf] %v2324
        %2403 = vst [vmem:[#allocation2 + $0x14] sm:$0xf] %v2334
        %2404 = vst [vmem:[#allocation2 + $0x18] sm:$0xf] %v2344
        %2405 = vst [vmem:[#allocation2 + $0x1c] sm:$0xf] %v2354
        %2406 = vst [vmem:[#allocation2 + $0x20] sm:$0xf] %v2364
        %2407 = vst [vmem:[#allocation2 + $0x24] sm:$0xf] %v2374
        %2408 = vst [vmem:[#allocation2 + $0x28] sm:$0xf] %v2384
        %v2409 = vld [vmem:[#allocation2 + $0x2c] sm:$0x3]
        %v2410 = vsel %vm257, %v2385, %v2409
        %2411 = vst [vmem:[#allocation2 + $0x2c] sm:$0x3] %v2410
        %v2412 = vld [vmem:[%s4] sm:$0x1]
        %v2414 = vlaneseq
        %v2415 = vshrl.u32 %v2414, 7
        %v2416 = vsub.s32 0, %v2415
        %v2417 = vrot.slane %v2412, %v2416
        %v2419 = vld [vmem:[#allocation2] sm:$0xf]
        %v2420 = vld [vmem:[#allocation2 + $0x4] sm:$0xf]
        %v2421 = vld [vmem:[#allocation2 + $0x8] sm:$0xf]
        %v2422 = vld [vmem:[#allocation2 + $0xc] sm:$0xf]
        %v2423 = vld [vmem:[#allocation2 + $0x10] sm:$0xf]
        %v2424 = vld [vmem:[#allocation2 + $0x14] sm:$0xf]
        %v2425 = vld [vmem:[#allocation2 + $0x18] sm:$0xf]
        %v2426 = vld [vmem:[#allocation2 + $0x1c] sm:$0xf]
        %v2427 = vld [vmem:[#allocation2 + $0x20] sm:$0xf]
        %v2428 = vld [vmem:[#allocation2 + $0x24] sm:$0xf]
        %v2429 = vld [vmem:[#allocation6] sm:$0xf]
        %v2430 = vld [vmem:[#allocation6 + $0x4] sm:$0xf]
        %v2431 = vld [vmem:[#allocation6 + $0x8] sm:$0xf]
        %v2432 = vld [vmem:[#allocation6 + $0xc] sm:$0xf]
        %v2433 = vld [vmem:[#allocation6 + $0x10] sm:$0xf]
        %v2434 = vld [vmem:[#allocation6 + $0x14] sm:$0xf]
        %v2435 = vld [vmem:[#allocation6 + $0x18] sm:$0xf]
        %v2436 = vld [vmem:[#allocation6 + $0x1c] sm:$0xf]
        %v2437 = vld [vmem:[#allocation6 + $0x20] sm:$0xf]
        %v2438 = vld [vmem:[#allocation6 + $0x24] sm:$0xf]
        %v2439 = vld [vmem:[#allocation6 + $0x28] sm:$0xf]
        %v2440 = vld [vmem:[#allocation6 + $0x2c] sm:$0xf]
        %v2441 = vld [vmem:[#allocation6 + $0x30] sm:$0xf]
        %v2442 = vld [vmem:[#allocation6 + $0x34] sm:$0xf]
        %v2443 = vld [vmem:[#allocation6 + $0x38] sm:$0xf]
        %v2444 = vld [vmem:[#allocation6 + $0x3c] sm:$0xf]
        %v2455 = vunpack.c.l.b16 %v2419
        %v2456 = vunpack.c.l.b16 %v2420
        %v2457 = vunpack.c.l.b16 %v2421
        %v2458 = vunpack.c.l.b16 %v2422
        %v2459 = vunpack.c.l.b16 %v2423
        %v2460 = vunpack.c.l.b16 %v2424
        %v2461 = vunpack.c.l.b16 %v2425
        %v2462 = vunpack.c.l.b16 %v2426
        %v2463 = vunpack.c.l.b16 %v2427
        %v2464 = vunpack.c.l.b16 %v2428
        %v2465 = vpack.c.b16 %v2456, %v2455
        %v2466 = vpack.c.b16 %v2458, %v2457
        %v2467 = vpack.c.b16 %v2460, %v2459
        %v2468 = vpack.c.b16 %v2462, %v2461
        %v2469 = vpack.c.b16 %v2464, %v2463
        %v2491 = vunpack.c.l.b16 %v2429
        %v2492 = vunpack.c.l.b16 %v2430
        %v2493 = vunpack.c.l.b16 %v2431
        %v2494 = vunpack.c.l.b16 %v2432
        %v2495 = vunpack.c.l.b16 %v2433
        %v2496 = vunpack.c.l.b16 %v2434
        %v2497 = vunpack.c.l.b16 %v2435
        %v2498 = vunpack.c.l.b16 %v2436
        %v2499 = vunpack.c.l.b16 %v2437
        %v2500 = vunpack.c.l.b16 %v2438
        %v2501 = vunpack.c.l.b16 %v2439
        %v2502 = vunpack.c.l.b16 %v2440
        %v2503 = vunpack.c.l.b16 %v2441
        %v2504 = vunpack.c.l.b16 %v2442
        %v2505 = vunpack.c.l.b16 %v2443
        %v2506 = vunpack.c.l.b16 %v2444
        %v2507 = vpack.c.b16 %v2492, %v2491
        %v2508 = vpack.c.b16 %v2494, %v2493
        %v2509 = vpack.c.b16 %v2496, %v2495
        %v2510 = vpack.c.b16 %v2498, %v2497
        %v2511 = vpack.c.b16 %v2500, %v2499
        %v2512 = vpack.c.b16 %v2502, %v2501
        %v2513 = vpack.c.b16 %v2504, %v2503
        %v2514 = vpack.c.b16 %v2506, %v2505
        %2523 = vmatprep.subr.bf16.mxu0 0
        %2524 = vmatpush1.bf16.msra.mxu0 %v2507
        %2525 = vmatprep.subr.bf16.mxu0 0
        %2526 = vmatpush1.bf16.msra.mxu0 %v2508
        %2527 = vmatprep.subr.bf16.mxu0 0
        %2528 = vmatpush1.bf16.msra.mxu0 %v2509
        %2529 = vmatprep.subr.bf16.mxu0 0
        %2530 = vmatpush1.bf16.msra.mxu0 %v2510
        %2531 = vmatprep.subr.bf16.mxu0 0
        %2532 = vmatpush1.bf16.msra.mxu0 %v2511
        %2533 = vmatprep.subr.bf16.mxu0 0
        %2534 = vmatpush1.bf16.msra.mxu0 %v2512
        %2535 = vmatprep.subr.bf16.mxu0 0
        %2536 = vmatpush1.bf16.msra.mxu0 %v2513
        %2537 = vmatprep.subr.bf16.mxu0 0
        %2538 = vmatpush1.bf16.msra.mxu0 %v2514
        %2539 = vmatprep.subr.bf16.mxu0 0
        %2540 = vmatpush1.bf16.msra.mxu0 0
        %2541 = vmatprep.subr.bf16.mxu0 0
        %2542 = vmatpush1.bf16.msra.mxu0 0
        %2543 = vmatprep.subr.bf16.mxu0 0
        %2544 = vmatpush1.bf16.msra.mxu0 0
        %2545 = vmatprep.subr.bf16.mxu0 0
        %2546 = vmatpush1.bf16.msra.mxu0 0
        %2547 = vmatprep.subr.bf16.mxu0 0
        %2548 = vmatpush1.bf16.msra.mxu0 0
        %2549 = vmatprep.subr.bf16.mxu0 0
        %2550 = vmatpush1.bf16.msra.mxu0 0
        %2551 = vmatprep.subr.bf16.mxu0 0
        %2552 = vmatpush1.bf16.msra.mxu0 0
        %2553 = vmatprep.subr.bf16.mxu0 0
        %2554 = vmatpush1.bf16.msra.mxu0 0
        %2555 = vmatprep.mubr.bf16.mxu0 0
        %2556 = vmatmul.mubr.bf16.gmra.mrb[0].mxu0 %v2465
        %v2557 = vpop.f32.mrb[0].mxu0
        %v2558 = vadd.f32 0.0, %v2557
        %v2559 = vpop.f32.mrb[0].mxu0
        %v2560 = vpop.f32.mrb[0].mxu0
        %v2561 = vadd.f32 0.0, %v2560
        %v2562 = vpop.f32.mrb[0].mxu0
        %2563 = vmatprep.mubr.bf16.mxu0 0
        %2564 = vmatmul.mubr.bf16.gmra.mrb[0].mxu0 %v2466
        %v2565 = vpop.f32.mrb[0].mxu0
        %v2566 = vadd.f32 0.0, %v2565
        %v2567 = vpop.f32.mrb[0].mxu0
        %v2568 = vpop.f32.mrb[0].mxu0
        %v2569 = vadd.f32 0.0, %v2568
        %v2570 = vpop.f32.mrb[0].mxu0
        %2571 = vmatprep.mubr.bf16.mxu0 0
        %2572 = vmatmul.mubr.bf16.gmra.mrb[0].mxu0 %v2467
        %v2573 = vpop.f32.mrb[0].mxu0
        %v2574 = vadd.f32 0.0, %v2573
        %v2575 = vpop.f32.mrb[0].mxu0
        %v2576 = vpop.f32.mrb[0].mxu0
        %v2577 = vadd.f32 0.0, %v2576
        %v2578 = vpop.f32.mrb[0].mxu0
        %2579 = vmatprep.mubr.bf16.mxu0 0
        %2580 = vmatmul.mubr.bf16.gmra.mrb[0].mxu0 %v2468
        %v2581 = vpop.f32.mrb[0].mxu0
        %v2582 = vadd.f32 0.0, %v2581
        %v2583 = vpop.f32.mrb[0].mxu0
        %v2584 = vpop.f32.mrb[0].mxu0
        %v2585 = vadd.f32 0.0, %v2584
        %v2586 = vpop.f32.mrb[0].mxu0
        %2587 = vmatprep.mubr.bf16.mxu0 0
        %2588 = vmatmul.mubr.bf16.gmra.mrb[0].mxu0 %v2469
        %v2589 = vpop.f32.mrb[0].mxu0
        %v2590 = vadd.f32 0.0, %v2589
        %v2591 = vpop.f32.mrb[0].mxu0
        %v2592 = vpop.f32.mrb[0].mxu0
        %v2593 = vadd.f32 0.0, %v2592
        %v2594 = vpop.f32.mrb[0].mxu0
        %2595 = vdwg.mxu0
        %v2596 = vadd.f32 %v2417, %v2558
        %v2597 = vadd.f32 %v2417, %v2561
        %v2598 = vadd.f32 %v2417, %v2566
        %v2599 = vadd.f32 %v2417, %v2569
        %v2600 = vadd.f32 %v2417, %v2574
        %v2601 = vadd.f32 %v2417, %v2577
        %v2602 = vadd.f32 %v2417, %v2582
        %v2603 = vadd.f32 %v2417, %v2585
        %v2604 = vadd.f32 %v2417, %v2590
        %v2605 = vadd.f32 %v2417, %v2593
        %v2606 = vld [vmem:[#allocation2] sm:$0xf]
        %v2607 = vld [vmem:[#allocation2 + $0x4] sm:$0xf]
        %v2608 = vld [vmem:[#allocation2 + $0x8] sm:$0xf]
        %v2609 = vld [vmem:[#allocation2 + $0xc] sm:$0xf]
        %v2610 = vld [vmem:[#allocation2 + $0x10] sm:$0xf]
        %v2611 = vld [vmem:[#allocation2 + $0x14] sm:$0xf]
        %v2612 = vld [vmem:[#allocation2 + $0x18] sm:$0xf]
        %v2613 = vld [vmem:[#allocation2 + $0x1c] sm:$0xf]
        %v2614 = vld [vmem:[#allocation2 + $0x20] sm:$0xf]
        %v2615 = vld [vmem:[#allocation2 + $0x24] sm:$0xf]
        %v2616 = vld [vmem:[#allocation2 + $0x28] sm:$0x1]
        %s2617 = scalar_lea.vmem [#allocation6], 64
        %v2618 = vld [vmem:[%s2617] sm:$0xf]
        %v2619 = vld [vmem:[%s2617 + $0x4] sm:$0xf]
        %v2620 = vld [vmem:[%s2617 + $0x8] sm:$0xf]
        %v2621 = vld [vmem:[%s2617 + $0xc] sm:$0xf]
        %v2622 = vld [vmem:[%s2617 + $0x10] sm:$0xf]
        %v2623 = vld [vmem:[%s2617 + $0x14] sm:$0xf]
        %v2624 = vld [vmem:[%s2617 + $0x18] sm:$0xf]
        %v2625 = vld [vmem:[%s2617 + $0x1c] sm:$0xf]
        %v2626 = vld [vmem:[%s2617 + $0x20] sm:$0xf]
        %v2627 = vld [vmem:[%s2617 + $0x24] sm:$0xf]
        %v2628 = vld [vmem:[%s2617 + $0x28] sm:$0xf]
        %v2629 = vld [vmem:[%s2617 + $0x2c] sm:$0xf]
        %v2630 = vld [vmem:[%s2617 + $0x30] sm:$0xf]
        %v2631 = vld [vmem:[%s2617 + $0x34] sm:$0xf]
        %v2632 = vld [vmem:[%s2617 + $0x38] sm:$0xf]
        %v2633 = vld [vmem:[%s2617 + $0x3c] sm:$0xf]
        %v2645 = vunpack.c.l.b16 %v2606
        %v2646 = vunpack.c.l.b16 %v2607
        %v2647 = vunpack.c.l.b16 %v2608
        %v2648 = vunpack.c.l.b16 %v2609
        %v2649 = vunpack.c.l.b16 %v2610
        %v2650 = vunpack.c.l.b16 %v2611
        %v2651 = vunpack.c.l.b16 %v2612
        %v2652 = vunpack.c.l.b16 %v2613
        %v2653 = vunpack.c.l.b16 %v2614
        %v2654 = vunpack.c.l.b16 %v2615
        %v2655 = vunpack.c.l.b16 %v2616
        %v2656 = vpack.c.b16 %v2646, %v2645
        %v2657 = vpack.c.b16 %v2648, %v2647
        %v2658 = vpack.c.b16 %v2650, %v2649
        %v2659 = vpack.c.b16 %v2652, %v2651
        %v2660 = vpack.c.b16 %v2654, %v2653
        %v2661 = vpack.c.b16 %v2655, %v2655
        %v2663 = vshrl.u32 %v2656, 16
        %v2665 = vshll.u32 %v2656, 16
        %v2667 = vrot.slane %v2665, 1
        %v2668 = vor.u32 %v2663, %v2667
        %v2670 = vshll.u32 %v2657, 16
        %v2672 = vrot.slane %v2670, 1
        %v2673 = vsel %vm699, %v2668, %v2672
        %v2674 = vshrl.u32 %v2657, 16
        %v2676 = vor.u32 %v2674, %v2672
        %v2678 = vshll.u32 %v2658, 16
        %v2680 = vrot.slane %v2678, 1
        %v2681 = vsel %vm699, %v2676, %v2680
        %v2682 = vshrl.u32 %v2658, 16
        %v2684 = vor.u32 %v2682, %v2680
        %v2686 = vshll.u32 %v2659, 16
        %v2688 = vrot.slane %v2686, 1
        %v2689 = vsel %vm699, %v2684, %v2688
        %v2690 = vshrl.u32 %v2659, 16
        %v2692 = vor.u32 %v2690, %v2688
        %v2694 = vshll.u32 %v2660, 16
        %v2696 = vrot.slane %v2694, 1
        %v2697 = vsel %vm699, %v2692, %v2696
        %v2698 = vshrl.u32 %v2660, 16
        %v2700 = vor.u32 %v2698, %v2696
        %v2702 = vshll.u32 %v2661, 16
        %v2704 = vrot.slane %v2702, 1
        %v2705 = vsel %vm699, %v2700, %v2704
        %v2727 = vunpack.c.l.b16 %v2618
        %v2728 = vunpack.c.l.b16 %v2619
        %v2729 = vunpack.c.l.b16 %v2620
        %v2730 = vunpack.c.l.b16 %v2621
        %v2731 = vunpack.c.l.b16 %v2622
        %v2732 = vunpack.c.l.b16 %v2623
        %v2733 = vunpack.c.l.b16 %v2624
        %v2734 = vunpack.c.l.b16 %v2625
        %v2735 = vunpack.c.l.b16 %v2626
        %v2736 = vunpack.c.l.b16 %v2627
        %v2737 = vunpack.c.l.b16 %v2628
        %v2738 = vunpack.c.l.b16 %v2629
        %v2739 = vunpack.c.l.b16 %v2630
        %v2740 = vunpack.c.l.b16 %v2631
        %v2741 = vunpack.c.l.b16 %v2632
        %v2742 = vunpack.c.l.b16 %v2633
        %v2743 = vpack.c.b16 %v2728, %v2727
        %v2744 = vpack.c.b16 %v2730, %v2729
        %v2745 = vpack.c.b16 %v2732, %v2731
        %v2746 = vpack.c.b16 %v2734, %v2733
        %v2747 = vpack.c.b16 %v2736, %v2735
        %v2748 = vpack.c.b16 %v2738, %v2737
        %v2749 = vpack.c.b16 %v2740, %v2739
        %v2750 = vpack.c.b16 %v2742, %v2741
        %2759 = vmatprep.subr.bf16.mxu0 0
        %2760 = vmatpush1.bf16.msra.mxu0 %v2743
        %2761 = vmatprep.subr.bf16.mxu0 0
        %2762 = vmatpush1.bf16.msra.mxu0 %v2744
        %2763 = vmatprep.subr.bf16.mxu0 0
        %2764 = vmatpush1.bf16.msra.mxu0 %v2745
        %2765 = vmatprep.subr.bf16.mxu0 0
        %2766 = vmatpush1.bf16.msra.mxu0 %v2746
        %2767 = vmatprep.subr.bf16.mxu0 0
        %2768 = vmatpush1.bf16.msra.mxu0 %v2747
        %2769 = vmatprep.subr.bf16.mxu0 0
        %2770 = vmatpush1.bf16.msra.mxu0 %v2748
        %2771 = vmatprep.subr.bf16.mxu0 0
        %2772 = vmatpush1.bf16.msra.mxu0 %v2749
        %2773 = vmatprep.subr.bf16.mxu0 0
        %2774 = vmatpush1.bf16.msra.mxu0 %v2750
        %2775 = vmatprep.subr.bf16.mxu0 0
        %2776 = vmatpush1.bf16.msra.mxu0 0
        %2777 = vmatprep.subr.bf16.mxu0 0
        %2778 = vmatpush1.bf16.msra.mxu0 0
        %2779 = vmatprep.subr.bf16.mxu0 0
        %2780 = vmatpush1.bf16.msra.mxu0 0
        %2781 = vmatprep.subr.bf16.mxu0 0
        %2782 = vmatpush1.bf16.msra.mxu0 0
        %2783 = vmatprep.subr.bf16.mxu0 0
        %2784 = vmatpush1.bf16.msra.mxu0 0
        %2785 = vmatprep.subr.bf16.mxu0 0
        %2786 = vmatpush1.bf16.msra.mxu0 0
        %2787 = vmatprep.subr.bf16.mxu0 0
        %2788 = vmatpush1.bf16.msra.mxu0 0
        %2789 = vmatprep.subr.bf16.mxu0 0
        %2790 = vmatpush1.bf16.msra.mxu0 0
        %2791 = vmatprep.mubr.bf16.mxu0 0
        %2792 = vmatmul.mubr.bf16.gmra.mrb[0].mxu0 %v2673
        %v2793 = vpop.f32.mrb[0].mxu0
        %v2794 = vadd.f32 0.0, %v2793
        %v2795 = vpop.f32.mrb[0].mxu0
        %v2796 = vpop.f32.mrb[0].mxu0
        %v2797 = vadd.f32 0.0, %v2796
        %v2798 = vpop.f32.mrb[0].mxu0
        %2799 = vmatprep.mubr.bf16.mxu0 0
        %2800 = vmatmul.mubr.bf16.gmra.mrb[0].mxu0 %v2681
        %v2801 = vpop.f32.mrb[0].mxu0
        %v2802 = vadd.f32 0.0, %v2801
        %v2803 = vpop.f32.mrb[0].mxu0
        %v2804 = vpop.f32.mrb[0].mxu0
        %v2805 = vadd.f32 0.0, %v2804
        %v2806 = vpop.f32.mrb[0].mxu0
        %2807 = vmatprep.mubr.bf16.mxu0 0
        %2808 = vmatmul.mubr.bf16.gmra.mrb[0].mxu0 %v2689
        %v2809 = vpop.f32.mrb[0].mxu0
        %v2810 = vadd.f32 0.0, %v2809
        %v2811 = vpop.f32.mrb[0].mxu0
        %v2812 = vpop.f32.mrb[0].mxu0
        %v2813 = vadd.f32 0.0, %v2812
        %v2814 = vpop.f32.mrb[0].mxu0
        %2815 = vmatprep.mubr.bf16.mxu0 0
        %2816 = vmatmul.mubr.bf16.gmra.mrb[0].mxu0 %v2697
        %v2817 = vpop.f32.mrb[0].mxu0
        %v2818 = vadd.f32 0.0, %v2817
        %v2819 = vpop.f32.mrb[0].mxu0
        %v2820 = vpop.f32.mrb[0].mxu0
        %v2821 = vadd.f32 0.0, %v2820
        %v2822 = vpop.f32.mrb[0].mxu0
        %2823 = vmatprep.mubr.bf16.mxu0 0
        %2824 = vmatmul.mubr.bf16.gmra.mrb[0].mxu0 %v2705
        %v2825 = vpop.f32.mrb[0].mxu0
        %v2826 = vadd.f32 0.0, %v2825
        %v2827 = vpop.f32.mrb[0].mxu0
        %v2828 = vpop.f32.mrb[0].mxu0
        %v2829 = vadd.f32 0.0, %v2828
        %v2830 = vpop.f32.mrb[0].mxu0
        %2831 = vdwg.mxu0
        %v2832 = vadd.f32 %v2596, %v2794
        %v2833 = vadd.f32 %v2597, %v2797
        %v2834 = vadd.f32 %v2598, %v2802
        %v2835 = vadd.f32 %v2599, %v2805
        %v2836 = vadd.f32 %v2600, %v2810
        %v2837 = vadd.f32 %v2601, %v2813
        %v2838 = vadd.f32 %v2602, %v2818
        %v2839 = vadd.f32 %v2603, %v2821
        %v2840 = vadd.f32 %v2604, %v2826
        %v2841 = vadd.f32 %v2605, %v2829
        %v2842 = vld [vmem:[#allocation2] sm:$0xe]
        %s2843 = scalar_lea.vmem [#allocation6], 128
        %v2844 = vld [vmem:[%s2843] sm:$0xf]
        %v2845 = vld [vmem:[%s2843 + $0x4] sm:$0xf]
        %v2846 = vld [vmem:[%s2843 + $0x8] sm:$0xf]
        %v2847 = vld [vmem:[%s2843 + $0xc] sm:$0xf]
        %v2848 = vld [vmem:[%s2843 + $0x10] sm:$0xf]
        %v2849 = vld [vmem:[%s2843 + $0x14] sm:$0xf]
        %v2850 = vld [vmem:[%s2843 + $0x18] sm:$0xf]
        %v2851 = vld [vmem:[%s2843 + $0x1c] sm:$0xf]
        %v2852 = vld [vmem:[%s2843 + $0x20] sm:$0xf]
        %v2853 = vld [vmem:[%s2843 + $0x24] sm:$0xf]
        %v2854 = vld [vmem:[%s2843 + $0x28] sm:$0xf]
        %v2855 = vld [vmem:[%s2843 + $0x2c] sm:$0xf]
        %v2856 = vld [vmem:[%s2843 + $0x30] sm:$0xf]
        %v2857 = vld [vmem:[%s2843 + $0x34] sm:$0xf]
        %v2858 = vld [vmem:[%s2843 + $0x38] sm:$0xf]
        %v2859 = vld [vmem:[%s2843 + $0x3c] sm:$0xf]
        %v2861 = vunpack.c.l.b16 %v2842
        %v2862 = vpack.c.b16 %v2646, %v2861
        %v2863 = vrot.slane %v2862, 1
        %v2864 = vrot.slane %v2657, 1
        %v2865 = vsel %vm901, %v2863, %v2864
        %v2866 = vrot.slane %v2658, 1
        %v2867 = vsel %vm901, %v2864, %v2866
        %v2868 = vrot.slane %v2659, 1
        %v2869 = vsel %vm901, %v2866, %v2868
        %v2870 = vrot.slane %v2660, 1
        %v2871 = vsel %vm901, %v2868, %v2870
        %v2872 = vrot.slane %v2661, 1
        %v2873 = vsel %vm901, %v2870, %v2872
        %v2895 = vunpack.c.l.b16 %v2844
        %v2896 = vunpack.c.l.b16 %v2845
        %v2897 = vunpack.c.l.b16 %v2846
        %v2898 = vunpack.c.l.b16 %v2847
        %v2899 = vunpack.c.l.b16 %v2848
        %v2900 = vunpack.c.l.b16 %v2849
        %v2901 = vunpack.c.l.b16 %v2850
        %v2902 = vunpack.c.l.b16 %v2851
        %v2903 = vunpack.c.l.b16 %v2852
        %v2904 = vunpack.c.l.b16 %v2853
        %v2905 = vunpack.c.l.b16 %v2854
        %v2906 = vunpack.c.l.b16 %v2855
        %v2907 = vunpack.c.l.b16 %v2856
        %v2908 = vunpack.c.l.b16 %v2857
        %v2909 = vunpack.c.l.b16 %v2858
        %v2910 = vunpack.c.l.b16 %v2859
        %v2911 = vpack.c.b16 %v2896, %v2895
        %v2912 = vpack.c.b16 %v2898, %v2897
        %v2913 = vpack.c.b16 %v2900, %v2899
        %v2914 = vpack.c.b16 %v2902, %v2901
        %v2915 = vpack.c.b16 %v2904, %v2903
        %v2916 = vpack.c.b16 %v2906, %v2905
        %v2917 = vpack.c.b16 %v2908, %v2907
        %v2918 = vpack.c.b16 %v2910, %v2909
        %2927 = vmatprep.subr.bf16.mxu0 0
        %2928 = vmatpush1.bf16.msra.mxu0 %v2911
        %2929 = vmatprep.subr.bf16.mxu0 0
        %2930 = vmatpush1.bf16.msra.mxu0 %v2912
        %2931 = vmatprep.subr.bf16.mxu0 0
        %2932 = vmatpush1.bf16.msra.mxu0 %v2913
        %2933 = vmatprep.subr.bf16.mxu0 0
        %2934 = vmatpush1.bf16.msra.mxu0 %v2914
        %2935 = vmatprep.subr.bf16.mxu0 0
        %2936 = vmatpush1.bf16.msra.mxu0 %v2915
        %2937 = vmatprep.subr.bf16.mxu0 0
        %2938 = vmatpush1.bf16.msra.mxu0 %v2916
        %2939 = vmatprep.subr.bf16.mxu0 0
        %2940 = vmatpush1.bf16.msra.mxu0 %v2917
        %2941 = vmatprep.subr.bf16.mxu0 0
        %2942 = vmatpush1.bf16.msra.mxu0 %v2918
        %2943 = vmatprep.subr.bf16.mxu0 0
        %2944 = vmatpush1.bf16.msra.mxu0 0
        %2945 = vmatprep.subr.bf16.mxu0 0
        %2946 = vmatpush1.bf16.msra.mxu0 0
        %2947 = vmatprep.subr.bf16.mxu0 0
        %2948 = vmatpush1.bf16.msra.mxu0 0
        %2949 = vmatprep.subr.bf16.mxu0 0
        %2950 = vmatpush1.bf16.msra.mxu0 0
        %2951 = vmatprep.subr.bf16.mxu0 0
        %2952 = vmatpush1.bf16.msra.mxu0 0
        %2953 = vmatprep.subr.bf16.mxu0 0
        %2954 = vmatpush1.bf16.msra.mxu0 0
        %2955 = vmatprep.subr.bf16.mxu0 0
        %2956 = vmatpush1.bf16.msra.mxu0 0
        %2957 = vmatprep.subr.bf16.mxu0 0
        %2958 = vmatpush1.bf16.msra.mxu0 0
        %2959 = vmatprep.mubr.bf16.mxu0 0
        %2960 = vmatmul.mubr.bf16.gmra.mrb[0].mxu0 %v2865
        %v2961 = vpop.f32.mrb[0].mxu0
        %v2962 = vadd.f32 0.0, %v2961
        %v2963 = vpop.f32.mrb[0].mxu0
        %v2964 = vpop.f32.mrb[0].mxu0
        %v2965 = vadd.f32 0.0, %v2964
        %v2966 = vpop.f32.mrb[0].mxu0
        %2967 = vmatprep.mubr.bf16.mxu0 0
        %2968 = vmatmul.mubr.bf16.gmra.mrb[0].mxu0 %v2867
        %v2969 = vpop.f32.mrb[0].mxu0
        %v2970 = vadd.f32 0.0, %v2969
        %v2971 = vpop.f32.mrb[0].mxu0
        %v2972 = vpop.f32.mrb[0].mxu0
        %v2973 = vadd.f32 0.0, %v2972
        %v2974 = vpop.f32.mrb[0].mxu0
        %2975 = vmatprep.mubr.bf16.mxu0 0
        %2976 = vmatmul.mubr.bf16.gmra.mrb[0].mxu0 %v2869
        %v2977 = vpop.f32.mrb[0].mxu0
        %v2978 = vadd.f32 0.0, %v2977
        %v2979 = vpop.f32.mrb[0].mxu0
        %v2980 = vpop.f32.mrb[0].mxu0
        %v2981 = vadd.f32 0.0, %v2980
        %v2982 = vpop.f32.mrb[0].mxu0
        %2983 = vmatprep.mubr.bf16.mxu0 0
        %2984 = vmatmul.mubr.bf16.gmra.mrb[0].mxu0 %v2871
        %v2985 = vpop.f32.mrb[0].mxu0
        %v2986 = vadd.f32 0.0, %v2985
        %v2987 = vpop.f32.mrb[0].mxu0
        %v2988 = vpop.f32.mrb[0].mxu0
        %v2989 = vadd.f32 0.0, %v2988
        %v2990 = vpop.f32.mrb[0].mxu0
        %2991 = vmatprep.mubr.bf16.mxu0 0
        %2992 = vmatmul.mubr.bf16.gmra.mrb[0].mxu0 %v2873
        %v2993 = vpop.f32.mrb[0].mxu0
        %v2994 = vadd.f32 0.0, %v2993
        %v2995 = vpop.f32.mrb[0].mxu0
        %v2996 = vpop.f32.mrb[0].mxu0
        %v2997 = vadd.f32 0.0, %v2996
        %v2998 = vpop.f32.mrb[0].mxu0
        %2999 = vdwg.mxu0
        %v3000 = vadd.f32 %v2832, %v2962
        %v3001 = vadd.f32 %v2833, %v2965
        %v3002 = vadd.f32 %v2834, %v2970
        %v3003 = vadd.f32 %v2835, %v2973
        %v3004 = vadd.f32 %v2836, %v2978
        %v3005 = vadd.f32 %v2837, %v2981
        %v3006 = vadd.f32 %v2838, %v2986
        %v3007 = vadd.f32 %v2839, %v2989
        %v3008 = vadd.f32 %v2840, %v2994
        %v3009 = vadd.f32 %v2841, %v2997
        %v3010 = vld [vmem:[#allocation2 + $0x4] sm:$0xe]
        %v3011 = vld [vmem:[#allocation2 + $0x8] sm:$0xf]
        %v3012 = vld [vmem:[#allocation2 + $0xc] sm:$0xf]
        %v3013 = vld [vmem:[#allocation2 + $0x10] sm:$0xf]
        %v3014 = vld [vmem:[#allocation2 + $0x14] sm:$0xf]
        %v3015 = vld [vmem:[#allocation2 + $0x18] sm:$0xf]
        %v3016 = vld [vmem:[#allocation2 + $0x1c] sm:$0xf]
        %v3017 = vld [vmem:[#allocation2 + $0x20] sm:$0xf]
        %v3018 = vld [vmem:[#allocation2 + $0x24] sm:$0xf]
        %v3019 = vld [vmem:[#allocation2 + $0x28] sm:$0xf]
        %v3020 = vld [vmem:[#allocation2 + $0x2c] sm:$0x1]
        %s3021 = scalar_lea.vmem [#allocation6], 192
        %v3022 = vld [vmem:[%s3021] sm:$0xf]
        %v3023 = vld [vmem:[%s3021 + $0x4] sm:$0xf]
        %v3024 = vld [vmem:[%s3021 + $0x8] sm:$0xf]
        %v3025 = vld [vmem:[%s3021 + $0xc] sm:$0xf]
        %v3026 = vld [vmem:[%s3021 + $0x10] sm:$0xf]
        %v3027 = vld [vmem:[%s3021 + $0x14] sm:$0xf]
        %v3028 = vld [vmem:[%s3021 + $0x18] sm:$0xf]
        %v3029 = vld [vmem:[%s3021 + $0x1c] sm:$0xf]
        %v3030 = vld [vmem:[%s3021 + $0x20] sm:$0xf]
        %v3031 = vld [vmem:[%s3021 + $0x24] sm:$0xf]
        %v3032 = vld [vmem:[%s3021 + $0x28] sm:$0xf]
        %v3033 = vld [vmem:[%s3021 + $0x2c] sm:$0xf]
        %v3034 = vld [vmem:[%s3021 + $0x30] sm:$0xf]
        %v3035 = vld [vmem:[%s3021 + $0x34] sm:$0xf]
        %v3036 = vld [vmem:[%s3021 + $0x38] sm:$0xf]
        %v3037 = vld [vmem:[%s3021 + $0x3c] sm:$0xf]
        %v3049 = vunpack.c.l.b16 %v3010
        %v3050 = vunpack.c.l.b16 %v3011
        %v3051 = vunpack.c.l.b16 %v3012
        %v3052 = vunpack.c.l.b16 %v3013
        %v3053 = vunpack.c.l.b16 %v3014
        %v3054 = vunpack.c.l.b16 %v3015
        %v3055 = vunpack.c.l.b16 %v3016
        %v3056 = vunpack.c.l.b16 %v3017
        %v3057 = vunpack.c.l.b16 %v3018
        %v3058 = vunpack.c.l.b16 %v3019
        %v3059 = vunpack.c.l.b16 %v3020
        %v3060 = vpack.c.b16 %v3050, %v3049
        %v3061 = vpack.c.b16 %v3052, %v3051
        %v3062 = vpack.c.b16 %v3054, %v3053
        %v3063 = vpack.c.b16 %v3056, %v3055
        %v3064 = vpack.c.b16 %v3058, %v3057
        %v3065 = vpack.c.b16 %v3059, %v3059
        %v3066 = vrot.slane %v3060, 1
        %v3067 = vrot.slane %v3061, 1
        %v3068 = vsel %vm901, %v3066, %v3067
        %v3069 = vrot.slane %v3062, 1
        %v3070 = vsel %vm901, %v3067, %v3069
        %v3071 = vrot.slane %v3063, 1
        %v3072 = vsel %vm901, %v3069, %v3071
        %v3073 = vrot.slane %v3064, 1
        %v3074 = vsel %vm901, %v3071, %v3073
        %v3075 = vrot.slane %v3065, 1
        %v3076 = vsel %vm901, %v3073, %v3075
        %v3098 = vunpack.c.l.b16 %v3022
        %v3099 = vunpack.c.l.b16 %v3023
        %v3100 = vunpack.c.l.b16 %v3024
        %v3101 = vunpack.c.l.b16 %v3025
        %v3102 = vunpack.c.l.b16 %v3026
        %v3103 = vunpack.c.l.b16 %v3027
        %v3104 = vunpack.c.l.b16 %v3028
        %v3105 = vunpack.c.l.b16 %v3029
        %v3106 = vunpack.c.l.b16 %v3030
        %v3107 = vunpack.c.l.b16 %v3031
        %v3108 = vunpack.c.l.b16 %v3032
        %v3109 = vunpack.c.l.b16 %v3033
        %v3110 = vunpack.c.l.b16 %v3034
        %v3111 = vunpack.c.l.b16 %v3035
        %v3112 = vunpack.c.l.b16 %v3036
        %v3113 = vunpack.c.l.b16 %v3037
        %v3114 = vpack.c.b16 %v3099, %v3098
        %v3115 = vpack.c.b16 %v3101, %v3100
        %v3116 = vpack.c.b16 %v3103, %v3102
        %v3117 = vpack.c.b16 %v3105, %v3104
        %v3118 = vpack.c.b16 %v3107, %v3106
        %v3119 = vpack.c.b16 %v3109, %v3108
        %v3120 = vpack.c.b16 %v3111, %v3110
        %v3121 = vpack.c.b16 %v3113, %v3112
        %3130 = vmatprep.subr.bf16.mxu0 0
        %3131 = vmatpush1.bf16.msra.mxu0 %v3114
        %3132 = vmatprep.subr.bf16.mxu0 0
        %3133 = vmatpush1.bf16.msra.mxu0 %v3115
        %3134 = vmatprep.subr.bf16.mxu0 0
        %3135 = vmatpush1.bf16.msra.mxu0 %v3116
        %3136 = vmatprep.subr.bf16.mxu0 0
        %3137 = vmatpush1.bf16.msra.mxu0 %v3117
        %3138 = vmatprep.subr.bf16.mxu0 0
        %3139 = vmatpush1.bf16.msra.mxu0 %v3118
        %3140 = vmatprep.subr.bf16.mxu0 0
        %3141 = vmatpush1.bf16.msra.mxu0 %v3119
        %3142 = vmatprep.subr.bf16.mxu0 0
        %3143 = vmatpush1.bf16.msra.mxu0 %v3120
        %3144 = vmatprep.subr.bf16.mxu0 0
        %3145 = vmatpush1.bf16.msra.mxu0 %v3121
        %3146 = vmatprep.subr.bf16.mxu0 0
        %3147 = vmatpush1.bf16.msra.mxu0 0
        %3148 = vmatprep.subr.bf16.mxu0 0
        %3149 = vmatpush1.bf16.msra.mxu0 0
        %3150 = vmatprep.subr.bf16.mxu0 0
        %3151 = vmatpush1.bf16.msra.mxu0 0
        %3152 = vmatprep.subr.bf16.mxu0 0
        %3153 = vmatpush1.bf16.msra.mxu0 0
        %3154 = vmatprep.subr.bf16.mxu0 0
        %3155 = vmatpush1.bf16.msra.mxu0 0
        %3156 = vmatprep.subr.bf16.mxu0 0
        %3157 = vmatpush1.bf16.msra.mxu0 0
        %3158 = vmatprep.subr.bf16.mxu0 0
        %3159 = vmatpush1.bf16.msra.mxu0 0
        %3160 = vmatprep.subr.bf16.mxu0 0
        %3161 = vmatpush1.bf16.msra.mxu0 0
        %3162 = vmatprep.mubr.bf16.mxu0 0
        %3163 = vmatmul.mubr.bf16.gmra.mrb[0].mxu0 %v3068
        %v3164 = vpop.f32.mrb[0].mxu0
        %v3165 = vadd.f32 0.0, %v3164
        %v3166 = vpop.f32.mrb[0].mxu0
        %v3167 = vpop.f32.mrb[0].mxu0
        %v3168 = vadd.f32 0.0, %v3167
        %v3169 = vpop.f32.mrb[0].mxu0
        %3170 = vmatprep.mubr.bf16.mxu0 0
        %3171 = vmatmul.mubr.bf16.gmra.mrb[0].mxu0 %v3070
        %v3172 = vpop.f32.mrb[0].mxu0
        %v3173 = vadd.f32 0.0, %v3172
        %v3174 = vpop.f32.mrb[0].mxu0
        %v3175 = vpop.f32.mrb[0].mxu0
        %v3176 = vadd.f32 0.0, %v3175
        %v3177 = vpop.f32.mrb[0].mxu0
        %3178 = vmatprep.mubr.bf16.mxu0 0
        %3179 = vmatmul.mubr.bf16.gmra.mrb[0].mxu0 %v3072
        %v3180 = vpop.f32.mrb[0].mxu0
        %v3181 = vadd.f32 0.0, %v3180
        %v3182 = vpop.f32.mrb[0].mxu0
        %v3183 = vpop.f32.mrb[0].mxu0
        %v3184 = vadd.f32 0.0, %v3183
        %v3185 = vpop.f32.mrb[0].mxu0
        %3186 = vmatprep.mubr.bf16.mxu0 0
        %3187 = vmatmul.mubr.bf16.gmra.mrb[0].mxu0 %v3074
        %v3188 = vpop.f32.mrb[0].mxu0
        %v3189 = vadd.f32 0.0, %v3188
        %v3190 = vpop.f32.mrb[0].mxu0
        %v3191 = vpop.f32.mrb[0].mxu0
        %v3192 = vadd.f32 0.0, %v3191
        %v3193 = vpop.f32.mrb[0].mxu0
        %3194 = vmatprep.mubr.bf16.mxu0 0
        %3195 = vmatmul.mubr.bf16.gmra.mrb[0].mxu0 %v3076
        %v3196 = vpop.f32.mrb[0].mxu0
        %v3197 = vadd.f32 0.0, %v3196
        %v3198 = vpop.f32.mrb[0].mxu0
        %v3199 = vpop.f32.mrb[0].mxu0
        %v3200 = vadd.f32 0.0, %v3199
        %v3201 = vpop.f32.mrb[0].mxu0
        %3202 = vdwg.mxu0
        %v3203 = vadd.f32 %v3000, %v3165
        %v3204 = vadd.f32 %v3001, %v3168
        %v3205 = vadd.f32 %v3002, %v3173
        %v3206 = vadd.f32 %v3003, %v3176
        %v3207 = vadd.f32 %v3004, %v3181
        %v3208 = vadd.f32 %v3005, %v3184
        %v3209 = vadd.f32 %v3006, %v3189
        %v3210 = vadd.f32 %v3007, %v3192
        %v3211 = vadd.f32 %v3008, %v3197
        %v3212 = vadd.f32 %v3009, %v3200
        %v3213 = vld [vmem:[#allocation2 + $0x2c] sm:$0x3]
        %s3214 = scalar_lea.vmem [#allocation6], 256
        %v3215 = vld [vmem:[%s3214] sm:$0xf]
        %v3216 = vld [vmem:[%s3214 + $0x4] sm:$0xf]
        %v3217 = vld [vmem:[%s3214 + $0x8] sm:$0xf]
        %v3218 = vld [vmem:[%s3214 + $0xc] sm:$0xf]
        %v3219 = vld [vmem:[%s3214 + $0x10] sm:$0xf]
        %v3220 = vld [vmem:[%s3214 + $0x14] sm:$0xf]
        %v3221 = vld [vmem:[%s3214 + $0x18] sm:$0xf]
        %v3222 = vld [vmem:[%s3214 + $0x1c] sm:$0xf]
        %v3223 = vld [vmem:[%s3214 + $0x20] sm:$0xf]
        %v3224 = vld [vmem:[%s3214 + $0x24] sm:$0xf]
        %v3225 = vld [vmem:[%s3214 + $0x28] sm:$0xf]
        %v3226 = vld [vmem:[%s3214 + $0x2c] sm:$0xf]
        %v3227 = vld [vmem:[%s3214 + $0x30] sm:$0xf]
        %v3228 = vld [vmem:[%s3214 + $0x34] sm:$0xf]
        %v3229 = vld [vmem:[%s3214 + $0x38] sm:$0xf]
        %v3230 = vld [vmem:[%s3214 + $0x3c] sm:$0xf]
        %v3232 = vunpack.c.l.b16 %v3213
        %v3233 = vpack.c.b16 %v3232, %v3232
        %v3235 = vshrl.u32 %v3060, 16
        %v3237 = vrot.slane %v3235, 1
        %v3238 = vshll.u32 %v3060, 16
        %v3240 = vrot.slane %v3238, 2
        %v3241 = vor.u32 %v3237, %v3240
        %v3243 = vshrl.u32 %v3061, 16
        %v3245 = vrot.slane %v3243, 1
        %v3246 = vshll.u32 %v3061, 16
        %v3248 = vrot.slane %v3246, 2
        %v3249 = vor.u32 %v3245, %v3248
        %v3250 = vsel %vm1273, %v3241, %v3249
        %v3252 = vshrl.u32 %v3062, 16
        %v3254 = vrot.slane %v3252, 1
        %v3255 = vshll.u32 %v3062, 16
        %v3257 = vrot.slane %v3255, 2
        %v3258 = vor.u32 %v3254, %v3257
        %v3259 = vsel %vm1273, %v3249, %v3258
        %v3261 = vshrl.u32 %v3063, 16
        %v3263 = vrot.slane %v3261, 1
        %v3264 = vshll.u32 %v3063, 16
        %v3266 = vrot.slane %v3264, 2
        %v3267 = vor.u32 %v3263, %v3266
        %v3268 = vsel %vm1273, %v3258, %v3267
        %v3270 = vshrl.u32 %v3064, 16
        %v3272 = vrot.slane %v3270, 1
        %v3273 = vshll.u32 %v3064, 16
        %v3275 = vrot.slane %v3273, 2
        %v3276 = vor.u32 %v3272, %v3275
        %v3277 = vsel %vm1273, %v3267, %v3276
        %v3279 = vshrl.u32 %v3233, 16
        %v3281 = vrot.slane %v3279, 1
        %v3282 = vshll.u32 %v3233, 16
        %v3284 = vrot.slane %v3282, 2
        %v3285 = vor.u32 %v3281, %v3284
        %v3286 = vsel %vm1273, %v3276, %v3285
        %v3308 = vunpack.c.l.b16 %v3215
        %v3309 = vunpack.c.l.b16 %v3216
        %v3310 = vunpack.c.l.b16 %v3217
        %v3311 = vunpack.c.l.b16 %v3218
        %v3312 = vunpack.c.l.b16 %v3219
        %v3313 = vunpack.c.l.b16 %v3220
        %v3314 = vunpack.c.l.b16 %v3221
        %v3315 = vunpack.c.l.b16 %v3222
        %v3316 = vunpack.c.l.b16 %v3223
        %v3317 = vunpack.c.l.b16 %v3224
        %v3318 = vunpack.c.l.b16 %v3225
        %v3319 = vunpack.c.l.b16 %v3226
        %v3320 = vunpack.c.l.b16 %v3227
        %v3321 = vunpack.c.l.b16 %v3228
        %v3322 = vunpack.c.l.b16 %v3229
        %v3323 = vunpack.c.l.b16 %v3230
        %v3324 = vpack.c.b16 %v3309, %v3308
        %v3325 = vpack.c.b16 %v3311, %v3310
        %v3326 = vpack.c.b16 %v3313, %v3312
        %v3327 = vpack.c.b16 %v3315, %v3314
        %v3328 = vpack.c.b16 %v3317, %v3316
        %v3329 = vpack.c.b16 %v3319, %v3318
        %v3330 = vpack.c.b16 %v3321, %v3320
        %v3331 = vpack.c.b16 %v3323, %v3322
        %3340 = vmatprep.subr.bf16.mxu0 0
        %3341 = vmatpush1.bf16.msra.mxu0 %v3324
        %3342 = vmatprep.subr.bf16.mxu0 0
        %3343 = vmatpush1.bf16.msra.mxu0 %v3325
        %3344 = vmatprep.subr.bf16.mxu0 0
        %3345 = vmatpush1.bf16.msra.mxu0 %v3326
        %3346 = vmatprep.subr.bf16.mxu0 0
        %3347 = vmatpush1.bf16.msra.mxu0 %v3327
        %3348 = vmatprep.subr.bf16.mxu0 0
        %3349 = vmatpush1.bf16.msra.mxu0 %v3328
        %3350 = vmatprep.subr.bf16.mxu0 0
        %3351 = vmatpush1.bf16.msra.mxu0 %v3329
        %3352 = vmatprep.subr.bf16.mxu0 0
        %3353 = vmatpush1.bf16.msra.mxu0 %v3330
        %3354 = vmatprep.subr.bf16.mxu0 0
        %3355 = vmatpush1.bf16.msra.mxu0 %v3331
        %3356 = vmatprep.subr.bf16.mxu0 0
        %3357 = vmatpush1.bf16.msra.mxu0 0
        %3358 = vmatprep.subr.bf16.mxu0 0
        %3359 = vmatpush1.bf16.msra.mxu0 0
        %3360 = vmatprep.subr.bf16.mxu0 0
        %3361 = vmatpush1.bf16.msra.mxu0 0
        %3362 = vmatprep.subr.bf16.mxu0 0
        %3363 = vmatpush1.bf16.msra.mxu0 0
        %3364 = vmatprep.subr.bf16.mxu0 0
        %3365 = vmatpush1.bf16.msra.mxu0 0
        %3366 = vmatprep.subr.bf16.mxu0 0
        %3367 = vmatpush1.bf16.msra.mxu0 0
        %3368 = vmatprep.subr.bf16.mxu0 0
        %3369 = vmatpush1.bf16.msra.mxu0 0
        %3370 = vmatprep.subr.bf16.mxu0 0
        %3371 = vmatpush1.bf16.msra.mxu0 0
        %3372 = vmatprep.mubr.bf16.mxu0 0
        %3373 = vmatmul.mubr.bf16.gmra.mrb[0].mxu0 %v3250
        %v3374 = vpop.f32.mrb[0].mxu0
        %v3375 = vadd.f32 0.0, %v3374
        %v3376 = vpop.f32.mrb[0].mxu0
        %v3377 = vpop.f32.mrb[0].mxu0
        %v3378 = vadd.f32 0.0, %v3377
        %v3379 = vpop.f32.mrb[0].mxu0
        %3380 = vmatprep.mubr.bf16.mxu0 0
        %3381 = vmatmul.mubr.bf16.gmra.mrb[0].mxu0 %v3259
        %v3382 = vpop.f32.mrb[0].mxu0
        %v3383 = vadd.f32 0.0, %v3382
        %v3384 = vpop.f32.mrb[0].mxu0
        %v3385 = vpop.f32.mrb[0].mxu0
        %v3386 = vadd.f32 0.0, %v3385
        %v3387 = vpop.f32.mrb[0].mxu0
        %3388 = vmatprep.mubr.bf16.mxu0 0
        %3389 = vmatmul.mubr.bf16.gmra.mrb[0].mxu0 %v3268
        %v3390 = vpop.f32.mrb[0].mxu0
        %v3391 = vadd.f32 0.0, %v3390
        %v3392 = vpop.f32.mrb[0].mxu0
        %v3393 = vpop.f32.mrb[0].mxu0
        %v3394 = vadd.f32 0.0, %v3393
        %v3395 = vpop.f32.mrb[0].mxu0
        %3396 = vmatprep.mubr.bf16.mxu0 0
        %3397 = vmatmul.mubr.bf16.gmra.mrb[0].mxu0 %v3277
        %v3398 = vpop.f32.mrb[0].mxu0
        %v3399 = vadd.f32 0.0, %v3398
        %v3400 = vpop.f32.mrb[0].mxu0
        %v3401 = vpop.f32.mrb[0].mxu0
        %v3402 = vadd.f32 0.0, %v3401
        %v3403 = vpop.f32.mrb[0].mxu0
        %3404 = vmatprep.mubr.bf16.mxu0 0
        %3405 = vmatmul.mubr.bf16.gmra.mrb[0].mxu0 %v3286
        %v3406 = vpop.f32.mrb[0].mxu0
        %v3407 = vadd.f32 0.0, %v3406
        %v3408 = vpop.f32.mrb[0].mxu0
        %v3409 = vpop.f32.mrb[0].mxu0
        %v3410 = vadd.f32 0.0, %v3409
        %v3411 = vpop.f32.mrb[0].mxu0
        %3412 = vdwg.mxu0
        %v3413 = vadd.f32 %v3203, %v3375
        %v3414 = vadd.f32 %v3204, %v3378
        %v3415 = vadd.f32 %v3205, %v3383
        %v3416 = vadd.f32 %v3206, %v3386
        %v3417 = vadd.f32 %v3207, %v3391
        %v3418 = vadd.f32 %v3208, %v3394
        %v3419 = vadd.f32 %v3209, %v3399
        %v3420 = vadd.f32 %v3210, %v3402
        %v3421 = vadd.f32 %v3211, %v3407
        %v3422 = vadd.f32 %v3212, %v3410
        %v3423 = vld [vmem:[#allocation2 + $0x4] sm:$0xc]
        %s3424 = scalar_lea.vmem [#allocation6], 320
        %v3425 = vld [vmem:[%s3424] sm:$0xf]
        %v3426 = vld [vmem:[%s3424 + $0x4] sm:$0xf]
        %v3427 = vld [vmem:[%s3424 + $0x8] sm:$0xf]
        %v3428 = vld [vmem:[%s3424 + $0xc] sm:$0xf]
        %v3429 = vld [vmem:[%s3424 + $0x10] sm:$0xf]
        %v3430 = vld [vmem:[%s3424 + $0x14] sm:$0xf]
        %v3431 = vld [vmem:[%s3424 + $0x18] sm:$0xf]
        %v3432 = vld [vmem:[%s3424 + $0x1c] sm:$0xf]
        %v3433 = vld [vmem:[%s3424 + $0x20] sm:$0xf]
        %v3434 = vld [vmem:[%s3424 + $0x24] sm:$0xf]
        %v3435 = vld [vmem:[%s3424 + $0x28] sm:$0xf]
        %v3436 = vld [vmem:[%s3424 + $0x2c] sm:$0xf]
        %v3437 = vld [vmem:[%s3424 + $0x30] sm:$0xf]
        %v3438 = vld [vmem:[%s3424 + $0x34] sm:$0xf]
        %v3439 = vld [vmem:[%s3424 + $0x38] sm:$0xf]
        %v3440 = vld [vmem:[%s3424 + $0x3c] sm:$0xf]
        %v3442 = vunpack.c.l.b16 %v3423
        %v3443 = vpack.c.b16 %v3050, %v3442
        %v3444 = vrot.slane %v3443, 2
        %v3445 = vrot.slane %v3061, 2
        %v3446 = vsel %vm1484, %v3444, %v3445
        %v3447 = vrot.slane %v3062, 2
        %v3448 = vsel %vm1484, %v3445, %v3447
        %v3449 = vrot.slane %v3063, 2
        %v3450 = vsel %vm1484, %v3447, %v3449
        %v3451 = vrot.slane %v3064, 2
        %v3452 = vsel %vm1484, %v3449, %v3451
        %v3453 = vrot.slane %v3233, 2
        %v3454 = vsel %vm1484, %v3451, %v3453
        %v3476 = vunpack.c.l.b16 %v3425
        %v3477 = vunpack.c.l.b16 %v3426
        %v3478 = vunpack.c.l.b16 %v3427
        %v3479 = vunpack.c.l.b16 %v3428
        %v3480 = vunpack.c.l.b16 %v3429
        %v3481 = vunpack.c.l.b16 %v3430
        %v3482 = vunpack.c.l.b16 %v3431
        %v3483 = vunpack.c.l.b16 %v3432
        %v3484 = vunpack.c.l.b16 %v3433
        %v3485 = vunpack.c.l.b16 %v3434
        %v3486 = vunpack.c.l.b16 %v3435
        %v3487 = vunpack.c.l.b16 %v3436
        %v3488 = vunpack.c.l.b16 %v3437
        %v3489 = vunpack.c.l.b16 %v3438
        %v3490 = vunpack.c.l.b16 %v3439
        %v3491 = vunpack.c.l.b16 %v3440
        %v3492 = vpack.c.b16 %v3477, %v3476
        %v3493 = vpack.c.b16 %v3479, %v3478
        %v3494 = vpack.c.b16 %v3481, %v3480
        %v3495 = vpack.c.b16 %v3483, %v3482
        %v3496 = vpack.c.b16 %v3485, %v3484
        %v3497 = vpack.c.b16 %v3487, %v3486
        %v3498 = vpack.c.b16 %v3489, %v3488
        %v3499 = vpack.c.b16 %v3491, %v3490
        %3508 = vmatprep.subr.bf16.mxu0 0
        %3509 = vmatpush1.bf16.msra.mxu0 %v3492
        %3510 = vmatprep.subr.bf16.mxu0 0
        %3511 = vmatpush1.bf16.msra.mxu0 %v3493
        %3512 = vmatprep.subr.bf16.mxu0 0
        %3513 = vmatpush1.bf16.msra.mxu0 %v3494
        %3514 = vmatprep.subr.bf16.mxu0 0
        %3515 = vmatpush1.bf16.msra.mxu0 %v3495
        %3516 = vmatprep.subr.bf16.mxu0 0
        %3517 = vmatpush1.bf16.msra.mxu0 %v3496
        %3518 = vmatprep.subr.bf16.mxu0 0
        %3519 = vmatpush1.bf16.msra.mxu0 %v3497
        %3520 = vmatprep.subr.bf16.mxu0 0
        %3521 = vmatpush1.bf16.msra.mxu0 %v3498
        %3522 = vmatprep.subr.bf16.mxu0 0
        %3523 = vmatpush1.bf16.msra.mxu0 %v3499
        %3524 = vmatprep.subr.bf16.mxu0 0
        %3525 = vmatpush1.bf16.msra.mxu0 0
        %3526 = vmatprep.subr.bf16.mxu0 0
        %3527 = vmatpush1.bf16.msra.mxu0 0
        %3528 = vmatprep.subr.bf16.mxu0 0
        %3529 = vmatpush1.bf16.msra.mxu0 0
        %3530 = vmatprep.subr.bf16.mxu0 0
        %3531 = vmatpush1.bf16.msra.mxu0 0
        %3532 = vmatprep.subr.bf16.mxu0 0
        %3533 = vmatpush1.bf16.msra.mxu0 0
        %3534 = vmatprep.subr.bf16.mxu0 0
        %3535 = vmatpush1.bf16.msra.mxu0 0
        %3536 = vmatprep.subr.bf16.mxu0 0
        %3537 = vmatpush1.bf16.msra.mxu0 0
        %3538 = vmatprep.subr.bf16.mxu0 0
        %3539 = vmatpush1.bf16.msra.mxu0 0
        %3540 = vmatprep.mubr.bf16.mxu0 0
        %3541 = vmatmul.mubr.bf16.gmra.mrb[0].mxu0 %v3446
        %v3542 = vpop.f32.mrb[0].mxu0
        %v3543 = vadd.f32 0.0, %v3542
        %v3544 = vpop.f32.mrb[0].mxu0
        %v3545 = vpop.f32.mrb[0].mxu0
        %v3546 = vadd.f32 0.0, %v3545
        %v3547 = vpop.f32.mrb[0].mxu0
        %3548 = vmatprep.mubr.bf16.mxu0 0
        %3549 = vmatmul.mubr.bf16.gmra.mrb[0].mxu0 %v3448
        %v3550 = vpop.f32.mrb[0].mxu0
        %v3551 = vadd.f32 0.0, %v3550
        %v3552 = vpop.f32.mrb[0].mxu0
        %v3553 = vpop.f32.mrb[0].mxu0
        %v3554 = vadd.f32 0.0, %v3553
        %v3555 = vpop.f32.mrb[0].mxu0
        %3556 = vmatprep.mubr.bf16.mxu0 0
        %3557 = vmatmul.mubr.bf16.gmra.mrb[0].mxu0 %v3450
        %v3558 = vpop.f32.mrb[0].mxu0
        %v3559 = vadd.f32 0.0, %v3558
        %v3560 = vpop.f32.mrb[0].mxu0
        %v3561 = vpop.f32.mrb[0].mxu0
        %v3562 = vadd.f32 0.0, %v3561
        %v3563 = vpop.f32.mrb[0].mxu0
        %3564 = vmatprep.mubr.bf16.mxu0 0
        %3565 = vmatmul.mubr.bf16.gmra.mrb[0].mxu0 %v3452
        %v3566 = vpop.f32.mrb[0].mxu0
        %v3567 = vadd.f32 0.0, %v3566
        %v3568 = vpop.f32.mrb[0].mxu0
        %v3569 = vpop.f32.mrb[0].mxu0
        %v3570 = vadd.f32 0.0, %v3569
        %v3571 = vpop.f32.mrb[0].mxu0
        %3572 = vmatprep.mubr.bf16.mxu0 0
        %3573 = vmatmul.mubr.bf16.gmra.mrb[0].mxu0 %v3454
        %v3574 = vpop.f32.mrb[0].mxu0
        %v3575 = vadd.f32 0.0, %v3574
        %v3576 = vpop.f32.mrb[0].mxu0
        %v3577 = vpop.f32.mrb[0].mxu0
        %v3578 = vadd.f32 0.0, %v3577
        %v3579 = vpop.f32.mrb[0].mxu0
        %3580 = vdwg.mxu0
        %v3581 = vadd.f32 %v3413, %v3543
        %v3582 = vadd.f32 %v3414, %v3546
        %v3583 = vadd.f32 %v3415, %v3551
        %v3584 = vadd.f32 %v3416, %v3554
        %v3585 = vadd.f32 %v3417, %v3559
        %v3586 = vadd.f32 %v3418, %v3562
        %v3587 = vadd.f32 %v3419, %v3567
        %v3588 = vadd.f32 %v3420, %v3570
        %v3589 = vadd.f32 %v3421, %v3575
        %v3590 = vadd.f32 %v3422, %v3578
        %v3591 = vld [vmem:[#allocation2 + $0x8] sm:$0xc]
        %v3592 = vld [vmem:[#allocation2 + $0xc] sm:$0xf]
        %v3593 = vld [vmem:[#allocation2 + $0x10] sm:$0xf]
        %v3594 = vld [vmem:[#allocation2 + $0x14] sm:$0xf]
        %v3595 = vld [vmem:[#allocation2 + $0x18] sm:$0xf]
        %v3596 = vld [vmem:[#allocation2 + $0x1c] sm:$0xf]
        %v3597 = vld [vmem:[#allocation2 + $0x20] sm:$0xf]
        %v3598 = vld [vmem:[#allocation2 + $0x24] sm:$0xf]
        %v3599 = vld [vmem:[#allocation2 + $0x28] sm:$0xf]
        %v3600 = vld [vmem:[#allocation2 + $0x2c] sm:$0xf]
        %v3601 = vld [vmem:[#allocation2 + $0x30] sm:$0x3]
        %s3602 = scalar_lea.vmem [#allocation6], 384
        %v3603 = vld [vmem:[%s3602] sm:$0xf]
        %v3604 = vld [vmem:[%s3602 + $0x4] sm:$0xf]
        %v3605 = vld [vmem:[%s3602 + $0x8] sm:$0xf]
        %v3606 = vld [vmem:[%s3602 + $0xc] sm:$0xf]
        %v3607 = vld [vmem:[%s3602 + $0x10] sm:$0xf]
        %v3608 = vld [vmem:[%s3602 + $0x14] sm:$0xf]
        %v3609 = vld [vmem:[%s3602 + $0x18] sm:$0xf]
        %v3610 = vld [vmem:[%s3602 + $0x1c] sm:$0xf]
        %v3611 = vld [vmem:[%s3602 + $0x20] sm:$0xf]
        %v3612 = vld [vmem:[%s3602 + $0x24] sm:$0xf]
        %v3613 = vld [vmem:[%s3602 + $0x28] sm:$0xf]
        %v3614 = vld [vmem:[%s3602 + $0x2c] sm:$0xf]
        %v3615 = vld [vmem:[%s3602 + $0x30] sm:$0xf]
        %v3616 = vld [vmem:[%s3602 + $0x34] sm:$0xf]
        %v3617 = vld [vmem:[%s3602 + $0x38] sm:$0xf]
        %v3618 = vld [vmem:[%s3602 + $0x3c] sm:$0xf]
        %v3630 = vunpack.c.l.b16 %v3591
        %v3631 = vunpack.c.l.b16 %v3592
        %v3632 = vunpack.c.l.b16 %v3593
        %v3633 = vunpack.c.l.b16 %v3594
        %v3634 = vunpack.c.l.b16 %v3595
        %v3635 = vunpack.c.l.b16 %v3596
        %v3636 = vunpack.c.l.b16 %v3597
        %v3637 = vunpack.c.l.b16 %v3598
        %v3638 = vunpack.c.l.b16 %v3599
        %v3639 = vunpack.c.l.b16 %v3600
        %v3640 = vunpack.c.l.b16 %v3601
        %v3641 = vpack.c.b16 %v3631, %v3630
        %v3642 = vpack.c.b16 %v3633, %v3632
        %v3643 = vpack.c.b16 %v3635, %v3634
        %v3644 = vpack.c.b16 %v3637, %v3636
        %v3645 = vpack.c.b16 %v3639, %v3638
        %v3646 = vpack.c.b16 %v3640, %v3640
        %v3647 = vrot.slane %v3641, 2
        %v3648 = vrot.slane %v3642, 2
        %v3649 = vsel %vm1484, %v3647, %v3648
        %v3650 = vrot.slane %v3643, 2
        %v3651 = vsel %vm1484, %v3648, %v3650
        %v3652 = vrot.slane %v3644, 2
        %v3653 = vsel %vm1484, %v3650, %v3652
        %v3654 = vrot.slane %v3645, 2
        %v3655 = vsel %vm1484, %v3652, %v3654
        %v3656 = vrot.slane %v3646, 2
        %v3657 = vsel %vm1484, %v3654, %v3656
        %v3679 = vunpack.c.l.b16 %v3603
        %v3680 = vunpack.c.l.b16 %v3604
        %v3681 = vunpack.c.l.b16 %v3605
        %v3682 = vunpack.c.l.b16 %v3606
        %v3683 = vunpack.c.l.b16 %v3607
        %v3684 = vunpack.c.l.b16 %v3608
        %v3685 = vunpack.c.l.b16 %v3609
        %v3686 = vunpack.c.l.b16 %v3610
        %v3687 = vunpack.c.l.b16 %v3611
        %v3688 = vunpack.c.l.b16 %v3612
        %v3689 = vunpack.c.l.b16 %v3613
        %v3690 = vunpack.c.l.b16 %v3614
        %v3691 = vunpack.c.l.b16 %v3615
        %v3692 = vunpack.c.l.b16 %v3616
        %v3693 = vunpack.c.l.b16 %v3617
        %v3694 = vunpack.c.l.b16 %v3618
        %v3695 = vpack.c.b16 %v3680, %v3679
        %v3696 = vpack.c.b16 %v3682, %v3681
        %v3697 = vpack.c.b16 %v3684, %v3683
        %v3698 = vpack.c.b16 %v3686, %v3685
        %v3699 = vpack.c.b16 %v3688, %v3687
        %v3700 = vpack.c.b16 %v3690, %v3689
        %v3701 = vpack.c.b16 %v3692, %v3691
        %v3702 = vpack.c.b16 %v3694, %v3693
        %3711 = vmatprep.subr.bf16.mxu0 0
        %3712 = vmatpush1.bf16.msra.mxu0 %v3695
        %3713 = vmatprep.subr.bf16.mxu0 0
        %3714 = vmatpush1.bf16.msra.mxu0 %v3696
        %3715 = vmatprep.subr.bf16.mxu0 0
        %3716 = vmatpush1.bf16.msra.mxu0 %v3697
        %3717 = vmatprep.subr.bf16.mxu0 0
        %3718 = vmatpush1.bf16.msra.mxu0 %v3698
        %3719 = vmatprep.subr.bf16.mxu0 0
        %3720 = vmatpush1.bf16.msra.mxu0 %v3699
        %3721 = vmatprep.subr.bf16.mxu0 0
        %3722 = vmatpush1.bf16.msra.mxu0 %v3700
        %3723 = vmatprep.subr.bf16.mxu0 0
        %3724 = vmatpush1.bf16.msra.mxu0 %v3701
        %3725 = vmatprep.subr.bf16.mxu0 0
        %3726 = vmatpush1.bf16.msra.mxu0 %v3702
        %3727 = vmatprep.subr.bf16.mxu0 0
        %3728 = vmatpush1.bf16.msra.mxu0 0
        %3729 = vmatprep.subr.bf16.mxu0 0
        %3730 = vmatpush1.bf16.msra.mxu0 0
        %3731 = vmatprep.subr.bf16.mxu0 0
        %3732 = vmatpush1.bf16.msra.mxu0 0
        %3733 = vmatprep.subr.bf16.mxu0 0
        %3734 = vmatpush1.bf16.msra.mxu0 0
        %3735 = vmatprep.subr.bf16.mxu0 0
        %3736 = vmatpush1.bf16.msra.mxu0 0
        %3737 = vmatprep.subr.bf16.mxu0 0
        %3738 = vmatpush1.bf16.msra.mxu0 0
        %3739 = vmatprep.subr.bf16.mxu0 0
        %3740 = vmatpush1.bf16.msra.mxu0 0
        %3741 = vmatprep.subr.bf16.mxu0 0
        %3742 = vmatpush1.bf16.msra.mxu0 0
        %3743 = vmatprep.mubr.bf16.mxu0 0
        %3744 = vmatmul.mubr.bf16.gmra.mrb[0].mxu0 %v3649
        %v3745 = vpop.f32.mrb[0].mxu0
        %v3746 = vadd.f32 0.0, %v3745
        %v3747 = vpop.f32.mrb[0].mxu0
        %v3748 = vpop.f32.mrb[0].mxu0
        %v3749 = vadd.f32 0.0, %v3748
        %v3750 = vpop.f32.mrb[0].mxu0
        %3751 = vmatprep.mubr.bf16.mxu0 0
        %3752 = vmatmul.mubr.bf16.gmra.mrb[0].mxu0 %v3651
        %v3753 = vpop.f32.mrb[0].mxu0
        %v3754 = vadd.f32 0.0, %v3753
        %v3755 = vpop.f32.mrb[0].mxu0
        %v3756 = vpop.f32.mrb[0].mxu0
        %v3757 = vadd.f32 0.0, %v3756
        %v3758 = vpop.f32.mrb[0].mxu0
        %3759 = vmatprep.mubr.bf16.mxu0 0
        %3760 = vmatmul.mubr.bf16.gmra.mrb[0].mxu0 %v3653
        %v3761 = vpop.f32.mrb[0].mxu0
        %v3762 = vadd.f32 0.0, %v3761
        %v3763 = vpop.f32.mrb[0].mxu0
        %v3764 = vpop.f32.mrb[0].mxu0
        %v3765 = vadd.f32 0.0, %v3764
        %v3766 = vpop.f32.mrb[0].mxu0
        %3767 = vmatprep.mubr.bf16.mxu0 0
        %3768 = vmatmul.mubr.bf16.gmra.mrb[0].mxu0 %v3655
        %v3769 = vpop.f32.mrb[0].mxu0
        %v3770 = vadd.f32 0.0, %v3769
        %v3771 = vpop.f32.mrb[0].mxu0
        %v3772 = vpop.f32.mrb[0].mxu0
        %v3773 = vadd.f32 0.0, %v3772
        %v3774 = vpop.f32.mrb[0].mxu0
        %3775 = vmatprep.mubr.bf16.mxu0 0
        %3776 = vmatmul.mubr.bf16.gmra.mrb[0].mxu0 %v3657
        %v3777 = vpop.f32.mrb[0].mxu0
        %v3778 = vadd.f32 0.0, %v3777
        %v3779 = vpop.f32.mrb[0].mxu0
        %v3780 = vpop.f32.mrb[0].mxu0
        %v3781 = vadd.f32 0.0, %v3780
        %v3782 = vpop.f32.mrb[0].mxu0
        %3783 = vdwg.mxu0
        %v3784 = vadd.f32 %v3581, %v3746
        %v3785 = vadd.f32 %v3582, %v3749
        %v3786 = vadd.f32 %v3583, %v3754
        %v3787 = vadd.f32 %v3584, %v3757
        %v3788 = vadd.f32 %v3585, %v3762
        %v3789 = vadd.f32 %v3586, %v3765
        %v3790 = vadd.f32 %v3587, %v3770
        %v3791 = vadd.f32 %v3588, %v3773
        %v3792 = vadd.f32 %v3589, %v3778
        %v3793 = vadd.f32 %v3590, %v3781
        %v3794 = vld [vmem:[#allocation2 + $0x30] sm:$0x7]
        %s3795 = scalar_lea.vmem [#allocation6], 448
        %v3796 = vld [vmem:[%s3795] sm:$0xf]
        %v3797 = vld [vmem:[%s3795 + $0x4] sm:$0xf]
        %v3798 = vld [vmem:[%s3795 + $0x8] sm:$0xf]
        %v3799 = vld [vmem:[%s3795 + $0xc] sm:$0xf]
        %v3800 = vld [vmem:[%s3795 + $0x10] sm:$0xf]
        %v3801 = vld [vmem:[%s3795 + $0x14] sm:$0xf]
        %v3802 = vld [vmem:[%s3795 + $0x18] sm:$0xf]
        %v3803 = vld [vmem:[%s3795 + $0x1c] sm:$0xf]
        %v3804 = vld [vmem:[%s3795 + $0x20] sm:$0xf]
        %v3805 = vld [vmem:[%s3795 + $0x24] sm:$0xf]
        %v3806 = vld [vmem:[%s3795 + $0x28] sm:$0xf]
        %v3807 = vld [vmem:[%s3795 + $0x2c] sm:$0xf]
        %v3808 = vld [vmem:[%s3795 + $0x30] sm:$0xf]
        %v3809 = vld [vmem:[%s3795 + $0x34] sm:$0xf]
        %v3810 = vld [vmem:[%s3795 + $0x38] sm:$0xf]
        %v3811 = vld [vmem:[%s3795 + $0x3c] sm:$0xf]
        %v3813 = vunpack.c.l.b16 %v3794
        %v3814 = vpack.c.b16 %v3813, %v3813
        %v3816 = vshrl.u32 %v3641, 16
        %v3818 = vrot.slane %v3816, 2
        %v3819 = vshll.u32 %v3641, 16
        %v3821 = vrot.slane %v3819, 3
        %v3822 = vor.u32 %v3818, %v3821
        %v3824 = vshrl.u32 %v3642, 16
        %v3826 = vrot.slane %v3824, 2
        %v3827 = vshll.u32 %v3642, 16
        %v3829 = vrot.slane %v3827, 3
        %v3830 = vor.u32 %v3826, %v3829
        %v3831 = vsel %vm1856, %v3822, %v3830
        %v3833 = vshrl.u32 %v3643, 16
        %v3835 = vrot.slane %v3833, 2
        %v3836 = vshll.u32 %v3643, 16
        %v3838 = vrot.slane %v3836, 3
        %v3839 = vor.u32 %v3835, %v3838
        %v3840 = vsel %vm1856, %v3830, %v3839
        %v3842 = vshrl.u32 %v3644, 16
        %v3844 = vrot.slane %v3842, 2
        %v3845 = vshll.u32 %v3644, 16
        %v3847 = vrot.slane %v3845, 3
        %v3848 = vor.u32 %v3844, %v3847
        %v3849 = vsel %vm1856, %v3839, %v3848
        %v3851 = vshrl.u32 %v3645, 16
        %v3853 = vrot.slane %v3851, 2
        %v3854 = vshll.u32 %v3645, 16
        %v3856 = vrot.slane %v3854, 3
        %v3857 = vor.u32 %v3853, %v3856
        %v3858 = vsel %vm1856, %v3848, %v3857
        %v3860 = vshrl.u32 %v3814, 16
        %v3862 = vrot.slane %v3860, 2
        %v3863 = vshll.u32 %v3814, 16
        %v3865 = vrot.slane %v3863, 3
        %v3866 = vor.u32 %v3862, %v3865
        %v3867 = vsel %vm1856, %v3857, %v3866
        %v3889 = vunpack.c.l.b16 %v3796
        %v3890 = vunpack.c.l.b16 %v3797
        %v3891 = vunpack.c.l.b16 %v3798
        %v3892 = vunpack.c.l.b16 %v3799
        %v3893 = vunpack.c.l.b16 %v3800
        %v3894 = vunpack.c.l.b16 %v3801
        %v3895 = vunpack.c.l.b16 %v3802
        %v3896 = vunpack.c.l.b16 %v3803
        %v3897 = vunpack.c.l.b16 %v3804
        %v3898 = vunpack.c.l.b16 %v3805
        %v3899 = vunpack.c.l.b16 %v3806
        %v3900 = vunpack.c.l.b16 %v3807
        %v3901 = vunpack.c.l.b16 %v3808
        %v3902 = vunpack.c.l.b16 %v3809
        %v3903 = vunpack.c.l.b16 %v3810
        %v3904 = vunpack.c.l.b16 %v3811
        %v3905 = vpack.c.b16 %v3890, %v3889
        %v3906 = vpack.c.b16 %v3892, %v3891
        %v3907 = vpack.c.b16 %v3894, %v3893
        %v3908 = vpack.c.b16 %v3896, %v3895
        %v3909 = vpack.c.b16 %v3898, %v3897
        %v3910 = vpack.c.b16 %v3900, %v3899
        %v3911 = vpack.c.b16 %v3902, %v3901
        %v3912 = vpack.c.b16 %v3904, %v3903
        %3921 = vmatprep.subr.bf16.mxu0 0
        %3922 = vmatpush1.bf16.msra.mxu0 %v3905
        %3923 = vmatprep.subr.bf16.mxu0 0
        %3924 = vmatpush1.bf16.msra.mxu0 %v3906
        %3925 = vmatprep.subr.bf16.mxu0 0
        %3926 = vmatpush1.bf16.msra.mxu0 %v3907
        %3927 = vmatprep.subr.bf16.mxu0 0
        %3928 = vmatpush1.bf16.msra.mxu0 %v3908
        %3929 = vmatprep.subr.bf16.mxu0 0
        %3930 = vmatpush1.bf16.msra.mxu0 %v3909
        %3931 = vmatprep.subr.bf16.mxu0 0
        %3932 = vmatpush1.bf16.msra.mxu0 %v3910
        %3933 = vmatprep.subr.bf16.mxu0 0
        %3934 = vmatpush1.bf16.msra.mxu0 %v3911
        %3935 = vmatprep.subr.bf16.mxu0 0
        %3936 = vmatpush1.bf16.msra.mxu0 %v3912
        %3937 = vmatprep.subr.bf16.mxu0 0
        %3938 = vmatpush1.bf16.msra.mxu0 0
        %3939 = vmatprep.subr.bf16.mxu0 0
        %3940 = vmatpush1.bf16.msra.mxu0 0
        %3941 = vmatprep.subr.bf16.mxu0 0
        %3942 = vmatpush1.bf16.msra.mxu0 0
        %3943 = vmatprep.subr.bf16.mxu0 0
        %3944 = vmatpush1.bf16.msra.mxu0 0
        %3945 = vmatprep.subr.bf16.mxu0 0
        %3946 = vmatpush1.bf16.msra.mxu0 0
        %3947 = vmatprep.subr.bf16.mxu0 0
        %3948 = vmatpush1.bf16.msra.mxu0 0
        %3949 = vmatprep.subr.bf16.mxu0 0
        %3950 = vmatpush1.bf16.msra.mxu0 0
        %3951 = vmatprep.subr.bf16.mxu0 0
        %3952 = vmatpush1.bf16.msra.mxu0 0
        %3953 = vmatprep.mubr.bf16.mxu0 0
        %3954 = vmatmul.mubr.bf16.gmra.mrb[0].mxu0 %v3831
        %v3955 = vpop.f32.mrb[0].mxu0
        %v3956 = vadd.f32 0.0, %v3955
        %v3957 = vpop.f32.mrb[0].mxu0
        %v3958 = vpop.f32.mrb[0].mxu0
        %v3959 = vadd.f32 0.0, %v3958
        %v3960 = vpop.f32.mrb[0].mxu0
        %3961 = vmatprep.mubr.bf16.mxu0 0
        %3962 = vmatmul.mubr.bf16.gmra.mrb[0].mxu0 %v3840
        %v3963 = vpop.f32.mrb[0].mxu0
        %v3964 = vadd.f32 0.0, %v3963
        %v3965 = vpop.f32.mrb[0].mxu0
        %v3966 = vpop.f32.mrb[0].mxu0
        %v3967 = vadd.f32 0.0, %v3966
        %v3968 = vpop.f32.mrb[0].mxu0
        %3969 = vmatprep.mubr.bf16.mxu0 0
        %3970 = vmatmul.mubr.bf16.gmra.mrb[0].mxu0 %v3849
        %v3971 = vpop.f32.mrb[0].mxu0
        %v3972 = vadd.f32 0.0, %v3971
        %v3973 = vpop.f32.mrb[0].mxu0
        %v3974 = vpop.f32.mrb[0].mxu0
        %v3975 = vadd.f32 0.0, %v3974
        %v3976 = vpop.f32.mrb[0].mxu0
        %3977 = vmatprep.mubr.bf16.mxu0 0
        %3978 = vmatmul.mubr.bf16.gmra.mrb[0].mxu0 %v3858
        %v3979 = vpop.f32.mrb[0].mxu0
        %v3980 = vadd.f32 0.0, %v3979
        %v3981 = vpop.f32.mrb[0].mxu0
        %v3982 = vpop.f32.mrb[0].mxu0
        %v3983 = vadd.f32 0.0, %v3982
        %v3984 = vpop.f32.mrb[0].mxu0
        %3985 = vmatprep.mubr.bf16.mxu0 0
        %3986 = vmatmul.mubr.bf16.gmra.mrb[0].mxu0 %v3867
        %v3987 = vpop.f32.mrb[0].mxu0
        %v3988 = vadd.f32 0.0, %v3987
        %v3989 = vpop.f32.mrb[0].mxu0
        %v3990 = vpop.f32.mrb[0].mxu0
        %v3991 = vadd.f32 0.0, %v3990
        %v3992 = vpop.f32.mrb[0].mxu0
        %3993 = vdwg.mxu0
        %v3994 = vadd.f32 %v3784, %v3956
        %v3995 = vadd.f32 %v3785, %v3959
        %v3996 = vadd.f32 %v3786, %v3964
        %v3997 = vadd.f32 %v3787, %v3967
        %v3998 = vadd.f32 %v3788, %v3972
        %v3999 = vadd.f32 %v3789, %v3975
        %v4000 = vadd.f32 %v3790, %v3980
        %v4001 = vadd.f32 %v3791, %v3983
        %v4002 = vadd.f32 %v3792, %v3988
        %v4003 = vadd.f32 %v3793, %v3991
        %v4004 = vld [vmem:[#allocation2 + $0x8] sm:$0x8]
        %s4005 = scalar_lea.vmem [#allocation6], 512
        %v4006 = vld [vmem:[%s4005] sm:$0xf]
        %v4007 = vld [vmem:[%s4005 + $0x4] sm:$0xf]
        %v4008 = vld [vmem:[%s4005 + $0x8] sm:$0xf]
        %v4009 = vld [vmem:[%s4005 + $0xc] sm:$0xf]
        %v4010 = vld [vmem:[%s4005 + $0x10] sm:$0xf]
        %v4011 = vld [vmem:[%s4005 + $0x14] sm:$0xf]
        %v4012 = vld [vmem:[%s4005 + $0x18] sm:$0xf]
        %v4013 = vld [vmem:[%s4005 + $0x1c] sm:$0xf]
        %v4014 = vld [vmem:[%s4005 + $0x20] sm:$0xf]
        %v4015 = vld [vmem:[%s4005 + $0x24] sm:$0xf]
        %v4016 = vld [vmem:[%s4005 + $0x28] sm:$0xf]
        %v4017 = vld [vmem:[%s4005 + $0x2c] sm:$0xf]
        %v4018 = vld [vmem:[%s4005 + $0x30] sm:$0xf]
        %v4019 = vld [vmem:[%s4005 + $0x34] sm:$0xf]
        %v4020 = vld [vmem:[%s4005 + $0x38] sm:$0xf]
        %v4021 = vld [vmem:[%s4005 + $0x3c] sm:$0xf]
        %v4023 = vunpack.c.l.b16 %v4004
        %v4024 = vpack.c.b16 %v3631, %v4023
        %v4025 = vrot.slane %v4024, 3
        %v4026 = vrot.slane %v3642, 3
        %v4027 = vsel %vm2067, %v4025, %v4026
        %v4028 = vrot.slane %v3643, 3
        %v4029 = vsel %vm2067, %v4026, %v4028
        %v4030 = vrot.slane %v3644, 3
        %v4031 = vsel %vm2067, %v4028, %v4030
        %v4032 = vrot.slane %v3645, 3
        %v4033 = vsel %vm2067, %v4030, %v4032
        %v4034 = vrot.slane %v3814, 3
        %v4035 = vsel %vm2067, %v4032, %v4034
        %v4057 = vunpack.c.l.b16 %v4006
        %v4058 = vunpack.c.l.b16 %v4007
        %v4059 = vunpack.c.l.b16 %v4008
        %v4060 = vunpack.c.l.b16 %v4009
        %v4061 = vunpack.c.l.b16 %v4010
        %v4062 = vunpack.c.l.b16 %v4011
        %v4063 = vunpack.c.l.b16 %v4012
        %v4064 = vunpack.c.l.b16 %v4013
        %v4065 = vunpack.c.l.b16 %v4014
        %v4066 = vunpack.c.l.b16 %v4015
        %v4067 = vunpack.c.l.b16 %v4016
        %v4068 = vunpack.c.l.b16 %v4017
        %v4069 = vunpack.c.l.b16 %v4018
        %v4070 = vunpack.c.l.b16 %v4019
        %v4071 = vunpack.c.l.b16 %v4020
        %v4072 = vunpack.c.l.b16 %v4021
        %v4073 = vpack.c.b16 %v4058, %v4057
        %v4074 = vpack.c.b16 %v4060, %v4059
        %v4075 = vpack.c.b16 %v4062, %v4061
        %v4076 = vpack.c.b16 %v4064, %v4063
        %v4077 = vpack.c.b16 %v4066, %v4065
        %v4078 = vpack.c.b16 %v4068, %v4067
        %v4079 = vpack.c.b16 %v4070, %v4069
        %v4080 = vpack.c.b16 %v4072, %v4071
        %4089 = vmatprep.subr.bf16.mxu0 0
        %4090 = vmatpush1.bf16.msra.mxu0 %v4073
        %4091 = vmatprep.subr.bf16.mxu0 0
        %4092 = vmatpush1.bf16.msra.mxu0 %v4074
        %4093 = vmatprep.subr.bf16.mxu0 0
        %4094 = vmatpush1.bf16.msra.mxu0 %v4075
        %4095 = vmatprep.subr.bf16.mxu0 0
        %4096 = vmatpush1.bf16.msra.mxu0 %v4076
        %4097 = vmatprep.subr.bf16.mxu0 0
        %4098 = vmatpush1.bf16.msra.mxu0 %v4077
        %4099 = vmatprep.subr.bf16.mxu0 0
        %4100 = vmatpush1.bf16.msra.mxu0 %v4078
        %4101 = vmatprep.subr.bf16.mxu0 0
        %4102 = vmatpush1.bf16.msra.mxu0 %v4079
        %4103 = vmatprep.subr.bf16.mxu0 0
        %4104 = vmatpush1.bf16.msra.mxu0 %v4080
        %4105 = vmatprep.subr.bf16.mxu0 0
        %4106 = vmatpush1.bf16.msra.mxu0 0
        %4107 = vmatprep.subr.bf16.mxu0 0
        %4108 = vmatpush1.bf16.msra.mxu0 0
        %4109 = vmatprep.subr.bf16.mxu0 0
        %4110 = vmatpush1.bf16.msra.mxu0 0
        %4111 = vmatprep.subr.bf16.mxu0 0
        %4112 = vmatpush1.bf16.msra.mxu0 0
        %4113 = vmatprep.subr.bf16.mxu0 0
        %4114 = vmatpush1.bf16.msra.mxu0 0
        %4115 = vmatprep.subr.bf16.mxu0 0
        %4116 = vmatpush1.bf16.msra.mxu0 0
        %4117 = vmatprep.subr.bf16.mxu0 0
        %4118 = vmatpush1.bf16.msra.mxu0 0
        %4119 = vmatprep.subr.bf16.mxu0 0
        %4120 = vmatpush1.bf16.msra.mxu0 0
        %4121 = vmatprep.mubr.bf16.mxu0 0
        %4122 = vmatmul.mubr.bf16.gmra.mrb[0].mxu0 %v4027
        %v4123 = vpop.f32.mrb[0].mxu0
        %v4124 = vadd.f32 0.0, %v4123
        %v4125 = vpop.f32.mrb[0].mxu0
        %v4126 = vpop.f32.mrb[0].mxu0
        %v4127 = vadd.f32 0.0, %v4126
        %v4128 = vpop.f32.mrb[0].mxu0
        %4129 = vmatprep.mubr.bf16.mxu0 0
        %4130 = vmatmul.mubr.bf16.gmra.mrb[0].mxu0 %v4029
        %v4131 = vpop.f32.mrb[0].mxu0
        %v4132 = vadd.f32 0.0, %v4131
        %v4133 = vpop.f32.mrb[0].mxu0
        %v4134 = vpop.f32.mrb[0].mxu0
        %v4135 = vadd.f32 0.0, %v4134
        %v4136 = vpop.f32.mrb[0].mxu0
        %4137 = vmatprep.mubr.bf16.mxu0 0
        %4138 = vmatmul.mubr.bf16.gmra.mrb[0].mxu0 %v4031
        %v4139 = vpop.f32.mrb[0].mxu0
        %v4140 = vadd.f32 0.0, %v4139
        %v4141 = vpop.f32.mrb[0].mxu0
        %v4142 = vpop.f32.mrb[0].mxu0
        %v4143 = vadd.f32 0.0, %v4142
        %v4144 = vpop.f32.mrb[0].mxu0
        %4145 = vmatprep.mubr.bf16.mxu0 0
        %4146 = vmatmul.mubr.bf16.gmra.mrb[0].mxu0 %v4033
        %v4147 = vpop.f32.mrb[0].mxu0
        %v4148 = vadd.f32 0.0, %v4147
        %v4149 = vpop.f32.mrb[0].mxu0
        %v4150 = vpop.f32.mrb[0].mxu0
        %v4151 = vadd.f32 0.0, %v4150
        %v4152 = vpop.f32.mrb[0].mxu0
        %4153 = vmatprep.mubr.bf16.mxu0 0
        %4154 = vmatmul.mubr.bf16.gmra.mrb[0].mxu0 %v4035
        %v4155 = vpop.f32.mrb[0].mxu0
        %v4156 = vadd.f32 0.0, %v4155
        %v4157 = vpop.f32.mrb[0].mxu0
        %v4158 = vpop.f32.mrb[0].mxu0
        %v4159 = vadd.f32 0.0, %v4158
        %v4160 = vpop.f32.mrb[0].mxu0
        %4161 = vdwg.mxu0
        %v4162 = vadd.f32 %v3994, %v4124
        %v4163 = vadd.f32 %v3995, %v4127
        %v4164 = vadd.f32 %v3996, %v4132
        %v4165 = vadd.f32 %v3997, %v4135
        %v4166 = vadd.f32 %v3998, %v4140
        %v4167 = vadd.f32 %v3999, %v4143
        %v4168 = vadd.f32 %v4000, %v4148
        %v4169 = vadd.f32 %v4001, %v4151
        %v4170 = vadd.f32 %v4002, %v4156
        %v4171 = vadd.f32 %v4003, %v4159
        %v4172 = vld [vmem:[%s252 + $0x4] sm:$0xe]
        %v4173 = vld [vmem:[%s252 + $0x8] sm:$0xf]
        %v4174 = vld [vmem:[%s252 + $0xc] sm:$0xf]
        %v4175 = vld [vmem:[%s252 + $0x10] sm:$0xf]
        %v4176 = vld [vmem:[%s252 + $0x14] sm:$0xf]
        %v4177 = vld [vmem:[%s252 + $0x18] sm:$0xf]
        %v4178 = vld [vmem:[%s252 + $0x1c] sm:$0xf]
        %v4179 = vld [vmem:[%s252 + $0x20] sm:$0xf]
        %v4180 = vld [vmem:[%s252 + $0x24] sm:$0xf]
        %v4181 = vld [vmem:[%s252 + $0x28] sm:$0xf]
        %v4182 = vld [vmem:[%s252 + $0x2c] sm:$0x3]
        %v4183 = vunpack.c.l.bf16 %v4172
        %v4184 = vunpack.c.l.bf16 %v4173
        %v4185 = vunpack.c.l.bf16 %v4174
        %v4186 = vunpack.c.l.bf16 %v4175
        %v4187 = vunpack.c.l.bf16 %v4176
        %v4188 = vunpack.c.l.bf16 %v4177
        %v4189 = vunpack.c.l.bf16 %v4178
        %v4190 = vunpack.c.l.bf16 %v4179
        %v4191 = vunpack.c.l.bf16 %v4180
        %v4192 = vunpack.c.l.bf16 %v4181
        %v4193 = vunpack.c.l.bf16 %v4182
        %vm4205 = vcmask 1044480
        %v4206 = vrot.slane %v4183, 3
        %v4207 = vrot.slane %v4184, 3
        %v4208 = vsel %vm4205, %v4206, %v4207
        %v4209 = vrot.slane %v4185, 3
        %v4210 = vsel %vm4205, %v4207, %v4209
        %v4211 = vrot.slane %v4186, 3
        %v4212 = vsel %vm4205, %v4209, %v4211
        %v4213 = vrot.slane %v4187, 3
        %v4214 = vsel %vm4205, %v4211, %v4213
        %v4215 = vrot.slane %v4188, 3
        %v4216 = vsel %vm4205, %v4213, %v4215
        %v4217 = vrot.slane %v4189, 3
        %v4218 = vsel %vm4205, %v4215, %v4217
        %v4219 = vrot.slane %v4190, 3
        %v4220 = vsel %vm4205, %v4217, %v4219
        %v4221 = vrot.slane %v4191, 3
        %v4222 = vsel %vm4205, %v4219, %v4221
        %v4223 = vrot.slane %v4192, 3
        %v4224 = vsel %vm4205, %v4221, %v4223
        %v4225 = vrot.slane %v4193, 3
        %v4226 = vsel %vm4205, %v4223, %v4225
        %v4237 = vadd.f32 %v4162, %v4208
        %v4238 = vadd.f32 %v4163, %v4210
        %v4239 = vadd.f32 %v4164, %v4212
        %v4240 = vadd.f32 %v4165, %v4214
        %v4241 = vadd.f32 %v4166, %v4216
        %v4242 = vadd.f32 %v4167, %v4218
        %v4243 = vadd.f32 %v4168, %v4220
        %v4244 = vadd.f32 %v4169, %v4222
        %v4245 = vadd.f32 %v4170, %v4224
        %v4246 = vadd.f32 %v4171, %v4226
        %v4247 = vmax.f32 %v4237, 0.0
        %v4248 = vmax.f32 %v4238, 0.0
        %v4249 = vmax.f32 %v4239, 0.0
        %v4250 = vmax.f32 %v4240, 0.0
        %v4251 = vmax.f32 %v4241, 0.0
        %v4252 = vmax.f32 %v4242, 0.0
        %v4253 = vmax.f32 %v4243, 0.0
        %v4254 = vmax.f32 %v4244, 0.0
        %v4255 = vmax.f32 %v4245, 0.0
        %v4256 = vmax.f32 %v4246, 0.0
        %4257 = vst [vmem:[%s247] sm:$0xff] %v4247
        %4258 = vst [vmem:[%s247 + $0x8] sm:$0xff] %v4248
        %4259 = vst [vmem:[%s247 + $0x10] sm:$0xff] %v4249
        %4260 = vst [vmem:[%s247 + $0x18] sm:$0xff] %v4250
        %4261 = vst [vmem:[%s247 + $0x20] sm:$0xff] %v4251
        %4262 = vst [vmem:[%s247 + $0x28] sm:$0xff] %v4252
        %4263 = vst [vmem:[%s247 + $0x30] sm:$0xff] %v4253
        %4264 = vst [vmem:[%s247 + $0x38] sm:$0xff] %v4254
        %4265 = vst [vmem:[%s247 + $0x40] sm:$0xff] %v4255
        %4266 = vst [vmem:[%s247 + $0x48] sm:$0xff] %v4256
        %s4267 = sand.u32 %s139, 1
        %s4268 = scalar_lea.sflag [#allocation5], %s4267
        %s4269 = sand.u32 %s139, 1
        %s4270 = smul.addr %s4269, 80
        %s4271 = scalar_lea.vmem [#allocation8], %s4270
        // Predicated region
        $region49: #{tpu_custom_call.1} parent=39 // pred_check
          %p4272 = pneg %p149
        $region50: #{tpu_custom_call.1} parent=39 // pred_check_branch
          %4274 = sbr.rel (%p4272) target = $region52
        $region51: #{tpu_custom_call.1} parent=39 // pred_region
          %s4276 = ssub.s32 1280, 1280
          %4277 = vsyncadd %s4268, %s4276
          %s4278 = smul.addr %s21, 10
          %s4279 = smul.addr %s4278, 128
          %s4280 = scalar_lea.hbm %s5, %s4279
          %s4281 = sshll.u32 %s4271, 4
          %s4282 = int_to_ptr.vmem [resolvable:$true] %s4281
          %4287 = dma.vmem_to_hbm [thread:$0]  %s4282, 1280, %s4280, %s4268, 128, 128, 8
        $region52: #{tpu_custom_call.1} parent=39 // pred_fallthru
          _
      $region40: #{tpu_custom_call.1} parent=5 // pred_fallthru
        _
      %p4288 = scmp.le.s32.totalorder 2, %s16
      // Predicated region
      $region53: #{tpu_custom_call.1} parent=5 // pred_check
        %p4289 = pneg %p4288
      $region54: #{tpu_custom_call.1} parent=5 // pred_check_branch
        %4291 = sbr.rel (%p4289) target = $region56
      $region55: #{tpu_custom_call.1} parent=5 // pred_region
        %s4292 = ssub.s32 %s16, 2
        // Predicated region
        $region57: #{tpu_custom_call.1} parent=55 // pred_check
          %p4293 = pneg %p155
        $region58: #{tpu_custom_call.1} parent=55 // pred_check_branch
          %4295 = sbr.rel (%p4293) target = $region60
        $region59: #{tpu_custom_call.1} parent=55 // pred_region
          %s4296 = sand.u32 %s140, 1
          %s4297 = scalar_lea.sflag [#allocation5], %s4296
          %s4298 = sand.u32 %s140, 1
          %s4299 = smul.addr %s4298, 80
          %s4300 = scalar_lea.vmem [#allocation8], %s4299
          %4301 = dma.done %s4297, 1280
        $region60: #{tpu_custom_call.1} parent=55 // pred_fallthru
          _
      $region56: #{tpu_custom_call.1} parent=5 // pred_fallthru
        _
    $region6: #{tpu_custom_call.1} parent=1 // loop_footer
      %s20 = sadd.s32 1, %s16
    $region7: #{tpu_custom_call.1} parent=1 // loop_footer_branch
      %15 = sbr.rel target = $region3
    $region8: #{tpu_custom_call.1} parent=1 // loop_exit
      _
    %4302 = vsyncpa [#allocation4], 1
    %s4303 = scalar_lea.sflag [#allocation4], 1
    %4304 = vsyncpa %s4303, 1
    %4305 = vsyncpa [#allocation7], 1
    %4306 = vsyncpa [#allocation5], 1
    %s4307 = scalar_lea.sflag [#allocation5], 1
    %4308 = vsyncpa %s4307, 1

// kernel: tpu_custom_call.1
$region0: #{tpu_custom_call.1}
  #allocation0 [shape = 'u32[]', space=smem, size = 0x4, offset = 0x4, fixed_abs, tag = 'smem constant byte address 0x4 - core index']
  #allocation1 [shape = 'u32[144,128]{1,0:T(1,128)}', space=vmem, size = 0x12000, scoped, tag = 'internal scratch']
  #allocation2 [shape = 'bf16[102,128]{1,0:T(8,128)(2,1)}', space=vmem, size = 0x6800, scoped, tag = 'scratch operand']
  %s0 = inlined_call_operand.vmem [shape: bf16[2,102,128], index: 0, kind: input, shape index: {}]
  %s1 = inlined_call_operand.hbm [shape: bf16[9,128,128], index: 1, kind: input, shape index: {}]
  %s2 = inlined_call_operand.vmem [shape: f32[1,128], index: 2, kind: input, shape index: {}]
  %s3 = inlined_call_operand.hbm [shape: bf16[9,128,128], index: 3, kind: input, shape index: {}]
  %s4 = inlined_call_operand.vmem [shape: f32[1,128], index: 4, kind: input, shape index: {}]
  %s5 = inlined_call_operand.hbm [shape: f32[2,80,128], index: 5, kind: output, shape index: {}]
  %s6 = sld [smem:[#allocation0]]
  $region61: #{tpu_custom_call.1} parent=0
    _
  %s8 = ssub.s32 1, %s6
  %s9 = scalar_select 0, %s8, %s6
  $region1: #{tpu_custom_call.1} parent=0
    #allocation3 [shape = 'u8[294912]{0}', space=vmem, size = 0x48000, scoped, tag = 'input window, operand 1, single buffered']
    #allocation4 [shape = 's32[2]{0}', space=sflag, size = 0x8, scoped, tag = 'scoped memory for tpu_custom_call.1']
    #allocation5 [shape = 's32[2]{0}', space=sflag, size = 0x8, scoped, tag = 'scoped memory for tpu_custom_call.1']
    #allocation6 [shape = 'u8[294912]{0}', space=vmem, size = 0x48000, scoped, tag = 'input window, operand 3, single buffered']
    #allocation7 [shape = 's32[1]{0}', space=sflag, size = 0x4, scoped, tag = 'scoped memory for tpu_custom_call.1']
    #allocation8 [shape = 'u8[81920]{0}', space=vmem, size = 0x14000, scoped, tag = 'output window, operand 0']
    %10 = vsyncpa [#allocation4], 0
    %11 = vsyncpa [#allocation7], 0
    %12 = vsyncpa [#allocation5], 0
    %s13 = scalar_lea.sflag [#allocation5], 1
    %14 = vsyncpa %s13, 0
    loop: start=0, step=1, limit=4
    $region2: #{tpu_custom_call.1} parent=1 // loop_pre_header
      _
    $region3: #{tpu_custom_call.1} parent=1 // loop_header
      %s16 = sphi 0, %s20
      %p17 = scmp.ge.s32.totalorder %s16, 4
      %s26 = sphi 0, %s28
      %s29 = sphi 0, %s26
      %s30 = sphi 0, %s29
      %s46 = sphi 0, %s30
      %s50 = sphi 0, %s50
      %s52 = sphi 0, %s50
      %s53 = sphi 0, %s52
      %s67 = sphi 0, %s53
      %s71 = sphi 0, %s71
      %s73 = sphi 0, %s71
      %s74 = sphi 0, %s73
      %s88 = sphi 0, %s74
      %s92 = sphi 0, %s92
      %s94 = sphi 0, %s92
      %s95 = sphi 0, %s94
      %s109 = sphi 0, %s95
      %s113 = sphi 0, %s113
      %s115 = sphi 0, %s113
      %s116 = sphi 0, %s115
      %s130 = sphi 0, %s116
      %s136 = sphi 0, %s138
      %s139 = sphi 0, %s136
      %s140 = sphi 0, %s139
      %s156 = sphi 0, %s140
    $region4: #{tpu_custom_call.1} parent=1 // loop_header_branch
      %19 = sbr.rel (%p17) target = $region8
    $region5: #{tpu_custom_call.1} parent=1 // loop_body
      %s21 = ssub.s32 %s16, 1
      %s22 = ssub.s32 %s16, 2
      %s23 = sadd.s32 %s16, 1
      %s24 = ssub.s32 %s16, %s23
      %p25 = scmp.eq.s32.totalorder %s24, 0
      %s27 = sadd.s32 %s26, 1
      %s28 = scalar_select %p25, %s26, %s27
      %p31 = pneg %p25
      %p32 = scmp.eq.s32.totalorder %s16, 1
      %p33 = por %p31, %p32
      %p34 = scmp.ne.s32.totalorder %s26, %s29
      %p35 = scmp.eq.s32.totalorder %s16, 0
      %p36 = por %p34, %p35
      %p37 = scmp.ne.s32.totalorder %s26, %s29
      %p38 = scmp.eq.s32.totalorder %s21, 1
      %p39 = por %p37, %p38
      %p40 = scmp.ne.s32.totalorder %s29, %s30
      %p41 = scmp.eq.s32.totalorder %s21, 0
      %p42 = por %p40, %p41
      %p43 = scmp.ne.s32.totalorder %s29, %s30
      %p44 = scmp.eq.s32.totalorder %s22, 1
      %p45 = por %p43, %p44
      %p47 = scmp.ne.s32.totalorder %s30, %s46
      %p48 = scmp.eq.s32.totalorder %s22, 0
      %p49 = por %p47, %p48
      %s51 = sadd.s32 %s50, 1
      %p54 = scmp.eq.s32.totalorder %s16, 1
      %p55 = scmp.ne.s32.totalorder %s50, %s52
      %p56 = scmp.eq.s32.totalorder %s16, 0
      %p57 = por %p55, %p56
      %p58 = scmp.ne.s32.totalorder %s50, %s52
      %p59 = scmp.eq.s32.totalorder %s21, 1
      %p60 = por %p58, %p59
      %p61 = scmp.ne.s32.totalorder %s52, %s53
      %p62 = scmp.eq.s32.totalorder %s21, 0
      %p63 = por %p61, %p62
      %p64 = scmp.ne.s32.totalorder %s52, %s53
      %p65 = scmp.eq.s32.totalorder %s22, 1
      %p66 = por %p64, %p65
      %p68 = scmp.ne.s32.totalorder %s53, %s67
      %p69 = scmp.eq.s32.totalorder %s22, 0
      %p70 = por %p68, %p69
      %s72 = sadd.s32 %s71, 1
      %p75 = scmp.eq.s32.totalorder %s16, 1
      %p76 = scmp.ne.s32.totalorder %s71, %s73
      %p77 = scmp.eq.s32.totalorder %s16, 0
      %p78 = por %p76, %p77
      %p79 = scmp.ne.s32.totalorder %s71, %s73
      %p80 = scmp.eq.s32.totalorder %s21, 1
      %p81 = por %p79, %p80
      %p82 = scmp.ne.s32.totalorder %s73, %s74
      %p83 = scmp.eq.s32.totalorder %s21, 0
      %p84 = por %p82, %p83
      %p85 = scmp.ne.s32.totalorder %s73, %s74
      %p86 = scmp.eq.s32.totalorder %s22, 1
      %p87 = por %p85, %p86
      %p89 = scmp.ne.s32.totalorder %s74, %s88
      %p90 = scmp.eq.s32.totalorder %s22, 0
      %p91 = por %p89, %p90
      %s93 = sadd.s32 %s92, 1
      %p96 = scmp.eq.s32.totalorder %s16, 1
      %p97 = scmp.ne.s32.totalorder %s92, %s94
      %p98 = scmp.eq.s32.totalorder %s16, 0
      %p99 = por %p97, %p98
      %p100 = scmp.ne.s32.totalorder %s92, %s94
      %p101 = scmp.eq.s32.totalorder %s21, 1
      %p102 = por %p100, %p101
      %p103 = scmp.ne.s32.totalorder %s94, %s95
      %p104 = scmp.eq.s32.totalorder %s21, 0
      %p105 = por %p103, %p104
      %p106 = scmp.ne.s32.totalorder %s94, %s95
      %p107 = scmp.eq.s32.totalorder %s22, 1
      %p108 = por %p106, %p107
      %p110 = scmp.ne.s32.totalorder %s95, %s109
      %p111 = scmp.eq.s32.totalorder %s22, 0
      %p112 = por %p110, %p111
      %s114 = sadd.s32 %s113, 1
      %p117 = scmp.eq.s32.totalorder %s16, 1
      %p118 = scmp.ne.s32.totalorder %s113, %s115
      %p119 = scmp.eq.s32.totalorder %s16, 0
      %p120 = por %p118, %p119
      %p121 = scmp.ne.s32.totalorder %s113, %s115
      %p122 = scmp.eq.s32.totalorder %s21, 1
      %p123 = por %p121, %p122
      %p124 = scmp.ne.s32.totalorder %s115, %s116
      %p125 = scmp.eq.s32.totalorder %s21, 0
      %p126 = por %p124, %p125
      %p127 = scmp.ne.s32.totalorder %s115, %s116
      %p128 = scmp.eq.s32.totalorder %s22, 1
      %p129 = por %p127, %p128
      %p131 = scmp.ne.s32.totalorder %s116, %s130
      %p132 = scmp.eq.s32.totalorder %s22, 0
      %p133 = por %p131, %p132
      %s134 = ssub.s32 %s16, %s23
      %p135 = scmp.eq.s32.totalorder %s134, 0
      %s137 = sadd.s32 %s136, 1
      %s138 = scalar_select %p135, %s136, %s137
      %p141 = pneg %p135
      %p142 = scmp.eq.s32.totalorder %s16, 1
      %p143 = por %p141, %p142
      %p144 = scmp.ne.s32.totalorder %s136, %s139
      %p145 = scmp.eq.s32.totalorder %s16, 0
      %p146 = por %p144, %p145
      %p147 = scmp.ne.s32.totalorder %s136, %s139
      %p148 = scmp.eq.s32.totalorder %s21, 1
      %p149 = por %p147, %p148
      %p150 = scmp.ne.s32.totalorder %s139, %s140
      %p151 = scmp.eq.s32.totalorder %s21, 0
      %p152 = por %p150, %p151
      %p153 = scmp.ne.s32.totalorder %s139, %s140
      %p154 = scmp.eq.s32.totalorder %s22, 1
      %p155 = por %p153, %p154
      %p157 = scmp.ne.s32.totalorder %s140, %s156
      %p158 = scmp.eq.s32.totalorder %s22, 0
      %p159 = por %p157, %p158
      %p160 = scmp.le.s32.totalorder 1, %s16
      %p161 = scmp.lt.s32.totalorder %s16, 3
      %p162 = pnand %p160, %p161
      %p163 = pneg %p162
      // Predicated region
      $region9: #{tpu_custom_call.1} parent=5 // pred_check
        _
      $region10: #{tpu_custom_call.1} parent=5 // pred_check_branch
        %165 = sbr.rel (%p162) target = $region12
      $region11: #{tpu_custom_call.1} parent=5 // pred_region
        %s166 = ssub.s32 %s16, 1
        // Predicated region
        $region13: #{tpu_custom_call.1} parent=11 // pred_check
          %p167 = pneg %p63
        $region14: #{tpu_custom_call.1} parent=11 // pred_check_branch
          %169 = sbr.rel (%p167) target = $region16
        $region15: #{tpu_custom_call.1} parent=11 // pred_region
          %s171 = ssub.s32 9216, 9216
          %172 = vsyncadd [#allocation4], %s171
          %s173 = sshll.u32 [#allocation3], 4
          %s174 = int_to_ptr.vmem [resolvable:$true] %s173
          %179 = dma.hbm_to_vmem [thread:$0]  %s1, 9216, %s174, [#allocation4], 64, 64, 4
        $region16: #{tpu_custom_call.1} parent=11 // pred_fallthru
          _
        // Predicated region
        $region17: #{tpu_custom_call.1} parent=11 // pred_check
          %p180 = pneg %p84
        $region18: #{tpu_custom_call.1} parent=11 // pred_check_branch
          %182 = sbr.rel (%p180) target = $region20
        $region19: #{tpu_custom_call.1} parent=11 // pred_region
          _
        $region20: #{tpu_custom_call.1} parent=11 // pred_fallthru
          _
        // Predicated region
        $region21: #{tpu_custom_call.1} parent=11 // pred_check
          %p183 = pneg %p105
        $region22: #{tpu_custom_call.1} parent=11 // pred_check_branch
          %185 = sbr.rel (%p183) target = $region24
        $region23: #{tpu_custom_call.1} parent=11 // pred_region
          %s187 = ssub.s32 9216, 9216
          %188 = vsyncadd [#allocation7], %s187
          %s189 = sshll.u32 [#allocation6], 4
          %s190 = int_to_ptr.vmem [resolvable:$true] %s189
          %195 = dma.hbm_to_vmem [thread:$0]  %s3, 9216, %s190, [#allocation7], 64, 64, 4
        $region24: #{tpu_custom_call.1} parent=11 // pred_fallthru
          _
        // Predicated region
        $region25: #{tpu_custom_call.1} parent=11 // pred_check
          %p196 = pneg %p126
        $region26: #{tpu_custom_call.1} parent=11 // pred_check_branch
          %198 = sbr.rel (%p196) target = $region28
        $region27: #{tpu_custom_call.1} parent=11 // pred_region
          _
        $region28: #{tpu_custom_call.1} parent=11 // pred_fallthru
          _
      $region12: #{tpu_custom_call.1} parent=5 // pred_fallthru
        _
      %p199 = scmp.lt.s32.totalorder %s16, 2
      // Predicated region
      $region29: #{tpu_custom_call.1} parent=5 // pred_check
        %p200 = pneg %p199
      $region30: #{tpu_custom_call.1} parent=5 // pred_check_branch
        %202 = sbr.rel (%p200) target = $region32
      $region31: #{tpu_custom_call.1} parent=5 // pred_region
        // Predicated region
        $region33: #{tpu_custom_call.1} parent=31 // pred_check
          %p203 = pneg %p36
        $region34: #{tpu_custom_call.1} parent=31 // pred_check_branch
          %205 = sbr.rel (%p203) target = $region36
        $region35: #{tpu_custom_call.1} parent=31 // pred_region
          %p206 = scmp.lt.s32.totalorder %s16, 1
          %s207 = scalar_select %p206, %s16, 1
          %s208 = smul.addr %s207, 13
          %s209 = smul.addr %s208, 4
          %s210 = scalar_lea.vmem %s0, %s209
        $region36: #{tpu_custom_call.1} parent=31 // pred_fallthru
          _
      $region32: #{tpu_custom_call.1} parent=5 // pred_fallthru
        _
      %p211 = scmp.le.s32.totalorder 1, %s16
      %p212 = scmp.lt.s32.totalorder %s16, 3
      %p213 = pnand %p211, %p212
      %p214 = pneg %p213
      // Predicated region
      $region37: #{tpu_custom_call.1} parent=5 // pred_check
        _
      $region38: #{tpu_custom_call.1} parent=5 // pred_check_branch
        %216 = sbr.rel (%p213) target = $region40
      $region39: #{tpu_custom_call.1} parent=5 // pred_region
        %s217 = ssub.s32 %s16, 1
        // Predicated region
        $region41: #{tpu_custom_call.1} parent=39 // pred_check
          %p218 = pneg %p63
        $region42: #{tpu_custom_call.1} parent=39 // pred_check_branch
          %220 = sbr.rel (%p218) target = $region44
        $region43: #{tpu_custom_call.1} parent=39 // pred_region
          %221 = dma.done [#allocation4], 9216
        $region44: #{tpu_custom_call.1} parent=39 // pred_fallthru
          _
        // Predicated region
        $region45: #{tpu_custom_call.1} parent=39 // pred_check
          %p222 = pneg %p105
        $region46: #{tpu_custom_call.1} parent=39 // pred_check_branch
          %224 = sbr.rel (%p222) target = $region48
        $region47: #{tpu_custom_call.1} parent=39 // pred_region
          %225 = dma.done [#allocation7], 9216
        $region48: #{tpu_custom_call.1} parent=39 // pred_fallthru
          _
        %p226 = scmp.lt.s32.totalorder %s21, 1
        %s227 = scalar_select %p226, %s21, 1
        %s228 = smul.addr %s227, 13
        %s229 = smul.addr %s228, 4
        %s230 = scalar_lea.vmem %s0, %s229
        %p231 = pneg %p42
        %p232 = pneg %p39
        %p233 = pneg %p63
        %p234 = pneg %p60
        %p235 = pneg %p84
        %p236 = pneg %p81
        %p237 = pneg %p105
        %p238 = pneg %p102
        %p239 = pneg %p126
        %p240 = pneg %p123
        %p241 = pneg %p152
        %p242 = pneg %p149
        %s243 = sand.u32 %s139, 1
        %s244 = scalar_lea.sflag [#allocation5], %s243
        %s245 = sand.u32 %s139, 1
        %s246 = smul.addr %s245, 80
        %s247 = scalar_lea.vmem [#allocation8], %s246
        %p248 = scmp.lt.s32.totalorder %s21, 1
        %s249 = scalar_select %p248, %s21, 1
        %s250 = smul.addr %s249, 13
        %s251 = smul.addr %s250, 4
        %s252 = scalar_lea.vmem %s0, %s251
        %254 = vst [vmem:[#allocation2] sm:$0xf] 0
        %vm255 = vcmask 1041408
        %vm256 = vsmask.f32 1280
        %vm257 = vmand %vm255, %vm256
        %v258 = vld [vmem:[#allocation2 + $0x4] sm:$0x3]
        %v259 = vsel %vm257, 0, %v258
        %260 = vst [vmem:[#allocation2 + $0x4] sm:$0x3] %v259
        %vm261 = vcmask 1043457
        %vm262 = vsmask.f32 7942
        %vm263 = vmand %vm261, %vm262
        %v264 = vld [vmem:[#allocation2 + $0x2c] sm:$0xe]
        %v265 = vsel %vm263, 0, %v264
        %266 = vst [vmem:[#allocation2 + $0x2c] sm:$0xe] %v265
        %267 = vst [vmem:[#allocation2 + $0x30] sm:$0x7] 0
        %v268 = vlaneseq
        %v269 = vshrl.u32 %v268, 7
        %v270 = vadd.s32 %v269, 8
        %v271 = vadd.s32 %v269, 16
        %v272 = vadd.s32 %v269, 24
        %v273 = vadd.s32 %v269, 32
        %v274 = vadd.s32 %v269, 40
        %v275 = vadd.s32 %v269, 48
        %v276 = vadd.s32 %v269, 56
        %v277 = vadd.s32 %v269, 64
        %v278 = vadd.s32 %v269, 72
        %vm279 = vcmp.lt.s32.totalorder %v269, 0
        %v280 = vsub.s32 0, %v269
        %v281 = vsel %vm279, %v280, %v269
        %v282 = vmul.u32.u64.compose %v281, 3435973837
        %v283 = vextract.low.u32 %v282
        %v284 = vextract.high.u32 %v282
        %v285 = vshrl.u32 %v284, 3
        %v286 = vmul.u32 %v285, 10
        %v287 = vsub.s32 %v281, %v286
        %v288 = vsub.s32 0, %v287
        %v289 = vsel %vm279, %v288, %v287
        %vm290 = vcmp.lt.s32.totalorder %v270, 0
        %v291 = vsub.s32 0, %v270
        %v292 = vsel %vm290, %v291, %v270
        %v293 = vmul.u32.u64.compose %v292, 3435973837
        %v294 = vextract.low.u32 %v293
        %v295 = vextract.high.u32 %v293
        %v296 = vshrl.u32 %v295, 3
        %v297 = vmul.u32 %v296, 10
        %v298 = vsub.s32 %v292, %v297
        %v299 = vsub.s32 0, %v298
        %v300 = vsel %vm290, %v299, %v298
        %vm301 = vcmp.lt.s32.totalorder %v271, 0
        %v302 = vsub.s32 0, %v271
        %v303 = vsel %vm301, %v302, %v271
        %v304 = vmul.u32.u64.compose %v303, 3435973837
        %v305 = vextract.low.u32 %v304
        %v306 = vextract.high.u32 %v304
        %v307 = vshrl.u32 %v306, 3
        %v308 = vmul.u32 %v307, 10
        %v309 = vsub.s32 %v303, %v308
        %v310 = vsub.s32 0, %v309
        %v311 = vsel %vm301, %v310, %v309
        %vm312 = vcmp.lt.s32.totalorder %v272, 0
        %v313 = vsub.s32 0, %v272
        %v314 = vsel %vm312, %v313, %v272
        %v315 = vmul.u32.u64.compose %v314, 3435973837
        %v316 = vextract.low.u32 %v315
        %v317 = vextract.high.u32 %v315
        %v318 = vshrl.u32 %v317, 3
        %v319 = vmul.u32 %v318, 10
        %v320 = vsub.s32 %v314, %v319
        %v321 = vsub.s32 0, %v320
        %v322 = vsel %vm312, %v321, %v320
        %vm323 = vcmp.lt.s32.totalorder %v273, 0
        %v324 = vsub.s32 0, %v273
        %v325 = vsel %vm323, %v324, %v273
        %v326 = vmul.u32.u64.compose %v325, 3435973837
        %v327 = vextract.low.u32 %v326
        %v328 = vextract.high.u32 %v326
        %v329 = vshrl.u32 %v328, 3
        %v330 = vmul.u32 %v329, 10
        %v331 = vsub.s32 %v325, %v330
        %v332 = vsub.s32 0, %v331
        %v333 = vsel %vm323, %v332, %v331
        %vm334 = vcmp.lt.s32.totalorder %v274, 0
        %v335 = vsub.s32 0, %v274
        %v336 = vsel %vm334, %v335, %v274
        %v337 = vmul.u32.u64.compose %v336, 3435973837
        %v338 = vextract.low.u32 %v337
        %v339 = vextract.high.u32 %v337
        %v340 = vshrl.u32 %v339, 3
        %v341 = vmul.u32 %v340, 10
        %v342 = vsub.s32 %v336, %v341
        %v343 = vsub.s32 0, %v342
        %v344 = vsel %vm334, %v343, %v342
        %vm345 = vcmp.lt.s32.totalorder %v275, 0
        %v346 = vsub.s32 0, %v275
        %v347 = vsel %vm345, %v346, %v275
        %v348 = vmul.u32.u64.compose %v347, 3435973837
        %v349 = vextract.low.u32 %v348
        %v350 = vextract.high.u32 %v348
        %v351 = vshrl.u32 %v350, 3
        %v352 = vmul.u32 %v351, 10
        %v353 = vsub.s32 %v347, %v352
        %v354 = vsub.s32 0, %v353
        %v355 = vsel %vm345, %v354, %v353
        %vm356 = vcmp.lt.s32.totalorder %v276, 0
        %v357 = vsub.s32 0, %v276
        %v358 = vsel %vm356, %v357, %v276
        %v359 = vmul.u32.u64.compose %v358, 3435973837
        %v360 = vextract.low.u32 %v359
        %v361 = vextract.high.u32 %v359
        %v362 = vshrl.u32 %v361, 3
        %v363 = vmul.u32 %v362, 10
        %v364 = vsub.s32 %v358, %v363
        %v365 = vsub.s32 0, %v364
        %v366 = vsel %vm356, %v365, %v364
        %vm367 = vcmp.lt.s32.totalorder %v277, 0
        %v368 = vsub.s32 0, %v277
        %v369 = vsel %vm367, %v368, %v277
        %v370 = vmul.u32.u64.compose %v369, 3435973837
        %v371 = vextract.low.u32 %v370
        %v372 = vextract.high.u32 %v370
        %v373 = vshrl.u32 %v372, 3
        %v374 = vmul.u32 %v373, 10
        %v375 = vsub.s32 %v369, %v374
        %v376 = vsub.s32 0, %v375
        %v377 = vsel %vm367, %v376, %v375
        %vm378 = vcmp.lt.s32.totalorder %v278, 0
        %v379 = vsub.s32 0, %v278
        %v380 = vsel %vm378, %v379, %v278
        %v381 = vmul.u32.u64.compose %v380, 3435973837
        %v382 = vextract.low.u32 %v381
        %v383 = vextract.high.u32 %v381
        %v384 = vshrl.u32 %v383, 3
        %v385 = vmul.u32 %v384, 10
        %v386 = vsub.s32 %v380, %v385
        %v387 = vsub.s32 0, %v386
        %v388 = vsel %vm378, %v387, %v386
        %vm389 = vcmp.ne.s32.totalorder %v289, 0
        %vm390 = vcmp.ne.s32.totalorder %v300, 0
        %vm391 = vcmp.ne.s32.totalorder %v311, 0
        %vm392 = vcmp.ne.s32.totalorder %v322, 0
        %vm393 = vcmp.ne.s32.totalorder %v333, 0
        %vm394 = vcmp.ne.s32.totalorder %v344, 0
        %vm395 = vcmp.ne.s32.totalorder %v355, 0
        %vm396 = vcmp.ne.s32.totalorder %v366, 0
        %vm397 = vcmp.ne.s32.totalorder %v377, 0
        %vm398 = vcmp.ne.s32.totalorder %v388, 0
        %vm399 = vcmp.lt.s32.totalorder %v289, 0
        %vm400 = vcmp.lt.s32.totalorder %v300, 0
        %vm401 = vcmp.lt.s32.totalorder %v311, 0
        %vm402 = vcmp.lt.s32.totalorder %v322, 0
        %vm403 = vcmp.lt.s32.totalorder %v333, 0
        %vm404 = vcmp.lt.s32.totalorder %v344, 0
        %vm405 = vcmp.lt.s32.totalorder %v355, 0
        %vm406 = vcmp.lt.s32.totalorder %v366, 0
        %vm407 = vcmp.lt.s32.totalorder %v377, 0
        %vm408 = vcmp.lt.s32.totalorder %v388, 0
        %vm409 = vmand %vm399, %vm389
        %vm410 = vmand %vm400, %vm390
        %vm411 = vmand %vm401, %vm391
        %vm412 = vmand %vm402, %vm392
        %vm413 = vmand %vm403, %vm393
        %vm414 = vmand %vm404, %vm394
        %vm415 = vmand %vm405, %vm395
        %vm416 = vmand %vm406, %vm396
        %vm417 = vmand %vm407, %vm397
        %vm418 = vmand %vm408, %vm398
        %v419 = vadd.s32 %v289, 10
        %v420 = vadd.s32 %v300, 10
        %v421 = vadd.s32 %v311, 10
        %v422 = vadd.s32 %v322, 10
        %v423 = vadd.s32 %v333, 10
        %v424 = vadd.s32 %v344, 10
        %v425 = vadd.s32 %v355, 10
        %v426 = vadd.s32 %v366, 10
        %v427 = vadd.s32 %v377, 10
        %v428 = vadd.s32 %v388, 10
        %v429 = vsel %vm409, %v419, %v289
        %v430 = vsel %vm410, %v420, %v300
        %v431 = vsel %vm411, %v421, %v311
        %v432 = vsel %vm412, %v422, %v322
        %v433 = vsel %vm413, %v423, %v333
        %v434 = vsel %vm414, %v424, %v344
        %v435 = vsel %vm415, %v425, %v355
        %v436 = vsel %vm416, %v426, %v366
        %v437 = vsel %vm417, %v427, %v377
        %v438 = vsel %vm418, %v428, %v388
        %vm439 = vcmp.lt.s32.totalorder %v429, 8
        %vm440 = vcmp.lt.s32.totalorder %v430, 8
        %vm441 = vcmp.lt.s32.totalorder %v431, 8
        %vm442 = vcmp.lt.s32.totalorder %v432, 8
        %vm443 = vcmp.lt.s32.totalorder %v433, 8
        %vm444 = vcmp.lt.s32.totalorder %v434, 8
        %vm445 = vcmp.lt.s32.totalorder %v435, 8
        %vm446 = vcmp.lt.s32.totalorder %v436, 8
        %vm447 = vcmp.lt.s32.totalorder %v437, 8
        %vm448 = vcmp.lt.s32.totalorder %v438, 8
        %v449 = vld [vmem:[%s2] sm:$0x1]
        %v451 = vlaneseq
        %v452 = vshrl.u32 %v451, 7
        %v453 = vsub.s32 0, %v452
        %v454 = vrot.slane %v449, %v453
        %v456 = vld [vmem:[%s252] sm:$0xf]
        %v457 = vld [vmem:[%s252 + $0x4] sm:$0xf]
        %v458 = vld [vmem:[%s252 + $0x8] sm:$0xf]
        %v459 = vld [vmem:[%s252 + $0xc] sm:$0xf]
        %v460 = vld [vmem:[%s252 + $0x10] sm:$0xf]
        %v461 = vld [vmem:[%s252 + $0x14] sm:$0xf]
        %v462 = vld [vmem:[%s252 + $0x18] sm:$0xf]
        %v463 = vld [vmem:[%s252 + $0x1c] sm:$0xf]
        %v464 = vld [vmem:[%s252 + $0x20] sm:$0xf]
        %v465 = vld [vmem:[%s252 + $0x24] sm:$0xf]
        %v466 = vld [vmem:[#allocation3] sm:$0xf]
        %v467 = vld [vmem:[#allocation3 + $0x4] sm:$0xf]
        %v468 = vld [vmem:[#allocation3 + $0x8] sm:$0xf]
        %v469 = vld [vmem:[#allocation3 + $0xc] sm:$0xf]
        %v470 = vld [vmem:[#allocation3 + $0x10] sm:$0xf]
        %v471 = vld [vmem:[#allocation3 + $0x14] sm:$0xf]
        %v472 = vld [vmem:[#allocation3 + $0x18] sm:$0xf]
        %v473 = vld [vmem:[#allocation3 + $0x1c] sm:$0xf]
        %v474 = vld [vmem:[#allocation3 + $0x20] sm:$0xf]
        %v475 = vld [vmem:[#allocation3 + $0x24] sm:$0xf]
        %v476 = vld [vmem:[#allocation3 + $0x28] sm:$0xf]
        %v477 = vld [vmem:[#allocation3 + $0x2c] sm:$0xf]
        %v478 = vld [vmem:[#allocation3 + $0x30] sm:$0xf]
        %v479 = vld [vmem:[#allocation3 + $0x34] sm:$0xf]
        %v480 = vld [vmem:[#allocation3 + $0x38] sm:$0xf]
        %v481 = vld [vmem:[#allocation3 + $0x3c] sm:$0xf]
        %v492 = vunpack.c.l.b16 %v456
        %v493 = vunpack.c.l.b16 %v457
        %v494 = vunpack.c.l.b16 %v458
        %v495 = vunpack.c.l.b16 %v459
        %v496 = vunpack.c.l.b16 %v460
        %v497 = vunpack.c.l.b16 %v461
        %v498 = vunpack.c.l.b16 %v462
        %v499 = vunpack.c.l.b16 %v463
        %v500 = vunpack.c.l.b16 %v464
        %v501 = vunpack.c.l.b16 %v465
        %v502 = vpack.c.b16 %v493, %v492
        %v503 = vpack.c.b16 %v495, %v494
        %v504 = vpack.c.b16 %v497, %v496
        %v505 = vpack.c.b16 %v499, %v498
        %v506 = vpack.c.b16 %v501, %v500
        %v528 = vunpack.c.l.b16 %v466
        %v529 = vunpack.c.l.b16 %v467
        %v530 = vunpack.c.l.b16 %v468
        %v531 = vunpack.c.l.b16 %v469
        %v532 = vunpack.c.l.b16 %v470
        %v533 = vunpack.c.l.b16 %v471
        %v534 = vunpack.c.l.b16 %v472
        %v535 = vunpack.c.l.b16 %v473
        %v536 = vunpack.c.l.b16 %v474
        %v537 = vunpack.c.l.b16 %v475
        %v538 = vunpack.c.l.b16 %v476
        %v539 = vunpack.c.l.b16 %v477
        %v540 = vunpack.c.l.b16 %v478
        %v541 = vunpack.c.l.b16 %v479
        %v542 = vunpack.c.l.b16 %v480
        %v543 = vunpack.c.l.b16 %v481
        %v544 = vpack.c.b16 %v529, %v528
        %v545 = vpack.c.b16 %v531, %v530
        %v546 = vpack.c.b16 %v533, %v532
        %v547 = vpack.c.b16 %v535, %v534
        %v548 = vpack.c.b16 %v537, %v536
        %v549 = vpack.c.b16 %v539, %v538
        %v550 = vpack.c.b16 %v541, %v540
        %v551 = vpack.c.b16 %v543, %v542
        %560 = vmatprep.subr.bf16.mxu0 0
        %561 = vmatpush1.bf16.msra.mxu0 %v544
        %562 = vmatprep.subr.bf16.mxu0 0
        %563 = vmatpush1.bf16.msra.mxu0 %v545
        %564 = vmatprep.subr.bf16.mxu0 0
        %565 = vmatpush1.bf16.msra.mxu0 %v546
        %566 = vmatprep.subr.bf16.mxu0 0
        %567 = vmatpush1.bf16.msra.mxu0 %v547
        %568 = vmatprep.subr.bf16.mxu0 0
        %569 = vmatpush1.bf16.msra.mxu0 %v548
        %570 = vmatprep.subr.bf16.mxu0 0
        %571 = vmatpush1.bf16.msra.mxu0 %v549
        %572 = vmatprep.subr.bf16.mxu0 0
        %573 = vmatpush1.bf16.msra.mxu0 %v550
        %574 = vmatprep.subr.bf16.mxu0 0
        %575 = vmatpush1.bf16.msra.mxu0 %v551
        %576 = vmatprep.subr.bf16.mxu0 0
        %577 = vmatpush1.bf16.msra.mxu0 0
        %578 = vmatprep.subr.bf16.mxu0 0
        %579 = vmatpush1.bf16.msra.mxu0 0
        %580 = vmatprep.subr.bf16.mxu0 0
        %581 = vmatpush1.bf16.msra.mxu0 0
        %582 = vmatprep.subr.bf16.mxu0 0
        %583 = vmatpush1.bf16.msra.mxu0 0
        %584 = vmatprep.subr.bf16.mxu0 0
        %585 = vmatpush1.bf16.msra.mxu0 0
        %586 = vmatprep.subr.bf16.mxu0 0
        %587 = vmatpush1.bf16.msra.mxu0 0
        %588 = vmatprep.subr.bf16.mxu0 0
        %589 = vmatpush1.bf16.msra.mxu0 0
        %590 = vmatprep.subr.bf16.mxu0 0
        %591 = vmatpush1.bf16.msra.mxu0 0
        %592 = vmatprep.mubr.bf16.mxu0 0
        %593 = vmatmul.mubr.bf16.gmra.mrb[0].mxu0 %v502
        %v594 = vpop.f32.mrb[0].mxu0
        %v595 = vadd.f32 0.0, %v594
        %v596 = vpop.f32.mrb[0].mxu0
        %v597 = vpop.f32.mrb[0].mxu0
        %v598 = vadd.f32 0.0, %v597
        %v599 = vpop.f32.mrb[0].mxu0
        %600 = vmatprep.mubr.bf16.mxu0 0
        %601 = vmatmul.mubr.bf16.gmra.mrb[0].mxu0 %v503
        %v602 = vpop.f32.mrb[0].mxu0
        %v603 = vadd.f32 0.0, %v602
        %v604 = vpop.f32.mrb[0].mxu0
        %v605 = vpop.f32.mrb[0].mxu0
        %v606 = vadd.f32 0.0, %v605
        %v607 = vpop.f32.mrb[0].mxu0
        %608 = vmatprep.mubr.bf16.mxu0 0
        %609 = vmatmul.mubr.bf16.gmra.mrb[0].mxu0 %v504
        %v610 = vpop.f32.mrb[0].mxu0
        %v611 = vadd.f32 0.0, %v610
        %v612 = vpop.f32.mrb[0].mxu0
        %v613 = vpop.f32.mrb[0].mxu0
        %v614 = vadd.f32 0.0, %v613
        %v615 = vpop.f32.mrb[0].mxu0
        %616 = vmatprep.mubr.bf16.mxu0 0
        %617 = vmatmul.mubr.bf16.gmra.mrb[0].mxu0 %v505
        %v618 = vpop.f32.mrb[0].mxu0
        %v619 = vadd.f32 0.0, %v618
        %v620 = vpop.f32.mrb[0].mxu0
        %v621 = vpop.f32.mrb[0].mxu0
        %v622 = vadd.f32 0.0, %v621
        %v623 = vpop.f32.mrb[0].mxu0
        %624 = vmatprep.mubr.bf16.mxu0 0
        %625 = vmatmul.mubr.bf16.gmra.mrb[0].mxu0 %v506
        %v626 = vpop.f32.mrb[0].mxu0
        %v627 = vadd.f32 0.0, %v626
        %v628 = vpop.f32.mrb[0].mxu0
        %v629 = vpop.f32.mrb[0].mxu0
        %v630 = vadd.f32 0.0, %v629
        %v631 = vpop.f32.mrb[0].mxu0
        %632 = vdwg.mxu0
        %v633 = vadd.f32 %v454, %v595
        %v634 = vadd.f32 %v454, %v598
        %v635 = vadd.f32 %v454, %v603
        %v636 = vadd.f32 %v454, %v606
        %v637 = vadd.f32 %v454, %v611
        %v638 = vadd.f32 %v454, %v614
        %v639 = vadd.f32 %v454, %v619
        %v640 = vadd.f32 %v454, %v622
        %v641 = vadd.f32 %v454, %v627
        %v642 = vadd.f32 %v454, %v630
        %v643 = vld [vmem:[%s252] sm:$0xf]
        %v644 = vld [vmem:[%s252 + $0x4] sm:$0xf]
        %v645 = vld [vmem:[%s252 + $0x8] sm:$0xf]
        %v646 = vld [vmem:[%s252 + $0xc] sm:$0xf]
        %v647 = vld [vmem:[%s252 + $0x10] sm:$0xf]
        %v648 = vld [vmem:[%s252 + $0x14] sm:$0xf]
        %v649 = vld [vmem:[%s252 + $0x18] sm:$0xf]
        %v650 = vld [vmem:[%s252 + $0x1c] sm:$0xf]
        %v651 = vld [vmem:[%s252 + $0x20] sm:$0xf]
        %v652 = vld [vmem:[%s252 + $0x24] sm:$0xf]
        %v653 = vld [vmem:[%s252 + $0x28] sm:$0x1]
        %s654 = scalar_lea.vmem [#allocation3], 64
        %v655 = vld [vmem:[%s654] sm:$0xf]
        %v656 = vld [vmem:[%s654 + $0x4] sm:$0xf]
        %v657 = vld [vmem:[%s654 + $0x8] sm:$0xf]
        %v658 = vld [vmem:[%s654 + $0xc] sm:$0xf]
        %v659 = vld [vmem:[%s654 + $0x10] sm:$0xf]
        %v660 = vld [vmem:[%s654 + $0x14] sm:$0xf]
        %v661 = vld [vmem:[%s654 + $0x18] sm:$0xf]
        %v662 = vld [vmem:[%s654 + $0x1c] sm:$0xf]
        %v663 = vld [vmem:[%s654 + $0x20] sm:$0xf]
        %v664 = vld [vmem:[%s654 + $0x24] sm:$0xf]
        %v665 = vld [vmem:[%s654 + $0x28] sm:$0xf]
        %v666 = vld [vmem:[%s654 + $0x2c] sm:$0xf]
        %v667 = vld [vmem:[%s654 + $0x30] sm:$0xf]
        %v668 = vld [vmem:[%s654 + $0x34] sm:$0xf]
        %v669 = vld [vmem:[%s654 + $0x38] sm:$0xf]
        %v670 = vld [vmem:[%s654 + $0x3c] sm:$0xf]
        %v682 = vunpack.c.l.b16 %v643
        %v683 = vunpack.c.l.b16 %v644
        %v684 = vunpack.c.l.b16 %v645
        %v685 = vunpack.c.l.b16 %v646
        %v686 = vunpack.c.l.b16 %v647
        %v687 = vunpack.c.l.b16 %v648
        %v688 = vunpack.c.l.b16 %v649
        %v689 = vunpack.c.l.b16 %v650
        %v690 = vunpack.c.l.b16 %v651
        %v691 = vunpack.c.l.b16 %v652
        %v692 = vunpack.c.l.b16 %v653
        %v693 = vpack.c.b16 %v683, %v682
        %v694 = vpack.c.b16 %v685, %v684
        %v695 = vpack.c.b16 %v687, %v686
        %v696 = vpack.c.b16 %v689, %v688
        %v697 = vpack.c.b16 %v691, %v690
        %v698 = vpack.c.b16 %v692, %v692
        %vm699 = vsmask.f32 7424
        %v701 = vshrl.u32 %v693, 16
        %v703 = vshll.u32 %v693, 16
        %v705 = vrot.slane %v703, 1
        %v706 = vor.u32 %v701, %v705
        %v708 = vshll.u32 %v694, 16
        %v710 = vrot.slane %v708, 1
        %v711 = vsel %vm699, %v706, %v710
        %v712 = vshrl.u32 %v694, 16
        %v714 = vor.u32 %v712, %v710
        %v716 = vshll.u32 %v695, 16
        %v718 = vrot.slane %v716, 1
        %v719 = vsel %vm699, %v714, %v718
        %v720 = vshrl.u32 %v695, 16
        %v722 = vor.u32 %v720, %v718
        %v724 = vshll.u32 %v696, 16
        %v726 = vrot.slane %v724, 1
        %v727 = vsel %vm699, %v722, %v726
        %v728 = vshrl.u32 %v696, 16
        %v730 = vor.u32 %v728, %v726
        %v732 = vshll.u32 %v697, 16
        %v734 = vrot.slane %v732, 1
        %v735 = vsel %vm699, %v730, %v734
        %v736 = vshrl.u32 %v697, 16
        %v738 = vor.u32 %v736, %v734
        %v740 = vshll.u32 %v698, 16
        %v742 = vrot.slane %v740, 1
        %v743 = vsel %vm699, %v738, %v742
        %v765 = vunpack.c.l.b16 %v655
        %v766 = vunpack.c.l.b16 %v656
        %v767 = vunpack.c.l.b16 %v657
        %v768 = vunpack.c.l.b16 %v658
        %v769 = vunpack.c.l.b16 %v659
        %v770 = vunpack.c.l.b16 %v660
        %v771 = vunpack.c.l.b16 %v661
        %v772 = vunpack.c.l.b16 %v662
        %v773 = vunpack.c.l.b16 %v663
        %v774 = vunpack.c.l.b16 %v664
        %v775 = vunpack.c.l.b16 %v665
        %v776 = vunpack.c.l.b16 %v666
        %v777 = vunpack.c.l.b16 %v667
        %v778 = vunpack.c.l.b16 %v668
        %v779 = vunpack.c.l.b16 %v669
        %v780 = vunpack.c.l.b16 %v670
        %v781 = vpack.c.b16 %v766, %v765
        %v782 = vpack.c.b16 %v768, %v767
        %v783 = vpack.c.b16 %v770, %v769
        %v784 = vpack.c.b16 %v772, %v771
        %v785 = vpack.c.b16 %v774, %v773
        %v786 = vpack.c.b16 %v776, %v775
        %v787 = vpack.c.b16 %v778, %v777
        %v788 = vpack.c.b16 %v780, %v779
        %797 = vmatprep.subr.bf16.mxu0 0
        %798 = vmatpush1.bf16.msra.mxu0 %v781
        %799 = vmatprep.subr.bf16.mxu0 0
        %800 = vmatpush1.bf16.msra.mxu0 %v782
        %801 = vmatprep.subr.bf16.mxu0 0
        %802 = vmatpush1.bf16.msra.mxu0 %v783
        %803 = vmatprep.subr.bf16.mxu0 0
        %804 = vmatpush1.bf16.msra.mxu0 %v784
        %805 = vmatprep.subr.bf16.mxu0 0
        %806 = vmatpush1.bf16.msra.mxu0 %v785
        %807 = vmatprep.subr.bf16.mxu0 0
        %808 = vmatpush1.bf16.msra.mxu0 %v786
        %809 = vmatprep.subr.bf16.mxu0 0
        %810 = vmatpush1.bf16.msra.mxu0 %v787
        %811 = vmatprep.subr.bf16.mxu0 0
        %812 = vmatpush1.bf16.msra.mxu0 %v788
        %813 = vmatprep.subr.bf16.mxu0 0
        %814 = vmatpush1.bf16.msra.mxu0 0
        %815 = vmatprep.subr.bf16.mxu0 0
        %816 = vmatpush1.bf16.msra.mxu0 0
        %817 = vmatprep.subr.bf16.mxu0 0
        %818 = vmatpush1.bf16.msra.mxu0 0
        %819 = vmatprep.subr.bf16.mxu0 0
        %820 = vmatpush1.bf16.msra.mxu0 0
        %821 = vmatprep.subr.bf16.mxu0 0
        %822 = vmatpush1.bf16.msra.mxu0 0
        %823 = vmatprep.subr.bf16.mxu0 0
        %824 = vmatpush1.bf16.msra.mxu0 0
        %825 = vmatprep.subr.bf16.mxu0 0
        %826 = vmatpush1.bf16.msra.mxu0 0
        %827 = vmatprep.subr.bf16.mxu0 0
        %828 = vmatpush1.bf16.msra.mxu0 0
        %829 = vmatprep.mubr.bf16.mxu0 0
        %830 = vmatmul.mubr.bf16.gmra.mrb[0].mxu0 %v711
        %v831 = vpop.f32.mrb[0].mxu0
        %v832 = vadd.f32 0.0, %v831
        %v833 = vpop.f32.mrb[0].mxu0
        %v834 = vpop.f32.mrb[0].mxu0
        %v835 = vadd.f32 0.0, %v834
        %v836 = vpop.f32.mrb[0].mxu0
        %837 = vmatprep.mubr.bf16.mxu0 0
        %838 = vmatmul.mubr.bf16.gmra.mrb[0].mxu0 %v719
        %v839 = vpop.f32.mrb[0].mxu0
        %v840 = vadd.f32 0.0, %v839
        %v841 = vpop.f32.mrb[0].mxu0
        %v842 = vpop.f32.mrb[0].mxu0
        %v843 = vadd.f32 0.0, %v842
        %v844 = vpop.f32.mrb[0].mxu0
        %845 = vmatprep.mubr.bf16.mxu0 0
        %846 = vmatmul.mubr.bf16.gmra.mrb[0].mxu0 %v727
        %v847 = vpop.f32.mrb[0].mxu0
        %v848 = vadd.f32 0.0, %v847
        %v849 = vpop.f32.mrb[0].mxu0
        %v850 = vpop.f32.mrb[0].mxu0
        %v851 = vadd.f32 0.0, %v850
        %v852 = vpop.f32.mrb[0].mxu0
        %853 = vmatprep.mubr.bf16.mxu0 0
        %854 = vmatmul.mubr.bf16.gmra.mrb[0].mxu0 %v735
        %v855 = vpop.f32.mrb[0].mxu0
        %v856 = vadd.f32 0.0, %v855
        %v857 = vpop.f32.mrb[0].mxu0
        %v858 = vpop.f32.mrb[0].mxu0
        %v859 = vadd.f32 0.0, %v858
        %v860 = vpop.f32.mrb[0].mxu0
        %861 = vmatprep.mubr.bf16.mxu0 0
        %862 = vmatmul.mubr.bf16.gmra.mrb[0].mxu0 %v743
        %v863 = vpop.f32.mrb[0].mxu0
        %v864 = vadd.f32 0.0, %v863
        %v865 = vpop.f32.mrb[0].mxu0
        %v866 = vpop.f32.mrb[0].mxu0
        %v867 = vadd.f32 0.0, %v866
        %v868 = vpop.f32.mrb[0].mxu0
        %869 = vdwg.mxu0
        %v870 = vadd.f32 %v633, %v832
        %v871 = vadd.f32 %v634, %v835
        %v872 = vadd.f32 %v635, %v840
        %v873 = vadd.f32 %v636, %v843
        %v874 = vadd.f32 %v637, %v848
        %v875 = vadd.f32 %v638, %v851
        %v876 = vadd.f32 %v639, %v856
        %v877 = vadd.f32 %v640, %v859
        %v878 = vadd.f32 %v641, %v864
        %v879 = vadd.f32 %v642, %v867
        %v880 = vld [vmem:[%s252] sm:$0xe]
        %s881 = scalar_lea.vmem [#allocation3], 128
        %v882 = vld [vmem:[%s881] sm:$0xf]
        %v883 = vld [vmem:[%s881 + $0x4] sm:$0xf]
        %v884 = vld [vmem:[%s881 + $0x8] sm:$0xf]
        %v885 = vld [vmem:[%s881 + $0xc] sm:$0xf]
        %v886 = vld [vmem:[%s881 + $0x10] sm:$0xf]
        %v887 = vld [vmem:[%s881 + $0x14] sm:$0xf]
        %v888 = vld [vmem:[%s881 + $0x18] sm:$0xf]
        %v889 = vld [vmem:[%s881 + $0x1c] sm:$0xf]
        %v890 = vld [vmem:[%s881 + $0x20] sm:$0xf]
        %v891 = vld [vmem:[%s881 + $0x24] sm:$0xf]
        %v892 = vld [vmem:[%s881 + $0x28] sm:$0xf]
        %v893 = vld [vmem:[%s881 + $0x2c] sm:$0xf]
        %v894 = vld [vmem:[%s881 + $0x30] sm:$0xf]
        %v895 = vld [vmem:[%s881 + $0x34] sm:$0xf]
        %v896 = vld [vmem:[%s881 + $0x38] sm:$0xf]
        %v897 = vld [vmem:[%s881 + $0x3c] sm:$0xf]
        %v899 = vunpack.c.l.b16 %v880
        %v900 = vpack.c.b16 %v683, %v899
        %vm901 = vcmask 1046528
        %v902 = vrot.slane %v900, 1
        %v903 = vrot.slane %v694, 1
        %v904 = vsel %vm901, %v902, %v903
        %v905 = vrot.slane %v695, 1
        %v906 = vsel %vm901, %v903, %v905
        %v907 = vrot.slane %v696, 1
        %v908 = vsel %vm901, %v905, %v907
        %v909 = vrot.slane %v697, 1
        %v910 = vsel %vm901, %v907, %v909
        %v911 = vrot.slane %v698, 1
        %v912 = vsel %vm901, %v909, %v911
        %v934 = vunpack.c.l.b16 %v882
        %v935 = vunpack.c.l.b16 %v883
        %v936 = vunpack.c.l.b16 %v884
        %v937 = vunpack.c.l.b16 %v885
        %v938 = vunpack.c.l.b16 %v886
        %v939 = vunpack.c.l.b16 %v887
        %v940 = vunpack.c.l.b16 %v888
        %v941 = vunpack.c.l.b16 %v889
        %v942 = vunpack.c.l.b16 %v890
        %v943 = vunpack.c.l.b16 %v891
        %v944 = vunpack.c.l.b16 %v892
        %v945 = vunpack.c.l.b16 %v893
        %v946 = vunpack.c.l.b16 %v894
        %v947 = vunpack.c.l.b16 %v895
        %v948 = vunpack.c.l.b16 %v896
        %v949 = vunpack.c.l.b16 %v897
        %v950 = vpack.c.b16 %v935, %v934
        %v951 = vpack.c.b16 %v937, %v936
        %v952 = vpack.c.b16 %v939, %v938
        %v953 = vpack.c.b16 %v941, %v940
        %v954 = vpack.c.b16 %v943, %v942
        %v955 = vpack.c.b16 %v945, %v944
        %v956 = vpack.c.b16 %v947, %v946
        %v957 = vpack.c.b16 %v949, %v948
        %966 = vmatprep.subr.bf16.mxu0 0
        %967 = vmatpush1.bf16.msra.mxu0 %v950
        %968 = vmatprep.subr.bf16.mxu0 0
        %969 = vmatpush1.bf16.msra.mxu0 %v951
        %970 = vmatprep.subr.bf16.mxu0 0
        %971 = vmatpush1.bf16.msra.mxu0 %v952
        %972 = vmatprep.subr.bf16.mxu0 0
        %973 = vmatpush1.bf16.msra.mxu0 %v953
        %974 = vmatprep.subr.bf16.mxu0 0
        %975 = vmatpush1.bf16.msra.mxu0 %v954
        %976 = vmatprep.subr.bf16.mxu0 0
        %977 = vmatpush1.bf16.msra.mxu0 %v955
        %978 = vmatprep.subr.bf16.mxu0 0
        %979 = vmatpush1.bf16.msra.mxu0 %v956
        %980 = vmatprep.subr.bf16.mxu0 0
        %981 = vmatpush1.bf16.msra.mxu0 %v957
        %982 = vmatprep.subr.bf16.mxu0 0
        %983 = vmatpush1.bf16.msra.mxu0 0
        %984 = vmatprep.subr.bf16.mxu0 0
        %985 = vmatpush1.bf16.msra.mxu0 0
        %986 = vmatprep.subr.bf16.mxu0 0
        %987 = vmatpush1.bf16.msra.mxu0 0
        %988 = vmatprep.subr.bf16.mxu0 0
        %989 = vmatpush1.bf16.msra.mxu0 0
        %990 = vmatprep.subr.bf16.mxu0 0
        %991 = vmatpush1.bf16.msra.mxu0 0
        %992 = vmatprep.subr.bf16.mxu0 0
        %993 = vmatpush1.bf16.msra.mxu0 0
        %994 = vmatprep.subr.bf16.mxu0 0
        %995 = vmatpush1.bf16.msra.mxu0 0
        %996 = vmatprep.subr.bf16.mxu0 0
        %997 = vmatpush1.bf16.msra.mxu0 0
        %998 = vmatprep.mubr.bf16.mxu0 0
        %999 = vmatmul.mubr.bf16.gmra.mrb[0].mxu0 %v904
        %v1000 = vpop.f32.mrb[0].mxu0
        %v1001 = vadd.f32 0.0, %v1000
        %v1002 = vpop.f32.mrb[0].mxu0
        %v1003 = vpop.f32.mrb[0].mxu0
        %v1004 = vadd.f32 0.0, %v1003
        %v1005 = vpop.f32.mrb[0].mxu0
        %1006 = vmatprep.mubr.bf16.mxu0 0
        %1007 = vmatmul.mubr.bf16.gmra.mrb[0].mxu0 %v906
        %v1008 = vpop.f32.mrb[0].mxu0
        %v1009 = vadd.f32 0.0, %v1008
        %v1010 = vpop.f32.mrb[0].mxu0
        %v1011 = vpop.f32.mrb[0].mxu0
        %v1012 = vadd.f32 0.0, %v1011
        %v1013 = vpop.f32.mrb[0].mxu0
        %1014 = vmatprep.mubr.bf16.mxu0 0
        %1015 = vmatmul.mubr.bf16.gmra.mrb[0].mxu0 %v908
        %v1016 = vpop.f32.mrb[0].mxu0
        %v1017 = vadd.f32 0.0, %v1016
        %v1018 = vpop.f32.mrb[0].mxu0
        %v1019 = vpop.f32.mrb[0].mxu0
        %v1020 = vadd.f32 0.0, %v1019
        %v1021 = vpop.f32.mrb[0].mxu0
        %1022 = vmatprep.mubr.bf16.mxu0 0
        %1023 = vmatmul.mubr.bf16.gmra.mrb[0].mxu0 %v910
        %v1024 = vpop.f32.mrb[0].mxu0
        %v1025 = vadd.f32 0.0, %v1024
        %v1026 = vpop.f32.mrb[0].mxu0
        %v1027 = vpop.f32.mrb[0].mxu0
        %v1028 = vadd.f32 0.0, %v1027
        %v1029 = vpop.f32.mrb[0].mxu0
        %1030 = vmatprep.mubr.bf16.mxu0 0
        %1031 = vmatmul.mubr.bf16.gmra.mrb[0].mxu0 %v912
        %v1032 = vpop.f32.mrb[0].mxu0
        %v1033 = vadd.f32 0.0, %v1032
        %v1034 = vpop.f32.mrb[0].mxu0
        %v1035 = vpop.f32.mrb[0].mxu0
        %v1036 = vadd.f32 0.0, %v1035
        %v1037 = vpop.f32.mrb[0].mxu0
        %1038 = vdwg.mxu0
        %v1039 = vadd.f32 %v870, %v1001
        %v1040 = vadd.f32 %v871, %v1004
        %v1041 = vadd.f32 %v872, %v1009
        %v1042 = vadd.f32 %v873, %v1012
        %v1043 = vadd.f32 %v874, %v1017
        %v1044 = vadd.f32 %v875, %v1020
        %v1045 = vadd.f32 %v876, %v1025
        %v1046 = vadd.f32 %v877, %v1028
        %v1047 = vadd.f32 %v878, %v1033
        %v1048 = vadd.f32 %v879, %v1036
        %v1049 = vld [vmem:[%s252 + $0x4] sm:$0xe]
        %v1050 = vld [vmem:[%s252 + $0x8] sm:$0xf]
        %v1051 = vld [vmem:[%s252 + $0xc] sm:$0xf]
        %v1052 = vld [vmem:[%s252 + $0x10] sm:$0xf]
        %v1053 = vld [vmem:[%s252 + $0x14] sm:$0xf]
        %v1054 = vld [vmem:[%s252 + $0x18] sm:$0xf]
        %v1055 = vld [vmem:[%s252 + $0x1c] sm:$0xf]
        %v1056 = vld [vmem:[%s252 + $0x20] sm:$0xf]
        %v1057 = vld [vmem:[%s252 + $0x24] sm:$0xf]
        %v1058 = vld [vmem:[%s252 + $0x28] sm:$0xf]
        %v1059 = vld [vmem:[%s252 + $0x2c] sm:$0x1]
        %s1060 = scalar_lea.vmem [#allocation3], 192
        %v1061 = vld [vmem:[%s1060] sm:$0xf]
        %v1062 = vld [vmem:[%s1060 + $0x4] sm:$0xf]
        %v1063 = vld [vmem:[%s1060 + $0x8] sm:$0xf]
        %v1064 = vld [vmem:[%s1060 + $0xc] sm:$0xf]
        %v1065 = vld [vmem:[%s1060 + $0x10] sm:$0xf]
        %v1066 = vld [vmem:[%s1060 + $0x14] sm:$0xf]
        %v1067 = vld [vmem:[%s1060 + $0x18] sm:$0xf]
        %v1068 = vld [vmem:[%s1060 + $0x1c] sm:$0xf]
        %v1069 = vld [vmem:[%s1060 + $0x20] sm:$0xf]
        %v1070 = vld [vmem:[%s1060 + $0x24] sm:$0xf]
        %v1071 = vld [vmem:[%s1060 + $0x28] sm:$0xf]
        %v1072 = vld [vmem:[%s1060 + $0x2c] sm:$0xf]
        %v1073 = vld [vmem:[%s1060 + $0x30] sm:$0xf]
        %v1074 = vld [vmem:[%s1060 + $0x34] sm:$0xf]
        %v1075 = vld [vmem:[%s1060 + $0x38] sm:$0xf]
        %v1076 = vld [vmem:[%s1060 + $0x3c] sm:$0xf]
        %v1088 = vunpack.c.l.b16 %v1049
        %v1089 = vunpack.c.l.b16 %v1050
        %v1090 = vunpack.c.l.b16 %v1051
        %v1091 = vunpack.c.l.b16 %v1052
        %v1092 = vunpack.c.l.b16 %v1053
        %v1093 = vunpack.c.l.b16 %v1054
        %v1094 = vunpack.c.l.b16 %v1055
        %v1095 = vunpack.c.l.b16 %v1056
        %v1096 = vunpack.c.l.b16 %v1057
        %v1097 = vunpack.c.l.b16 %v1058
        %v1098 = vunpack.c.l.b16 %v1059
        %v1099 = vpack.c.b16 %v1089, %v1088
        %v1100 = vpack.c.b16 %v1091, %v1090
        %v1101 = vpack.c.b16 %v1093, %v1092
        %v1102 = vpack.c.b16 %v1095, %v1094
        %v1103 = vpack.c.b16 %v1097, %v1096
        %v1104 = vpack.c.b16 %v1098, %v1098
        %v1105 = vrot.slane %v1099, 1
        %v1106 = vrot.slane %v1100, 1
        %v1107 = vsel %vm901, %v1105, %v1106
        %v1108 = vrot.slane %v1101, 1
        %v1109 = vsel %vm901, %v1106, %v1108
        %v1110 = vrot.slane %v1102, 1
        %v1111 = vsel %vm901, %v1108, %v1110
        %v1112 = vrot.slane %v1103, 1
        %v1113 = vsel %vm901, %v1110, %v1112
        %v1114 = vrot.slane %v1104, 1
        %v1115 = vsel %vm901, %v1112, %v1114
        %v1137 = vunpack.c.l.b16 %v1061
        %v1138 = vunpack.c.l.b16 %v1062
        %v1139 = vunpack.c.l.b16 %v1063
        %v1140 = vunpack.c.l.b16 %v1064
        %v1141 = vunpack.c.l.b16 %v1065
        %v1142 = vunpack.c.l.b16 %v1066
        %v1143 = vunpack.c.l.b16 %v1067
        %v1144 = vunpack.c.l.b16 %v1068
        %v1145 = vunpack.c.l.b16 %v1069
        %v1146 = vunpack.c.l.b16 %v1070
        %v1147 = vunpack.c.l.b16 %v1071
        %v1148 = vunpack.c.l.b16 %v1072
        %v1149 = vunpack.c.l.b16 %v1073
        %v1150 = vunpack.c.l.b16 %v1074
        %v1151 = vunpack.c.l.b16 %v1075
        %v1152 = vunpack.c.l.b16 %v1076
        %v1153 = vpack.c.b16 %v1138, %v1137
        %v1154 = vpack.c.b16 %v1140, %v1139
        %v1155 = vpack.c.b16 %v1142, %v1141
        %v1156 = vpack.c.b16 %v1144, %v1143
        %v1157 = vpack.c.b16 %v1146, %v1145
        %v1158 = vpack.c.b16 %v1148, %v1147
        %v1159 = vpack.c.b16 %v1150, %v1149
        %v1160 = vpack.c.b16 %v1152, %v1151
        %1169 = vmatprep.subr.bf16.mxu0 0
        %1170 = vmatpush1.bf16.msra.mxu0 %v1153
        %1171 = vmatprep.subr.bf16.mxu0 0
        %1172 = vmatpush1.bf16.msra.mxu0 %v1154
        %1173 = vmatprep.subr.bf16.mxu0 0
        %1174 = vmatpush1.bf16.msra.mxu0 %v1155
        %1175 = vmatprep.subr.bf16.mxu0 0
        %1176 = vmatpush1.bf16.msra.mxu0 %v1156
        %1177 = vmatprep.subr.bf16.mxu0 0
        %1178 = vmatpush1.bf16.msra.mxu0 %v1157
        %1179 = vmatprep.subr.bf16.mxu0 0
        %1180 = vmatpush1.bf16.msra.mxu0 %v1158
        %1181 = vmatprep.subr.bf16.mxu0 0
        %1182 = vmatpush1.bf16.msra.mxu0 %v1159
        %1183 = vmatprep.subr.bf16.mxu0 0
        %1184 = vmatpush1.bf16.msra.mxu0 %v1160
        %1185 = vmatprep.subr.bf16.mxu0 0
        %1186 = vmatpush1.bf16.msra.mxu0 0
        %1187 = vmatprep.subr.bf16.mxu0 0
        %1188 = vmatpush1.bf16.msra.mxu0 0
        %1189 = vmatprep.subr.bf16.mxu0 0
        %1190 = vmatpush1.bf16.msra.mxu0 0
        %1191 = vmatprep.subr.bf16.mxu0 0
        %1192 = vmatpush1.bf16.msra.mxu0 0
        %1193 = vmatprep.subr.bf16.mxu0 0
        %1194 = vmatpush1.bf16.msra.mxu0 0
        %1195 = vmatprep.subr.bf16.mxu0 0
        %1196 = vmatpush1.bf16.msra.mxu0 0
        %1197 = vmatprep.subr.bf16.mxu0 0
        %1198 = vmatpush1.bf16.msra.mxu0 0
        %1199 = vmatprep.subr.bf16.mxu0 0
        %1200 = vmatpush1.bf16.msra.mxu0 0
        %1201 = vmatprep.mubr.bf16.mxu0 0
        %1202 = vmatmul.mubr.bf16.gmra.mrb[0].mxu0 %v1107
        %v1203 = vpop.f32.mrb[0].mxu0
        %v1204 = vadd.f32 0.0, %v1203
        %v1205 = vpop.f32.mrb[0].mxu0
        %v1206 = vpop.f32.mrb[0].mxu0
        %v1207 = vadd.f32 0.0, %v1206
        %v1208 = vpop.f32.mrb[0].mxu0
        %1209 = vmatprep.mubr.bf16.mxu0 0
        %1210 = vmatmul.mubr.bf16.gmra.mrb[0].mxu0 %v1109
        %v1211 = vpop.f32.mrb[0].mxu0
        %v1212 = vadd.f32 0.0, %v1211
        %v1213 = vpop.f32.mrb[0].mxu0
        %v1214 = vpop.f32.mrb[0].mxu0
        %v1215 = vadd.f32 0.0, %v1214
        %v1216 = vpop.f32.mrb[0].mxu0
        %1217 = vmatprep.mubr.bf16.mxu0 0
        %1218 = vmatmul.mubr.bf16.gmra.mrb[0].mxu0 %v1111
        %v1219 = vpop.f32.mrb[0].mxu0
        %v1220 = vadd.f32 0.0, %v1219
        %v1221 = vpop.f32.mrb[0].mxu0
        %v1222 = vpop.f32.mrb[0].mxu0
        %v1223 = vadd.f32 0.0, %v1222
        %v1224 = vpop.f32.mrb[0].mxu0
        %1225 = vmatprep.mubr.bf16.mxu0 0
        %1226 = vmatmul.mubr.bf16.gmra.mrb[0].mxu0 %v1113
        %v1227 = vpop.f32.mrb[0].mxu0
        %v1228 = vadd.f32 0.0, %v1227
        %v1229 = vpop.f32.mrb[0].mxu0
        %v1230 = vpop.f32.mrb[0].mxu0
        %v1231 = vadd.f32 0.0, %v1230
        %v1232 = vpop.f32.mrb[0].mxu0
        %1233 = vmatprep.mubr.bf16.mxu0 0
        %1234 = vmatmul.mubr.bf16.gmra.mrb[0].mxu0 %v1115
        %v1235 = vpop.f32.mrb[0].mxu0
        %v1236 = vadd.f32 0.0, %v1235
        %v1237 = vpop.f32.mrb[0].mxu0
        %v1238 = vpop.f32.mrb[0].mxu0
        %v1239 = vadd.f32 0.0, %v1238
        %v1240 = vpop.f32.mrb[0].mxu0
        %1241 = vdwg.mxu0
        %v1242 = vadd.f32 %v1039, %v1204
        %v1243 = vadd.f32 %v1040, %v1207
        %v1244 = vadd.f32 %v1041, %v1212
        %v1245 = vadd.f32 %v1042, %v1215
        %v1246 = vadd.f32 %v1043, %v1220
        %v1247 = vadd.f32 %v1044, %v1223
        %v1248 = vadd.f32 %v1045, %v1228
        %v1249 = vadd.f32 %v1046, %v1231
        %v1250 = vadd.f32 %v1047, %v1236
        %v1251 = vadd.f32 %v1048, %v1239
        %v1252 = vld [vmem:[%s252 + $0x2c] sm:$0x3]
        %s1253 = scalar_lea.vmem [#allocation3], 256
        %v1254 = vld [vmem:[%s1253] sm:$0xf]
        %v1255 = vld [vmem:[%s1253 + $0x4] sm:$0xf]
        %v1256 = vld [vmem:[%s1253 + $0x8] sm:$0xf]
        %v1257 = vld [vmem:[%s1253 + $0xc] sm:$0xf]
        %v1258 = vld [vmem:[%s1253 + $0x10] sm:$0xf]
        %v1259 = vld [vmem:[%s1253 + $0x14] sm:$0xf]
        %v1260 = vld [vmem:[%s1253 + $0x18] sm:$0xf]
        %v1261 = vld [vmem:[%s1253 + $0x1c] sm:$0xf]
        %v1262 = vld [vmem:[%s1253 + $0x20] sm:$0xf]
        %v1263 = vld [vmem:[%s1253 + $0x24] sm:$0xf]
        %v1264 = vld [vmem:[%s1253 + $0x28] sm:$0xf]
        %v1265 = vld [vmem:[%s1253 + $0x2c] sm:$0xf]
        %v1266 = vld [vmem:[%s1253 + $0x30] sm:$0xf]
        %v1267 = vld [vmem:[%s1253 + $0x34] sm:$0xf]
        %v1268 = vld [vmem:[%s1253 + $0x38] sm:$0xf]
        %v1269 = vld [vmem:[%s1253 + $0x3c] sm:$0xf]
        %v1271 = vunpack.c.l.b16 %v1252
        %v1272 = vpack.c.b16 %v1271, %v1271
        %vm1273 = vsmask.f32 6400
        %v1275 = vshrl.u32 %v1099, 16
        %v1277 = vrot.slane %v1275, 1
        %v1278 = vshll.u32 %v1099, 16
        %v1280 = vrot.slane %v1278, 2
        %v1281 = vor.u32 %v1277, %v1280
        %v1283 = vshrl.u32 %v1100, 16
        %v1285 = vrot.slane %v1283, 1
        %v1286 = vshll.u32 %v1100, 16
        %v1288 = vrot.slane %v1286, 2
        %v1289 = vor.u32 %v1285, %v1288
        %v1290 = vsel %vm1273, %v1281, %v1289
        %v1292 = vshrl.u32 %v1101, 16
        %v1294 = vrot.slane %v1292, 1
        %v1295 = vshll.u32 %v1101, 16
        %v1297 = vrot.slane %v1295, 2
        %v1298 = vor.u32 %v1294, %v1297
        %v1299 = vsel %vm1273, %v1289, %v1298
        %v1301 = vshrl.u32 %v1102, 16
        %v1303 = vrot.slane %v1301, 1
        %v1304 = vshll.u32 %v1102, 16
        %v1306 = vrot.slane %v1304, 2
        %v1307 = vor.u32 %v1303, %v1306
        %v1308 = vsel %vm1273, %v1298, %v1307
        %v1310 = vshrl.u32 %v1103, 16
        %v1312 = vrot.slane %v1310, 1
        %v1313 = vshll.u32 %v1103, 16
        %v1315 = vrot.slane %v1313, 2
        %v1316 = vor.u32 %v1312, %v1315
        %v1317 = vsel %vm1273, %v1307, %v1316
        %v1319 = vshrl.u32 %v1272, 16
        %v1321 = vrot.slane %v1319, 1
        %v1322 = vshll.u32 %v1272, 16
        %v1324 = vrot.slane %v1322, 2
        %v1325 = vor.u32 %v1321, %v1324
        %v1326 = vsel %vm1273, %v1316, %v1325
        %v1348 = vunpack.c.l.b16 %v1254
        %v1349 = vunpack.c.l.b16 %v1255
        %v1350 = vunpack.c.l.b16 %v1256
        %v1351 = vunpack.c.l.b16 %v1257
        %v1352 = vunpack.c.l.b16 %v1258
        %v1353 = vunpack.c.l.b16 %v1259
        %v1354 = vunpack.c.l.b16 %v1260
        %v1355 = vunpack.c.l.b16 %v1261
        %v1356 = vunpack.c.l.b16 %v1262
        %v1357 = vunpack.c.l.b16 %v1263
        %v1358 = vunpack.c.l.b16 %v1264
        %v1359 = vunpack.c.l.b16 %v1265
        %v1360 = vunpack.c.l.b16 %v1266
        %v1361 = vunpack.c.l.b16 %v1267
        %v1362 = vunpack.c.l.b16 %v1268
        %v1363 = vunpack.c.l.b16 %v1269
        %v1364 = vpack.c.b16 %v1349, %v1348
        %v1365 = vpack.c.b16 %v1351, %v1350
        %v1366 = vpack.c.b16 %v1353, %v1352
        %v1367 = vpack.c.b16 %v1355, %v1354
        %v1368 = vpack.c.b16 %v1357, %v1356
        %v1369 = vpack.c.b16 %v1359, %v1358
        %v1370 = vpack.c.b16 %v1361, %v1360
        %v1371 = vpack.c.b16 %v1363, %v1362
        %1380 = vmatprep.subr.bf16.mxu0 0
        %1381 = vmatpush1.bf16.msra.mxu0 %v1364
        %1382 = vmatprep.subr.bf16.mxu0 0
        %1383 = vmatpush1.bf16.msra.mxu0 %v1365
        %1384 = vmatprep.subr.bf16.mxu0 0
        %1385 = vmatpush1.bf16.msra.mxu0 %v1366
        %1386 = vmatprep.subr.bf16.mxu0 0
        %1387 = vmatpush1.bf16.msra.mxu0 %v1367
        %1388 = vmatprep.subr.bf16.mxu0 0
        %1389 = vmatpush1.bf16.msra.mxu0 %v1368
        %1390 = vmatprep.subr.bf16.mxu0 0
        %1391 = vmatpush1.bf16.msra.mxu0 %v1369
        %1392 = vmatprep.subr.bf16.mxu0 0
        %1393 = vmatpush1.bf16.msra.mxu0 %v1370
        %1394 = vmatprep.subr.bf16.mxu0 0
        %1395 = vmatpush1.bf16.msra.mxu0 %v1371
        %1396 = vmatprep.subr.bf16.mxu0 0
        %1397 = vmatpush1.bf16.msra.mxu0 0
        %1398 = vmatprep.subr.bf16.mxu0 0
        %1399 = vmatpush1.bf16.msra.mxu0 0
        %1400 = vmatprep.subr.bf16.mxu0 0
        %1401 = vmatpush1.bf16.msra.mxu0 0
        %1402 = vmatprep.subr.bf16.mxu0 0
        %1403 = vmatpush1.bf16.msra.mxu0 0
        %1404 = vmatprep.subr.bf16.mxu0 0
        %1405 = vmatpush1.bf16.msra.mxu0 0
        %1406 = vmatprep.subr.bf16.mxu0 0
        %1407 = vmatpush1.bf16.msra.mxu0 0
        %1408 = vmatprep.subr.bf16.mxu0 0
        %1409 = vmatpush1.bf16.msra.mxu0 0
        %1410 = vmatprep.subr.bf16.mxu0 0
        %1411 = vmatpush1.bf16.msra.mxu0 0
        %1412 = vmatprep.mubr.bf16.mxu0 0
        %1413 = vmatmul.mubr.bf16.gmra.mrb[0].mxu0 %v1290
        %v1414 = vpop.f32.mrb[0].mxu0
        %v1415 = vadd.f32 0.0, %v1414
        %v1416 = vpop.f32.mrb[0].mxu0
        %v1417 = vpop.f32.mrb[0].mxu0
        %v1418 = vadd.f32 0.0, %v1417
        %v1419 = vpop.f32.mrb[0].mxu0
        %1420 = vmatprep.mubr.bf16.mxu0 0
        %1421 = vmatmul.mubr.bf16.gmra.mrb[0].mxu0 %v1299
        %v1422 = vpop.f32.mrb[0].mxu0
        %v1423 = vadd.f32 0.0, %v1422
        %v1424 = vpop.f32.mrb[0].mxu0
        %v1425 = vpop.f32.mrb[0].mxu0
        %v1426 = vadd.f32 0.0, %v1425
        %v1427 = vpop.f32.mrb[0].mxu0
        %1428 = vmatprep.mubr.bf16.mxu0 0
        %1429 = vmatmul.mubr.bf16.gmra.mrb[0].mxu0 %v1308
        %v1430 = vpop.f32.mrb[0].mxu0
        %v1431 = vadd.f32 0.0, %v1430
        %v1432 = vpop.f32.mrb[0].mxu0
        %v1433 = vpop.f32.mrb[0].mxu0
        %v1434 = vadd.f32 0.0, %v1433
        %v1435 = vpop.f32.mrb[0].mxu0
        %1436 = vmatprep.mubr.bf16.mxu0 0
        %1437 = vmatmul.mubr.bf16.gmra.mrb[0].mxu0 %v1317
        %v1438 = vpop.f32.mrb[0].mxu0
        %v1439 = vadd.f32 0.0, %v1438
        %v1440 = vpop.f32.mrb[0].mxu0
        %v1441 = vpop.f32.mrb[0].mxu0
        %v1442 = vadd.f32 0.0, %v1441
        %v1443 = vpop.f32.mrb[0].mxu0
        %1444 = vmatprep.mubr.bf16.mxu0 0
        %1445 = vmatmul.mubr.bf16.gmra.mrb[0].mxu0 %v1326
        %v1446 = vpop.f32.mrb[0].mxu0
        %v1447 = vadd.f32 0.0, %v1446
        %v1448 = vpop.f32.mrb[0].mxu0
        %v1449 = vpop.f32.mrb[0].mxu0
        %v1450 = vadd.f32 0.0, %v1449
        %v1451 = vpop.f32.mrb[0].mxu0
        %1452 = vdwg.mxu0
        %v1453 = vadd.f32 %v1242, %v1415
        %v1454 = vadd.f32 %v1243, %v1418
        %v1455 = vadd.f32 %v1244, %v1423
        %v1456 = vadd.f32 %v1245, %v1426
        %v1457 = vadd.f32 %v1246, %v1431
        %v1458 = vadd.f32 %v1247, %v1434
        %v1459 = vadd.f32 %v1248, %v1439
        %v1460 = vadd.f32 %v1249, %v1442
        %v1461 = vadd.f32 %v1250, %v1447
        %v1462 = vadd.f32 %v1251, %v1450
        %v1463 = vld [vmem:[%s252 + $0x4] sm:$0xc]
        %s1464 = scalar_lea.vmem [#allocation3], 320
        %v1465 = vld [vmem:[%s1464] sm:$0xf]
        %v1466 = vld [vmem:[%s1464 + $0x4] sm:$0xf]
        %v1467 = vld [vmem:[%s1464 + $0x8] sm:$0xf]
        %v1468 = vld [vmem:[%s1464 + $0xc] sm:$0xf]
        %v1469 = vld [vmem:[%s1464 + $0x10] sm:$0xf]
        %v1470 = vld [vmem:[%s1464 + $0x14] sm:$0xf]
        %v1471 = vld [vmem:[%s1464 + $0x18] sm:$0xf]
        %v1472 = vld [vmem:[%s1464 + $0x1c] sm:$0xf]
        %v1473 = vld [vmem:[%s1464 + $0x20] sm:$0xf]
        %v1474 = vld [vmem:[%s1464 + $0x24] sm:$0xf]
        %v1475 = vld [vmem:[%s1464 + $0x28] sm:$0xf]
        %v1476 = vld [vmem:[%s1464 + $0x2c] sm:$0xf]
        %v1477 = vld [vmem:[%s1464 + $0x30] sm:$0xf]
        %v1478 = vld [vmem:[%s1464 + $0x34] sm:$0xf]
        %v1479 = vld [vmem:[%s1464 + $0x38] sm:$0xf]
        %v1480 = vld [vmem:[%s1464 + $0x3c] sm:$0xf]
        %v1482 = vunpack.c.l.b16 %v1463
        %v1483 = vpack.c.b16 %v1089, %v1482
        %vm1484 = vcmask 1045504
        %v1485 = vrot.slane %v1483, 2
        %v1486 = vrot.slane %v1100, 2
        %v1487 = vsel %vm1484, %v1485, %v1486
        %v1488 = vrot.slane %v1101, 2
        %v1489 = vsel %vm1484, %v1486, %v1488
        %v1490 = vrot.slane %v1102, 2
        %v1491 = vsel %vm1484, %v1488, %v1490
        %v1492 = vrot.slane %v1103, 2
        %v1493 = vsel %vm1484, %v1490, %v1492
        %v1494 = vrot.slane %v1272, 2
        %v1495 = vsel %vm1484, %v1492, %v1494
        %v1517 = vunpack.c.l.b16 %v1465
        %v1518 = vunpack.c.l.b16 %v1466
        %v1519 = vunpack.c.l.b16 %v1467
        %v1520 = vunpack.c.l.b16 %v1468
        %v1521 = vunpack.c.l.b16 %v1469
        %v1522 = vunpack.c.l.b16 %v1470
        %v1523 = vunpack.c.l.b16 %v1471
        %v1524 = vunpack.c.l.b16 %v1472
        %v1525 = vunpack.c.l.b16 %v1473
        %v1526 = vunpack.c.l.b16 %v1474
        %v1527 = vunpack.c.l.b16 %v1475
        %v1528 = vunpack.c.l.b16 %v1476
        %v1529 = vunpack.c.l.b16 %v1477
        %v1530 = vunpack.c.l.b16 %v1478
        %v1531 = vunpack.c.l.b16 %v1479
        %v1532 = vunpack.c.l.b16 %v1480
        %v1533 = vpack.c.b16 %v1518, %v1517
        %v1534 = vpack.c.b16 %v1520, %v1519
        %v1535 = vpack.c.b16 %v1522, %v1521
        %v1536 = vpack.c.b16 %v1524, %v1523
        %v1537 = vpack.c.b16 %v1526, %v1525
        %v1538 = vpack.c.b16 %v1528, %v1527
        %v1539 = vpack.c.b16 %v1530, %v1529
        %v1540 = vpack.c.b16 %v1532, %v1531
        %1549 = vmatprep.subr.bf16.mxu0 0
        %1550 = vmatpush1.bf16.msra.mxu0 %v1533
        %1551 = vmatprep.subr.bf16.mxu0 0
        %1552 = vmatpush1.bf16.msra.mxu0 %v1534
        %1553 = vmatprep.subr.bf16.mxu0 0
        %1554 = vmatpush1.bf16.msra.mxu0 %v1535
        %1555 = vmatprep.subr.bf16.mxu0 0
        %1556 = vmatpush1.bf16.msra.mxu0 %v1536
        %1557 = vmatprep.subr.bf16.mxu0 0
        %1558 = vmatpush1.bf16.msra.mxu0 %v1537
        %1559 = vmatprep.subr.bf16.mxu0 0
        %1560 = vmatpush1.bf16.msra.mxu0 %v1538
        %1561 = vmatprep.subr.bf16.mxu0 0
        %1562 = vmatpush1.bf16.msra.mxu0 %v1539
        %1563 = vmatprep.subr.bf16.mxu0 0
        %1564 = vmatpush1.bf16.msra.mxu0 %v1540
        %1565 = vmatprep.subr.bf16.mxu0 0
        %1566 = vmatpush1.bf16.msra.mxu0 0
        %1567 = vmatprep.subr.bf16.mxu0 0
        %1568 = vmatpush1.bf16.msra.mxu0 0
        %1569 = vmatprep.subr.bf16.mxu0 0
        %1570 = vmatpush1.bf16.msra.mxu0 0
        %1571 = vmatprep.subr.bf16.mxu0 0
        %1572 = vmatpush1.bf16.msra.mxu0 0
        %1573 = vmatprep.subr.bf16.mxu0 0
        %1574 = vmatpush1.bf16.msra.mxu0 0
        %1575 = vmatprep.subr.bf16.mxu0 0
        %1576 = vmatpush1.bf16.msra.mxu0 0
        %1577 = vmatprep.subr.bf16.mxu0 0
        %1578 = vmatpush1.bf16.msra.mxu0 0
        %1579 = vmatprep.subr.bf16.mxu0 0
        %1580 = vmatpush1.bf16.msra.mxu0 0
        %1581 = vmatprep.mubr.bf16.mxu0 0
        %1582 = vmatmul.mubr.bf16.gmra.mrb[0].mxu0 %v1487
        %v1583 = vpop.f32.mrb[0].mxu0
        %v1584 = vadd.f32 0.0, %v1583
        %v1585 = vpop.f32.mrb[0].mxu0
        %v1586 = vpop.f32.mrb[0].mxu0
        %v1587 = vadd.f32 0.0, %v1586
        %v1588 = vpop.f32.mrb[0].mxu0
        %1589 = vmatprep.mubr.bf16.mxu0 0
        %1590 = vmatmul.mubr.bf16.gmra.mrb[0].mxu0 %v1489
        %v1591 = vpop.f32.mrb[0].mxu0
        %v1592 = vadd.f32 0.0, %v1591
        %v1593 = vpop.f32.mrb[0].mxu0
        %v1594 = vpop.f32.mrb[0].mxu0
        %v1595 = vadd.f32 0.0, %v1594
        %v1596 = vpop.f32.mrb[0].mxu0
        %1597 = vmatprep.mubr.bf16.mxu0 0
        %1598 = vmatmul.mubr.bf16.gmra.mrb[0].mxu0 %v1491
        %v1599 = vpop.f32.mrb[0].mxu0
        %v1600 = vadd.f32 0.0, %v1599
        %v1601 = vpop.f32.mrb[0].mxu0
        %v1602 = vpop.f32.mrb[0].mxu0
        %v1603 = vadd.f32 0.0, %v1602
        %v1604 = vpop.f32.mrb[0].mxu0
        %1605 = vmatprep.mubr.bf16.mxu0 0
        %1606 = vmatmul.mubr.bf16.gmra.mrb[0].mxu0 %v1493
        %v1607 = vpop.f32.mrb[0].mxu0
        %v1608 = vadd.f32 0.0, %v1607
        %v1609 = vpop.f32.mrb[0].mxu0
        %v1610 = vpop.f32.mrb[0].mxu0
        %v1611 = vadd.f32 0.0, %v1610
        %v1612 = vpop.f32.mrb[0].mxu0
        %1613 = vmatprep.mubr.bf16.mxu0 0
        %1614 = vmatmul.mubr.bf16.gmra.mrb[0].mxu0 %v1495
        %v1615 = vpop.f32.mrb[0].mxu0
        %v1616 = vadd.f32 0.0, %v1615
        %v1617 = vpop.f32.mrb[0].mxu0
        %v1618 = vpop.f32.mrb[0].mxu0
        %v1619 = vadd.f32 0.0, %v1618
        %v1620 = vpop.f32.mrb[0].mxu0
        %1621 = vdwg.mxu0
        %v1622 = vadd.f32 %v1453, %v1584
        %v1623 = vadd.f32 %v1454, %v1587
        %v1624 = vadd.f32 %v1455, %v1592
        %v1625 = vadd.f32 %v1456, %v1595
        %v1626 = vadd.f32 %v1457, %v1600
        %v1627 = vadd.f32 %v1458, %v1603
        %v1628 = vadd.f32 %v1459, %v1608
        %v1629 = vadd.f32 %v1460, %v1611
        %v1630 = vadd.f32 %v1461, %v1616
        %v1631 = vadd.f32 %v1462, %v1619
        %v1632 = vld [vmem:[%s252 + $0x8] sm:$0xc]
        %v1633 = vld [vmem:[%s252 + $0xc] sm:$0xf]
        %v1634 = vld [vmem:[%s252 + $0x10] sm:$0xf]
        %v1635 = vld [vmem:[%s252 + $0x14] sm:$0xf]
        %v1636 = vld [vmem:[%s252 + $0x18] sm:$0xf]
        %v1637 = vld [vmem:[%s252 + $0x1c] sm:$0xf]
        %v1638 = vld [vmem:[%s252 + $0x20] sm:$0xf]
        %v1639 = vld [vmem:[%s252 + $0x24] sm:$0xf]
        %v1640 = vld [vmem:[%s252 + $0x28] sm:$0xf]
        %v1641 = vld [vmem:[%s252 + $0x2c] sm:$0xf]
        %v1642 = vld [vmem:[%s252 + $0x30] sm:$0x3]
        %s1643 = scalar_lea.vmem [#allocation3], 384
        %v1644 = vld [vmem:[%s1643] sm:$0xf]
        %v1645 = vld [vmem:[%s1643 + $0x4] sm:$0xf]
        %v1646 = vld [vmem:[%s1643 + $0x8] sm:$0xf]
        %v1647 = vld [vmem:[%s1643 + $0xc] sm:$0xf]
        %v1648 = vld [vmem:[%s1643 + $0x10] sm:$0xf]
        %v1649 = vld [vmem:[%s1643 + $0x14] sm:$0xf]
        %v1650 = vld [vmem:[%s1643 + $0x18] sm:$0xf]
        %v1651 = vld [vmem:[%s1643 + $0x1c] sm:$0xf]
        %v1652 = vld [vmem:[%s1643 + $0x20] sm:$0xf]
        %v1653 = vld [vmem:[%s1643 + $0x24] sm:$0xf]
        %v1654 = vld [vmem:[%s1643 + $0x28] sm:$0xf]
        %v1655 = vld [vmem:[%s1643 + $0x2c] sm:$0xf]
        %v1656 = vld [vmem:[%s1643 + $0x30] sm:$0xf]
        %v1657 = vld [vmem:[%s1643 + $0x34] sm:$0xf]
        %v1658 = vld [vmem:[%s1643 + $0x38] sm:$0xf]
        %v1659 = vld [vmem:[%s1643 + $0x3c] sm:$0xf]
        %v1671 = vunpack.c.l.b16 %v1632
        %v1672 = vunpack.c.l.b16 %v1633
        %v1673 = vunpack.c.l.b16 %v1634
        %v1674 = vunpack.c.l.b16 %v1635
        %v1675 = vunpack.c.l.b16 %v1636
        %v1676 = vunpack.c.l.b16 %v1637
        %v1677 = vunpack.c.l.b16 %v1638
        %v1678 = vunpack.c.l.b16 %v1639
        %v1679 = vunpack.c.l.b16 %v1640
        %v1680 = vunpack.c.l.b16 %v1641
        %v1681 = vunpack.c.l.b16 %v1642
        %v1682 = vpack.c.b16 %v1672, %v1671
        %v1683 = vpack.c.b16 %v1674, %v1673
        %v1684 = vpack.c.b16 %v1676, %v1675
        %v1685 = vpack.c.b16 %v1678, %v1677
        %v1686 = vpack.c.b16 %v1680, %v1679
        %v1687 = vpack.c.b16 %v1681, %v1681
        %v1688 = vrot.slane %v1682, 2
        %v1689 = vrot.slane %v1683, 2
        %v1690 = vsel %vm1484, %v1688, %v1689
        %v1691 = vrot.slane %v1684, 2
        %v1692 = vsel %vm1484, %v1689, %v1691
        %v1693 = vrot.slane %v1685, 2
        %v1694 = vsel %vm1484, %v1691, %v1693
        %v1695 = vrot.slane %v1686, 2
        %v1696 = vsel %vm1484, %v1693, %v1695
        %v1697 = vrot.slane %v1687, 2
        %v1698 = vsel %vm1484, %v1695, %v1697
        %v1720 = vunpack.c.l.b16 %v1644
        %v1721 = vunpack.c.l.b16 %v1645
        %v1722 = vunpack.c.l.b16 %v1646
        %v1723 = vunpack.c.l.b16 %v1647
        %v1724 = vunpack.c.l.b16 %v1648
        %v1725 = vunpack.c.l.b16 %v1649
        %v1726 = vunpack.c.l.b16 %v1650
        %v1727 = vunpack.c.l.b16 %v1651
        %v1728 = vunpack.c.l.b16 %v1652
        %v1729 = vunpack.c.l.b16 %v1653
        %v1730 = vunpack.c.l.b16 %v1654
        %v1731 = vunpack.c.l.b16 %v1655
        %v1732 = vunpack.c.l.b16 %v1656
        %v1733 = vunpack.c.l.b16 %v1657
        %v1734 = vunpack.c.l.b16 %v1658
        %v1735 = vunpack.c.l.b16 %v1659
        %v1736 = vpack.c.b16 %v1721, %v1720
        %v1737 = vpack.c.b16 %v1723, %v1722
        %v1738 = vpack.c.b16 %v1725, %v1724
        %v1739 = vpack.c.b16 %v1727, %v1726
        %v1740 = vpack.c.b16 %v1729, %v1728
        %v1741 = vpack.c.b16 %v1731, %v1730
        %v1742 = vpack.c.b16 %v1733, %v1732
        %v1743 = vpack.c.b16 %v1735, %v1734
        %1752 = vmatprep.subr.bf16.mxu0 0
        %1753 = vmatpush1.bf16.msra.mxu0 %v1736
        %1754 = vmatprep.subr.bf16.mxu0 0
        %1755 = vmatpush1.bf16.msra.mxu0 %v1737
        %1756 = vmatprep.subr.bf16.mxu0 0
        %1757 = vmatpush1.bf16.msra.mxu0 %v1738
        %1758 = vmatprep.subr.bf16.mxu0 0
        %1759 = vmatpush1.bf16.msra.mxu0 %v1739
        %1760 = vmatprep.subr.bf16.mxu0 0
        %1761 = vmatpush1.bf16.msra.mxu0 %v1740
        %1762 = vmatprep.subr.bf16.mxu0 0
        %1763 = vmatpush1.bf16.msra.mxu0 %v1741
        %1764 = vmatprep.subr.bf16.mxu0 0
        %1765 = vmatpush1.bf16.msra.mxu0 %v1742
        %1766 = vmatprep.subr.bf16.mxu0 0
        %1767 = vmatpush1.bf16.msra.mxu0 %v1743
        %1768 = vmatprep.subr.bf16.mxu0 0
        %1769 = vmatpush1.bf16.msra.mxu0 0
        %1770 = vmatprep.subr.bf16.mxu0 0
        %1771 = vmatpush1.bf16.msra.mxu0 0
        %1772 = vmatprep.subr.bf16.mxu0 0
        %1773 = vmatpush1.bf16.msra.mxu0 0
        %1774 = vmatprep.subr.bf16.mxu0 0
        %1775 = vmatpush1.bf16.msra.mxu0 0
        %1776 = vmatprep.subr.bf16.mxu0 0
        %1777 = vmatpush1.bf16.msra.mxu0 0
        %1778 = vmatprep.subr.bf16.mxu0 0
        %1779 = vmatpush1.bf16.msra.mxu0 0
        %1780 = vmatprep.subr.bf16.mxu0 0
        %1781 = vmatpush1.bf16.msra.mxu0 0
        %1782 = vmatprep.subr.bf16.mxu0 0
        %1783 = vmatpush1.bf16.msra.mxu0 0
        %1784 = vmatprep.mubr.bf16.mxu0 0
        %1785 = vmatmul.mubr.bf16.gmra.mrb[0].mxu0 %v1690
        %v1786 = vpop.f32.mrb[0].mxu0
        %v1787 = vadd.f32 0.0, %v1786
        %v1788 = vpop.f32.mrb[0].mxu0
        %v1789 = vpop.f32.mrb[0].mxu0
        %v1790 = vadd.f32 0.0, %v1789
        %v1791 = vpop.f32.mrb[0].mxu0
        %1792 = vmatprep.mubr.bf16.mxu0 0
        %1793 = vmatmul.mubr.bf16.gmra.mrb[0].mxu0 %v1692
        %v1794 = vpop.f32.mrb[0].mxu0
        %v1795 = vadd.f32 0.0, %v1794
        %v1796 = vpop.f32.mrb[0].mxu0
        %v1797 = vpop.f32.mrb[0].mxu0
        %v1798 = vadd.f32 0.0, %v1797
        %v1799 = vpop.f32.mrb[0].mxu0
        %1800 = vmatprep.mubr.bf16.mxu0 0
        %1801 = vmatmul.mubr.bf16.gmra.mrb[0].mxu0 %v1694
        %v1802 = vpop.f32.mrb[0].mxu0
        %v1803 = vadd.f32 0.0, %v1802
        %v1804 = vpop.f32.mrb[0].mxu0
        %v1805 = vpop.f32.mrb[0].mxu0
        %v1806 = vadd.f32 0.0, %v1805
        %v1807 = vpop.f32.mrb[0].mxu0
        %1808 = vmatprep.mubr.bf16.mxu0 0
        %1809 = vmatmul.mubr.bf16.gmra.mrb[0].mxu0 %v1696
        %v1810 = vpop.f32.mrb[0].mxu0
        %v1811 = vadd.f32 0.0, %v1810
        %v1812 = vpop.f32.mrb[0].mxu0
        %v1813 = vpop.f32.mrb[0].mxu0
        %v1814 = vadd.f32 0.0, %v1813
        %v1815 = vpop.f32.mrb[0].mxu0
        %1816 = vmatprep.mubr.bf16.mxu0 0
        %1817 = vmatmul.mubr.bf16.gmra.mrb[0].mxu0 %v1698
        %v1818 = vpop.f32.mrb[0].mxu0
        %v1819 = vadd.f32 0.0, %v1818
        %v1820 = vpop.f32.mrb[0].mxu0
        %v1821 = vpop.f32.mrb[0].mxu0
        %v1822 = vadd.f32 0.0, %v1821
        %v1823 = vpop.f32.mrb[0].mxu0
        %1824 = vdwg.mxu0
        %v1825 = vadd.f32 %v1622, %v1787
        %v1826 = vadd.f32 %v1623, %v1790
        %v1827 = vadd.f32 %v1624, %v1795
        %v1828 = vadd.f32 %v1625, %v1798
        %v1829 = vadd.f32 %v1626, %v1803
        %v1830 = vadd.f32 %v1627, %v1806
        %v1831 = vadd.f32 %v1628, %v1811
        %v1832 = vadd.f32 %v1629, %v1814
        %v1833 = vadd.f32 %v1630, %v1819
        %v1834 = vadd.f32 %v1631, %v1822
        %v1835 = vld [vmem:[%s252 + $0x30] sm:$0x7]
        %s1836 = scalar_lea.vmem [#allocation3], 448
        %v1837 = vld [vmem:[%s1836] sm:$0xf]
        %v1838 = vld [vmem:[%s1836 + $0x4] sm:$0xf]
        %v1839 = vld [vmem:[%s1836 + $0x8] sm:$0xf]
        %v1840 = vld [vmem:[%s1836 + $0xc] sm:$0xf]
        %v1841 = vld [vmem:[%s1836 + $0x10] sm:$0xf]
        %v1842 = vld [vmem:[%s1836 + $0x14] sm:$0xf]
        %v1843 = vld [vmem:[%s1836 + $0x18] sm:$0xf]
        %v1844 = vld [vmem:[%s1836 + $0x1c] sm:$0xf]
        %v1845 = vld [vmem:[%s1836 + $0x20] sm:$0xf]
        %v1846 = vld [vmem:[%s1836 + $0x24] sm:$0xf]
        %v1847 = vld [vmem:[%s1836 + $0x28] sm:$0xf]
        %v1848 = vld [vmem:[%s1836 + $0x2c] sm:$0xf]
        %v1849 = vld [vmem:[%s1836 + $0x30] sm:$0xf]
        %v1850 = vld [vmem:[%s1836 + $0x34] sm:$0xf]
        %v1851 = vld [vmem:[%s1836 + $0x38] sm:$0xf]
        %v1852 = vld [vmem:[%s1836 + $0x3c] sm:$0xf]
        %v1854 = vunpack.c.l.b16 %v1835
        %v1855 = vpack.c.b16 %v1854, %v1854
        %vm1856 = vsmask.f32 5376
        %v1858 = vshrl.u32 %v1682, 16
        %v1860 = vrot.slane %v1858, 2
        %v1861 = vshll.u32 %v1682, 16
        %v1863 = vrot.slane %v1861, 3
        %v1864 = vor.u32 %v1860, %v1863
        %v1866 = vshrl.u32 %v1683, 16
        %v1868 = vrot.slane %v1866, 2
        %v1869 = vshll.u32 %v1683, 16
        %v1871 = vrot.slane %v1869, 3
        %v1872 = vor.u32 %v1868, %v1871
        %v1873 = vsel %vm1856, %v1864, %v1872
        %v1875 = vshrl.u32 %v1684, 16
        %v1877 = vrot.slane %v1875, 2
        %v1878 = vshll.u32 %v1684, 16
        %v1880 = vrot.slane %v1878, 3
        %v1881 = vor.u32 %v1877, %v1880
        %v1882 = vsel %vm1856, %v1872, %v1881
        %v1884 = vshrl.u32 %v1685, 16
        %v1886 = vrot.slane %v1884, 2
        %v1887 = vshll.u32 %v1685, 16
        %v1889 = vrot.slane %v1887, 3
        %v1890 = vor.u32 %v1886, %v1889
        %v1891 = vsel %vm1856, %v1881, %v1890
        %v1893 = vshrl.u32 %v1686, 16
        %v1895 = vrot.slane %v1893, 2
        %v1896 = vshll.u32 %v1686, 16
        %v1898 = vrot.slane %v1896, 3
        %v1899 = vor.u32 %v1895, %v1898
        %v1900 = vsel %vm1856, %v1890, %v1899
        %v1902 = vshrl.u32 %v1855, 16
        %v1904 = vrot.slane %v1902, 2
        %v1905 = vshll.u32 %v1855, 16
        %v1907 = vrot.slane %v1905, 3
        %v1908 = vor.u32 %v1904, %v1907
        %v1909 = vsel %vm1856, %v1899, %v1908
        %v1931 = vunpack.c.l.b16 %v1837
        %v1932 = vunpack.c.l.b16 %v1838
        %v1933 = vunpack.c.l.b16 %v1839
        %v1934 = vunpack.c.l.b16 %v1840
        %v1935 = vunpack.c.l.b16 %v1841
        %v1936 = vunpack.c.l.b16 %v1842
        %v1937 = vunpack.c.l.b16 %v1843
        %v1938 = vunpack.c.l.b16 %v1844
        %v1939 = vunpack.c.l.b16 %v1845
        %v1940 = vunpack.c.l.b16 %v1846
        %v1941 = vunpack.c.l.b16 %v1847
        %v1942 = vunpack.c.l.b16 %v1848
        %v1943 = vunpack.c.l.b16 %v1849
        %v1944 = vunpack.c.l.b16 %v1850
        %v1945 = vunpack.c.l.b16 %v1851
        %v1946 = vunpack.c.l.b16 %v1852
        %v1947 = vpack.c.b16 %v1932, %v1931
        %v1948 = vpack.c.b16 %v1934, %v1933
        %v1949 = vpack.c.b16 %v1936, %v1935
        %v1950 = vpack.c.b16 %v1938, %v1937
        %v1951 = vpack.c.b16 %v1940, %v1939
        %v1952 = vpack.c.b16 %v1942, %v1941
        %v1953 = vpack.c.b16 %v1944, %v1943
        %v1954 = vpack.c.b16 %v1946, %v1945
        %1963 = vmatprep.subr.bf16.mxu0 0
        %1964 = vmatpush1.bf16.msra.mxu0 %v1947
        %1965 = vmatprep.subr.bf16.mxu0 0
        %1966 = vmatpush1.bf16.msra.mxu0 %v1948
        %1967 = vmatprep.subr.bf16.mxu0 0
        %1968 = vmatpush1.bf16.msra.mxu0 %v1949
        %1969 = vmatprep.subr.bf16.mxu0 0
        %1970 = vmatpush1.bf16.msra.mxu0 %v1950
        %1971 = vmatprep.subr.bf16.mxu0 0
        %1972 = vmatpush1.bf16.msra.mxu0 %v1951
        %1973 = vmatprep.subr.bf16.mxu0 0
        %1974 = vmatpush1.bf16.msra.mxu0 %v1952
        %1975 = vmatprep.subr.bf16.mxu0 0
        %1976 = vmatpush1.bf16.msra.mxu0 %v1953
        %1977 = vmatprep.subr.bf16.mxu0 0
        %1978 = vmatpush1.bf16.msra.mxu0 %v1954
        %1979 = vmatprep.subr.bf16.mxu0 0
        %1980 = vmatpush1.bf16.msra.mxu0 0
        %1981 = vmatprep.subr.bf16.mxu0 0
        %1982 = vmatpush1.bf16.msra.mxu0 0
        %1983 = vmatprep.subr.bf16.mxu0 0
        %1984 = vmatpush1.bf16.msra.mxu0 0
        %1985 = vmatprep.subr.bf16.mxu0 0
        %1986 = vmatpush1.bf16.msra.mxu0 0
        %1987 = vmatprep.subr.bf16.mxu0 0
        %1988 = vmatpush1.bf16.msra.mxu0 0
        %1989 = vmatprep.subr.bf16.mxu0 0
        %1990 = vmatpush1.bf16.msra.mxu0 0
        %1991 = vmatprep.subr.bf16.mxu0 0
        %1992 = vmatpush1.bf16.msra.mxu0 0
        %1993 = vmatprep.subr.bf16.mxu0 0
        %1994 = vmatpush1.bf16.msra.mxu0 0
        %1995 = vmatprep.mubr.bf16.mxu0 0
        %1996 = vmatmul.mubr.bf16.gmra.mrb[0].mxu0 %v1873
        %v1997 = vpop.f32.mrb[0].mxu0
        %v1998 = vadd.f32 0.0, %v1997
        %v1999 = vpop.f32.mrb[0].mxu0
        %v2000 = vpop.f32.mrb[0].mxu0
        %v2001 = vadd.f32 0.0, %v2000
        %v2002 = vpop.f32.mrb[0].mxu0
        %2003 = vmatprep.mubr.bf16.mxu0 0
        %2004 = vmatmul.mubr.bf16.gmra.mrb[0].mxu0 %v1882
        %v2005 = vpop.f32.mrb[0].mxu0
        %v2006 = vadd.f32 0.0, %v2005
        %v2007 = vpop.f32.mrb[0].mxu0
        %v2008 = vpop.f32.mrb[0].mxu0
        %v2009 = vadd.f32 0.0, %v2008
        %v2010 = vpop.f32.mrb[0].mxu0
        %2011 = vmatprep.mubr.bf16.mxu0 0
        %2012 = vmatmul.mubr.bf16.gmra.mrb[0].mxu0 %v1891
        %v2013 = vpop.f32.mrb[0].mxu0
        %v2014 = vadd.f32 0.0, %v2013
        %v2015 = vpop.f32.mrb[0].mxu0
        %v2016 = vpop.f32.mrb[0].mxu0
        %v2017 = vadd.f32 0.0, %v2016
        %v2018 = vpop.f32.mrb[0].mxu0
        %2019 = vmatprep.mubr.bf16.mxu0 0
        %2020 = vmatmul.mubr.bf16.gmra.mrb[0].mxu0 %v1900
        %v2021 = vpop.f32.mrb[0].mxu0
        %v2022 = vadd.f32 0.0, %v2021
        %v2023 = vpop.f32.mrb[0].mxu0
        %v2024 = vpop.f32.mrb[0].mxu0
        %v2025 = vadd.f32 0.0, %v2024
        %v2026 = vpop.f32.mrb[0].mxu0
        %2027 = vmatprep.mubr.bf16.mxu0 0
        %2028 = vmatmul.mubr.bf16.gmra.mrb[0].mxu0 %v1909
        %v2029 = vpop.f32.mrb[0].mxu0
        %v2030 = vadd.f32 0.0, %v2029
        %v2031 = vpop.f32.mrb[0].mxu0
        %v2032 = vpop.f32.mrb[0].mxu0
        %v2033 = vadd.f32 0.0, %v2032
        %v2034 = vpop.f32.mrb[0].mxu0
        %2035 = vdwg.mxu0
        %v2036 = vadd.f32 %v1825, %v1998
        %v2037 = vadd.f32 %v1826, %v2001
        %v2038 = vadd.f32 %v1827, %v2006
        %v2039 = vadd.f32 %v1828, %v2009
        %v2040 = vadd.f32 %v1829, %v2014
        %v2041 = vadd.f32 %v1830, %v2017
        %v2042 = vadd.f32 %v1831, %v2022
        %v2043 = vadd.f32 %v1832, %v2025
        %v2044 = vadd.f32 %v1833, %v2030
        %v2045 = vadd.f32 %v1834, %v2033
        %v2046 = vld [vmem:[%s252 + $0x8] sm:$0x8]
        %s2047 = scalar_lea.vmem [#allocation3], 512
        %v2048 = vld [vmem:[%s2047] sm:$0xf]
        %v2049 = vld [vmem:[%s2047 + $0x4] sm:$0xf]
        %v2050 = vld [vmem:[%s2047 + $0x8] sm:$0xf]
        %v2051 = vld [vmem:[%s2047 + $0xc] sm:$0xf]
        %v2052 = vld [vmem:[%s2047 + $0x10] sm:$0xf]
        %v2053 = vld [vmem:[%s2047 + $0x14] sm:$0xf]
        %v2054 = vld [vmem:[%s2047 + $0x18] sm:$0xf]
        %v2055 = vld [vmem:[%s2047 + $0x1c] sm:$0xf]
        %v2056 = vld [vmem:[%s2047 + $0x20] sm:$0xf]
        %v2057 = vld [vmem:[%s2047 + $0x24] sm:$0xf]
        %v2058 = vld [vmem:[%s2047 + $0x28] sm:$0xf]
        %v2059 = vld [vmem:[%s2047 + $0x2c] sm:$0xf]
        %v2060 = vld [vmem:[%s2047 + $0x30] sm:$0xf]
        %v2061 = vld [vmem:[%s2047 + $0x34] sm:$0xf]
        %v2062 = vld [vmem:[%s2047 + $0x38] sm:$0xf]
        %v2063 = vld [vmem:[%s2047 + $0x3c] sm:$0xf]
        %v2065 = vunpack.c.l.b16 %v2046
        %v2066 = vpack.c.b16 %v1672, %v2065
        %vm2067 = vcmask 1044480
        %v2068 = vrot.slane %v2066, 3
        %v2069 = vrot.slane %v1683, 3
        %v2070 = vsel %vm2067, %v2068, %v2069
        %v2071 = vrot.slane %v1684, 3
        %v2072 = vsel %vm2067, %v2069, %v2071
        %v2073 = vrot.slane %v1685, 3
        %v2074 = vsel %vm2067, %v2071, %v2073
        %v2075 = vrot.slane %v1686, 3
        %v2076 = vsel %vm2067, %v2073, %v2075
        %v2077 = vrot.slane %v1855, 3
        %v2078 = vsel %vm2067, %v2075, %v2077
        %v2100 = vunpack.c.l.b16 %v2048
        %v2101 = vunpack.c.l.b16 %v2049
        %v2102 = vunpack.c.l.b16 %v2050
        %v2103 = vunpack.c.l.b16 %v2051
        %v2104 = vunpack.c.l.b16 %v2052
        %v2105 = vunpack.c.l.b16 %v2053
        %v2106 = vunpack.c.l.b16 %v2054
        %v2107 = vunpack.c.l.b16 %v2055
        %v2108 = vunpack.c.l.b16 %v2056
        %v2109 = vunpack.c.l.b16 %v2057
        %v2110 = vunpack.c.l.b16 %v2058
        %v2111 = vunpack.c.l.b16 %v2059
        %v2112 = vunpack.c.l.b16 %v2060
        %v2113 = vunpack.c.l.b16 %v2061
        %v2114 = vunpack.c.l.b16 %v2062
        %v2115 = vunpack.c.l.b16 %v2063
        %v2116 = vpack.c.b16 %v2101, %v2100
        %v2117 = vpack.c.b16 %v2103, %v2102
        %v2118 = vpack.c.b16 %v2105, %v2104
        %v2119 = vpack.c.b16 %v2107, %v2106
        %v2120 = vpack.c.b16 %v2109, %v2108
        %v2121 = vpack.c.b16 %v2111, %v2110
        %v2122 = vpack.c.b16 %v2113, %v2112
        %v2123 = vpack.c.b16 %v2115, %v2114
        %2132 = vmatprep.subr.bf16.mxu0 0
        %2133 = vmatpush1.bf16.msra.mxu0 %v2116
        %2134 = vmatprep.subr.bf16.mxu0 0
        %2135 = vmatpush1.bf16.msra.mxu0 %v2117
        %2136 = vmatprep.subr.bf16.mxu0 0
        %2137 = vmatpush1.bf16.msra.mxu0 %v2118
        %2138 = vmatprep.subr.bf16.mxu0 0
        %2139 = vmatpush1.bf16.msra.mxu0 %v2119
        %2140 = vmatprep.subr.bf16.mxu0 0
        %2141 = vmatpush1.bf16.msra.mxu0 %v2120
        %2142 = vmatprep.subr.bf16.mxu0 0
        %2143 = vmatpush1.bf16.msra.mxu0 %v2121
        %2144 = vmatprep.subr.bf16.mxu0 0
        %2145 = vmatpush1.bf16.msra.mxu0 %v2122
        %2146 = vmatprep.subr.bf16.mxu0 0
        %2147 = vmatpush1.bf16.msra.mxu0 %v2123
        %2148 = vmatprep.subr.bf16.mxu0 0
        %2149 = vmatpush1.bf16.msra.mxu0 0
        %2150 = vmatprep.subr.bf16.mxu0 0
        %2151 = vmatpush1.bf16.msra.mxu0 0
        %2152 = vmatprep.subr.bf16.mxu0 0
        %2153 = vmatpush1.bf16.msra.mxu0 0
        %2154 = vmatprep.subr.bf16.mxu0 0
        %2155 = vmatpush1.bf16.msra.mxu0 0
        %2156 = vmatprep.subr.bf16.mxu0 0
        %2157 = vmatpush1.bf16.msra.mxu0 0
        %2158 = vmatprep.subr.bf16.mxu0 0
        %2159 = vmatpush1.bf16.msra.mxu0 0
        %2160 = vmatprep.subr.bf16.mxu0 0
        %2161 = vmatpush1.bf16.msra.mxu0 0
        %2162 = vmatprep.subr.bf16.mxu0 0
        %2163 = vmatpush1.bf16.msra.mxu0 0
        %2164 = vmatprep.mubr.bf16.mxu0 0
        %2165 = vmatmul.mubr.bf16.gmra.mrb[0].mxu0 %v2070
        %v2166 = vpop.f32.mrb[0].mxu0
        %v2167 = vadd.f32 0.0, %v2166
        %v2168 = vpop.f32.mrb[0].mxu0
        %v2169 = vpop.f32.mrb[0].mxu0
        %v2170 = vadd.f32 0.0, %v2169
        %v2171 = vpop.f32.mrb[0].mxu0
        %2172 = vmatprep.mubr.bf16.mxu0 0
        %2173 = vmatmul.mubr.bf16.gmra.mrb[0].mxu0 %v2072
        %v2174 = vpop.f32.mrb[0].mxu0
        %v2175 = vadd.f32 0.0, %v2174
        %v2176 = vpop.f32.mrb[0].mxu0
        %v2177 = vpop.f32.mrb[0].mxu0
        %v2178 = vadd.f32 0.0, %v2177
        %v2179 = vpop.f32.mrb[0].mxu0
        %2180 = vmatprep.mubr.bf16.mxu0 0
        %2181 = vmatmul.mubr.bf16.gmra.mrb[0].mxu0 %v2074
        %v2182 = vpop.f32.mrb[0].mxu0
        %v2183 = vadd.f32 0.0, %v2182
        %v2184 = vpop.f32.mrb[0].mxu0
        %v2185 = vpop.f32.mrb[0].mxu0
        %v2186 = vadd.f32 0.0, %v2185
        %v2187 = vpop.f32.mrb[0].mxu0
        %2188 = vmatprep.mubr.bf16.mxu0 0
        %2189 = vmatmul.mubr.bf16.gmra.mrb[0].mxu0 %v2076
        %v2190 = vpop.f32.mrb[0].mxu0
        %v2191 = vadd.f32 0.0, %v2190
        %v2192 = vpop.f32.mrb[0].mxu0
        %v2193 = vpop.f32.mrb[0].mxu0
        %v2194 = vadd.f32 0.0, %v2193
        %v2195 = vpop.f32.mrb[0].mxu0
        %2196 = vmatprep.mubr.bf16.mxu0 0
        %2197 = vmatmul.mubr.bf16.gmra.mrb[0].mxu0 %v2078
        %v2198 = vpop.f32.mrb[0].mxu0
        %v2199 = vadd.f32 0.0, %v2198
        %v2200 = vpop.f32.mrb[0].mxu0
        %v2201 = vpop.f32.mrb[0].mxu0
        %v2202 = vadd.f32 0.0, %v2201
        %v2203 = vpop.f32.mrb[0].mxu0
        %2204 = vdwg.mxu0
        %v2205 = vadd.f32 %v2036, %v2167
        %v2206 = vadd.f32 %v2037, %v2170
        %v2207 = vadd.f32 %v2038, %v2175
        %v2208 = vadd.f32 %v2039, %v2178
        %v2209 = vadd.f32 %v2040, %v2183
        %v2210 = vadd.f32 %v2041, %v2186
        %v2211 = vadd.f32 %v2042, %v2191
        %v2212 = vadd.f32 %v2043, %v2194
        %v2213 = vadd.f32 %v2044, %v2199
        %v2214 = vadd.f32 %v2045, %v2202
        %v2215 = vmax.f32 %v2205, 0.0
        %v2216 = vmax.f32 %v2206, 0.0
        %v2217 = vmax.f32 %v2207, 0.0
        %v2218 = vmax.f32 %v2208, 0.0
        %v2219 = vmax.f32 %v2209, 0.0
        %v2220 = vmax.f32 %v2210, 0.0
        %v2221 = vmax.f32 %v2211, 0.0
        %v2222 = vmax.f32 %v2212, 0.0
        %v2223 = vmax.f32 %v2213, 0.0
        %v2224 = vmax.f32 %v2214, 0.0
        %v2225 = vsel %vm439, 1, 0
        %v2226 = vsel %vm440, 1, 0
        %v2227 = vsel %vm441, 1, 0
        %v2228 = vsel %vm442, 1, 0
        %v2229 = vsel %vm443, 1, 0
        %v2230 = vsel %vm444, 1, 0
        %v2231 = vsel %vm445, 1, 0
        %v2232 = vsel %vm446, 1, 0
        %v2233 = vsel %vm447, 1, 0
        %v2234 = vsel %vm448, 1, 0
        %vm2235 = vcmp.eq.s32.totalorder %v2225, 1
        %vm2236 = vcmp.eq.s32.totalorder %v2226, 1
        %vm2237 = vcmp.eq.s32.totalorder %v2227, 1
        %vm2238 = vcmp.eq.s32.totalorder %v2228, 1
        %vm2239 = vcmp.eq.s32.totalorder %v2229, 1
        %vm2240 = vcmp.eq.s32.totalorder %v2230, 1
        %vm2241 = vcmp.eq.s32.totalorder %v2231, 1
        %vm2242 = vcmp.eq.s32.totalorder %v2232, 1
        %vm2243 = vcmp.eq.s32.totalorder %v2233, 1
        %vm2244 = vcmp.eq.s32.totalorder %v2234, 1
        %v2245 = vsel %vm2235, %v2215, 0.0
        %v2246 = vsel %vm2236, %v2216, 0.0
        %v2247 = vsel %vm2237, %v2217, 0.0
        %v2248 = vsel %vm2238, %v2218, 0.0
        %v2249 = vsel %vm2239, %v2219, 0.0
        %v2250 = vsel %vm2240, %v2220, 0.0
        %v2251 = vsel %vm2241, %v2221, 0.0
        %v2252 = vsel %vm2242, %v2222, 0.0
        %v2253 = vsel %vm2243, %v2223, 0.0
        %v2254 = vsel %vm2244, %v2224, 0.0
        %v2255 = vpack.c.bf16 %v2246, %v2245
        %v2256 = vpack.c.bf16 %v2248, %v2247
        %v2257 = vpack.c.bf16 %v2250, %v2249
        %v2258 = vpack.c.bf16 %v2252, %v2251
        %v2259 = vpack.c.bf16 %v2254, %v2253
        %v2265 = vunpack.c.l.b16 %v2255
        %v2266 = vunpack.c.h.b16 %v2255
        %v2267 = vunpack.c.l.b16 %v2256
        %v2268 = vunpack.c.h.b16 %v2256
        %v2269 = vunpack.c.l.b16 %v2257
        %v2270 = vunpack.c.h.b16 %v2257
        %v2271 = vunpack.c.l.b16 %v2258
        %v2272 = vunpack.c.h.b16 %v2258
        %v2273 = vunpack.c.l.b16 %v2259
        %v2274 = vunpack.c.h.b16 %v2259
        %v2275 = vpack.c.b16 %v2265, %v2265
        %v2276 = vpack.c.b16 %v2266, %v2266
        %v2277 = vpack.c.b16 %v2267, %v2267
        %v2278 = vpack.c.b16 %v2268, %v2268
        %v2279 = vpack.c.b16 %v2269, %v2269
        %v2280 = vpack.c.b16 %v2270, %v2270
        %v2281 = vpack.c.b16 %v2271, %v2271
        %v2282 = vpack.c.b16 %v2272, %v2272
        %v2283 = vpack.c.b16 %v2273, %v2273
        %v2284 = vpack.c.b16 %v2274, %v2274
        %vm2285 = vsmask.f32 5392
        %vm2286 = vmor %vm256, %vm2285
        %v2288 = vshrl.u32 %v2275, 16
        %v2290 = vrot.slane %v2288, 6
        %v2291 = vshll.u32 %v2275, 16
        %v2293 = vrot.slane %v2291, 7
        %v2294 = vor.u32 %v2290, %v2293
        %v2295 = vrot.slane %v2294, 4
        %v2297 = vshrl.u32 %v2276, 16
        %v2299 = vrot.slane %v2297, 6
        %v2300 = vshll.u32 %v2276, 16
        %v2302 = vrot.slane %v2300, 7
        %v2303 = vor.u32 %v2299, %v2302
        %v2304 = vsel %vm2286, %v2295, %v2303
        %v2305 = vrot.slane %v2303, 4
        %v2307 = vshrl.u32 %v2277, 16
        %v2309 = vrot.slane %v2307, 6
        %v2310 = vshll.u32 %v2277, 16
        %v2312 = vrot.slane %v2310, 7
        %v2313 = vor.u32 %v2309, %v2312
        %v2314 = vsel %vm2286, %v2305, %v2313
        %v2315 = vrot.slane %v2313, 4
        %v2317 = vshrl.u32 %v2278, 16
        %v2319 = vrot.slane %v2317, 6
        %v2320 = vshll.u32 %v2278, 16
        %v2322 = vrot.slane %v2320, 7
        %v2323 = vor.u32 %v2319, %v2322
        %v2324 = vsel %vm2286, %v2315, %v2323
        %v2325 = vrot.slane %v2323, 4
        %v2327 = vshrl.u32 %v2279, 16
        %v2329 = vrot.slane %v2327, 6
        %v2330 = vshll.u32 %v2279, 16
        %v2332 = vrot.slane %v2330, 7
        %v2333 = vor.u32 %v2329, %v2332
        %v2334 = vsel %vm2286, %v2325, %v2333
        %v2335 = vrot.slane %v2333, 4
        %v2337 = vshrl.u32 %v2280, 16
        %v2339 = vrot.slane %v2337, 6
        %v2340 = vshll.u32 %v2280, 16
        %v2342 = vrot.slane %v2340, 7
        %v2343 = vor.u32 %v2339, %v2342
        %v2344 = vsel %vm2286, %v2335, %v2343
        %v2345 = vrot.slane %v2343, 4
        %v2347 = vshrl.u32 %v2281, 16
        %v2349 = vrot.slane %v2347, 6
        %v2350 = vshll.u32 %v2281, 16
        %v2352 = vrot.slane %v2350, 7
        %v2353 = vor.u32 %v2349, %v2352
        %v2354 = vsel %vm2286, %v2345, %v2353
        %v2355 = vrot.slane %v2353, 4
        %v2357 = vshrl.u32 %v2282, 16
        %v2359 = vrot.slane %v2357, 6
        %v2360 = vshll.u32 %v2282, 16
        %v2362 = vrot.slane %v2360, 7
        %v2363 = vor.u32 %v2359, %v2362
        %v2364 = vsel %vm2286, %v2355, %v2363
        %v2365 = vrot.slane %v2363, 4
        %v2367 = vshrl.u32 %v2283, 16
        %v2369 = vrot.slane %v2367, 6
        %v2370 = vshll.u32 %v2283, 16
        %v2372 = vrot.slane %v2370, 7
        %v2373 = vor.u32 %v2369, %v2372
        %v2374 = vsel %vm2286, %v2365, %v2373
        %v2375 = vrot.slane %v2373, 4
        %v2377 = vshrl.u32 %v2284, 16
        %v2379 = vrot.slane %v2377, 6
        %v2380 = vshll.u32 %v2284, 16
        %v2382 = vrot.slane %v2380, 7
        %v2383 = vor.u32 %v2379, %v2382
        %v2384 = vsel %vm2286, %v2375, %v2383
        %v2385 = vrot.slane %v2383, 4
        %v2397 = vld [vmem:[#allocation2 + $0x4] sm:$0xe]
        %v2398 = vsel %vm263, %v2294, %v2397
        %2399 = vst [vmem:[#allocation2 + $0x4] sm:$0xe] %v2398
        %2400 = vst [vmem:[#allocation2 + $0x8] sm:$0xf] %v2304
        %2401 = vst [vmem:[#allocation2 + $0xc] sm:$0xf] %v2314
        %2402 = vst [vmem:[#allocation2 + $0x10] sm:$0xf] %v2324
        %2403 = vst [vmem:[#allocation2 + $0x14] sm:$0xf] %v2334
        %2404 = vst [vmem:[#allocation2 + $0x18] sm:$0xf] %v2344
        %2405 = vst [vmem:[#allocation2 + $0x1c] sm:$0xf] %v2354
        %2406 = vst [vmem:[#allocation2 + $0x20] sm:$0xf] %v2364
        %2407 = vst [vmem:[#allocation2 + $0x24] sm:$0xf] %v2374
        %2408 = vst [vmem:[#allocation2 + $0x28] sm:$0xf] %v2384
        %v2409 = vld [vmem:[#allocation2 + $0x2c] sm:$0x3]
        %v2410 = vsel %vm257, %v2385, %v2409
        %2411 = vst [vmem:[#allocation2 + $0x2c] sm:$0x3] %v2410
        %v2412 = vld [vmem:[%s4] sm:$0x1]
        %v2414 = vlaneseq
        %v2415 = vshrl.u32 %v2414, 7
        %v2416 = vsub.s32 0, %v2415
        %v2417 = vrot.slane %v2412, %v2416
        %v2419 = vld [vmem:[#allocation2] sm:$0xf]
        %v2420 = vld [vmem:[#allocation2 + $0x4] sm:$0xf]
        %v2421 = vld [vmem:[#allocation2 + $0x8] sm:$0xf]
        %v2422 = vld [vmem:[#allocation2 + $0xc] sm:$0xf]
        %v2423 = vld [vmem:[#allocation2 + $0x10] sm:$0xf]
        %v2424 = vld [vmem:[#allocation2 + $0x14] sm:$0xf]
        %v2425 = vld [vmem:[#allocation2 + $0x18] sm:$0xf]
        %v2426 = vld [vmem:[#allocation2 + $0x1c] sm:$0xf]
        %v2427 = vld [vmem:[#allocation2 + $0x20] sm:$0xf]
        %v2428 = vld [vmem:[#allocation2 + $0x24] sm:$0xf]
        %v2429 = vld [vmem:[#allocation6] sm:$0xf]
        %v2430 = vld [vmem:[#allocation6 + $0x4] sm:$0xf]
        %v2431 = vld [vmem:[#allocation6 + $0x8] sm:$0xf]
        %v2432 = vld [vmem:[#allocation6 + $0xc] sm:$0xf]
        %v2433 = vld [vmem:[#allocation6 + $0x10] sm:$0xf]
        %v2434 = vld [vmem:[#allocation6 + $0x14] sm:$0xf]
        %v2435 = vld [vmem:[#allocation6 + $0x18] sm:$0xf]
        %v2436 = vld [vmem:[#allocation6 + $0x1c] sm:$0xf]
        %v2437 = vld [vmem:[#allocation6 + $0x20] sm:$0xf]
        %v2438 = vld [vmem:[#allocation6 + $0x24] sm:$0xf]
        %v2439 = vld [vmem:[#allocation6 + $0x28] sm:$0xf]
        %v2440 = vld [vmem:[#allocation6 + $0x2c] sm:$0xf]
        %v2441 = vld [vmem:[#allocation6 + $0x30] sm:$0xf]
        %v2442 = vld [vmem:[#allocation6 + $0x34] sm:$0xf]
        %v2443 = vld [vmem:[#allocation6 + $0x38] sm:$0xf]
        %v2444 = vld [vmem:[#allocation6 + $0x3c] sm:$0xf]
        %v2455 = vunpack.c.l.b16 %v2419
        %v2456 = vunpack.c.l.b16 %v2420
        %v2457 = vunpack.c.l.b16 %v2421
        %v2458 = vunpack.c.l.b16 %v2422
        %v2459 = vunpack.c.l.b16 %v2423
        %v2460 = vunpack.c.l.b16 %v2424
        %v2461 = vunpack.c.l.b16 %v2425
        %v2462 = vunpack.c.l.b16 %v2426
        %v2463 = vunpack.c.l.b16 %v2427
        %v2464 = vunpack.c.l.b16 %v2428
        %v2465 = vpack.c.b16 %v2456, %v2455
        %v2466 = vpack.c.b16 %v2458, %v2457
        %v2467 = vpack.c.b16 %v2460, %v2459
        %v2468 = vpack.c.b16 %v2462, %v2461
        %v2469 = vpack.c.b16 %v2464, %v2463
        %v2491 = vunpack.c.l.b16 %v2429
        %v2492 = vunpack.c.l.b16 %v2430
        %v2493 = vunpack.c.l.b16 %v2431
        %v2494 = vunpack.c.l.b16 %v2432
        %v2495 = vunpack.c.l.b16 %v2433
        %v2496 = vunpack.c.l.b16 %v2434
        %v2497 = vunpack.c.l.b16 %v2435
        %v2498 = vunpack.c.l.b16 %v2436
        %v2499 = vunpack.c.l.b16 %v2437
        %v2500 = vunpack.c.l.b16 %v2438
        %v2501 = vunpack.c.l.b16 %v2439
        %v2502 = vunpack.c.l.b16 %v2440
        %v2503 = vunpack.c.l.b16 %v2441
        %v2504 = vunpack.c.l.b16 %v2442
        %v2505 = vunpack.c.l.b16 %v2443
        %v2506 = vunpack.c.l.b16 %v2444
        %v2507 = vpack.c.b16 %v2492, %v2491
        %v2508 = vpack.c.b16 %v2494, %v2493
        %v2509 = vpack.c.b16 %v2496, %v2495
        %v2510 = vpack.c.b16 %v2498, %v2497
        %v2511 = vpack.c.b16 %v2500, %v2499
        %v2512 = vpack.c.b16 %v2502, %v2501
        %v2513 = vpack.c.b16 %v2504, %v2503
        %v2514 = vpack.c.b16 %v2506, %v2505
        %2523 = vmatprep.subr.bf16.mxu0 0
        %2524 = vmatpush1.bf16.msra.mxu0 %v2507
        %2525 = vmatprep.subr.bf16.mxu0 0
        %2526 = vmatpush1.bf16.msra.mxu0 %v2508
        %2527 = vmatprep.subr.bf16.mxu0 0
        %2528 = vmatpush1.bf16.msra.mxu0 %v2509
        %2529 = vmatprep.subr.bf16.mxu0 0
        %2530 = vmatpush1.bf16.msra.mxu0 %v2510
        %2531 = vmatprep.subr.bf16.mxu0 0
        %2532 = vmatpush1.bf16.msra.mxu0 %v2511
        %2533 = vmatprep.subr.bf16.mxu0 0
        %2534 = vmatpush1.bf16.msra.mxu0 %v2512
        %2535 = vmatprep.subr.bf16.mxu0 0
        %2536 = vmatpush1.bf16.msra.mxu0 %v2513
        %2537 = vmatprep.subr.bf16.mxu0 0
        %2538 = vmatpush1.bf16.msra.mxu0 %v2514
        %2539 = vmatprep.subr.bf16.mxu0 0
        %2540 = vmatpush1.bf16.msra.mxu0 0
        %2541 = vmatprep.subr.bf16.mxu0 0
        %2542 = vmatpush1.bf16.msra.mxu0 0
        %2543 = vmatprep.subr.bf16.mxu0 0
        %2544 = vmatpush1.bf16.msra.mxu0 0
        %2545 = vmatprep.subr.bf16.mxu0 0
        %2546 = vmatpush1.bf16.msra.mxu0 0
        %2547 = vmatprep.subr.bf16.mxu0 0
        %2548 = vmatpush1.bf16.msra.mxu0 0
        %2549 = vmatprep.subr.bf16.mxu0 0
        %2550 = vmatpush1.bf16.msra.mxu0 0
        %2551 = vmatprep.subr.bf16.mxu0 0
        %2552 = vmatpush1.bf16.msra.mxu0 0
        %2553 = vmatprep.subr.bf16.mxu0 0
        %2554 = vmatpush1.bf16.msra.mxu0 0
        %2555 = vmatprep.mubr.bf16.mxu0 0
        %2556 = vmatmul.mubr.bf16.gmra.mrb[0].mxu0 %v2465
        %v2557 = vpop.f32.mrb[0].mxu0
        %v2558 = vadd.f32 0.0, %v2557
        %v2559 = vpop.f32.mrb[0].mxu0
        %v2560 = vpop.f32.mrb[0].mxu0
        %v2561 = vadd.f32 0.0, %v2560
        %v2562 = vpop.f32.mrb[0].mxu0
        %2563 = vmatprep.mubr.bf16.mxu0 0
        %2564 = vmatmul.mubr.bf16.gmra.mrb[0].mxu0 %v2466
        %v2565 = vpop.f32.mrb[0].mxu0
        %v2566 = vadd.f32 0.0, %v2565
        %v2567 = vpop.f32.mrb[0].mxu0
        %v2568 = vpop.f32.mrb[0].mxu0
        %v2569 = vadd.f32 0.0, %v2568
        %v2570 = vpop.f32.mrb[0].mxu0
        %2571 = vmatprep.mubr.bf16.mxu0 0
        %2572 = vmatmul.mubr.bf16.gmra.mrb[0].mxu0 %v2467
        %v2573 = vpop.f32.mrb[0].mxu0
        %v2574 = vadd.f32 0.0, %v2573
        %v2575 = vpop.f32.mrb[0].mxu0
        %v2576 = vpop.f32.mrb[0].mxu0
        %v2577 = vadd.f32 0.0, %v2576
        %v2578 = vpop.f32.mrb[0].mxu0
        %2579 = vmatprep.mubr.bf16.mxu0 0
        %2580 = vmatmul.mubr.bf16.gmra.mrb[0].mxu0 %v2468
        %v2581 = vpop.f32.mrb[0].mxu0
        %v2582 = vadd.f32 0.0, %v2581
        %v2583 = vpop.f32.mrb[0].mxu0
        %v2584 = vpop.f32.mrb[0].mxu0
        %v2585 = vadd.f32 0.0, %v2584
        %v2586 = vpop.f32.mrb[0].mxu0
        %2587 = vmatprep.mubr.bf16.mxu0 0
        %2588 = vmatmul.mubr.bf16.gmra.mrb[0].mxu0 %v2469
        %v2589 = vpop.f32.mrb[0].mxu0
        %v2590 = vadd.f32 0.0, %v2589
        %v2591 = vpop.f32.mrb[0].mxu0
        %v2592 = vpop.f32.mrb[0].mxu0
        %v2593 = vadd.f32 0.0, %v2592
        %v2594 = vpop.f32.mrb[0].mxu0
        %2595 = vdwg.mxu0
        %v2596 = vadd.f32 %v2417, %v2558
        %v2597 = vadd.f32 %v2417, %v2561
        %v2598 = vadd.f32 %v2417, %v2566
        %v2599 = vadd.f32 %v2417, %v2569
        %v2600 = vadd.f32 %v2417, %v2574
        %v2601 = vadd.f32 %v2417, %v2577
        %v2602 = vadd.f32 %v2417, %v2582
        %v2603 = vadd.f32 %v2417, %v2585
        %v2604 = vadd.f32 %v2417, %v2590
        %v2605 = vadd.f32 %v2417, %v2593
        %v2606 = vld [vmem:[#allocation2] sm:$0xf]
        %v2607 = vld [vmem:[#allocation2 + $0x4] sm:$0xf]
        %v2608 = vld [vmem:[#allocation2 + $0x8] sm:$0xf]
        %v2609 = vld [vmem:[#allocation2 + $0xc] sm:$0xf]
        %v2610 = vld [vmem:[#allocation2 + $0x10] sm:$0xf]
        %v2611 = vld [vmem:[#allocation2 + $0x14] sm:$0xf]
        %v2612 = vld [vmem:[#allocation2 + $0x18] sm:$0xf]
        %v2613 = vld [vmem:[#allocation2 + $0x1c] sm:$0xf]
        %v2614 = vld [vmem:[#allocation2 + $0x20] sm:$0xf]
        %v2615 = vld [vmem:[#allocation2 + $0x24] sm:$0xf]
        %v2616 = vld [vmem:[#allocation2 + $0x28] sm:$0x1]
        %s2617 = scalar_lea.vmem [#allocation6], 64
        %v2618 = vld [vmem:[%s2617] sm:$0xf]
        %v2619 = vld [vmem:[%s2617 + $0x4] sm:$0xf]
        %v2620 = vld [vmem:[%s2617 + $0x8] sm:$0xf]
        %v2621 = vld [vmem:[%s2617 + $0xc] sm:$0xf]
        %v2622 = vld [vmem:[%s2617 + $0x10] sm:$0xf]
        %v2623 = vld [vmem:[%s2617 + $0x14] sm:$0xf]
        %v2624 = vld [vmem:[%s2617 + $0x18] sm:$0xf]
        %v2625 = vld [vmem:[%s2617 + $0x1c] sm:$0xf]
        %v2626 = vld [vmem:[%s2617 + $0x20] sm:$0xf]
        %v2627 = vld [vmem:[%s2617 + $0x24] sm:$0xf]
        %v2628 = vld [vmem:[%s2617 + $0x28] sm:$0xf]
        %v2629 = vld [vmem:[%s2617 + $0x2c] sm:$0xf]
        %v2630 = vld [vmem:[%s2617 + $0x30] sm:$0xf]
        %v2631 = vld [vmem:[%s2617 + $0x34] sm:$0xf]
        %v2632 = vld [vmem:[%s2617 + $0x38] sm:$0xf]
        %v2633 = vld [vmem:[%s2617 + $0x3c] sm:$0xf]
        %v2645 = vunpack.c.l.b16 %v2606
        %v2646 = vunpack.c.l.b16 %v2607
        %v2647 = vunpack.c.l.b16 %v2608
        %v2648 = vunpack.c.l.b16 %v2609
        %v2649 = vunpack.c.l.b16 %v2610
        %v2650 = vunpack.c.l.b16 %v2611
        %v2651 = vunpack.c.l.b16 %v2612
        %v2652 = vunpack.c.l.b16 %v2613
        %v2653 = vunpack.c.l.b16 %v2614
        %v2654 = vunpack.c.l.b16 %v2615
        %v2655 = vunpack.c.l.b16 %v2616
        %v2656 = vpack.c.b16 %v2646, %v2645
        %v2657 = vpack.c.b16 %v2648, %v2647
        %v2658 = vpack.c.b16 %v2650, %v2649
        %v2659 = vpack.c.b16 %v2652, %v2651
        %v2660 = vpack.c.b16 %v2654, %v2653
        %v2661 = vpack.c.b16 %v2655, %v2655
        %v2663 = vshrl.u32 %v2656, 16
        %v2665 = vshll.u32 %v2656, 16
        %v2667 = vrot.slane %v2665, 1
        %v2668 = vor.u32 %v2663, %v2667
        %v2670 = vshll.u32 %v2657, 16
        %v2672 = vrot.slane %v2670, 1
        %v2673 = vsel %vm699, %v2668, %v2672
        %v2674 = vshrl.u32 %v2657, 16
        %v2676 = vor.u32 %v2674, %v2672
        %v2678 = vshll.u32 %v2658, 16
        %v2680 = vrot.slane %v2678, 1
        %v2681 = vsel %vm699, %v2676, %v2680
        %v2682 = vshrl.u32 %v2658, 16
        %v2684 = vor.u32 %v2682, %v2680
        %v2686 = vshll.u32 %v2659, 16
        %v2688 = vrot.slane %v2686, 1
        %v2689 = vsel %vm699, %v2684, %v2688
        %v2690 = vshrl.u32 %v2659, 16
        %v2692 = vor.u32 %v2690, %v2688
        %v2694 = vshll.u32 %v2660, 16
        %v2696 = vrot.slane %v2694, 1
        %v2697 = vsel %vm699, %v2692, %v2696
        %v2698 = vshrl.u32 %v2660, 16
        %v2700 = vor.u32 %v2698, %v2696
        %v2702 = vshll.u32 %v2661, 16
        %v2704 = vrot.slane %v2702, 1
        %v2705 = vsel %vm699, %v2700, %v2704
        %v2727 = vunpack.c.l.b16 %v2618
        %v2728 = vunpack.c.l.b16 %v2619
        %v2729 = vunpack.c.l.b16 %v2620
        %v2730 = vunpack.c.l.b16 %v2621
        %v2731 = vunpack.c.l.b16 %v2622
        %v2732 = vunpack.c.l.b16 %v2623
        %v2733 = vunpack.c.l.b16 %v2624
        %v2734 = vunpack.c.l.b16 %v2625
        %v2735 = vunpack.c.l.b16 %v2626
        %v2736 = vunpack.c.l.b16 %v2627
        %v2737 = vunpack.c.l.b16 %v2628
        %v2738 = vunpack.c.l.b16 %v2629
        %v2739 = vunpack.c.l.b16 %v2630
        %v2740 = vunpack.c.l.b16 %v2631
        %v2741 = vunpack.c.l.b16 %v2632
        %v2742 = vunpack.c.l.b16 %v2633
        %v2743 = vpack.c.b16 %v2728, %v2727
        %v2744 = vpack.c.b16 %v2730, %v2729
        %v2745 = vpack.c.b16 %v2732, %v2731
        %v2746 = vpack.c.b16 %v2734, %v2733
        %v2747 = vpack.c.b16 %v2736, %v2735
        %v2748 = vpack.c.b16 %v2738, %v2737
        %v2749 = vpack.c.b16 %v2740, %v2739
        %v2750 = vpack.c.b16 %v2742, %v2741
        %2759 = vmatprep.subr.bf16.mxu0 0
        %2760 = vmatpush1.bf16.msra.mxu0 %v2743
        %2761 = vmatprep.subr.bf16.mxu0 0
        %2762 = vmatpush1.bf16.msra.mxu0 %v2744
        %2763 = vmatprep.subr.bf16.mxu0 0
        %2764 = vmatpush1.bf16.msra.mxu0 %v2745
        %2765 = vmatprep.subr.bf16.mxu0 0
        %2766 = vmatpush1.bf16.msra.mxu0 %v2746
        %2767 = vmatprep.subr.bf16.mxu0 0
        %2768 = vmatpush1.bf16.msra.mxu0 %v2747
        %2769 = vmatprep.subr.bf16.mxu0 0
        %2770 = vmatpush1.bf16.msra.mxu0 %v2748
        %2771 = vmatprep.subr.bf16.mxu0 0
        %2772 = vmatpush1.bf16.msra.mxu0 %v2749
        %2773 = vmatprep.subr.bf16.mxu0 0
        %2774 = vmatpush1.bf16.msra.mxu0 %v2750
        %2775 = vmatprep.subr.bf16.mxu0 0
        %2776 = vmatpush1.bf16.msra.mxu0 0
        %2777 = vmatprep.subr.bf16.mxu0 0
        %2778 = vmatpush1.bf16.msra.mxu0 0
        %2779 = vmatprep.subr.bf16.mxu0 0
        %2780 = vmatpush1.bf16.msra.mxu0 0
        %2781 = vmatprep.subr.bf16.mxu0 0
        %2782 = vmatpush1.bf16.msra.mxu0 0
        %2783 = vmatprep.subr.bf16.mxu0 0
        %2784 = vmatpush1.bf16.msra.mxu0 0
        %2785 = vmatprep.subr.bf16.mxu0 0
        %2786 = vmatpush1.bf16.msra.mxu0 0
        %2787 = vmatprep.subr.bf16.mxu0 0
        %2788 = vmatpush1.bf16.msra.mxu0 0
        %2789 = vmatprep.subr.bf16.mxu0 0
        %2790 = vmatpush1.bf16.msra.mxu0 0
        %2791 = vmatprep.mubr.bf16.mxu0 0
        %2792 = vmatmul.mubr.bf16.gmra.mrb[0].mxu0 %v2673
        %v2793 = vpop.f32.mrb[0].mxu0
        %v2794 = vadd.f32 0.0, %v2793
        %v2795 = vpop.f32.mrb[0].mxu0
        %v2796 = vpop.f32.mrb[0].mxu0
        %v2797 = vadd.f32 0.0, %v2796
        %v2798 = vpop.f32.mrb[0].mxu0
        %2799 = vmatprep.mubr.bf16.mxu0 0
        %2800 = vmatmul.mubr.bf16.gmra.mrb[0].mxu0 %v2681
        %v2801 = vpop.f32.mrb[0].mxu0
        %v2802 = vadd.f32 0.0, %v2801
        %v2803 = vpop.f32.mrb[0].mxu0
        %v2804 = vpop.f32.mrb[0].mxu0
        %v2805 = vadd.f32 0.0, %v2804
        %v2806 = vpop.f32.mrb[0].mxu0
        %2807 = vmatprep.mubr.bf16.mxu0 0
        %2808 = vmatmul.mubr.bf16.gmra.mrb[0].mxu0 %v2689
        %v2809 = vpop.f32.mrb[0].mxu0
        %v2810 = vadd.f32 0.0, %v2809
        %v2811 = vpop.f32.mrb[0].mxu0
        %v2812 = vpop.f32.mrb[0].mxu0
        %v2813 = vadd.f32 0.0, %v2812
        %v2814 = vpop.f32.mrb[0].mxu0
        %2815 = vmatprep.mubr.bf16.mxu0 0
        %2816 = vmatmul.mubr.bf16.gmra.mrb[0].mxu0 %v2697
        %v2817 = vpop.f32.mrb[0].mxu0
        %v2818 = vadd.f32 0.0, %v2817
        %v2819 = vpop.f32.mrb[0].mxu0
        %v2820 = vpop.f32.mrb[0].mxu0
        %v2821 = vadd.f32 0.0, %v2820
        %v2822 = vpop.f32.mrb[0].mxu0
        %2823 = vmatprep.mubr.bf16.mxu0 0
        %2824 = vmatmul.mubr.bf16.gmra.mrb[0].mxu0 %v2705
        %v2825 = vpop.f32.mrb[0].mxu0
        %v2826 = vadd.f32 0.0, %v2825
        %v2827 = vpop.f32.mrb[0].mxu0
        %v2828 = vpop.f32.mrb[0].mxu0
        %v2829 = vadd.f32 0.0, %v2828
        %v2830 = vpop.f32.mrb[0].mxu0
        %2831 = vdwg.mxu0
        %v2832 = vadd.f32 %v2596, %v2794
        %v2833 = vadd.f32 %v2597, %v2797
        %v2834 = vadd.f32 %v2598, %v2802
        %v2835 = vadd.f32 %v2599, %v2805
        %v2836 = vadd.f32 %v2600, %v2810
        %v2837 = vadd.f32 %v2601, %v2813
        %v2838 = vadd.f32 %v2602, %v2818
        %v2839 = vadd.f32 %v2603, %v2821
        %v2840 = vadd.f32 %v2604, %v2826
        %v2841 = vadd.f32 %v2605, %v2829
        %v2842 = vld [vmem:[#allocation2] sm:$0xe]
        %s2843 = scalar_lea.vmem [#allocation6], 128
        %v2844 = vld [vmem:[%s2843] sm:$0xf]
        %v2845 = vld [vmem:[%s2843 + $0x4] sm:$0xf]
        %v2846 = vld [vmem:[%s2843 + $0x8] sm:$0xf]
        %v2847 = vld [vmem:[%s2843 + $0xc] sm:$0xf]
        %v2848 = vld [vmem:[%s2843 + $0x10] sm:$0xf]
        %v2849 = vld [vmem:[%s2843 + $0x14] sm:$0xf]
        %v2850 = vld [vmem:[%s2843 + $0x18] sm:$0xf]
        %v2851 = vld [vmem:[%s2843 + $0x1c] sm:$0xf]
        %v2852 = vld [vmem:[%s2843 + $0x20] sm:$0xf]
        %v2853 = vld [vmem:[%s2843 + $0x24] sm:$0xf]
        %v2854 = vld [vmem:[%s2843 + $0x28] sm:$0xf]
        %v2855 = vld [vmem:[%s2843 + $0x2c] sm:$0xf]
        %v2856 = vld [vmem:[%s2843 + $0x30] sm:$0xf]
        %v2857 = vld [vmem:[%s2843 + $0x34] sm:$0xf]
        %v2858 = vld [vmem:[%s2843 + $0x38] sm:$0xf]
        %v2859 = vld [vmem:[%s2843 + $0x3c] sm:$0xf]
        %v2861 = vunpack.c.l.b16 %v2842
        %v2862 = vpack.c.b16 %v2646, %v2861
        %v2863 = vrot.slane %v2862, 1
        %v2864 = vrot.slane %v2657, 1
        %v2865 = vsel %vm901, %v2863, %v2864
        %v2866 = vrot.slane %v2658, 1
        %v2867 = vsel %vm901, %v2864, %v2866
        %v2868 = vrot.slane %v2659, 1
        %v2869 = vsel %vm901, %v2866, %v2868
        %v2870 = vrot.slane %v2660, 1
        %v2871 = vsel %vm901, %v2868, %v2870
        %v2872 = vrot.slane %v2661, 1
        %v2873 = vsel %vm901, %v2870, %v2872
        %v2895 = vunpack.c.l.b16 %v2844
        %v2896 = vunpack.c.l.b16 %v2845
        %v2897 = vunpack.c.l.b16 %v2846
        %v2898 = vunpack.c.l.b16 %v2847
        %v2899 = vunpack.c.l.b16 %v2848
        %v2900 = vunpack.c.l.b16 %v2849
        %v2901 = vunpack.c.l.b16 %v2850
        %v2902 = vunpack.c.l.b16 %v2851
        %v2903 = vunpack.c.l.b16 %v2852
        %v2904 = vunpack.c.l.b16 %v2853
        %v2905 = vunpack.c.l.b16 %v2854
        %v2906 = vunpack.c.l.b16 %v2855
        %v2907 = vunpack.c.l.b16 %v2856
        %v2908 = vunpack.c.l.b16 %v2857
        %v2909 = vunpack.c.l.b16 %v2858
        %v2910 = vunpack.c.l.b16 %v2859
        %v2911 = vpack.c.b16 %v2896, %v2895
        %v2912 = vpack.c.b16 %v2898, %v2897
        %v2913 = vpack.c.b16 %v2900, %v2899
        %v2914 = vpack.c.b16 %v2902, %v2901
        %v2915 = vpack.c.b16 %v2904, %v2903
        %v2916 = vpack.c.b16 %v2906, %v2905
        %v2917 = vpack.c.b16 %v2908, %v2907
        %v2918 = vpack.c.b16 %v2910, %v2909
        %2927 = vmatprep.subr.bf16.mxu0 0
        %2928 = vmatpush1.bf16.msra.mxu0 %v2911
        %2929 = vmatprep.subr.bf16.mxu0 0
        %2930 = vmatpush1.bf16.msra.mxu0 %v2912
        %2931 = vmatprep.subr.bf16.mxu0 0
        %2932 = vmatpush1.bf16.msra.mxu0 %v2913
        %2933 = vmatprep.subr.bf16.mxu0 0
        %2934 = vmatpush1.bf16.msra.mxu0 %v2914
        %2935 = vmatprep.subr.bf16.mxu0 0
        %2936 = vmatpush1.bf16.msra.mxu0 %v2915
        %2937 = vmatprep.subr.bf16.mxu0 0
        %2938 = vmatpush1.bf16.msra.mxu0 %v2916
        %2939 = vmatprep.subr.bf16.mxu0 0
        %2940 = vmatpush1.bf16.msra.mxu0 %v2917
        %2941 = vmatprep.subr.bf16.mxu0 0
        %2942 = vmatpush1.bf16.msra.mxu0 %v2918
        %2943 = vmatprep.subr.bf16.mxu0 0
        %2944 = vmatpush1.bf16.msra.mxu0 0
        %2945 = vmatprep.subr.bf16.mxu0 0
        %2946 = vmatpush1.bf16.msra.mxu0 0
        %2947 = vmatprep.subr.bf16.mxu0 0
        %2948 = vmatpush1.bf16.msra.mxu0 0
        %2949 = vmatprep.subr.bf16.mxu0 0
        %2950 = vmatpush1.bf16.msra.mxu0 0
        %2951 = vmatprep.subr.bf16.mxu0 0
        %2952 = vmatpush1.bf16.msra.mxu0 0
        %2953 = vmatprep.subr.bf16.mxu0 0
        %2954 = vmatpush1.bf16.msra.mxu0 0
        %2955 = vmatprep.subr.bf16.mxu0 0
        %2956 = vmatpush1.bf16.msra.mxu0 0
        %2957 = vmatprep.subr.bf16.mxu0 0
        %2958 = vmatpush1.bf16.msra.mxu0 0
        %2959 = vmatprep.mubr.bf16.mxu0 0
        %2960 = vmatmul.mubr.bf16.gmra.mrb[0].mxu0 %v2865
        %v2961 = vpop.f32.mrb[0].mxu0
        %v2962 = vadd.f32 0.0, %v2961
        %v2963 = vpop.f32.mrb[0].mxu0
        %v2964 = vpop.f32.mrb[0].mxu0
        %v2965 = vadd.f32 0.0, %v2964
        %v2966 = vpop.f32.mrb[0].mxu0
        %2967 = vmatprep.mubr.bf16.mxu0 0
        %2968 = vmatmul.mubr.bf16.gmra.mrb[0].mxu0 %v2867
        %v2969 = vpop.f32.mrb[0].mxu0
        %v2970 = vadd.f32 0.0, %v2969
        %v2971 = vpop.f32.mrb[0].mxu0
        %v2972 = vpop.f32.mrb[0].mxu0
        %v2973 = vadd.f32 0.0, %v2972
        %v2974 = vpop.f32.mrb[0].mxu0
        %2975 = vmatprep.mubr.bf16.mxu0 0
        %2976 = vmatmul.mubr.bf16.gmra.mrb[0].mxu0 %v2869
        %v2977 = vpop.f32.mrb[0].mxu0
        %v2978 = vadd.f32 0.0, %v2977
        %v2979 = vpop.f32.mrb[0].mxu0
        %v2980 = vpop.f32.mrb[0].mxu0
        %v2981 = vadd.f32 0.0, %v2980
        %v2982 = vpop.f32.mrb[0].mxu0
        %2983 = vmatprep.mubr.bf16.mxu0 0
        %2984 = vmatmul.mubr.bf16.gmra.mrb[0].mxu0 %v2871
        %v2985 = vpop.f32.mrb[0].mxu0
        %v2986 = vadd.f32 0.0, %v2985
        %v2987 = vpop.f32.mrb[0].mxu0
        %v2988 = vpop.f32.mrb[0].mxu0
        %v2989 = vadd.f32 0.0, %v2988
        %v2990 = vpop.f32.mrb[0].mxu0
        %2991 = vmatprep.mubr.bf16.mxu0 0
        %2992 = vmatmul.mubr.bf16.gmra.mrb[0].mxu0 %v2873
        %v2993 = vpop.f32.mrb[0].mxu0
        %v2994 = vadd.f32 0.0, %v2993
        %v2995 = vpop.f32.mrb[0].mxu0
        %v2996 = vpop.f32.mrb[0].mxu0
        %v2997 = vadd.f32 0.0, %v2996
        %v2998 = vpop.f32.mrb[0].mxu0
        %2999 = vdwg.mxu0
        %v3000 = vadd.f32 %v2832, %v2962
        %v3001 = vadd.f32 %v2833, %v2965
        %v3002 = vadd.f32 %v2834, %v2970
        %v3003 = vadd.f32 %v2835, %v2973
        %v3004 = vadd.f32 %v2836, %v2978
        %v3005 = vadd.f32 %v2837, %v2981
        %v3006 = vadd.f32 %v2838, %v2986
        %v3007 = vadd.f32 %v2839, %v2989
        %v3008 = vadd.f32 %v2840, %v2994
        %v3009 = vadd.f32 %v2841, %v2997
        %v3010 = vld [vmem:[#allocation2 + $0x4] sm:$0xe]
        %v3011 = vld [vmem:[#allocation2 + $0x8] sm:$0xf]
        %v3012 = vld [vmem:[#allocation2 + $0xc] sm:$0xf]
        %v3013 = vld [vmem:[#allocation2 + $0x10] sm:$0xf]
        %v3014 = vld [vmem:[#allocation2 + $0x14] sm:$0xf]
        %v3015 = vld [vmem:[#allocation2 + $0x18] sm:$0xf]
        %v3016 = vld [vmem:[#allocation2 + $0x1c] sm:$0xf]
        %v3017 = vld [vmem:[#allocation2 + $0x20] sm:$0xf]
        %v3018 = vld [vmem:[#allocation2 + $0x24] sm:$0xf]
        %v3019 = vld [vmem:[#allocation2 + $0x28] sm:$0xf]
        %v3020 = vld [vmem:[#allocation2 + $0x2c] sm:$0x1]
        %s3021 = scalar_lea.vmem [#allocation6], 192
        %v3022 = vld [vmem:[%s3021] sm:$0xf]
        %v3023 = vld [vmem:[%s3021 + $0x4] sm:$0xf]
        %v3024 = vld [vmem:[%s3021 + $0x8] sm:$0xf]
        %v3025 = vld [vmem:[%s3021 + $0xc] sm:$0xf]
        %v3026 = vld [vmem:[%s3021 + $0x10] sm:$0xf]
        %v3027 = vld [vmem:[%s3021 + $0x14] sm:$0xf]
        %v3028 = vld [vmem:[%s3021 + $0x18] sm:$0xf]
        %v3029 = vld [vmem:[%s3021 + $0x1c] sm:$0xf]
        %v3030 = vld [vmem:[%s3021 + $0x20] sm:$0xf]
        %v3031 = vld [vmem:[%s3021 + $0x24] sm:$0xf]
        %v3032 = vld [vmem:[%s3021 + $0x28] sm:$0xf]
        %v3033 = vld [vmem:[%s3021 + $0x2c] sm:$0xf]
        %v3034 = vld [vmem:[%s3021 + $0x30] sm:$0xf]
        %v3035 = vld [vmem:[%s3021 + $0x34] sm:$0xf]
        %v3036 = vld [vmem:[%s3021 + $0x38] sm:$0xf]
        %v3037 = vld [vmem:[%s3021 + $0x3c] sm:$0xf]
        %v3049 = vunpack.c.l.b16 %v3010
        %v3050 = vunpack.c.l.b16 %v3011
        %v3051 = vunpack.c.l.b16 %v3012
        %v3052 = vunpack.c.l.b16 %v3013
        %v3053 = vunpack.c.l.b16 %v3014
        %v3054 = vunpack.c.l.b16 %v3015
        %v3055 = vunpack.c.l.b16 %v3016
        %v3056 = vunpack.c.l.b16 %v3017
        %v3057 = vunpack.c.l.b16 %v3018
        %v3058 = vunpack.c.l.b16 %v3019
        %v3059 = vunpack.c.l.b16 %v3020
        %v3060 = vpack.c.b16 %v3050, %v3049
        %v3061 = vpack.c.b16 %v3052, %v3051
        %v3062 = vpack.c.b16 %v3054, %v3053
        %v3063 = vpack.c.b16 %v3056, %v3055
        %v3064 = vpack.c.b16 %v3058, %v3057
        %v3065 = vpack.c.b16 %v3059, %v3059
        %v3066 = vrot.slane %v3060, 1
        %v3067 = vrot.slane %v3061, 1
        %v3068 = vsel %vm901, %v3066, %v3067
        %v3069 = vrot.slane %v3062, 1
        %v3070 = vsel %vm901, %v3067, %v3069
        %v3071 = vrot.slane %v3063, 1
        %v3072 = vsel %vm901, %v3069, %v3071
        %v3073 = vrot.slane %v3064, 1
        %v3074 = vsel %vm901, %v3071, %v3073
        %v3075 = vrot.slane %v3065, 1
        %v3076 = vsel %vm901, %v3073, %v3075
        %v3098 = vunpack.c.l.b16 %v3022
        %v3099 = vunpack.c.l.b16 %v3023
        %v3100 = vunpack.c.l.b16 %v3024
        %v3101 = vunpack.c.l.b16 %v3025
        %v3102 = vunpack.c.l.b16 %v3026
        %v3103 = vunpack.c.l.b16 %v3027
        %v3104 = vunpack.c.l.b16 %v3028
        %v3105 = vunpack.c.l.b16 %v3029
        %v3106 = vunpack.c.l.b16 %v3030
        %v3107 = vunpack.c.l.b16 %v3031
        %v3108 = vunpack.c.l.b16 %v3032
        %v3109 = vunpack.c.l.b16 %v3033
        %v3110 = vunpack.c.l.b16 %v3034
        %v3111 = vunpack.c.l.b16 %v3035
        %v3112 = vunpack.c.l.b16 %v3036
        %v3113 = vunpack.c.l.b16 %v3037
        %v3114 = vpack.c.b16 %v3099, %v3098
        %v3115 = vpack.c.b16 %v3101, %v3100
        %v3116 = vpack.c.b16 %v3103, %v3102
        %v3117 = vpack.c.b16 %v3105, %v3104
        %v3118 = vpack.c.b16 %v3107, %v3106
        %v3119 = vpack.c.b16 %v3109, %v3108
        %v3120 = vpack.c.b16 %v3111, %v3110
        %v3121 = vpack.c.b16 %v3113, %v3112
        %3130 = vmatprep.subr.bf16.mxu0 0
        %3131 = vmatpush1.bf16.msra.mxu0 %v3114
        %3132 = vmatprep.subr.bf16.mxu0 0
        %3133 = vmatpush1.bf16.msra.mxu0 %v3115
        %3134 = vmatprep.subr.bf16.mxu0 0
        %3135 = vmatpush1.bf16.msra.mxu0 %v3116
        %3136 = vmatprep.subr.bf16.mxu0 0
        %3137 = vmatpush1.bf16.msra.mxu0 %v3117
        %3138 = vmatprep.subr.bf16.mxu0 0
        %3139 = vmatpush1.bf16.msra.mxu0 %v3118
        %3140 = vmatprep.subr.bf16.mxu0 0
        %3141 = vmatpush1.bf16.msra.mxu0 %v3119
        %3142 = vmatprep.subr.bf16.mxu0 0
        %3143 = vmatpush1.bf16.msra.mxu0 %v3120
        %3144 = vmatprep.subr.bf16.mxu0 0
        %3145 = vmatpush1.bf16.msra.mxu0 %v3121
        %3146 = vmatprep.subr.bf16.mxu0 0
        %3147 = vmatpush1.bf16.msra.mxu0 0
        %3148 = vmatprep.subr.bf16.mxu0 0
        %3149 = vmatpush1.bf16.msra.mxu0 0
        %3150 = vmatprep.subr.bf16.mxu0 0
        %3151 = vmatpush1.bf16.msra.mxu0 0
        %3152 = vmatprep.subr.bf16.mxu0 0
        %3153 = vmatpush1.bf16.msra.mxu0 0
        %3154 = vmatprep.subr.bf16.mxu0 0
        %3155 = vmatpush1.bf16.msra.mxu0 0
        %3156 = vmatprep.subr.bf16.mxu0 0
        %3157 = vmatpush1.bf16.msra.mxu0 0
        %3158 = vmatprep.subr.bf16.mxu0 0
        %3159 = vmatpush1.bf16.msra.mxu0 0
        %3160 = vmatprep.subr.bf16.mxu0 0
        %3161 = vmatpush1.bf16.msra.mxu0 0
        %3162 = vmatprep.mubr.bf16.mxu0 0
        %3163 = vmatmul.mubr.bf16.gmra.mrb[0].mxu0 %v3068
        %v3164 = vpop.f32.mrb[0].mxu0
        %v3165 = vadd.f32 0.0, %v3164
        %v3166 = vpop.f32.mrb[0].mxu0
        %v3167 = vpop.f32.mrb[0].mxu0
        %v3168 = vadd.f32 0.0, %v3167
        %v3169 = vpop.f32.mrb[0].mxu0
        %3170 = vmatprep.mubr.bf16.mxu0 0
        %3171 = vmatmul.mubr.bf16.gmra.mrb[0].mxu0 %v3070
        %v3172 = vpop.f32.mrb[0].mxu0
        %v3173 = vadd.f32 0.0, %v3172
        %v3174 = vpop.f32.mrb[0].mxu0
        %v3175 = vpop.f32.mrb[0].mxu0
        %v3176 = vadd.f32 0.0, %v3175
        %v3177 = vpop.f32.mrb[0].mxu0
        %3178 = vmatprep.mubr.bf16.mxu0 0
        %3179 = vmatmul.mubr.bf16.gmra.mrb[0].mxu0 %v3072
        %v3180 = vpop.f32.mrb[0].mxu0
        %v3181 = vadd.f32 0.0, %v3180
        %v3182 = vpop.f32.mrb[0].mxu0
        %v3183 = vpop.f32.mrb[0].mxu0
        %v3184 = vadd.f32 0.0, %v3183
        %v3185 = vpop.f32.mrb[0].mxu0
        %3186 = vmatprep.mubr.bf16.mxu0 0
        %3187 = vmatmul.mubr.bf16.gmra.mrb[0].mxu0 %v3074
        %v3188 = vpop.f32.mrb[0].mxu0
        %v3189 = vadd.f32 0.0, %v3188
        %v3190 = vpop.f32.mrb[0].mxu0
        %v3191 = vpop.f32.mrb[0].mxu0
        %v3192 = vadd.f32 0.0, %v3191
        %v3193 = vpop.f32.mrb[0].mxu0
        %3194 = vmatprep.mubr.bf16.mxu0 0
        %3195 = vmatmul.mubr.bf16.gmra.mrb[0].mxu0 %v3076
        %v3196 = vpop.f32.mrb[0].mxu0
        %v3197 = vadd.f32 0.0, %v3196
        %v3198 = vpop.f32.mrb[0].mxu0
        %v3199 = vpop.f32.mrb[0].mxu0
        %v3200 = vadd.f32 0.0, %v3199
        %v3201 = vpop.f32.mrb[0].mxu0
        %3202 = vdwg.mxu0
        %v3203 = vadd.f32 %v3000, %v3165
        %v3204 = vadd.f32 %v3001, %v3168
        %v3205 = vadd.f32 %v3002, %v3173
        %v3206 = vadd.f32 %v3003, %v3176
        %v3207 = vadd.f32 %v3004, %v3181
        %v3208 = vadd.f32 %v3005, %v3184
        %v3209 = vadd.f32 %v3006, %v3189
        %v3210 = vadd.f32 %v3007, %v3192
        %v3211 = vadd.f32 %v3008, %v3197
        %v3212 = vadd.f32 %v3009, %v3200
        %v3213 = vld [vmem:[#allocation2 + $0x2c] sm:$0x3]
        %s3214 = scalar_lea.vmem [#allocation6], 256
        %v3215 = vld [vmem:[%s3214] sm:$0xf]
        %v3216 = vld [vmem:[%s3214 + $0x4] sm:$0xf]
        %v3217 = vld [vmem:[%s3214 + $0x8] sm:$0xf]
        %v3218 = vld [vmem:[%s3214 + $0xc] sm:$0xf]
        %v3219 = vld [vmem:[%s3214 + $0x10] sm:$0xf]
        %v3220 = vld [vmem:[%s3214 + $0x14] sm:$0xf]
        %v3221 = vld [vmem:[%s3214 + $0x18] sm:$0xf]
        %v3222 = vld [vmem:[%s3214 + $0x1c] sm:$0xf]
        %v3223 = vld [vmem:[%s3214 + $0x20] sm:$0xf]
        %v3224 = vld [vmem:[%s3214 + $0x24] sm:$0xf]
        %v3225 = vld [vmem:[%s3214 + $0x28] sm:$0xf]
        %v3226 = vld [vmem:[%s3214 + $0x2c] sm:$0xf]
        %v3227 = vld [vmem:[%s3214 + $0x30] sm:$0xf]
        %v3228 = vld [vmem:[%s3214 + $0x34] sm:$0xf]
        %v3229 = vld [vmem:[%s3214 + $0x38] sm:$0xf]
        %v3230 = vld [vmem:[%s3214 + $0x3c] sm:$0xf]
        %v3232 = vunpack.c.l.b16 %v3213
        %v3233 = vpack.c.b16 %v3232, %v3232
        %v3235 = vshrl.u32 %v3060, 16
        %v3237 = vrot.slane %v3235, 1
        %v3238 = vshll.u32 %v3060, 16
        %v3240 = vrot.slane %v3238, 2
        %v3241 = vor.u32 %v3237, %v3240
        %v3243 = vshrl.u32 %v3061, 16
        %v3245 = vrot.slane %v3243, 1
        %v3246 = vshll.u32 %v3061, 16
        %v3248 = vrot.slane %v3246, 2
        %v3249 = vor.u32 %v3245, %v3248
        %v3250 = vsel %vm1273, %v3241, %v3249
        %v3252 = vshrl.u32 %v3062, 16
        %v3254 = vrot.slane %v3252, 1
        %v3255 = vshll.u32 %v3062, 16
        %v3257 = vrot.slane %v3255, 2
        %v3258 = vor.u32 %v3254, %v3257
        %v3259 = vsel %vm1273, %v3249, %v3258
        %v3261 = vshrl.u32 %v3063, 16
        %v3263 = vrot.slane %v3261, 1
        %v3264 = vshll.u32 %v3063, 16
        %v3266 = vrot.slane %v3264, 2
        %v3267 = vor.u32 %v3263, %v3266
        %v3268 = vsel %vm1273, %v3258, %v3267
        %v3270 = vshrl.u32 %v3064, 16
        %v3272 = vrot.slane %v3270, 1
        %v3273 = vshll.u32 %v3064, 16
        %v3275 = vrot.slane %v3273, 2
        %v3276 = vor.u32 %v3272, %v3275
        %v3277 = vsel %vm1273, %v3267, %v3276
        %v3279 = vshrl.u32 %v3233, 16
        %v3281 = vrot.slane %v3279, 1
        %v3282 = vshll.u32 %v3233, 16
        %v3284 = vrot.slane %v3282, 2
        %v3285 = vor.u32 %v3281, %v3284
        %v3286 = vsel %vm1273, %v3276, %v3285
        %v3308 = vunpack.c.l.b16 %v3215
        %v3309 = vunpack.c.l.b16 %v3216
        %v3310 = vunpack.c.l.b16 %v3217
        %v3311 = vunpack.c.l.b16 %v3218
        %v3312 = vunpack.c.l.b16 %v3219
        %v3313 = vunpack.c.l.b16 %v3220
        %v3314 = vunpack.c.l.b16 %v3221
        %v3315 = vunpack.c.l.b16 %v3222
        %v3316 = vunpack.c.l.b16 %v3223
        %v3317 = vunpack.c.l.b16 %v3224
        %v3318 = vunpack.c.l.b16 %v3225
        %v3319 = vunpack.c.l.b16 %v3226
        %v3320 = vunpack.c.l.b16 %v3227
        %v3321 = vunpack.c.l.b16 %v3228
        %v3322 = vunpack.c.l.b16 %v3229
        %v3323 = vunpack.c.l.b16 %v3230
        %v3324 = vpack.c.b16 %v3309, %v3308
        %v3325 = vpack.c.b16 %v3311, %v3310
        %v3326 = vpack.c.b16 %v3313, %v3312
        %v3327 = vpack.c.b16 %v3315, %v3314
        %v3328 = vpack.c.b16 %v3317, %v3316
        %v3329 = vpack.c.b16 %v3319, %v3318
        %v3330 = vpack.c.b16 %v3321, %v3320
        %v3331 = vpack.c.b16 %v3323, %v3322
        %3340 = vmatprep.subr.bf16.mxu0 0
        %3341 = vmatpush1.bf16.msra.mxu0 %v3324
        %3342 = vmatprep.subr.bf16.mxu0 0
        %3343 = vmatpush1.bf16.msra.mxu0 %v3325
        %3344 = vmatprep.subr.bf16.mxu0 0
        %3345 = vmatpush1.bf16.msra.mxu0 %v3326
        %3346 = vmatprep.subr.bf16.mxu0 0
        %3347 = vmatpush1.bf16.msra.mxu0 %v3327
        %3348 = vmatprep.subr.bf16.mxu0 0
        %3349 = vmatpush1.bf16.msra.mxu0 %v3328
        %3350 = vmatprep.subr.bf16.mxu0 0
        %3351 = vmatpush1.bf16.msra.mxu0 %v3329
        %3352 = vmatprep.subr.bf16.mxu0 0
        %3353 = vmatpush1.bf16.msra.mxu0 %v3330
        %3354 = vmatprep.subr.bf16.mxu0 0
        %3355 = vmatpush1.bf16.msra.mxu0 %v3331
        %3356 = vmatprep.subr.bf16.mxu0 0
        %3357 = vmatpush1.bf16.msra.mxu0 0
        %3358 = vmatprep.subr.bf16.mxu0 0
        %3359 = vmatpush1.bf16.msra.mxu0 0
        %3360 = vmatprep.subr.bf16.mxu0 0
        %3361 = vmatpush1.bf16.msra.mxu0 0
        %3362 = vmatprep.subr.bf16.mxu0 0
        %3363 = vmatpush1.bf16.msra.mxu0 0
        %3364 = vmatprep.subr.bf16.mxu0 0
        %3365 = vmatpush1.bf16.msra.mxu0 0
        %3366 = vmatprep.subr.bf16.mxu0 0
        %3367 = vmatpush1.bf16.msra.mxu0 0
        %3368 = vmatprep.subr.bf16.mxu0 0
        %3369 = vmatpush1.bf16.msra.mxu0 0
        %3370 = vmatprep.subr.bf16.mxu0 0
        %3371 = vmatpush1.bf16.msra.mxu0 0
        %3372 = vmatprep.mubr.bf16.mxu0 0
        %3373 = vmatmul.mubr.bf16.gmra.mrb[0].mxu0 %v3250
        %v3374 = vpop.f32.mrb[0].mxu0
        %v3375 = vadd.f32 0.0, %v3374
        %v3376 = vpop.f32.mrb[0].mxu0
        %v3377 = vpop.f32.mrb[0].mxu0
        %v3378 = vadd.f32 0.0, %v3377
        %v3379 = vpop.f32.mrb[0].mxu0
        %3380 = vmatprep.mubr.bf16.mxu0 0
        %3381 = vmatmul.mubr.bf16.gmra.mrb[0].mxu0 %v3259
        %v3382 = vpop.f32.mrb[0].mxu0
        %v3383 = vadd.f32 0.0, %v3382
        %v3384 = vpop.f32.mrb[0].mxu0
        %v3385 = vpop.f32.mrb[0].mxu0
        %v3386 = vadd.f32 0.0, %v3385
        %v3387 = vpop.f32.mrb[0].mxu0
        %3388 = vmatprep.mubr.bf16.mxu0 0
        %3389 = vmatmul.mubr.bf16.gmra.mrb[0].mxu0 %v3268
        %v3390 = vpop.f32.mrb[0].mxu0
        %v3391 = vadd.f32 0.0, %v3390
        %v3392 = vpop.f32.mrb[0].mxu0
        %v3393 = vpop.f32.mrb[0].mxu0
        %v3394 = vadd.f32 0.0, %v3393
        %v3395 = vpop.f32.mrb[0].mxu0
        %3396 = vmatprep.mubr.bf16.mxu0 0
        %3397 = vmatmul.mubr.bf16.gmra.mrb[0].mxu0 %v3277
        %v3398 = vpop.f32.mrb[0].mxu0
        %v3399 = vadd.f32 0.0, %v3398
        %v3400 = vpop.f32.mrb[0].mxu0
        %v3401 = vpop.f32.mrb[0].mxu0
        %v3402 = vadd.f32 0.0, %v3401
        %v3403 = vpop.f32.mrb[0].mxu0
        %3404 = vmatprep.mubr.bf16.mxu0 0
        %3405 = vmatmul.mubr.bf16.gmra.mrb[0].mxu0 %v3286
        %v3406 = vpop.f32.mrb[0].mxu0
        %v3407 = vadd.f32 0.0, %v3406
        %v3408 = vpop.f32.mrb[0].mxu0
        %v3409 = vpop.f32.mrb[0].mxu0
        %v3410 = vadd.f32 0.0, %v3409
        %v3411 = vpop.f32.mrb[0].mxu0
        %3412 = vdwg.mxu0
        %v3413 = vadd.f32 %v3203, %v3375
        %v3414 = vadd.f32 %v3204, %v3378
        %v3415 = vadd.f32 %v3205, %v3383
        %v3416 = vadd.f32 %v3206, %v3386
        %v3417 = vadd.f32 %v3207, %v3391
        %v3418 = vadd.f32 %v3208, %v3394
        %v3419 = vadd.f32 %v3209, %v3399
        %v3420 = vadd.f32 %v3210, %v3402
        %v3421 = vadd.f32 %v3211, %v3407
        %v3422 = vadd.f32 %v3212, %v3410
        %v3423 = vld [vmem:[#allocation2 + $0x4] sm:$0xc]
        %s3424 = scalar_lea.vmem [#allocation6], 320
        %v3425 = vld [vmem:[%s3424] sm:$0xf]
        %v3426 = vld [vmem:[%s3424 + $0x4] sm:$0xf]
        %v3427 = vld [vmem:[%s3424 + $0x8] sm:$0xf]
        %v3428 = vld [vmem:[%s3424 + $0xc] sm:$0xf]
        %v3429 = vld [vmem:[%s3424 + $0x10] sm:$0xf]
        %v3430 = vld [vmem:[%s3424 + $0x14] sm:$0xf]
        %v3431 = vld [vmem:[%s3424 + $0x18] sm:$0xf]
        %v3432 = vld [vmem:[%s3424 + $0x1c] sm:$0xf]
        %v3433 = vld [vmem:[%s3424 + $0x20] sm:$0xf]
        %v3434 = vld [vmem:[%s3424 + $0x24] sm:$0xf]
        %v3435 = vld [vmem:[%s3424 + $0x28] sm:$0xf]
        %v3436 = vld [vmem:[%s3424 + $0x2c] sm:$0xf]
        %v3437 = vld [vmem:[%s3424 + $0x30] sm:$0xf]
        %v3438 = vld [vmem:[%s3424 + $0x34] sm:$0xf]
        %v3439 = vld [vmem:[%s3424 + $0x38] sm:$0xf]
        %v3440 = vld [vmem:[%s3424 + $0x3c] sm:$0xf]
        %v3442 = vunpack.c.l.b16 %v3423
        %v3443 = vpack.c.b16 %v3050, %v3442
        %v3444 = vrot.slane %v3443, 2
        %v3445 = vrot.slane %v3061, 2
        %v3446 = vsel %vm1484, %v3444, %v3445
        %v3447 = vrot.slane %v3062, 2
        %v3448 = vsel %vm1484, %v3445, %v3447
        %v3449 = vrot.slane %v3063, 2
        %v3450 = vsel %vm1484, %v3447, %v3449
        %v3451 = vrot.slane %v3064, 2
        %v3452 = vsel %vm1484, %v3449, %v3451
        %v3453 = vrot.slane %v3233, 2
        %v3454 = vsel %vm1484, %v3451, %v3453
        %v3476 = vunpack.c.l.b16 %v3425
        %v3477 = vunpack.c.l.b16 %v3426
        %v3478 = vunpack.c.l.b16 %v3427
        %v3479 = vunpack.c.l.b16 %v3428
        %v3480 = vunpack.c.l.b16 %v3429
        %v3481 = vunpack.c.l.b16 %v3430
        %v3482 = vunpack.c.l.b16 %v3431
        %v3483 = vunpack.c.l.b16 %v3432
        %v3484 = vunpack.c.l.b16 %v3433
        %v3485 = vunpack.c.l.b16 %v3434
        %v3486 = vunpack.c.l.b16 %v3435
        %v3487 = vunpack.c.l.b16 %v3436
        %v3488 = vunpack.c.l.b16 %v3437
        %v3489 = vunpack.c.l.b16 %v3438
        %v3490 = vunpack.c.l.b16 %v3439
        %v3491 = vunpack.c.l.b16 %v3440
        %v3492 = vpack.c.b16 %v3477, %v3476
        %v3493 = vpack.c.b16 %v3479, %v3478
        %v3494 = vpack.c.b16 %v3481, %v3480
        %v3495 = vpack.c.b16 %v3483, %v3482
        %v3496 = vpack.c.b16 %v3485, %v3484
        %v3497 = vpack.c.b16 %v3487, %v3486
        %v3498 = vpack.c.b16 %v3489, %v3488
        %v3499 = vpack.c.b16 %v3491, %v3490
        %3508 = vmatprep.subr.bf16.mxu0 0
        %3509 = vmatpush1.bf16.msra.mxu0 %v3492
        %3510 = vmatprep.subr.bf16.mxu0 0
        %3511 = vmatpush1.bf16.msra.mxu0 %v3493
        %3512 = vmatprep.subr.bf16.mxu0 0
        %3513 = vmatpush1.bf16.msra.mxu0 %v3494
        %3514 = vmatprep.subr.bf16.mxu0 0
        %3515 = vmatpush1.bf16.msra.mxu0 %v3495
        %3516 = vmatprep.subr.bf16.mxu0 0
        %3517 = vmatpush1.bf16.msra.mxu0 %v3496
        %3518 = vmatprep.subr.bf16.mxu0 0
        %3519 = vmatpush1.bf16.msra.mxu0 %v3497
        %3520 = vmatprep.subr.bf16.mxu0 0
        %3521 = vmatpush1.bf16.msra.mxu0 %v3498
        %3522 = vmatprep.subr.bf16.mxu0 0
        %3523 = vmatpush1.bf16.msra.mxu0 %v3499
        %3524 = vmatprep.subr.bf16.mxu0 0
        %3525 = vmatpush1.bf16.msra.mxu0 0
        %3526 = vmatprep.subr.bf16.mxu0 0
        %3527 = vmatpush1.bf16.msra.mxu0 0
        %3528 = vmatprep.subr.bf16.mxu0 0
        %3529 = vmatpush1.bf16.msra.mxu0 0
        %3530 = vmatprep.subr.bf16.mxu0 0
        %3531 = vmatpush1.bf16.msra.mxu0 0
        %3532 = vmatprep.subr.bf16.mxu0 0
        %3533 = vmatpush1.bf16.msra.mxu0 0
        %3534 = vmatprep.subr.bf16.mxu0 0
        %3535 = vmatpush1.bf16.msra.mxu0 0
        %3536 = vmatprep.subr.bf16.mxu0 0
        %3537 = vmatpush1.bf16.msra.mxu0 0
        %3538 = vmatprep.subr.bf16.mxu0 0
        %3539 = vmatpush1.bf16.msra.mxu0 0
        %3540 = vmatprep.mubr.bf16.mxu0 0
        %3541 = vmatmul.mubr.bf16.gmra.mrb[0].mxu0 %v3446
        %v3542 = vpop.f32.mrb[0].mxu0
        %v3543 = vadd.f32 0.0, %v3542
        %v3544 = vpop.f32.mrb[0].mxu0
        %v3545 = vpop.f32.mrb[0].mxu0
        %v3546 = vadd.f32 0.0, %v3545
        %v3547 = vpop.f32.mrb[0].mxu0
        %3548 = vmatprep.mubr.bf16.mxu0 0
        %3549 = vmatmul.mubr.bf16.gmra.mrb[0].mxu0 %v3448
        %v3550 = vpop.f32.mrb[0].mxu0
        %v3551 = vadd.f32 0.0, %v3550
        %v3552 = vpop.f32.mrb[0].mxu0
        %v3553 = vpop.f32.mrb[0].mxu0
        %v3554 = vadd.f32 0.0, %v3553
        %v3555 = vpop.f32.mrb[0].mxu0
        %3556 = vmatprep.mubr.bf16.mxu0 0
        %3557 = vmatmul.mubr.bf16.gmra.mrb[0].mxu0 %v3450
        %v3558 = vpop.f32.mrb[0].mxu0
        %v3559 = vadd.f32 0.0, %v3558
        %v3560 = vpop.f32.mrb[0].mxu0
        %v3561 = vpop.f32.mrb[0].mxu0
        %v3562 = vadd.f32 0.0, %v3561
        %v3563 = vpop.f32.mrb[0].mxu0
        %3564 = vmatprep.mubr.bf16.mxu0 0
        %3565 = vmatmul.mubr.bf16.gmra.mrb[0].mxu0 %v3452
        %v3566 = vpop.f32.mrb[0].mxu0
        %v3567 = vadd.f32 0.0, %v3566
        %v3568 = vpop.f32.mrb[0].mxu0
        %v3569 = vpop.f32.mrb[0].mxu0
        %v3570 = vadd.f32 0.0, %v3569
        %v3571 = vpop.f32.mrb[0].mxu0
        %3572 = vmatprep.mubr.bf16.mxu0 0
        %3573 = vmatmul.mubr.bf16.gmra.mrb[0].mxu0 %v3454
        %v3574 = vpop.f32.mrb[0].mxu0
        %v3575 = vadd.f32 0.0, %v3574
        %v3576 = vpop.f32.mrb[0].mxu0
        %v3577 = vpop.f32.mrb[0].mxu0
        %v3578 = vadd.f32 0.0, %v3577
        %v3579 = vpop.f32.mrb[0].mxu0
        %3580 = vdwg.mxu0
        %v3581 = vadd.f32 %v3413, %v3543
        %v3582 = vadd.f32 %v3414, %v3546
        %v3583 = vadd.f32 %v3415, %v3551
        %v3584 = vadd.f32 %v3416, %v3554
        %v3585 = vadd.f32 %v3417, %v3559
        %v3586 = vadd.f32 %v3418, %v3562
        %v3587 = vadd.f32 %v3419, %v3567
        %v3588 = vadd.f32 %v3420, %v3570
        %v3589 = vadd.f32 %v3421, %v3575
        %v3590 = vadd.f32 %v3422, %v3578
        %v3591 = vld [vmem:[#allocation2 + $0x8] sm:$0xc]
        %v3592 = vld [vmem:[#allocation2 + $0xc] sm:$0xf]
        %v3593 = vld [vmem:[#allocation2 + $0x10] sm:$0xf]
        %v3594 = vld [vmem:[#allocation2 + $0x14] sm:$0xf]
        %v3595 = vld [vmem:[#allocation2 + $0x18] sm:$0xf]
        %v3596 = vld [vmem:[#allocation2 + $0x1c] sm:$0xf]
        %v3597 = vld [vmem:[#allocation2 + $0x20] sm:$0xf]
        %v3598 = vld [vmem:[#allocation2 + $0x24] sm:$0xf]
        %v3599 = vld [vmem:[#allocation2 + $0x28] sm:$0xf]
        %v3600 = vld [vmem:[#allocation2 + $0x2c] sm:$0xf]
        %v3601 = vld [vmem:[#allocation2 + $0x30] sm:$0x3]
        %s3602 = scalar_lea.vmem [#allocation6], 384
        %v3603 = vld [vmem:[%s3602] sm:$0xf]
        %v3604 = vld [vmem:[%s3602 + $0x4] sm:$0xf]
        %v3605 = vld [vmem:[%s3602 + $0x8] sm:$0xf]
        %v3606 = vld [vmem:[%s3602 + $0xc] sm:$0xf]
        %v3607 = vld [vmem:[%s3602 + $0x10] sm:$0xf]
        %v3608 = vld [vmem:[%s3602 + $0x14] sm:$0xf]
        %v3609 = vld [vmem:[%s3602 + $0x18] sm:$0xf]
        %v3610 = vld [vmem:[%s3602 + $0x1c] sm:$0xf]
        %v3611 = vld [vmem:[%s3602 + $0x20] sm:$0xf]
        %v3612 = vld [vmem:[%s3602 + $0x24] sm:$0xf]
        %v3613 = vld [vmem:[%s3602 + $0x28] sm:$0xf]
        %v3614 = vld [vmem:[%s3602 + $0x2c] sm:$0xf]
        %v3615 = vld [vmem:[%s3602 + $0x30] sm:$0xf]
        %v3616 = vld [vmem:[%s3602 + $0x34] sm:$0xf]
        %v3617 = vld [vmem:[%s3602 + $0x38] sm:$0xf]
        %v3618 = vld [vmem:[%s3602 + $0x3c] sm:$0xf]
        %v3630 = vunpack.c.l.b16 %v3591
        %v3631 = vunpack.c.l.b16 %v3592
        %v3632 = vunpack.c.l.b16 %v3593
        %v3633 = vunpack.c.l.b16 %v3594
        %v3634 = vunpack.c.l.b16 %v3595
        %v3635 = vunpack.c.l.b16 %v3596
        %v3636 = vunpack.c.l.b16 %v3597
        %v3637 = vunpack.c.l.b16 %v3598
        %v3638 = vunpack.c.l.b16 %v3599
        %v3639 = vunpack.c.l.b16 %v3600
        %v3640 = vunpack.c.l.b16 %v3601
        %v3641 = vpack.c.b16 %v3631, %v3630
        %v3642 = vpack.c.b16 %v3633, %v3632
        %v3643 = vpack.c.b16 %v3635, %v3634
        %v3644 = vpack.c.b16 %v3637, %v3636
        %v3645 = vpack.c.b16 %v3639, %v3638
        %v3646 = vpack.c.b16 %v3640, %v3640
        %v3647 = vrot.slane %v3641, 2
        %v3648 = vrot.slane %v3642, 2
        %v3649 = vsel %vm1484, %v3647, %v3648
        %v3650 = vrot.slane %v3643, 2
        %v3651 = vsel %vm1484, %v3648, %v3650
        %v3652 = vrot.slane %v3644, 2
        %v3653 = vsel %vm1484, %v3650, %v3652
        %v3654 = vrot.slane %v3645, 2
        %v3655 = vsel %vm1484, %v3652, %v3654
        %v3656 = vrot.slane %v3646, 2
        %v3657 = vsel %vm1484, %v3654, %v3656
        %v3679 = vunpack.c.l.b16 %v3603
        %v3680 = vunpack.c.l.b16 %v3604
        %v3681 = vunpack.c.l.b16 %v3605
        %v3682 = vunpack.c.l.b16 %v3606
        %v3683 = vunpack.c.l.b16 %v3607
        %v3684 = vunpack.c.l.b16 %v3608
        %v3685 = vunpack.c.l.b16 %v3609
        %v3686 = vunpack.c.l.b16 %v3610
        %v3687 = vunpack.c.l.b16 %v3611
        %v3688 = vunpack.c.l.b16 %v3612
        %v3689 = vunpack.c.l.b16 %v3613
        %v3690 = vunpack.c.l.b16 %v3614
        %v3691 = vunpack.c.l.b16 %v3615
        %v3692 = vunpack.c.l.b16 %v3616
        %v3693 = vunpack.c.l.b16 %v3617
        %v3694 = vunpack.c.l.b16 %v3618
        %v3695 = vpack.c.b16 %v3680, %v3679
        %v3696 = vpack.c.b16 %v3682, %v3681
        %v3697 = vpack.c.b16 %v3684, %v3683
        %v3698 = vpack.c.b16 %v3686, %v3685
        %v3699 = vpack.c.b16 %v3688, %v3687
        %v3700 = vpack.c.b16 %v3690, %v3689
        %v3701 = vpack.c.b16 %v3692, %v3691
        %v3702 = vpack.c.b16 %v3694, %v3693
        %3711 = vmatprep.subr.bf16.mxu0 0
        %3712 = vmatpush1.bf16.msra.mxu0 %v3695
        %3713 = vmatprep.subr.bf16.mxu0 0
        %3714 = vmatpush1.bf16.msra.mxu0 %v3696
        %3715 = vmatprep.subr.bf16.mxu0 0
        %3716 = vmatpush1.bf16.msra.mxu0 %v3697
        %3717 = vmatprep.subr.bf16.mxu0 0
        %3718 = vmatpush1.bf16.msra.mxu0 %v3698
        %3719 = vmatprep.subr.bf16.mxu0 0
        %3720 = vmatpush1.bf16.msra.mxu0 %v3699
        %3721 = vmatprep.subr.bf16.mxu0 0
        %3722 = vmatpush1.bf16.msra.mxu0 %v3700
        %3723 = vmatprep.subr.bf16.mxu0 0
        %3724 = vmatpush1.bf16.msra.mxu0 %v3701
        %3725 = vmatprep.subr.bf16.mxu0 0
        %3726 = vmatpush1.bf16.msra.mxu0 %v3702
        %3727 = vmatprep.subr.bf16.mxu0 0
        %3728 = vmatpush1.bf16.msra.mxu0 0
        %3729 = vmatprep.subr.bf16.mxu0 0
        %3730 = vmatpush1.bf16.msra.mxu0 0
        %3731 = vmatprep.subr.bf16.mxu0 0
        %3732 = vmatpush1.bf16.msra.mxu0 0
        %3733 = vmatprep.subr.bf16.mxu0 0
        %3734 = vmatpush1.bf16.msra.mxu0 0
        %3735 = vmatprep.subr.bf16.mxu0 0
        %3736 = vmatpush1.bf16.msra.mxu0 0
        %3737 = vmatprep.subr.bf16.mxu0 0
        %3738 = vmatpush1.bf16.msra.mxu0 0
        %3739 = vmatprep.subr.bf16.mxu0 0
        %3740 = vmatpush1.bf16.msra.mxu0 0
        %3741 = vmatprep.subr.bf16.mxu0 0
        %3742 = vmatpush1.bf16.msra.mxu0 0
        %3743 = vmatprep.mubr.bf16.mxu0 0
        %3744 = vmatmul.mubr.bf16.gmra.mrb[0].mxu0 %v3649
        %v3745 = vpop.f32.mrb[0].mxu0
        %v3746 = vadd.f32 0.0, %v3745
        %v3747 = vpop.f32.mrb[0].mxu0
        %v3748 = vpop.f32.mrb[0].mxu0
        %v3749 = vadd.f32 0.0, %v3748
        %v3750 = vpop.f32.mrb[0].mxu0
        %3751 = vmatprep.mubr.bf16.mxu0 0
        %3752 = vmatmul.mubr.bf16.gmra.mrb[0].mxu0 %v3651
        %v3753 = vpop.f32.mrb[0].mxu0
        %v3754 = vadd.f32 0.0, %v3753
        %v3755 = vpop.f32.mrb[0].mxu0
        %v3756 = vpop.f32.mrb[0].mxu0
        %v3757 = vadd.f32 0.0, %v3756
        %v3758 = vpop.f32.mrb[0].mxu0
        %3759 = vmatprep.mubr.bf16.mxu0 0
        %3760 = vmatmul.mubr.bf16.gmra.mrb[0].mxu0 %v3653
        %v3761 = vpop.f32.mrb[0].mxu0
        %v3762 = vadd.f32 0.0, %v3761
        %v3763 = vpop.f32.mrb[0].mxu0
        %v3764 = vpop.f32.mrb[0].mxu0
        %v3765 = vadd.f32 0.0, %v3764
        %v3766 = vpop.f32.mrb[0].mxu0
        %3767 = vmatprep.mubr.bf16.mxu0 0
        %3768 = vmatmul.mubr.bf16.gmra.mrb[0].mxu0 %v3655
        %v3769 = vpop.f32.mrb[0].mxu0
        %v3770 = vadd.f32 0.0, %v3769
        %v3771 = vpop.f32.mrb[0].mxu0
        %v3772 = vpop.f32.mrb[0].mxu0
        %v3773 = vadd.f32 0.0, %v3772
        %v3774 = vpop.f32.mrb[0].mxu0
        %3775 = vmatprep.mubr.bf16.mxu0 0
        %3776 = vmatmul.mubr.bf16.gmra.mrb[0].mxu0 %v3657
        %v3777 = vpop.f32.mrb[0].mxu0
        %v3778 = vadd.f32 0.0, %v3777
        %v3779 = vpop.f32.mrb[0].mxu0
        %v3780 = vpop.f32.mrb[0].mxu0
        %v3781 = vadd.f32 0.0, %v3780
        %v3782 = vpop.f32.mrb[0].mxu0
        %3783 = vdwg.mxu0
        %v3784 = vadd.f32 %v3581, %v3746
        %v3785 = vadd.f32 %v3582, %v3749
        %v3786 = vadd.f32 %v3583, %v3754
        %v3787 = vadd.f32 %v3584, %v3757
        %v3788 = vadd.f32 %v3585, %v3762
        %v3789 = vadd.f32 %v3586, %v3765
        %v3790 = vadd.f32 %v3587, %v3770
        %v3791 = vadd.f32 %v3588, %v3773
        %v3792 = vadd.f32 %v3589, %v3778
        %v3793 = vadd.f32 %v3590, %v3781
        %v3794 = vld [vmem:[#allocation2 + $0x30] sm:$0x7]
        %s3795 = scalar_lea.vmem [#allocation6], 448
        %v3796 = vld [vmem:[%s3795] sm:$0xf]
        %v3797 = vld [vmem:[%s3795 + $0x4] sm:$0xf]
        %v3798 = vld [vmem:[%s3795 + $0x8] sm:$0xf]
        %v3799 = vld [vmem:[%s3795 + $0xc] sm:$0xf]
        %v3800 = vld [vmem:[%s3795 + $0x10] sm:$0xf]
        %v3801 = vld [vmem:[%s3795 + $0x14] sm:$0xf]
        %v3802 = vld [vmem:[%s3795 + $0x18] sm:$0xf]
        %v3803 = vld [vmem:[%s3795 + $0x1c] sm:$0xf]
        %v3804 = vld [vmem:[%s3795 + $0x20] sm:$0xf]
        %v3805 = vld [vmem:[%s3795 + $0x24] sm:$0xf]
        %v3806 = vld [vmem:[%s3795 + $0x28] sm:$0xf]
        %v3807 = vld [vmem:[%s3795 + $0x2c] sm:$0xf]
        %v3808 = vld [vmem:[%s3795 + $0x30] sm:$0xf]
        %v3809 = vld [vmem:[%s3795 + $0x34] sm:$0xf]
        %v3810 = vld [vmem:[%s3795 + $0x38] sm:$0xf]
        %v3811 = vld [vmem:[%s3795 + $0x3c] sm:$0xf]
        %v3813 = vunpack.c.l.b16 %v3794
        %v3814 = vpack.c.b16 %v3813, %v3813
        %v3816 = vshrl.u32 %v3641, 16
        %v3818 = vrot.slane %v3816, 2
        %v3819 = vshll.u32 %v3641, 16
        %v3821 = vrot.slane %v3819, 3
        %v3822 = vor.u32 %v3818, %v3821
        %v3824 = vshrl.u32 %v3642, 16
        %v3826 = vrot.slane %v3824, 2
        %v3827 = vshll.u32 %v3642, 16
        %v3829 = vrot.slane %v3827, 3
        %v3830 = vor.u32 %v3826, %v3829
        %v3831 = vsel %vm1856, %v3822, %v3830
        %v3833 = vshrl.u32 %v3643, 16
        %v3835 = vrot.slane %v3833, 2
        %v3836 = vshll.u32 %v3643, 16
        %v3838 = vrot.slane %v3836, 3
        %v3839 = vor.u32 %v3835, %v3838
        %v3840 = vsel %vm1856, %v3830, %v3839
        %v3842 = vshrl.u32 %v3644, 16
        %v3844 = vrot.slane %v3842, 2
        %v3845 = vshll.u32 %v3644, 16
        %v3847 = vrot.slane %v3845, 3
        %v3848 = vor.u32 %v3844, %v3847
        %v3849 = vsel %vm1856, %v3839, %v3848
        %v3851 = vshrl.u32 %v3645, 16
        %v3853 = vrot.slane %v3851, 2
        %v3854 = vshll.u32 %v3645, 16
        %v3856 = vrot.slane %v3854, 3
        %v3857 = vor.u32 %v3853, %v3856
        %v3858 = vsel %vm1856, %v3848, %v3857
        %v3860 = vshrl.u32 %v3814, 16
        %v3862 = vrot.slane %v3860, 2
        %v3863 = vshll.u32 %v3814, 16
        %v3865 = vrot.slane %v3863, 3
        %v3866 = vor.u32 %v3862, %v3865
        %v3867 = vsel %vm1856, %v3857, %v3866
        %v3889 = vunpack.c.l.b16 %v3796
        %v3890 = vunpack.c.l.b16 %v3797
        %v3891 = vunpack.c.l.b16 %v3798
        %v3892 = vunpack.c.l.b16 %v3799
        %v3893 = vunpack.c.l.b16 %v3800
        %v3894 = vunpack.c.l.b16 %v3801
        %v3895 = vunpack.c.l.b16 %v3802
        %v3896 = vunpack.c.l.b16 %v3803
        %v3897 = vunpack.c.l.b16 %v3804
        %v3898 = vunpack.c.l.b16 %v3805
        %v3899 = vunpack.c.l.b16 %v3806
        %v3900 = vunpack.c.l.b16 %v3807
        %v3901 = vunpack.c.l.b16 %v3808
        %v3902 = vunpack.c.l.b16 %v3809
        %v3903 = vunpack.c.l.b16 %v3810
        %v3904 = vunpack.c.l.b16 %v3811
        %v3905 = vpack.c.b16 %v3890, %v3889
        %v3906 = vpack.c.b16 %v3892, %v3891
        %v3907 = vpack.c.b16 %v3894, %v3893
        %v3908 = vpack.c.b16 %v3896, %v3895
        %v3909 = vpack.c.b16 %v3898, %v3897
        %v3910 = vpack.c.b16 %v3900, %v3899
        %v3911 = vpack.c.b16 %v3902, %v3901
        %v3912 = vpack.c.b16 %v3904, %v3903
        %3921 = vmatprep.subr.bf16.mxu0 0
        %3922 = vmatpush1.bf16.msra.mxu0 %v3905
        %3923 = vmatprep.subr.bf16.mxu0 0
        %3924 = vmatpush1.bf16.msra.mxu0 %v3906
        %3925 = vmatprep.subr.bf16.mxu0 0
        %3926 = vmatpush1.bf16.msra.mxu0 %v3907
        %3927 = vmatprep.subr.bf16.mxu0 0
        %3928 = vmatpush1.bf16.msra.mxu0 %v3908
        %3929 = vmatprep.subr.bf16.mxu0 0
        %3930 = vmatpush1.bf16.msra.mxu0 %v3909
        %3931 = vmatprep.subr.bf16.mxu0 0
        %3932 = vmatpush1.bf16.msra.mxu0 %v3910
        %3933 = vmatprep.subr.bf16.mxu0 0
        %3934 = vmatpush1.bf16.msra.mxu0 %v3911
        %3935 = vmatprep.subr.bf16.mxu0 0
        %3936 = vmatpush1.bf16.msra.mxu0 %v3912
        %3937 = vmatprep.subr.bf16.mxu0 0
        %3938 = vmatpush1.bf16.msra.mxu0 0
        %3939 = vmatprep.subr.bf16.mxu0 0
        %3940 = vmatpush1.bf16.msra.mxu0 0
        %3941 = vmatprep.subr.bf16.mxu0 0
        %3942 = vmatpush1.bf16.msra.mxu0 0
        %3943 = vmatprep.subr.bf16.mxu0 0
        %3944 = vmatpush1.bf16.msra.mxu0 0
        %3945 = vmatprep.subr.bf16.mxu0 0
        %3946 = vmatpush1.bf16.msra.mxu0 0
        %3947 = vmatprep.subr.bf16.mxu0 0
        %3948 = vmatpush1.bf16.msra.mxu0 0
        %3949 = vmatprep.subr.bf16.mxu0 0
        %3950 = vmatpush1.bf16.msra.mxu0 0
        %3951 = vmatprep.subr.bf16.mxu0 0
        %3952 = vmatpush1.bf16.msra.mxu0 0
        %3953 = vmatprep.mubr.bf16.mxu0 0
        %3954 = vmatmul.mubr.bf16.gmra.mrb[0].mxu0 %v3831
        %v3955 = vpop.f32.mrb[0].mxu0
        %v3956 = vadd.f32 0.0, %v3955
        %v3957 = vpop.f32.mrb[0].mxu0
        %v3958 = vpop.f32.mrb[0].mxu0
        %v3959 = vadd.f32 0.0, %v3958
        %v3960 = vpop.f32.mrb[0].mxu0
        %3961 = vmatprep.mubr.bf16.mxu0 0
        %3962 = vmatmul.mubr.bf16.gmra.mrb[0].mxu0 %v3840
        %v3963 = vpop.f32.mrb[0].mxu0
        %v3964 = vadd.f32 0.0, %v3963
        %v3965 = vpop.f32.mrb[0].mxu0
        %v3966 = vpop.f32.mrb[0].mxu0
        %v3967 = vadd.f32 0.0, %v3966
        %v3968 = vpop.f32.mrb[0].mxu0
        %3969 = vmatprep.mubr.bf16.mxu0 0
        %3970 = vmatmul.mubr.bf16.gmra.mrb[0].mxu0 %v3849
        %v3971 = vpop.f32.mrb[0].mxu0
        %v3972 = vadd.f32 0.0, %v3971
        %v3973 = vpop.f32.mrb[0].mxu0
        %v3974 = vpop.f32.mrb[0].mxu0
        %v3975 = vadd.f32 0.0, %v3974
        %v3976 = vpop.f32.mrb[0].mxu0
        %3977 = vmatprep.mubr.bf16.mxu0 0
        %3978 = vmatmul.mubr.bf16.gmra.mrb[0].mxu0 %v3858
        %v3979 = vpop.f32.mrb[0].mxu0
        %v3980 = vadd.f32 0.0, %v3979
        %v3981 = vpop.f32.mrb[0].mxu0
        %v3982 = vpop.f32.mrb[0].mxu0
        %v3983 = vadd.f32 0.0, %v3982
        %v3984 = vpop.f32.mrb[0].mxu0
        %3985 = vmatprep.mubr.bf16.mxu0 0
        %3986 = vmatmul.mubr.bf16.gmra.mrb[0].mxu0 %v3867
        %v3987 = vpop.f32.mrb[0].mxu0
        %v3988 = vadd.f32 0.0, %v3987
        %v3989 = vpop.f32.mrb[0].mxu0
        %v3990 = vpop.f32.mrb[0].mxu0
        %v3991 = vadd.f32 0.0, %v3990
        %v3992 = vpop.f32.mrb[0].mxu0
        %3993 = vdwg.mxu0
        %v3994 = vadd.f32 %v3784, %v3956
        %v3995 = vadd.f32 %v3785, %v3959
        %v3996 = vadd.f32 %v3786, %v3964
        %v3997 = vadd.f32 %v3787, %v3967
        %v3998 = vadd.f32 %v3788, %v3972
        %v3999 = vadd.f32 %v3789, %v3975
        %v4000 = vadd.f32 %v3790, %v3980
        %v4001 = vadd.f32 %v3791, %v3983
        %v4002 = vadd.f32 %v3792, %v3988
        %v4003 = vadd.f32 %v3793, %v3991
        %v4004 = vld [vmem:[#allocation2 + $0x8] sm:$0x8]
        %s4005 = scalar_lea.vmem [#allocation6], 512
        %v4006 = vld [vmem:[%s4005] sm:$0xf]
        %v4007 = vld [vmem:[%s4005 + $0x4] sm:$0xf]
        %v4008 = vld [vmem:[%s4005 + $0x8] sm:$0xf]
        %v4009 = vld [vmem:[%s4005 + $0xc] sm:$0xf]
        %v4010 = vld [vmem:[%s4005 + $0x10] sm:$0xf]
        %v4011 = vld [vmem:[%s4005 + $0x14] sm:$0xf]
        %v4012 = vld [vmem:[%s4005 + $0x18] sm:$0xf]
        %v4013 = vld [vmem:[%s4005 + $0x1c] sm:$0xf]
        %v4014 = vld [vmem:[%s4005 + $0x20] sm:$0xf]
        %v4015 = vld [vmem:[%s4005 + $0x24] sm:$0xf]
        %v4016 = vld [vmem:[%s4005 + $0x28] sm:$0xf]
        %v4017 = vld [vmem:[%s4005 + $0x2c] sm:$0xf]
        %v4018 = vld [vmem:[%s4005 + $0x30] sm:$0xf]
        %v4019 = vld [vmem:[%s4005 + $0x34] sm:$0xf]
        %v4020 = vld [vmem:[%s4005 + $0x38] sm:$0xf]
        %v4021 = vld [vmem:[%s4005 + $0x3c] sm:$0xf]
        %v4023 = vunpack.c.l.b16 %v4004
        %v4024 = vpack.c.b16 %v3631, %v4023
        %v4025 = vrot.slane %v4024, 3
        %v4026 = vrot.slane %v3642, 3
        %v4027 = vsel %vm2067, %v4025, %v4026
        %v4028 = vrot.slane %v3643, 3
        %v4029 = vsel %vm2067, %v4026, %v4028
        %v4030 = vrot.slane %v3644, 3
        %v4031 = vsel %vm2067, %v4028, %v4030
        %v4032 = vrot.slane %v3645, 3
        %v4033 = vsel %vm2067, %v4030, %v4032
        %v4034 = vrot.slane %v3814, 3
        %v4035 = vsel %vm2067, %v4032, %v4034
        %v4057 = vunpack.c.l.b16 %v4006
        %v4058 = vunpack.c.l.b16 %v4007
        %v4059 = vunpack.c.l.b16 %v4008
        %v4060 = vunpack.c.l.b16 %v4009
        %v4061 = vunpack.c.l.b16 %v4010
        %v4062 = vunpack.c.l.b16 %v4011
        %v4063 = vunpack.c.l.b16 %v4012
        %v4064 = vunpack.c.l.b16 %v4013
        %v4065 = vunpack.c.l.b16 %v4014
        %v4066 = vunpack.c.l.b16 %v4015
        %v4067 = vunpack.c.l.b16 %v4016
        %v4068 = vunpack.c.l.b16 %v4017
        %v4069 = vunpack.c.l.b16 %v4018
        %v4070 = vunpack.c.l.b16 %v4019
        %v4071 = vunpack.c.l.b16 %v4020
        %v4072 = vunpack.c.l.b16 %v4021
        %v4073 = vpack.c.b16 %v4058, %v4057
        %v4074 = vpack.c.b16 %v4060, %v4059
        %v4075 = vpack.c.b16 %v4062, %v4061
        %v4076 = vpack.c.b16 %v4064, %v4063
        %v4077 = vpack.c.b16 %v4066, %v4065
        %v4078 = vpack.c.b16 %v4068, %v4067
        %v4079 = vpack.c.b16 %v4070, %v4069
        %v4080 = vpack.c.b16 %v4072, %v4071
        %4089 = vmatprep.subr.bf16.mxu0 0
        %4090 = vmatpush1.bf16.msra.mxu0 %v4073
        %4091 = vmatprep.subr.bf16.mxu0 0
        %4092 = vmatpush1.bf16.msra.mxu0 %v4074
        %4093 = vmatprep.subr.bf16.mxu0 0
        %4094 = vmatpush1.bf16.msra.mxu0 %v4075
        %4095 = vmatprep.subr.bf16.mxu0 0
        %4096 = vmatpush1.bf16.msra.mxu0 %v4076
        %4097 = vmatprep.subr.bf16.mxu0 0
        %4098 = vmatpush1.bf16.msra.mxu0 %v4077
        %4099 = vmatprep.subr.bf16.mxu0 0
        %4100 = vmatpush1.bf16.msra.mxu0 %v4078
        %4101 = vmatprep.subr.bf16.mxu0 0
        %4102 = vmatpush1.bf16.msra.mxu0 %v4079
        %4103 = vmatprep.subr.bf16.mxu0 0
        %4104 = vmatpush1.bf16.msra.mxu0 %v4080
        %4105 = vmatprep.subr.bf16.mxu0 0
        %4106 = vmatpush1.bf16.msra.mxu0 0
        %4107 = vmatprep.subr.bf16.mxu0 0
        %4108 = vmatpush1.bf16.msra.mxu0 0
        %4109 = vmatprep.subr.bf16.mxu0 0
        %4110 = vmatpush1.bf16.msra.mxu0 0
        %4111 = vmatprep.subr.bf16.mxu0 0
        %4112 = vmatpush1.bf16.msra.mxu0 0
        %4113 = vmatprep.subr.bf16.mxu0 0
        %4114 = vmatpush1.bf16.msra.mxu0 0
        %4115 = vmatprep.subr.bf16.mxu0 0
        %4116 = vmatpush1.bf16.msra.mxu0 0
        %4117 = vmatprep.subr.bf16.mxu0 0
        %4118 = vmatpush1.bf16.msra.mxu0 0
        %4119 = vmatprep.subr.bf16.mxu0 0
        %4120 = vmatpush1.bf16.msra.mxu0 0
        %4121 = vmatprep.mubr.bf16.mxu0 0
        %4122 = vmatmul.mubr.bf16.gmra.mrb[0].mxu0 %v4027
        %v4123 = vpop.f32.mrb[0].mxu0
        %v4124 = vadd.f32 0.0, %v4123
        %v4125 = vpop.f32.mrb[0].mxu0
        %v4126 = vpop.f32.mrb[0].mxu0
        %v4127 = vadd.f32 0.0, %v4126
        %v4128 = vpop.f32.mrb[0].mxu0
        %4129 = vmatprep.mubr.bf16.mxu0 0
        %4130 = vmatmul.mubr.bf16.gmra.mrb[0].mxu0 %v4029
        %v4131 = vpop.f32.mrb[0].mxu0
        %v4132 = vadd.f32 0.0, %v4131
        %v4133 = vpop.f32.mrb[0].mxu0
        %v4134 = vpop.f32.mrb[0].mxu0
        %v4135 = vadd.f32 0.0, %v4134
        %v4136 = vpop.f32.mrb[0].mxu0
        %4137 = vmatprep.mubr.bf16.mxu0 0
        %4138 = vmatmul.mubr.bf16.gmra.mrb[0].mxu0 %v4031
        %v4139 = vpop.f32.mrb[0].mxu0
        %v4140 = vadd.f32 0.0, %v4139
        %v4141 = vpop.f32.mrb[0].mxu0
        %v4142 = vpop.f32.mrb[0].mxu0
        %v4143 = vadd.f32 0.0, %v4142
        %v4144 = vpop.f32.mrb[0].mxu0
        %4145 = vmatprep.mubr.bf16.mxu0 0
        %4146 = vmatmul.mubr.bf16.gmra.mrb[0].mxu0 %v4033
        %v4147 = vpop.f32.mrb[0].mxu0
        %v4148 = vadd.f32 0.0, %v4147
        %v4149 = vpop.f32.mrb[0].mxu0
        %v4150 = vpop.f32.mrb[0].mxu0
        %v4151 = vadd.f32 0.0, %v4150
        %v4152 = vpop.f32.mrb[0].mxu0
        %4153 = vmatprep.mubr.bf16.mxu0 0
        %4154 = vmatmul.mubr.bf16.gmra.mrb[0].mxu0 %v4035
        %v4155 = vpop.f32.mrb[0].mxu0
        %v4156 = vadd.f32 0.0, %v4155
        %v4157 = vpop.f32.mrb[0].mxu0
        %v4158 = vpop.f32.mrb[0].mxu0
        %v4159 = vadd.f32 0.0, %v4158
        %v4160 = vpop.f32.mrb[0].mxu0
        %4161 = vdwg.mxu0
        %v4162 = vadd.f32 %v3994, %v4124
        %v4163 = vadd.f32 %v3995, %v4127
        %v4164 = vadd.f32 %v3996, %v4132
        %v4165 = vadd.f32 %v3997, %v4135
        %v4166 = vadd.f32 %v3998, %v4140
        %v4167 = vadd.f32 %v3999, %v4143
        %v4168 = vadd.f32 %v4000, %v4148
        %v4169 = vadd.f32 %v4001, %v4151
        %v4170 = vadd.f32 %v4002, %v4156
        %v4171 = vadd.f32 %v4003, %v4159
        %v4172 = vld [vmem:[%s252 + $0x4] sm:$0xe]
        %v4173 = vld [vmem:[%s252 + $0x8] sm:$0xf]
        %v4174 = vld [vmem:[%s252 + $0xc] sm:$0xf]
        %v4175 = vld [vmem:[%s252 + $0x10] sm:$0xf]
        %v4176 = vld [vmem:[%s252 + $0x14] sm:$0xf]
        %v4177 = vld [vmem:[%s252 + $0x18] sm:$0xf]
        %v4178 = vld [vmem:[%s252 + $0x1c] sm:$0xf]
        %v4179 = vld [vmem:[%s252 + $0x20] sm:$0xf]
        %v4180 = vld [vmem:[%s252 + $0x24] sm:$0xf]
        %v4181 = vld [vmem:[%s252 + $0x28] sm:$0xf]
        %v4182 = vld [vmem:[%s252 + $0x2c] sm:$0x3]
        %v4183 = vunpack.c.l.bf16 %v4172
        %v4184 = vunpack.c.l.bf16 %v4173
        %v4185 = vunpack.c.l.bf16 %v4174
        %v4186 = vunpack.c.l.bf16 %v4175
        %v4187 = vunpack.c.l.bf16 %v4176
        %v4188 = vunpack.c.l.bf16 %v4177
        %v4189 = vunpack.c.l.bf16 %v4178
        %v4190 = vunpack.c.l.bf16 %v4179
        %v4191 = vunpack.c.l.bf16 %v4180
        %v4192 = vunpack.c.l.bf16 %v4181
        %v4193 = vunpack.c.l.bf16 %v4182
        %vm4205 = vcmask 1044480
        %v4206 = vrot.slane %v4183, 3
        %v4207 = vrot.slane %v4184, 3
        %v4208 = vsel %vm4205, %v4206, %v4207
        %v4209 = vrot.slane %v4185, 3
        %v4210 = vsel %vm4205, %v4207, %v4209
        %v4211 = vrot.slane %v4186, 3
        %v4212 = vsel %vm4205, %v4209, %v4211
        %v4213 = vrot.slane %v4187, 3
        %v4214 = vsel %vm4205, %v4211, %v4213
        %v4215 = vrot.slane %v4188, 3
        %v4216 = vsel %vm4205, %v4213, %v4215
        %v4217 = vrot.slane %v4189, 3
        %v4218 = vsel %vm4205, %v4215, %v4217
        %v4219 = vrot.slane %v4190, 3
        %v4220 = vsel %vm4205, %v4217, %v4219
        %v4221 = vrot.slane %v4191, 3
        %v4222 = vsel %vm4205, %v4219, %v4221
        %v4223 = vrot.slane %v4192, 3
        %v4224 = vsel %vm4205, %v4221, %v4223
        %v4225 = vrot.slane %v4193, 3
        %v4226 = vsel %vm4205, %v4223, %v4225
        %v4237 = vadd.f32 %v4162, %v4208
        %v4238 = vadd.f32 %v4163, %v4210
        %v4239 = vadd.f32 %v4164, %v4212
        %v4240 = vadd.f32 %v4165, %v4214
        %v4241 = vadd.f32 %v4166, %v4216
        %v4242 = vadd.f32 %v4167, %v4218
        %v4243 = vadd.f32 %v4168, %v4220
        %v4244 = vadd.f32 %v4169, %v4222
        %v4245 = vadd.f32 %v4170, %v4224
        %v4246 = vadd.f32 %v4171, %v4226
        %v4247 = vmax.f32 %v4237, 0.0
        %v4248 = vmax.f32 %v4238, 0.0
        %v4249 = vmax.f32 %v4239, 0.0
        %v4250 = vmax.f32 %v4240, 0.0
        %v4251 = vmax.f32 %v4241, 0.0
        %v4252 = vmax.f32 %v4242, 0.0
        %v4253 = vmax.f32 %v4243, 0.0
        %v4254 = vmax.f32 %v4244, 0.0
        %v4255 = vmax.f32 %v4245, 0.0
        %v4256 = vmax.f32 %v4246, 0.0
        %4257 = vst [vmem:[%s247] sm:$0xff] %v4247
        %4258 = vst [vmem:[%s247 + $0x8] sm:$0xff] %v4248
        %4259 = vst [vmem:[%s247 + $0x10] sm:$0xff] %v4249
        %4260 = vst [vmem:[%s247 + $0x18] sm:$0xff] %v4250
        %4261 = vst [vmem:[%s247 + $0x20] sm:$0xff] %v4251
        %4262 = vst [vmem:[%s247 + $0x28] sm:$0xff] %v4252
        %4263 = vst [vmem:[%s247 + $0x30] sm:$0xff] %v4253
        %4264 = vst [vmem:[%s247 + $0x38] sm:$0xff] %v4254
        %4265 = vst [vmem:[%s247 + $0x40] sm:$0xff] %v4255
        %4266 = vst [vmem:[%s247 + $0x48] sm:$0xff] %v4256
        %s4267 = sand.u32 %s139, 1
        %s4268 = scalar_lea.sflag [#allocation5], %s4267
        %s4269 = sand.u32 %s139, 1
        %s4270 = smul.addr %s4269, 80
        %s4271 = scalar_lea.vmem [#allocation8], %s4270
        // Predicated region
        $region49: #{tpu_custom_call.1} parent=39 // pred_check
          %p4272 = pneg %p149
        $region50: #{tpu_custom_call.1} parent=39 // pred_check_branch
          %4274 = sbr.rel (%p4272) target = $region52
        $region51: #{tpu_custom_call.1} parent=39 // pred_region
          %s4276 = ssub.s32 1280, 1280
          %4277 = vsyncadd %s4268, %s4276
          %s4278 = smul.addr %s21, 10
          %s4279 = smul.addr %s4278, 128
          %s4280 = scalar_lea.hbm %s5, %s4279
          %s4281 = sshll.u32 %s4271, 4
          %s4282 = int_to_ptr.vmem [resolvable:$true] %s4281
          %4287 = dma.vmem_to_hbm [thread:$0]  %s4282, 1280, %s4280, %s4268, 128, 128, 8
        $region52: #{tpu_custom_call.1} parent=39 // pred_fallthru
          _
      $region40: #{tpu_custom_call.1} parent=5 // pred_fallthru
        _
      %p4288 = scmp.le.s32.totalorder 2, %s16
      // Predicated region
      $region53: #{tpu_custom_call.1} parent=5 // pred_check
        %p4289 = pneg %p4288
      $region54: #{tpu_custom_call.1} parent=5 // pred_check_branch
        %4291 = sbr.rel (%p4289) target = $region56
      $region55: #{tpu_custom_call.1} parent=5 // pred_region
        %s4292 = ssub.s32 %s16, 2
        // Predicated region
        $region57: #{tpu_custom_call.1} parent=55 // pred_check
          %p4293 = pneg %p155
        $region58: #{tpu_custom_call.1} parent=55 // pred_check_branch
          %4295 = sbr.rel (%p4293) target = $region60
        $region59: #{tpu_custom_call.1} parent=55 // pred_region
          %s4296 = sand.u32 %s140, 1
          %s4297 = scalar_lea.sflag [#allocation5], %s4296
          %s4298 = sand.u32 %s140, 1
          %s4299 = smul.addr %s4298, 80
          %s4300 = scalar_lea.vmem [#allocation8], %s4299
          %4301 = dma.done %s4297, 1280
        $region60: #{tpu_custom_call.1} parent=55 // pred_fallthru
          _
      $region56: #{tpu_custom_call.1} parent=5 // pred_fallthru
        _
    $region6: #{tpu_custom_call.1} parent=1 // loop_footer
      %s20 = sadd.s32 1, %s16
    $region7: #{tpu_custom_call.1} parent=1 // loop_footer_branch
      %15 = sbr.rel target = $region3
    $region8: #{tpu_custom_call.1} parent=1 // loop_exit
      _
    %4302 = vsyncpa [#allocation4], 1
    %s4303 = scalar_lea.sflag [#allocation4], 1
    %4304 = vsyncpa %s4303, 1
    %4305 = vsyncpa [#allocation7], 1
    %4306 = vsyncpa [#allocation5], 1
    %s4307 = scalar_lea.sflag [#allocation5], 1
    %4308 = vsyncpa %s4307, 1

</llo_original>
